<compile_context>
chip_gen: v7x
topology: tpu7x:2x2x1
jax: 0.10.0
libtpu: 0.0.40
codegen_flags: <defaults>
</compile_context>

<pallas_src>
import functools

import jax
import jax.numpy as jnp
from jax.experimental import pallas as pl
from jax.experimental.pallas import tpu as pltpu


# Flip to jnp.bfloat16 on v6e/v7x for full-rate MXU (then loosen the correctness check).
_MATMUL_DTYPE = jnp.float32


# ---------------------------------------------------------------------------
# Pallas kernels
# ---------------------------------------------------------------------------

def _conv_gn_relu_pool_kernel(p00_ref, p01_ref, p10_ref, p11_ref, w_ref, b_ref,
                              gamma_ref, beta_ref, gmat_ref, smt_ref, sm_ref,
                              o_ref, *, inv_n, eps):
    """Fused conv (im2col matmul) + bias + GroupNorm + ReLU + 2x2 max-pool.

    One grid step processes NS samples.  The four p??_refs hold the im2col patches of the
    four 2x2 pool quadrants, each (NS*Sq, K) with rows in (sample, pooled_h, pooled_w)
    order, so the pooled output row r is the max over the four quadrants at row r.

    p??_ref:   (NS*Sq, K)   quadrant patches
    w_ref:     (K, C)       conv weight in (kh, kw, cin) x cout layout
    b_ref:     (1, C)       conv bias
    gamma_ref: (1, C)       GroupNorm affine weight
    beta_ref:  (1, C)       GroupNorm affine bias
    gmat_ref:  (C, C)       0/1 same-group indicator (group aggregate + broadcast)
    smt_ref:   (NS, NS*Sq)  0/1 sample indicator, transposed (per-sample sums)
    sm_ref:    (NS*Sq, NS)  0/1 sample indicator (broadcast per-sample stats to rows)
    o_ref:     (NS*Sq, C)   pooled output
    """
    w = w_ref[...].astype(_MATMUL_DTYPE)
    bias = b_ref[...]

    def conv(p_ref):
        return jnp.dot(p_ref[...].astype(_MATMUL_DTYPE), w,
                       preferred_element_type=jnp.float32) + bias

    y00, y01, y10, y11 = conv(p00_ref), conv(p01_ref), conv(p10_ref), conv(p11_ref)

    # GroupNorm statistics over ALL conv-output positions (pre-ReLU, pre-pool):
    # per-sample/channel sums via the indicator matmul, then per-group aggregation and
    # per-channel broadcast via the tiny gmat matmul (stats kept in f32).
    smt = smt_ref[...]
    s1 = jnp.dot(smt, y00 + y01 + y10 + y11, preferred_element_type=jnp.float32)
    s2 = jnp.dot(smt, y00 * y00 + y01 * y01 + y10 * y10 + y11 * y11,
                 preferred_element_type=jnp.float32)
    s1 = jnp.dot(s1, gmat_ref[...], preferred_element_type=jnp.float32)
    s2 = jnp.dot(s2, gmat_ref[...], preferred_element_type=jnp.float32)
    mean = s1 * inv_n                                    # (NS, C)
    var = s2 * inv_n - mean * mean
    scale = jax.lax.rsqrt(var + eps) * gamma_ref[...]    # (NS, C)
    shift = beta_ref[...] - mean * scale

    # Broadcast per-sample scale/shift back to rows, normalize, max-pool, ReLU.
    sm = sm_ref[...]
    scale_r = jnp.dot(sm, scale, preferred_element_type=jnp.float32)   # (NS*Sq, C)
    shift_r = jnp.dot(sm, shift, preferred_element_type=jnp.float32)
    z = jnp.maximum(jnp.maximum(y00 * scale_r + shift_r, y01 * scale_r + shift_r),
                    jnp.maximum(y10 * scale_r + shift_r, y11 * scale_r + shift_r))
    o_ref[...] = jnp.maximum(z, 0.0).astype(o_ref.dtype)


def _mlp_head_kernel(x_ref, w1_ref, b1_ref, w2_ref, b2_ref, o_ref):
    """Fused fc1 + ReLU + fc for one batch tile; class dim pre-padded to 128 lanes."""
    h = jnp.dot(x_ref[...].astype(_MATMUL_DTYPE), w1_ref[...].astype(_MATMUL_DTYPE),
                preferred_element_type=jnp.float32) + b1_ref[...]
    h = jnp.maximum(h, 0.0)
    o_ref[...] = (jnp.dot(h.astype(_MATMUL_DTYPE), w2_ref[...].astype(_MATMUL_DTYPE),
                          preferred_element_type=jnp.float32)
                  + b2_ref[...]).astype(o_ref.dtype)


# ---------------------------------------------------------------------------
# pallas_call wrappers
# ---------------------------------------------------------------------------

def _vmem_limit_bytes(per_step_bytes):
    """Raise the scoped-VMEM cap only when the (double-buffered) working set needs it;
    cap below v7x's 64 MiB physical VMEM so one schedule fits v5e/v6e/v7x."""
    need = 2 * per_step_bytes + (4 << 20)
    if need <= (24 << 20):
        return None
    return int(min(need, 48 << 20))


def _conv_gn_relu_pool(quads, w, bias, gamma, beta, gmat, *, batch, ns, sq,
                       group_size, eps=1e-5):
    """quads: 4 arrays (batch*Sq, K) -> pooled activation (batch*Sq, C), NHWC row order."""
    k = quads[0].shape[1]
    c = w.shape[1]
    rows = ns * sq
    assert batch % ns == 0 and rows % 8 == 0, (
        "samples_per_step * pooled spatial size must be a multiple of 8")
    steps = batch // ns

    # 0/1 sample indicator (same for every grid step -> VMEM resident).
    sid = jnp.repeat(jnp.arange(ns, dtype=jnp.int32), sq)
    sm = (sid[:, None] == jnp.arange(ns, dtype=jnp.int32)[None, :]).astype(jnp.float32)
    smt = sm.T

    inv_n = 1.0 / float(4 * sq * group_size)
    kern = functools.partial(_conv_gn_relu_pool_kernel, inv_n=inv_n, eps=eps)

    s_total = 4 * sq                               # conv-output positions per sample
    flops = (2 * batch * s_total * k * c           # conv matmuls
             + 12 * batch * s_total * c            # GN epilogue + pool
             + 8 * batch * sq * ns * c)            # indicator matmuls
    bytes_acc = 4 * (batch * s_total * k + batch * sq * c
                     + k * c + c * c + 4 * c + 2 * ns * rows)
    per_step_bytes = 4 * (4 * rows * k + rows * c + k * c + c * c + 4 * c + 2 * ns * rows)

    patch_spec = pl.BlockSpec((rows, k), lambda i: (i, 0))

    def const(shape):
        return pl.BlockSpec(shape, lambda i: (0, 0))

    return pl.pallas_call(
        kern,
        out_shape=jax.ShapeDtypeStruct((batch * sq, c), jnp.float32),
        grid=(steps,),
        in_specs=[patch_spec, patch_spec, patch_spec, patch_spec,
                  const((k, c)), const((1, c)), const((1, c)), const((1, c)),
                  const((c, c)), const((ns, rows)), const((rows, ns))],
        out_specs=pl.BlockSpec((rows, c), lambda i: (i, 0)),
        compiler_params=pltpu.CompilerParams(
            dimension_semantics=("parallel",),
            vmem_limit_bytes=_vmem_limit_bytes(per_step_bytes)),
        cost_estimate=pl.CostEstimate(flops=int(flops),
                                      transcendentals=int(batch * c),
                                      bytes_accessed=int(bytes_acc)),
    )(*quads, w, bias, gamma, beta, gmat, smt, sm)


def _mlp_head(x, w1, b1, w2, b2, *, row_tile):
    """x: (Bp, D) -> (Bp, Cpad) with Cpad a multiple of 128 (lane-dense stores)."""
    bp, d = x.shape
    h = w1.shape[1]
    cp = w2.shape[1]
    assert bp % row_tile == 0

    flops = 2 * bp * (d * h + h * cp)
    bytes_acc = 4 * (bp * d + d * h + h + h * cp + cp + bp * cp)
    per_step_bytes = 4 * (row_tile * d + d * h + h + h * cp + cp + row_tile * cp)

    return pl.pallas_call(
        _mlp_head_kernel,
        out_shape=jax.ShapeDtypeStruct((bp, cp), jnp.float32),
        grid=(bp // row_tile,),
        in_specs=[
            pl.BlockSpec((row_tile, d), lambda i: (i, 0)),
            pl.BlockSpec((d, h), lambda i: (0, 0)),     # fc1 weight stays VMEM-resident
            pl.BlockSpec((1, h), lambda i: (0, 0)),
            pl.BlockSpec((h, cp), lambda i: (0, 0)),
            pl.BlockSpec((1, cp), lambda i: (0, 0)),
        ],
        out_specs=pl.BlockSpec((row_tile, cp), lambda i: (i, 0)),
        compiler_params=pltpu.CompilerParams(
            dimension_semantics=("parallel",),
            vmem_limit_bytes=_vmem_limit_bytes(per_step_bytes)),
        cost_estimate=pl.CostEstimate(flops=int(flops), transcendentals=0,
                                      bytes_accessed=int(bytes_acc)),
    )(x, w1, b1, w2, b2)


# ---------------------------------------------------------------------------
# Wrapper-side data movement (layout plumbing left to XLA)
# ---------------------------------------------------------------------------

def _quadrant_patches(x_nhwc, k):
    """im2col patches split into the four 2x2 max-pool quadrants.

    Returns ([p00, p01, p10, p11], Sq); each p is (B*Sq, k*k*Cin) with rows in
    (sample, pooled_h, pooled_w) order and columns in (kh, kw, cin) order.
    """
    # TODO(synk): patch extraction is pure data movement and stays in XLA; an in-kernel
    # shifted-matmul conv would remove the im2col HBM blowup entirely.
    b, h, w, cin = x_nhwc.shape
    ho, wo = h - k + 1, w - k + 1
    cols = []
    for ki in range(k):
        for kj in range(k):
            cols.append(x_nhwc[:, ki:ki + ho, kj:kj + wo, :])
    p = jnp.concatenate(cols, axis=-1)                    # (B, ho, wo, k*k*Cin)
    hp, wp = ho // 2, wo // 2
    p = p[:, :2 * hp, :2 * wp, :]                         # floor, like MaxPool2d(2)
    quads = [p[:, a::2, c::2, :].reshape(b * hp * wp, k * k * cin)
             for a in (0, 1) for c in (0, 1)]
    return quads, hp * wp


def _pick_samples_per_step(batch, sqs, target):
    """Largest divisor of batch <= target keeping every ns*Sq a multiple of 8."""
    best = 1
    for d in range(1, min(target, batch) + 1):
        if batch % d == 0 and all((d * s) % 8 == 0 for s in sqs):
            best = d
    return best


def _pick_row_tile(n, candidates=(256, 128, 64, 32, 16, 8)):
    for cand in candidates:
        if n % cand == 0:
            return cand
    return n


# ---------------------------------------------------------------------------
# Full forward pass
# ---------------------------------------------------------------------------

@functools.partial(jax.jit, static_argnames=("num_classes", "samples_per_step"))
def fedavg_cnn_forward(x_nchw, kp, num_classes=10, samples_per_step=8):
    x = jnp.transpose(x_nchw.astype(jnp.float32), (0, 2, 3, 1))   # NHWC
    b, hh, ww, _ = x.shape
    hp1, wp1 = (hh - 4) // 2, (ww - 4) // 2
    hp2, wp2 = (hp1 - 4) // 2, (wp1 - 4) // 2
    ns = _pick_samples_per_step(b, (hp1 * wp1, hp2 * wp2), samples_per_step)

    # conv1 block: Conv2d(Cin,32,5)+GroupNorm(8,32)+ReLU+MaxPool(2) in one fused kernel.
    q1, sq1 = _quadrant_patches(x, 5)
    y1 = _conv_gn_relu_pool(q1, kp["w1"], kp["b1"], kp["gamma1"], kp["beta1"], kp["gmat1"],
                            batch=b, ns=ns, sq=sq1, group_size=32 // 8)
    y1 = y1.reshape(b, hp1, wp1, 32)

    # conv2 block: Conv2d(32,64,5)+GroupNorm(8,64)+ReLU+MaxPool(2) in one fused kernel.
    q2, sq2 = _quadrant_patches(y1, 5)
    y2 = _conv_gn_relu_pool(q2, kp["w2"], kp["b2"], kp["gamma2"], kp["beta2"], kp["gmat2"],
                            batch=b, ns=ns, sq=sq2, group_size=64 // 8)

    # MLP head: NHWC flatten (fc1 columns pre-permuted to match torch's NCHW flatten).
    feat = y2.reshape(b, hp2 * wp2 * 64)
    bp = max(8, -(-b // 8) * 8)
    if bp != b:
        feat = jnp.pad(feat, ((0, bp - b), (0, 0)))
    out = _mlp_head(feat, kp["wfc1"], kp["bfc1"], kp["wfc"], kp["bfc"],
                    row_tile=_pick_row_tile(bp))
    return out[:b, :num_classes]


# ---------------------------------------------------------------------------
# Parameters (PyTorch layouts -> one-time conversion to kernel layouts)
# ---------------------------------------------------------------------------

def init_torch_like_params(key, in_features=1, num_classes=10, dim=1024):
    """Parameters in PyTorch layouts (Conv: OIHW, Linear: (out, in))."""
    ks = jax.random.split(key, 8)

    def u(k, shape, fan_in):
        bound = 1.0 / (fan_in ** 0.5)
        return jax.random.uniform(k, shape, jnp.float32, -bound, bound)

    return {
        "conv1_w": u(ks[0], (32, in_features, 5, 5), in_features * 25),
        "conv1_b": u(ks[1], (32,), in_features * 25),
        "gn1_g": jnp.ones((32,), jnp.float32),
        "gn1_b": jnp.zeros((32,), jnp.float32),
        "conv2_w": u(ks[2], (64, 32, 5, 5), 32 * 25),
        "conv2_b": u(ks[3], (64,), 32 * 25),
        "gn2_g": jnp.ones((64,), jnp.float32),
        "gn2_b": jnp.zeros((64,), jnp.float32),
        "fc1_w": u(ks[4], (512, dim), dim),
        "fc1_b": u(ks[5], (512,), dim),
        "fc_w": u(ks[6], (num_classes, 512), 512),
        "fc_b": u(ks[7], (num_classes,), 512),
    }


def _group_matrix(channels, groups):
    gid = jnp.arange(channels) // (channels // groups)
    return (gid[:, None] == gid[None, :]).astype(jnp.float32)


def prepare_kernel_params(p, num_classes=10, dim=1024, lane=128):
    """One-time conversion to kernel-friendly layouts (no per-call transposes)."""
    cin = p["conv1_w"].shape[1]
    side = int(round((dim // 64) ** 0.5))   # spatial side after conv2 + pool (4 for 28x28)
    # fc1: permute columns from torch's NCHW flatten to our NHWC flatten, then (in, out).
    wfc1 = (p["fc1_w"].reshape(512, 64, side, side)
            .transpose(0, 2, 3, 1).reshape(512, dim).T)
    # fc: (in, out) with the class dim zero-padded to a full 128-lane register.
    ncp = ((num_classes + lane - 1) // lane) * lane
    wfc = jnp.zeros((512, ncp), jnp.float32).at[:, :num_classes].set(p["fc_w"].T)
    bfc = jnp.zeros((1, ncp), jnp.float32).at[0, :num_classes].set(p["fc_b"])
    return {
        "w1": jnp.transpose(p["conv1_w"], (2, 3, 1, 0)).reshape(25 * cin, 32),
        "b1": p["conv1_b"].reshape(1, 32),
        "gamma1": p["gn1_g"].reshape(1, 32),
        "beta1": p["gn1_b"].reshape(1, 32),
        "gmat1": _group_matrix(32, 8),
        "w2": jnp.transpose(p["conv2_w"], (2, 3, 1, 0)).reshape(25 * 32, 64),
        "b2": p["conv2_b"].reshape(1, 64),
        "gamma2": p["gn2_g"].reshape(1, 64),
        "beta2": p["gn2_b"].reshape(1, 64),
        "gmat2": _group_matrix(64, 8),
        "wfc1": wfc1,
        "bfc1": p["fc1_b"].reshape(1, 512),
        "wfc": wfc,
        "bfc": bfc,
    }


# ---------------------------------------------------------------------------
# Pure-JAX reference (for the in-script correctness check)
# ---------------------------------------------------------------------------

def _reference_forward(x, p):
    hp = jax.lax.Precision.HIGHEST
    x = x.astype(jnp.float32)

    def conv(z, w, bias):
        y = jax.lax.conv_general_dilated(z, w, (1, 1), "VALID",
                                         dimension_numbers=("NCHW", "OIHW", "NCHW"),
                                         precision=hp)
        return y + bias[None, :, None, None]

    def gnorm(z, g, bt, groups):
        n, c, h, w = z.shape
        zg = z.reshape(n, groups, c // groups, h, w)
        m = zg.mean(axis=(2, 3, 4), keepdims=True)
        v = zg.var(axis=(2, 3, 4), keepdims=True)
        zg = (zg - m) / jnp.sqrt(v + 1e-5)
        return zg.reshape(n, c, h, w) * g[None, :, None, None] + bt[None, :, None, None]

    def pool(z):
        n, c, h, w = z.shape
        return z.reshape(n, c, h // 2, 2, w // 2, 2).max(axis=(3, 5))

    h = pool(jax.nn.relu(gnorm(conv(x, p["conv1_w"], p["conv1_b"]), p["gn1_g"], p["gn1_b"], 8)))
    h = pool(jax.nn.relu(gnorm(conv(h, p["conv2_w"], p["conv2_b"]), p["gn2_g"], p["gn2_b"], 8)))
    h = h.reshape(h.shape[0], -1)                      # NCHW flatten, like torch.flatten
    h = jax.nn.relu(jnp.dot(h, p["fc1_w"].T, precision=hp) + p["fc1_b"])
    return jnp.dot(h, p["fc_w"].T, precision=hp) + p["fc_b"]


if __name__ == "__main__":
    key = jax.random.PRNGKey(0)
    kx, kparams_key = jax.random.split(key)

    batch, in_features, num_classes = 2, 1, 10
    x = jax.random.normal(kx, (batch, in_features, 28, 28), jnp.float32)   # 28x28 -> dim=1024

    torch_params = init_torch_like_params(kparams_key, in_features=in_features,
                                          num_classes=num_classes, dim=1024)
    kparams = prepare_kernel_params(torch_params, num_classes=num_classes, dim=1024)

    out = fedavg_cnn_forward(x, kparams, num_classes=num_classes)
    out = jax.block_until_ready(out)
    assert out.shape == (batch, num_classes)

    ref = jax.block_until_ready(_reference_forward(x, torch_params))
    max_err = float(jnp.max(jnp.abs(out - ref)))
    assert bool(jnp.allclose(out, ref, atol=1e-3, rtol=1e-3)), f"max abs err {max_err}"

    print("KERNEL_OK")
</pallas_src>

<mosaic_0001>
module attributes {stable_mosaic.version = 11 : i64} {
  func.func @_conv_gn_relu_pool_kernel(%arg0: i32, %arg1: memref<288x25xf32, #tpu.memory_space<vmem>>, %arg2: memref<288x25xf32, #tpu.memory_space<vmem>>, %arg3: memref<288x25xf32, #tpu.memory_space<vmem>>, %arg4: memref<288x25xf32, #tpu.memory_space<vmem>>, %arg5: memref<25x32xf32, #tpu.memory_space<vmem>>, %arg6: memref<1x32xf32, #tpu.memory_space<vmem>>, %arg7: memref<1x32xf32, #tpu.memory_space<vmem>>, %arg8: memref<1x32xf32, #tpu.memory_space<vmem>>, %arg9: memref<32x32xf32, #tpu.memory_space<vmem>>, %arg10: memref<2x288xf32, #tpu.memory_space<vmem>>, %arg11: memref<288x2xf32, #tpu.memory_space<vmem>>, %arg12: memref<288x32xf32, #tpu.memory_space<vmem>>) attributes {dimension_semantics = [#tpu.dimension_semantics<parallel>], iteration_bounds = array<i64: 1>, scalar_prefetch = 0 : i64, scratch_operands = 0 : i64, tpu.core_type = #tpu.core_type<tc>, window_params = [{transform_indices = @transform_0, window_bounds = array<i64: 288, 25>}, {transform_indices = @transform_1, window_bounds = array<i64: 288, 25>}, {transform_indices = @transform_2, window_bounds = array<i64: 288, 25>}, {transform_indices = @transform_3, window_bounds = array<i64: 288, 25>}, {pipeline_mode = #tpu.pipeline_mode<synchronous>, transform_indices = @transform_4, window_bounds = array<i64: 25, 32>}, {pipeline_mode = #tpu.pipeline_mode<synchronous>, transform_indices = @transform_5, window_bounds = array<i64: 1, 32>}, {pipeline_mode = #tpu.pipeline_mode<synchronous>, transform_indices = @transform_6, window_bounds = array<i64: 1, 32>}, {pipeline_mode = #tpu.pipeline_mode<synchronous>, transform_indices = @transform_7, window_bounds = array<i64: 1, 32>}, {pipeline_mode = #tpu.pipeline_mode<synchronous>, transform_indices = @transform_8, window_bounds = array<i64: 32, 32>}, {pipeline_mode = #tpu.pipeline_mode<synchronous>, transform_indices = @transform_9, window_bounds = array<i64: 2, 288>}, {pipeline_mode = #tpu.pipeline_mode<synchronous>, transform_indices = @transform_10, window_bounds = array<i64: 288, 2>}, {transform_indices = @transform_11, window_bounds = array<i64: 288, 32>}]} {
    %c0 = arith.constant 0 : index
    %c0_0 = arith.constant 0 : index
    %0 = vector.load %arg5[%c0, %c0_0] : memref<25x32xf32, #tpu.memory_space<vmem>>, vector<25x32xf32>
    %c0_1 = arith.constant 0 : index
    %c0_2 = arith.constant 0 : index
    %1 = vector.load %arg6[%c0_1, %c0_2] : memref<1x32xf32, #tpu.memory_space<vmem>>, vector<1x32xf32>
    %c0_3 = arith.constant 0 : index
    %c0_4 = arith.constant 0 : index
    %2 = vector.load %arg1[%c0_3, %c0_4] : memref<288x25xf32, #tpu.memory_space<vmem>>, vector<288x25xf32>
    %cst = arith.constant dense<0.000000e+00> : vector<288x32xf32>
    %3 = tpu.matmul %2, %0, %cst {dimension_numbers = #tpu.dot_dimension_numbers<[1], [0], [0], [1], [0, 0, 1, 1], [], []>} : vector<288x25xf32>, vector<25x32xf32>, vector<288x32xf32> -> vector<288x32xf32>
    %4 = vector.broadcast %1 : vector<1x32xf32> to vector<288x32xf32>
    %5 = arith.addf %3, %4 : vector<288x32xf32>
    %c0_5 = arith.constant 0 : index
    %c0_6 = arith.constant 0 : index
    %6 = vector.load %arg2[%c0_5, %c0_6] : memref<288x25xf32, #tpu.memory_space<vmem>>, vector<288x25xf32>
    %cst_7 = arith.constant dense<0.000000e+00> : vector<288x32xf32>
    %7 = tpu.matmul %6, %0, %cst_7 {dimension_numbers = #tpu.dot_dimension_numbers<[1], [0], [0], [1], [0, 0, 1, 1], [], []>} : vector<288x25xf32>, vector<25x32xf32>, vector<288x32xf32> -> vector<288x32xf32>
    %8 = vector.broadcast %1 : vector<1x32xf32> to vector<288x32xf32>
    %9 = arith.addf %7, %8 : vector<288x32xf32>
    %c0_8 = arith.constant 0 : index
    %c0_9 = arith.constant 0 : index
    %10 = vector.load %arg3[%c0_8, %c0_9] : memref<288x25xf32, #tpu.memory_space<vmem>>, vector<288x25xf32>
    %cst_10 = arith.constant dense<0.000000e+00> : vector<288x32xf32>
    %11 = tpu.matmul %10, %0, %cst_10 {dimension_numbers = #tpu.dot_dimension_numbers<[1], [0], [0], [1], [0, 0, 1, 1], [], []>} : vector<288x25xf32>, vector<25x32xf32>, vector<288x32xf32> -> vector<288x32xf32>
    %12 = vector.broadcast %1 : vector<1x32xf32> to vector<288x32xf32>
    %13 = arith.addf %11, %12 : vector<288x32xf32>
    %c0_11 = arith.constant 0 : index
    %c0_12 = arith.constant 0 : index
    %14 = vector.load %arg4[%c0_11, %c0_12] : memref<288x25xf32, #tpu.memory_space<vmem>>, vector<288x25xf32>
    %cst_13 = arith.constant dense<0.000000e+00> : vector<288x32xf32>
    %15 = tpu.matmul %14, %0, %cst_13 {dimension_numbers = #tpu.dot_dimension_numbers<[1], [0], [0], [1], [0, 0, 1, 1], [], []>} : vector<288x25xf32>, vector<25x32xf32>, vector<288x32xf32> -> vector<288x32xf32>
    %16 = vector.broadcast %1 : vector<1x32xf32> to vector<288x32xf32>
    %17 = arith.addf %15, %16 : vector<288x32xf32>
    %c0_14 = arith.constant 0 : index
    %c0_15 = arith.constant 0 : index
    %18 = vector.load %arg10[%c0_14, %c0_15] : memref<2x288xf32, #tpu.memory_space<vmem>>, vector<2x288xf32>
    %19 = arith.addf %5, %9 : vector<288x32xf32>
    %20 = arith.addf %19, %13 : vector<288x32xf32>
    %21 = arith.addf %20, %17 : vector<288x32xf32>
    %cst_16 = arith.constant dense<0.000000e+00> : vector<2x32xf32>
    %22 = tpu.matmul %18, %21, %cst_16 {dimension_numbers = #tpu.dot_dimension_numbers<[1], [0], [0], [1], [0, 0, 1, 1], [], []>} : vector<2x288xf32>, vector<288x32xf32>, vector<2x32xf32> -> vector<2x32xf32>
    %23 = arith.mulf %5, %5 : vector<288x32xf32>
    %24 = arith.mulf %9, %9 : vector<288x32xf32>
    %25 = arith.addf %23, %24 : vector<288x32xf32>
    %26 = arith.mulf %13, %13 : vector<288x32xf32>
    %27 = arith.addf %25, %26 : vector<288x32xf32>
    %28 = arith.mulf %17, %17 : vector<288x32xf32>
    %29 = arith.addf %27, %28 : vector<288x32xf32>
    %cst_17 = arith.constant dense<0.000000e+00> : vector<2x32xf32>
    %30 = tpu.matmul %18, %29, %cst_17 {dimension_numbers = #tpu.dot_dimension_numbers<[1], [0], [0], [1], [0, 0, 1, 1], [], []>} : vector<2x288xf32>, vector<288x32xf32>, vector<2x32xf32> -> vector<2x32xf32>
    %c0_18 = arith.constant 0 : index
    %c0_19 = arith.constant 0 : index
    %31 = vector.load %arg9[%c0_18, %c0_19] : memref<32x32xf32, #tpu.memory_space<vmem>>, vector<32x32xf32>
    %cst_20 = arith.constant dense<0.000000e+00> : vector<2x32xf32>
    %32 = tpu.matmul %22, %31, %cst_20 {dimension_numbers = #tpu.dot_dimension_numbers<[1], [0], [0], [1], [0, 0, 1, 1], [], []>} : vector<2x32xf32>, vector<32x32xf32>, vector<2x32xf32> -> vector<2x32xf32>
    %c0_21 = arith.constant 0 : index
    %c0_22 = arith.constant 0 : index
    %33 = vector.load %arg9[%c0_21, %c0_22] : memref<32x32xf32, #tpu.memory_space<vmem>>, vector<32x32xf32>
    %cst_23 = arith.constant dense<0.000000e+00> : vector<2x32xf32>
    %34 = tpu.matmul %30, %33, %cst_23 {dimension_numbers = #tpu.dot_dimension_numbers<[1], [0], [0], [1], [0, 0, 1, 1], [], []>} : vector<2x32xf32>, vector<32x32xf32>, vector<2x32xf32> -> vector<2x32xf32>
    %cst_24 = arith.constant 4.34027781E-4 : f32
    %35 = vector.broadcast %cst_24 : f32 to vector<2x32xf32>
    %36 = arith.mulf %32, %35 : vector<2x32xf32>
    %cst_25 = arith.constant 4.34027781E-4 : f32
    %37 = vector.broadcast %cst_25 : f32 to vector<2x32xf32>
    %38 = arith.mulf %34, %37 : vector<2x32xf32>
    %39 = arith.mulf %36, %36 : vector<2x32xf32>
    %40 = arith.subf %38, %39 : vector<2x32xf32>
    %cst_26 = arith.constant 9.99999974E-6 : f32
    %41 = vector.broadcast %cst_26 : f32 to vector<2x32xf32>
    %42 = arith.addf %40, %41 : vector<2x32xf32>
    %43 = math.rsqrt %42 : vector<2x32xf32>
    %c0_27 = arith.constant 0 : index
    %c0_28 = arith.constant 0 : index
    %44 = vector.load %arg7[%c0_27, %c0_28] : memref<1x32xf32, #tpu.memory_space<vmem>>, vector<1x32xf32>
    %45 = vector.broadcast %44 : vector<1x32xf32> to vector<2x32xf32>
    %46 = arith.mulf %43, %45 : vector<2x32xf32>
    %c0_29 = arith.constant 0 : index
    %c0_30 = arith.constant 0 : index
    %47 = vector.load %arg8[%c0_29, %c0_30] : memref<1x32xf32, #tpu.memory_space<vmem>>, vector<1x32xf32>
    %48 = arith.mulf %36, %46 : vector<2x32xf32>
    %49 = vector.broadcast %47 : vector<1x32xf32> to vector<2x32xf32>
    %50 = arith.subf %49, %48 : vector<2x32xf32>
    %c0_31 = arith.constant 0 : index
    %c0_32 = arith.constant 0 : index
    %51 = vector.load %arg11[%c0_31, %c0_32] : memref<288x2xf32, #tpu.memory_space<vmem>>, vector<288x2xf32>
    %cst_33 = arith.constant dense<0.000000e+00> : vector<288x32xf32>
    %52 = tpu.matmul %51, %46, %cst_33 {dimension_numbers = #tpu.dot_dimension_numbers<[1], [0], [0], [1], [0, 0, 1, 1], [], []>} : vector<288x2xf32>, vector<2x32xf32>, vector<288x32xf32> -> vector<288x32xf32>
    %cst_34 = arith.constant dense<0.000000e+00> : vector<288x32xf32>
    %53 = tpu.matmul %51, %50, %cst_34 {dimension_numbers = #tpu.dot_dimension_numbers<[1], [0], [0], [1], [0, 0, 1, 1], [], []>} : vector<288x2xf32>, vector<2x32xf32>, vector<288x32xf32> -> vector<288x32xf32>
    %54 = arith.mulf %5, %52 : vector<288x32xf32>
    %55 = arith.addf %54, %53 : vector<288x32xf32>
    %56 = arith.mulf %9, %52 : vector<288x32xf32>
    %57 = arith.addf %56, %53 : vector<288x32xf32>
    %58 = arith.maximumf %55, %57 : vector<288x32xf32>
    %59 = arith.mulf %13, %52 : vector<288x32xf32>
    %60 = arith.addf %59, %53 : vector<288x32xf32>
    %61 = arith.mulf %17, %52 : vector<288x32xf32>
    %62 = arith.addf %61, %53 : vector<288x32xf32>
    %63 = arith.maximumf %60, %62 : vector<288x32xf32>
    %64 = arith.maximumf %58, %63 : vector<288x32xf32>
    %cst_35 = arith.constant 0.000000e+00 : f32
    %65 = vector.broadcast %cst_35 : f32 to vector<288x32xf32>
    %66 = arith.maximumf %64, %65 : vector<288x32xf32>
    %c0_36 = arith.constant 0 : index
    %c0_37 = arith.constant 0 : index
    %67 = vector.load %arg12[%c0_36, %c0_37] : memref<288x32xf32, #tpu.memory_space<vmem>>, vector<288x32xf32>
    tpu.vector_store %arg12[%c0_36, %c0_37], %66 {strides = array<i32>} : memref<288x32xf32, #tpu.memory_space<vmem>>, vector<288x32xf32>,
    return
  }
  func.func @transform_0(%arg0: i32) -> (i32, i32) {
    %c0_i32 = arith.constant 0 : i32
    %c0_i32_0 = arith.constant 0 : i32
    return %arg0, %c0_i32 : i32, i32
  }
  func.func @transform_1(%arg0: i32) -> (i32, i32) {
    %c0_i32 = arith.constant 0 : i32
    %c0_i32_0 = arith.constant 0 : i32
    return %arg0, %c0_i32 : i32, i32
  }
  func.func @transform_2(%arg0: i32) -> (i32, i32) {
    %c0_i32 = arith.constant 0 : i32
    %c0_i32_0 = arith.constant 0 : i32
    return %arg0, %c0_i32 : i32, i32
  }
  func.func @transform_3(%arg0: i32) -> (i32, i32) {
    %c0_i32 = arith.constant 0 : i32
    %c0_i32_0 = arith.constant 0 : i32
    return %arg0, %c0_i32 : i32, i32
  }
  func.func @transform_4(%arg0: i32) -> (i32, i32) {
    %c0_i32 = arith.constant 0 : i32
    %c0_i32_0 = arith.constant 0 : i32
    %c0_i32_1 = arith.constant 0 : i32
    return %c0_i32, %c0_i32_0 : i32, i32
  }
  func.func @transform_5(%arg0: i32) -> (i32, i32) {
    %c0_i32 = arith.constant 0 : i32
    %c0_i32_0 = arith.constant 0 : i32
    %c0_i32_1 = arith.constant 0 : i32
    return %c0_i32, %c0_i32_0 : i32, i32
  }
  func.func @transform_6(%arg0: i32) -> (i32, i32) {
    %c0_i32 = arith.constant 0 : i32
    %c0_i32_0 = arith.constant 0 : i32
    %c0_i32_1 = arith.constant 0 : i32
    return %c0_i32, %c0_i32_0 : i32, i32
  }
  func.func @transform_7(%arg0: i32) -> (i32, i32) {
    %c0_i32 = arith.constant 0 : i32
    %c0_i32_0 = arith.constant 0 : i32
    %c0_i32_1 = arith.constant 0 : i32
    return %c0_i32, %c0_i32_0 : i32, i32
  }
  func.func @transform_8(%arg0: i32) -> (i32, i32) {
    %c0_i32 = arith.constant 0 : i32
    %c0_i32_0 = arith.constant 0 : i32
    %c0_i32_1 = arith.constant 0 : i32
    return %c0_i32, %c0_i32_0 : i32, i32
  }
  func.func @transform_9(%arg0: i32) -> (i32, i32) {
    %c0_i32 = arith.constant 0 : i32
    %c0_i32_0 = arith.constant 0 : i32
    %c0_i32_1 = arith.constant 0 : i32
    return %c0_i32, %c0_i32_0 : i32, i32
  }
  func.func @transform_10(%arg0: i32) -> (i32, i32) {
    %c0_i32 = arith.constant 0 : i32
    %c0_i32_0 = arith.constant 0 : i32
    %c0_i32_1 = arith.constant 0 : i32
    return %c0_i32, %c0_i32_0 : i32, i32
  }
  func.func @transform_11(%arg0: i32) -> (i32, i32) {
    %c0_i32 = arith.constant 0 : i32
    %c0_i32_0 = arith.constant 0 : i32
    return %arg0, %c0_i32 : i32, i32
  }
}

module attributes {stable_mosaic.version = 11 : i64} {
  func.func @_conv_gn_relu_pool_kernel(%arg0: i32, %arg1: memref<32x800xf32, #tpu.memory_space<vmem>>, %arg2: memref<32x800xf32, #tpu.memory_space<vmem>>, %arg3: memref<32x800xf32, #tpu.memory_space<vmem>>, %arg4: memref<32x800xf32, #tpu.memory_space<vmem>>, %arg5: memref<800x64xf32, #tpu.memory_space<vmem>>, %arg6: memref<1x64xf32, #tpu.memory_space<vmem>>, %arg7: memref<1x64xf32, #tpu.memory_space<vmem>>, %arg8: memref<1x64xf32, #tpu.memory_space<vmem>>, %arg9: memref<64x64xf32, #tpu.memory_space<vmem>>, %arg10: memref<2x32xf32, #tpu.memory_space<vmem>>, %arg11: memref<32x2xf32, #tpu.memory_space<vmem>>, %arg12: memref<32x64xf32, #tpu.memory_space<vmem>>) attributes {dimension_semantics = [#tpu.dimension_semantics<parallel>], iteration_bounds = array<i64: 1>, scalar_prefetch = 0 : i64, scratch_operands = 0 : i64, tpu.core_type = #tpu.core_type<tc>, window_params = [{transform_indices = @transform_0, window_bounds = array<i64: 32, 800>}, {transform_indices = @transform_1, window_bounds = array<i64: 32, 800>}, {transform_indices = @transform_2, window_bounds = array<i64: 32, 800>}, {transform_indices = @transform_3, window_bounds = array<i64: 32, 800>}, {pipeline_mode = #tpu.pipeline_mode<synchronous>, transform_indices = @transform_4, window_bounds = array<i64: 800, 64>}, {pipeline_mode = #tpu.pipeline_mode<synchronous>, transform_indices = @transform_5, window_bounds = array<i64: 1, 64>}, {pipeline_mode = #tpu.pipeline_mode<synchronous>, transform_indices = @transform_6, window_bounds = array<i64: 1, 64>}, {pipeline_mode = #tpu.pipeline_mode<synchronous>, transform_indices = @transform_7, window_bounds = array<i64: 1, 64>}, {pipeline_mode = #tpu.pipeline_mode<synchronous>, transform_indices = @transform_8, window_bounds = array<i64: 64, 64>}, {pipeline_mode = #tpu.pipeline_mode<synchronous>, transform_indices = @transform_9, window_bounds = array<i64: 2, 32>}, {pipeline_mode = #tpu.pipeline_mode<synchronous>, transform_indices = @transform_10, window_bounds = array<i64: 32, 2>}, {transform_indices = @transform_11, window_bounds = array<i64: 32, 64>}]} {
    %c0 = arith.constant 0 : index
    %c0_0 = arith.constant 0 : index
    %0 = vector.load %arg5[%c0, %c0_0] : memref<800x64xf32, #tpu.memory_space<vmem>>, vector<800x64xf32>
    %c0_1 = arith.constant 0 : index
    %c0_2 = arith.constant 0 : index
    %1 = vector.load %arg6[%c0_1, %c0_2] : memref<1x64xf32, #tpu.memory_space<vmem>>, vector<1x64xf32>
    %c0_3 = arith.constant 0 : index
    %c0_4 = arith.constant 0 : index
    %2 = vector.load %arg1[%c0_3, %c0_4] : memref<32x800xf32, #tpu.memory_space<vmem>>, vector<32x800xf32>
    %cst = arith.constant dense<0.000000e+00> : vector<32x64xf32>
    %3 = tpu.matmul %2, %0, %cst {dimension_numbers = #tpu.dot_dimension_numbers<[1], [0], [0], [1], [0, 0, 1, 1], [], []>} : vector<32x800xf32>, vector<800x64xf32>, vector<32x64xf32> -> vector<32x64xf32>
    %4 = vector.broadcast %1 : vector<1x64xf32> to vector<32x64xf32>
    %5 = arith.addf %3, %4 : vector<32x64xf32>
    %c0_5 = arith.constant 0 : index
    %c0_6 = arith.constant 0 : index
    %6 = vector.load %arg2[%c0_5, %c0_6] : memref<32x800xf32, #tpu.memory_space<vmem>>, vector<32x800xf32>
    %cst_7 = arith.constant dense<0.000000e+00> : vector<32x64xf32>
    %7 = tpu.matmul %6, %0, %cst_7 {dimension_numbers = #tpu.dot_dimension_numbers<[1], [0], [0], [1], [0, 0, 1, 1], [], []>} : vector<32x800xf32>, vector<800x64xf32>, vector<32x64xf32> -> vector<32x64xf32>
    %8 = vector.broadcast %1 : vector<1x64xf32> to vector<32x64xf32>
    %9 = arith.addf %7, %8 : vector<32x64xf32>
    %c0_8 = arith.constant 0 : index
    %c0_9 = arith.constant 0 : index
    %10 = vector.load %arg3[%c0_8, %c0_9] : memref<32x800xf32, #tpu.memory_space<vmem>>, vector<32x800xf32>
    %cst_10 = arith.constant dense<0.000000e+00> : vector<32x64xf32>
    %11 = tpu.matmul %10, %0, %cst_10 {dimension_numbers = #tpu.dot_dimension_numbers<[1], [0], [0], [1], [0, 0, 1, 1], [], []>} : vector<32x800xf32>, vector<800x64xf32>, vector<32x64xf32> -> vector<32x64xf32>
    %12 = vector.broadcast %1 : vector<1x64xf32> to vector<32x64xf32>
    %13 = arith.addf %11, %12 : vector<32x64xf32>
    %c0_11 = arith.constant 0 : index
    %c0_12 = arith.constant 0 : index
    %14 = vector.load %arg4[%c0_11, %c0_12] : memref<32x800xf32, #tpu.memory_space<vmem>>, vector<32x800xf32>
    %cst_13 = arith.constant dense<0.000000e+00> : vector<32x64xf32>
    %15 = tpu.matmul %14, %0, %cst_13 {dimension_numbers = #tpu.dot_dimension_numbers<[1], [0], [0], [1], [0, 0, 1, 1], [], []>} : vector<32x800xf32>, vector<800x64xf32>, vector<32x64xf32> -> vector<32x64xf32>
    %16 = vector.broadcast %1 : vector<1x64xf32> to vector<32x64xf32>
    %17 = arith.addf %15, %16 : vector<32x64xf32>
    %c0_14 = arith.constant 0 : index
    %c0_15 = arith.constant 0 : index
    %18 = vector.load %arg10[%c0_14, %c0_15] : memref<2x32xf32, #tpu.memory_space<vmem>>, vector<2x32xf32>
    %19 = arith.addf %5, %9 : vector<32x64xf32>
    %20 = arith.addf %19, %13 : vector<32x64xf32>
    %21 = arith.addf %20, %17 : vector<32x64xf32>
    %cst_16 = arith.constant dense<0.000000e+00> : vector<2x64xf32>
    %22 = tpu.matmul %18, %21, %cst_16 {dimension_numbers = #tpu.dot_dimension_numbers<[1], [0], [0], [1], [0, 0, 1, 1], [], []>} : vector<2x32xf32>, vector<32x64xf32>, vector<2x64xf32> -> vector<2x64xf32>
    %23 = arith.mulf %5, %5 : vector<32x64xf32>
    %24 = arith.mulf %9, %9 : vector<32x64xf32>
    %25 = arith.addf %23, %24 : vector<32x64xf32>
    %26 = arith.mulf %13, %13 : vector<32x64xf32>
    %27 = arith.addf %25, %26 : vector<32x64xf32>
    %28 = arith.mulf %17, %17 : vector<32x64xf32>
    %29 = arith.addf %27, %28 : vector<32x64xf32>
    %cst_17 = arith.constant dense<0.000000e+00> : vector<2x64xf32>
    %30 = tpu.matmul %18, %29, %cst_17 {dimension_numbers = #tpu.dot_dimension_numbers<[1], [0], [0], [1], [0, 0, 1, 1], [], []>} : vector<2x32xf32>, vector<32x64xf32>, vector<2x64xf32> -> vector<2x64xf32>
    %c0_18 = arith.constant 0 : index
    %c0_19 = arith.constant 0 : index
    %31 = vector.load %arg9[%c0_18, %c0_19] : memref<64x64xf32, #tpu.memory_space<vmem>>, vector<64x64xf32>
    %cst_20 = arith.constant dense<0.000000e+00> : vector<2x64xf32>
    %32 = tpu.matmul %22, %31, %cst_20 {dimension_numbers = #tpu.dot_dimension_numbers<[1], [0], [0], [1], [0, 0, 1, 1], [], []>} : vector<2x64xf32>, vector<64x64xf32>, vector<2x64xf32> -> vector<2x64xf32>
    %c0_21 = arith.constant 0 : index
    %c0_22 = arith.constant 0 : index
    %33 = vector.load %arg9[%c0_21, %c0_22] : memref<64x64xf32, #tpu.memory_space<vmem>>, vector<64x64xf32>
    %cst_23 = arith.constant dense<0.000000e+00> : vector<2x64xf32>
    %34 = tpu.matmul %30, %33, %cst_23 {dimension_numbers = #tpu.dot_dimension_numbers<[1], [0], [0], [1], [0, 0, 1, 1], [], []>} : vector<2x64xf32>, vector<64x64xf32>, vector<2x64xf32> -> vector<2x64xf32>
    %cst_24 = arith.constant 0.001953125 : f32
    %35 = vector.broadcast %cst_24 : f32 to vector<2x64xf32>
    %36 = arith.mulf %32, %35 : vector<2x64xf32>
    %cst_25 = arith.constant 0.001953125 : f32
    %37 = vector.broadcast %cst_25 : f32 to vector<2x64xf32>
    %38 = arith.mulf %34, %37 : vector<2x64xf32>
    %39 = arith.mulf %36, %36 : vector<2x64xf32>
    %40 = arith.subf %38, %39 : vector<2x64xf32>
    %cst_26 = arith.constant 9.99999974E-6 : f32
    %41 = vector.broadcast %cst_26 : f32 to vector<2x64xf32>
    %42 = arith.addf %40, %41 : vector<2x64xf32>
    %43 = math.rsqrt %42 : vector<2x64xf32>
    %c0_27 = arith.constant 0 : index
    %c0_28 = arith.constant 0 : index
    %44 = vector.load %arg7[%c0_27, %c0_28] : memref<1x64xf32, #tpu.memory_space<vmem>>, vector<1x64xf32>
    %45 = vector.broadcast %44 : vector<1x64xf32> to vector<2x64xf32>
    %46 = arith.mulf %43, %45 : vector<2x64xf32>
    %c0_29 = arith.constant 0 : index
    %c0_30 = arith.constant 0 : index
    %47 = vector.load %arg8[%c0_29, %c0_30] : memref<1x64xf32, #tpu.memory_space<vmem>>, vector<1x64xf32>
    %48 = arith.mulf %36, %46 : vector<2x64xf32>
    %49 = vector.broadcast %47 : vector<1x64xf32> to vector<2x64xf32>
    %50 = arith.subf %49, %48 : vector<2x64xf32>
    %c0_31 = arith.constant 0 : index
    %c0_32 = arith.constant 0 : index
    %51 = vector.load %arg11[%c0_31, %c0_32] : memref<32x2xf32, #tpu.memory_space<vmem>>, vector<32x2xf32>
    %cst_33 = arith.constant dense<0.000000e+00> : vector<32x64xf32>
    %52 = tpu.matmul %51, %46, %cst_33 {dimension_numbers = #tpu.dot_dimension_numbers<[1], [0], [0], [1], [0, 0, 1, 1], [], []>} : vector<32x2xf32>, vector<2x64xf32>, vector<32x64xf32> -> vector<32x64xf32>
    %cst_34 = arith.constant dense<0.000000e+00> : vector<32x64xf32>
    %53 = tpu.matmul %51, %50, %cst_34 {dimension_numbers = #tpu.dot_dimension_numbers<[1], [0], [0], [1], [0, 0, 1, 1], [], []>} : vector<32x2xf32>, vector<2x64xf32>, vector<32x64xf32> -> vector<32x64xf32>
    %54 = arith.mulf %5, %52 : vector<32x64xf32>
    %55 = arith.addf %54, %53 : vector<32x64xf32>
    %56 = arith.mulf %9, %52 : vector<32x64xf32>
    %57 = arith.addf %56, %53 : vector<32x64xf32>
    %58 = arith.maximumf %55, %57 : vector<32x64xf32>
    %59 = arith.mulf %13, %52 : vector<32x64xf32>
    %60 = arith.addf %59, %53 : vector<32x64xf32>
    %61 = arith.mulf %17, %52 : vector<32x64xf32>
    %62 = arith.addf %61, %53 : vector<32x64xf32>
    %63 = arith.maximumf %60, %62 : vector<32x64xf32>
    %64 = arith.maximumf %58, %63 : vector<32x64xf32>
    %cst_35 = arith.constant 0.000000e+00 : f32
    %65 = vector.broadcast %cst_35 : f32 to vector<32x64xf32>
    %66 = arith.maximumf %64, %65 : vector<32x64xf32>
    %c0_36 = arith.constant 0 : index
    %c0_37 = arith.constant 0 : index
    %67 = vector.load %arg12[%c0_36, %c0_37] : memref<32x64xf32, #tpu.memory_space<vmem>>, vector<32x64xf32>
    tpu.vector_store %arg12[%c0_36, %c0_37], %66 {strides = array<i32>} : memref<32x64xf32, #tpu.memory_space<vmem>>, vector<32x64xf32>,
    return
  }
  func.func @transform_0(%arg0: i32) -> (i32, i32) {
    %c0_i32 = arith.constant 0 : i32
    %c0_i32_0 = arith.constant 0 : i32
    return %arg0, %c0_i32 : i32, i32
  }
  func.func @transform_1(%arg0: i32) -> (i32, i32) {
    %c0_i32 = arith.constant 0 : i32
    %c0_i32_0 = arith.constant 0 : i32
    return %arg0, %c0_i32 : i32, i32
  }
  func.func @transform_2(%arg0: i32) -> (i32, i32) {
    %c0_i32 = arith.constant 0 : i32
    %c0_i32_0 = arith.constant 0 : i32
    return %arg0, %c0_i32 : i32, i32
  }
  func.func @transform_3(%arg0: i32) -> (i32, i32) {
    %c0_i32 = arith.constant 0 : i32
    %c0_i32_0 = arith.constant 0 : i32
    return %arg0, %c0_i32 : i32, i32
  }
  func.func @transform_4(%arg0: i32) -> (i32, i32) {
    %c0_i32 = arith.constant 0 : i32
    %c0_i32_0 = arith.constant 0 : i32
    %c0_i32_1 = arith.constant 0 : i32
    return %c0_i32, %c0_i32_0 : i32, i32
  }
  func.func @transform_5(%arg0: i32) -> (i32, i32) {
    %c0_i32 = arith.constant 0 : i32
    %c0_i32_0 = arith.constant 0 : i32
    %c0_i32_1 = arith.constant 0 : i32
    return %c0_i32, %c0_i32_0 : i32, i32
  }
  func.func @transform_6(%arg0: i32) -> (i32, i32) {
    %c0_i32 = arith.constant 0 : i32
    %c0_i32_0 = arith.constant 0 : i32
    %c0_i32_1 = arith.constant 0 : i32
    return %c0_i32, %c0_i32_0 : i32, i32
  }
  func.func @transform_7(%arg0: i32) -> (i32, i32) {
    %c0_i32 = arith.constant 0 : i32
    %c0_i32_0 = arith.constant 0 : i32
    %c0_i32_1 = arith.constant 0 : i32
    return %c0_i32, %c0_i32_0 : i32, i32
  }
  func.func @transform_8(%arg0: i32) -> (i32, i32) {
    %c0_i32 = arith.constant 0 : i32
    %c0_i32_0 = arith.constant 0 : i32
    %c0_i32_1 = arith.constant 0 : i32
    return %c0_i32, %c0_i32_0 : i32, i32
  }
  func.func @transform_9(%arg0: i32) -> (i32, i32) {
    %c0_i32 = arith.constant 0 : i32
    %c0_i32_0 = arith.constant 0 : i32
    %c0_i32_1 = arith.constant 0 : i32
    return %c0_i32, %c0_i32_0 : i32, i32
  }
  func.func @transform_10(%arg0: i32) -> (i32, i32) {
    %c0_i32 = arith.constant 0 : i32
    %c0_i32_0 = arith.constant 0 : i32
    %c0_i32_1 = arith.constant 0 : i32
    return %c0_i32, %c0_i32_0 : i32, i32
  }
  func.func @transform_11(%arg0: i32) -> (i32, i32) {
    %c0_i32 = arith.constant 0 : i32
    %c0_i32_0 = arith.constant 0 : i32
    return %arg0, %c0_i32 : i32, i32
  }
}

module attributes {stable_mosaic.version = 11 : i64} {
  func.func @_mlp_head_kernel(%arg0: i32, %arg1: memref<8x1024xf32, #tpu.memory_space<vmem>>, %arg2: memref<1024x512xf32, #tpu.memory_space<vmem>>, %arg3: memref<1x512xf32, #tpu.memory_space<vmem>>, %arg4: memref<512x128xf32, #tpu.memory_space<vmem>>, %arg5: memref<1x128xf32, #tpu.memory_space<vmem>>, %arg6: memref<8x128xf32, #tpu.memory_space<vmem>>) attributes {dimension_semantics = [#tpu.dimension_semantics<parallel>], iteration_bounds = array<i64: 1>, scalar_prefetch = 0 : i64, scratch_operands = 0 : i64, tpu.core_type = #tpu.core_type<tc>, window_params = [{transform_indices = @transform_0, window_bounds = array<i64: 8, 1024>}, {pipeline_mode = #tpu.pipeline_mode<synchronous>, transform_indices = @transform_1, window_bounds = array<i64: 1024, 512>}, {pipeline_mode = #tpu.pipeline_mode<synchronous>, transform_indices = @transform_2, window_bounds = array<i64: 1, 512>}, {pipeline_mode = #tpu.pipeline_mode<synchronous>, transform_indices = @transform_3, window_bounds = array<i64: 512, 128>}, {pipeline_mode = #tpu.pipeline_mode<synchronous>, transform_indices = @transform_4, window_bounds = array<i64: 1, 128>}, {transform_indices = @transform_5, window_bounds = array<i64: 8, 128>}]} {
    %c0 = arith.constant 0 : index
    %c0_0 = arith.constant 0 : index
    %0 = vector.load %arg1[%c0, %c0_0] : memref<8x1024xf32, #tpu.memory_space<vmem>>, vector<8x1024xf32>
    %c0_1 = arith.constant 0 : index
    %c0_2 = arith.constant 0 : index
    %1 = vector.load %arg2[%c0_1, %c0_2] : memref<1024x512xf32, #tpu.memory_space<vmem>>, vector<1024x512xf32>
    %cst = arith.constant dense<0.000000e+00> : vector<8x512xf32>
    %2 = tpu.matmul %0, %1, %cst {dimension_numbers = #tpu.dot_dimension_numbers<[1], [0], [0], [1], [0, 0, 1, 1], [], []>} : vector<8x1024xf32>, vector<1024x512xf32>, vector<8x512xf32> -> vector<8x512xf32>
    %c0_3 = arith.constant 0 : index
    %c0_4 = arith.constant 0 : index
    %3 = vector.load %arg3[%c0_3, %c0_4] : memref<1x512xf32, #tpu.memory_space<vmem>>, vector<1x512xf32>
    %4 = vector.broadcast %3 : vector<1x512xf32> to vector<8x512xf32>
    %5 = arith.addf %2, %4 : vector<8x512xf32>
    %cst_5 = arith.constant 0.000000e+00 : f32
    %6 = vector.broadcast %cst_5 : f32 to vector<8x512xf32>
    %7 = arith.maximumf %5, %6 : vector<8x512xf32>
    %c0_6 = arith.constant 0 : index
    %c0_7 = arith.constant 0 : index
    %8 = vector.load %arg4[%c0_6, %c0_7] : memref<512x128xf32, #tpu.memory_space<vmem>>, vector<512x128xf32>
    %cst_8 = arith.constant dense<0.000000e+00> : vector<8x128xf32>
    %9 = tpu.matmul %7, %8, %cst_8 {dimension_numbers = #tpu.dot_dimension_numbers<[1], [0], [0], [1], [0, 0, 1, 1], [], []>} : vector<8x512xf32>, vector<512x128xf32>, vector<8x128xf32> -> vector<8x128xf32>
    %c0_9 = arith.constant 0 : index
    %c0_10 = arith.constant 0 : index
    %10 = vector.load %arg5[%c0_9, %c0_10] : memref<1x128xf32, #tpu.memory_space<vmem>>, vector<1x128xf32>
    %11 = vector.broadcast %10 : vector<1x128xf32> to vector<8x128xf32>
    %12 = arith.addf %9, %11 : vector<8x128xf32>
    %c0_11 = arith.constant 0 : index
    %c0_12 = arith.constant 0 : index
    %13 = vector.load %arg6[%c0_11, %c0_12] : memref<8x128xf32, #tpu.memory_space<vmem>>, vector<8x128xf32>
    tpu.vector_store %arg6[%c0_11, %c0_12], %12 {strides = array<i32>} : memref<8x128xf32, #tpu.memory_space<vmem>>, vector<8x128xf32>,
    return
  }
  func.func @transform_0(%arg0: i32) -> (i32, i32) {
    %c0_i32 = arith.constant 0 : i32
    %c0_i32_0 = arith.constant 0 : i32
    return %arg0, %c0_i32 : i32, i32
  }
  func.func @transform_1(%arg0: i32) -> (i32, i32) {
    %c0_i32 = arith.constant 0 : i32
    %c0_i32_0 = arith.constant 0 : i32
    %c0_i32_1 = arith.constant 0 : i32
    return %c0_i32, %c0_i32_0 : i32, i32
  }
  func.func @transform_2(%arg0: i32) -> (i32, i32) {
    %c0_i32 = arith.constant 0 : i32
    %c0_i32_0 = arith.constant 0 : i32
    %c0_i32_1 = arith.constant 0 : i32
    return %c0_i32, %c0_i32_0 : i32, i32
  }
  func.func @transform_3(%arg0: i32) -> (i32, i32) {
    %c0_i32 = arith.constant 0 : i32
    %c0_i32_0 = arith.constant 0 : i32
    %c0_i32_1 = arith.constant 0 : i32
    return %c0_i32, %c0_i32_0 : i32, i32
  }
  func.func @transform_4(%arg0: i32) -> (i32, i32) {
    %c0_i32 = arith.constant 0 : i32
    %c0_i32_0 = arith.constant 0 : i32
    %c0_i32_1 = arith.constant 0 : i32
    return %c0_i32, %c0_i32_0 : i32, i32
  }
  func.func @transform_5(%arg0: i32) -> (i32, i32) {
    %c0_i32 = arith.constant 0 : i32
    %c0_i32_0 = arith.constant 0 : i32
    return %arg0, %c0_i32 : i32, i32
  }
}

</mosaic_0001>

<llo_original>
// kernel: eq.15
$region0: #{eq.15}
  %s0 = inlined_call_operand.vmem [shape: s32[2,144], index: 0, kind: input, shape index: {}]
  %s1 = inlined_call_operand.vmem [shape: s32[288], index: 1, kind: output, shape index: {}]
  $region1: #{eq.15} parent=0
    #allocation0 [shape = 'u8[4096]{0}', space=vmem, size = 0x1000, scoped, tag = 'scoped mem for output reshape']
    #allocation1 [shape = 'u8[8192]{0}', space=vmem, size = 0x2000, scoped, tag = 'scoped mem for input reshape']
    %s3 = sshllo.u32 0, 2
    %s4 = scalar_lea.vmem %s0, 2
    %v5 = vld [vmem:[%s4] sm:%s3]
    %s6 = scalar_lea.vmem [#allocation1], 8
    %7 = vst [vmem:[%s6] sm:%s3] %v5
    %v8 = vld [vmem:[%s0] sm:%s3]
    %9 = vst [vmem:[#allocation1] sm:%s3] %v8
    %s10 = scalar_lea.vmem [#allocation1], 8
    %v11 = vld [vmem:[%s10] sm:$0x1]
    %vm12 = vcmask 130048
    %s13 = scalar_lea.vmem [#allocation0], 1
    %14 = vst.msk [vmem:[%s13] sm:$0x1] %vm12, %v11
    %v15 = vld [vmem:[#allocation1] sm:$0x1]
    %16 = vst [vmem:[#allocation0] sm:$0x1] %v15
    %s17 = scalar_lea.vmem [#allocation1], 1
    %v18 = vld [vmem:[%s17] sm:$0x1]
    %s19 = scalar_lea.vmem [#allocation1], 9
    %v20 = vld [vmem:[%s19] sm:$0x1]
    %vm21 = vcmask 916480
    %v22 = vsel %vm21, %v20, %v18
    %23 = vrot.lane.b32.xlu0 %v22, 16
    %v24 = vpop.permute.xlu0 %23
    %vm25 = vcmask 130048
    %s26 = scalar_lea.vmem [#allocation0], 2
    %27 = vst.msk [vmem:[%s26] sm:$0x1] %vm25, %v24
    %vm28 = vcmask 261248
    %s29 = scalar_lea.vmem [#allocation0], 2
    %30 = vst.msk [vmem:[%s29] sm:$0x1] %vm28, %v24
    %s31 = scalar_lea.vmem [#allocation1], 1
    %v32 = vld [vmem:[%s31] sm:$0x1]
    %33 = vrot.lane.b32.xlu0 %v32, 16
    %v34 = vpop.permute.xlu0 %33
    %vm35 = vcmask 1047680
    %s36 = scalar_lea.vmem [#allocation0], 1
    %37 = vst.msk [vmem:[%s36] sm:$0x1] %vm35, %v34
    %s39 = sshllo.u32 0, 4
    %v41 = vld [vmem:[#allocation0] sm:%s39]
    %s42 = sshllo.u32 0, 4
    %43 = vst [vmem:[%s1] sm:%s42] %v41

// kernel: fedavg_cnn_forward.3
$region0: #{fedavg_cnn_forward.3}
  #allocation0 [shape = 'u32[]', space=smem, size = 0x4, offset = 0x4, fixed_abs, tag = 'smem constant byte address 0x4 - core index']
  #allocation1 [shape = 'u32[144,128]{1,0:T(1,128)}', space=vmem, size = 0x12000, scoped, tag = 'internal scratch']
  %s0 = inlined_call_operand.vmem [shape: f32[288,25], index: 0, kind: input, shape index: {}]
  %s1 = inlined_call_operand.vmem [shape: f32[288,25], index: 1, kind: input, shape index: {}]
  %s2 = inlined_call_operand.vmem [shape: f32[288,25], index: 2, kind: input, shape index: {}]
  %s3 = inlined_call_operand.vmem [shape: f32[288,25], index: 3, kind: input, shape index: {}]
  %s4 = inlined_call_operand.vmem [shape: f32[25,32], index: 4, kind: input, shape index: {}]
  %s5 = inlined_call_operand.vmem [shape: f32[1,32], index: 5, kind: input, shape index: {}]
  %s6 = inlined_call_operand.vmem [shape: f32[1,32], index: 6, kind: input, shape index: {}]
  %s7 = inlined_call_operand.vmem [shape: f32[1,32], index: 7, kind: input, shape index: {}]
  %s8 = inlined_call_operand.vmem [shape: f32[32,32], index: 8, kind: input, shape index: {}]
  %s9 = inlined_call_operand.vmem [shape: f32[2,288], index: 9, kind: input, shape index: {}]
  %s10 = inlined_call_operand.vmem [shape: f32[288,2], index: 10, kind: input, shape index: {}]
  %s11 = inlined_call_operand.vmem [shape: f32[288,32], index: 11, kind: output, shape index: {}]
  %s12 = sld [smem:[#allocation0]]
  $region54: #{fedavg_cnn_forward.3} parent=0
    _
  %s14 = ssub.s32 1, %s12
  %s15 = scalar_select 0, %s14, %s12
  // Predicated region
  $region2: #{fedavg_cnn_forward.3} parent=0 // pred_check
    _
  $region3: #{fedavg_cnn_forward.3} parent=0 // pred_check_branch
    %17 = sbr.rel (0) target = $region5
  $region4: #{fedavg_cnn_forward.3} parent=0 // pred_region
    _
  $region5: #{fedavg_cnn_forward.3} parent=0 // pred_fallthru
    _
  // Predicated region
  $region6: #{fedavg_cnn_forward.3} parent=0 // pred_check
    _
  $region7: #{fedavg_cnn_forward.3} parent=0 // pred_check_branch
    %19 = sbr.rel (0) target = $region9
  $region8: #{fedavg_cnn_forward.3} parent=0 // pred_region
    _
  $region9: #{fedavg_cnn_forward.3} parent=0 // pred_fallthru
    _
  // Predicated region
  $region10: #{fedavg_cnn_forward.3} parent=0 // pred_check
    _
  $region11: #{fedavg_cnn_forward.3} parent=0 // pred_check_branch
    %21 = sbr.rel (0) target = $region13
  $region12: #{fedavg_cnn_forward.3} parent=0 // pred_region
    _
  $region13: #{fedavg_cnn_forward.3} parent=0 // pred_fallthru
    _
  // Predicated region
  $region14: #{fedavg_cnn_forward.3} parent=0 // pred_check
    _
  $region15: #{fedavg_cnn_forward.3} parent=0 // pred_check_branch
    %23 = sbr.rel (0) target = $region17
  $region16: #{fedavg_cnn_forward.3} parent=0 // pred_region
    _
  $region17: #{fedavg_cnn_forward.3} parent=0 // pred_fallthru
    _
  // Predicated region
  $region18: #{fedavg_cnn_forward.3} parent=0 // pred_check
    _
  $region19: #{fedavg_cnn_forward.3} parent=0 // pred_check_branch
    %25 = sbr.rel (0) target = $region21
  $region20: #{fedavg_cnn_forward.3} parent=0 // pred_region
    _
  $region21: #{fedavg_cnn_forward.3} parent=0 // pred_fallthru
    _
  // Predicated region
  $region22: #{fedavg_cnn_forward.3} parent=0 // pred_check
    _
  $region23: #{fedavg_cnn_forward.3} parent=0 // pred_check_branch
    %27 = sbr.rel (0) target = $region25
  $region24: #{fedavg_cnn_forward.3} parent=0 // pred_region
    _
  $region25: #{fedavg_cnn_forward.3} parent=0 // pred_fallthru
    _
  // Predicated region
  $region26: #{fedavg_cnn_forward.3} parent=0 // pred_check
    _
  $region27: #{fedavg_cnn_forward.3} parent=0 // pred_check_branch
    %29 = sbr.rel (0) target = $region29
  $region28: #{fedavg_cnn_forward.3} parent=0 // pred_region
    _
  $region29: #{fedavg_cnn_forward.3} parent=0 // pred_fallthru
    _
  // Predicated region
  $region30: #{fedavg_cnn_forward.3} parent=0 // pred_check
    _
  $region31: #{fedavg_cnn_forward.3} parent=0 // pred_check_branch
    %31 = sbr.rel (0) target = $region33
  $region32: #{fedavg_cnn_forward.3} parent=0 // pred_region
    _
  $region33: #{fedavg_cnn_forward.3} parent=0 // pred_fallthru
    _
  // Predicated region
  $region34: #{fedavg_cnn_forward.3} parent=0 // pred_check
    _
  $region35: #{fedavg_cnn_forward.3} parent=0 // pred_check_branch
    %33 = sbr.rel (0) target = $region37
  $region36: #{fedavg_cnn_forward.3} parent=0 // pred_region
    _
  $region37: #{fedavg_cnn_forward.3} parent=0 // pred_fallthru
    _
  // Predicated region
  $region38: #{fedavg_cnn_forward.3} parent=0 // pred_check
    _
  $region39: #{fedavg_cnn_forward.3} parent=0 // pred_check_branch
    %35 = sbr.rel (0) target = $region41
  $region40: #{fedavg_cnn_forward.3} parent=0 // pred_region
    _
  $region41: #{fedavg_cnn_forward.3} parent=0 // pred_fallthru
    _
  // Predicated region
  $region42: #{fedavg_cnn_forward.3} parent=0 // pred_check
    _
  $region43: #{fedavg_cnn_forward.3} parent=0 // pred_check_branch
    %37 = sbr.rel (0) target = $region45
  $region44: #{fedavg_cnn_forward.3} parent=0 // pred_region
    _
  $region45: #{fedavg_cnn_forward.3} parent=0 // pred_fallthru
    _
  %v38 = vld [vmem:[%s4] sm:$0xff]
  %v39 = vld [vmem:[%s4 + $0x8] sm:$0xff]
  %v40 = vld [vmem:[%s4 + $0x10] sm:$0xff]
  %v41 = vld [vmem:[%s4 + $0x18] sm:$0x1]
  %v42 = vld [vmem:[%s5] sm:$0x1]
  %v43 = vld [vmem:[%s0] sm:$0xff]
  %v44 = vld [vmem:[%s0 + $0x8] sm:$0xff]
  %v45 = vld [vmem:[%s0 + $0x10] sm:$0xff]
  %v46 = vld [vmem:[%s0 + $0x18] sm:$0xff]
  %v47 = vld [vmem:[%s0 + $0x20] sm:$0xff]
  %v48 = vld [vmem:[%s0 + $0x28] sm:$0xff]
  %v49 = vld [vmem:[%s0 + $0x30] sm:$0xff]
  %v50 = vld [vmem:[%s0 + $0x38] sm:$0xff]
  %v51 = vld [vmem:[%s0 + $0x40] sm:$0xff]
  %v52 = vld [vmem:[%s0 + $0x48] sm:$0xff]
  %v53 = vld [vmem:[%s0 + $0x50] sm:$0xff]
  %v54 = vld [vmem:[%s0 + $0x58] sm:$0xff]
  %v55 = vld [vmem:[%s0 + $0x60] sm:$0xff]
  %v56 = vld [vmem:[%s0 + $0x68] sm:$0xff]
  %v57 = vld [vmem:[%s0 + $0x70] sm:$0xff]
  %v58 = vld [vmem:[%s0 + $0x78] sm:$0xff]
  %v59 = vld [vmem:[%s0 + $0x80] sm:$0xff]
  %v60 = vld [vmem:[%s0 + $0x88] sm:$0xff]
  %v61 = vld [vmem:[%s0 + $0x90] sm:$0xff]
  %v62 = vld [vmem:[%s0 + $0x98] sm:$0xff]
  %v63 = vld [vmem:[%s0 + $0xa0] sm:$0xff]
  %v64 = vld [vmem:[%s0 + $0xa8] sm:$0xff]
  %v65 = vld [vmem:[%s0 + $0xb0] sm:$0xff]
  %v66 = vld [vmem:[%s0 + $0xb8] sm:$0xff]
  %v67 = vld [vmem:[%s0 + $0xc0] sm:$0xff]
  %v68 = vld [vmem:[%s0 + $0xc8] sm:$0xff]
  %v69 = vld [vmem:[%s0 + $0xd0] sm:$0xff]
  %v70 = vld [vmem:[%s0 + $0xd8] sm:$0xff]
  %v71 = vld [vmem:[%s0 + $0xe0] sm:$0xff]
  %v72 = vld [vmem:[%s0 + $0xe8] sm:$0xff]
  %v73 = vld [vmem:[%s0 + $0xf0] sm:$0xff]
  %v74 = vld [vmem:[%s0 + $0xf8] sm:$0xff]
  %v75 = vld [vmem:[%s0 + $0x100] sm:$0xff]
  %v76 = vld [vmem:[%s0 + $0x108] sm:$0xff]
  %v77 = vld [vmem:[%s0 + $0x110] sm:$0xff]
  %v78 = vld [vmem:[%s0 + $0x118] sm:$0xff]
  %v80 = vlaneseq
  %v81 = vshrl.u32 %v80, 7
  %v82 = vsub.s32 0, %v81
  %v83 = vrot.slane %v42, %v82
  %vm85 = vcmask 203776
  %v87 = vsel %vm85, %v43, 0
  %v90 = vsel %vm85, %v44, 0
  %v93 = vsel %vm85, %v45, 0
  %v96 = vsel %vm85, %v46, 0
  %v99 = vsel %vm85, %v47, 0
  %v102 = vsel %vm85, %v48, 0
  %v105 = vsel %vm85, %v49, 0
  %v108 = vsel %vm85, %v50, 0
  %v111 = vsel %vm85, %v51, 0
  %v114 = vsel %vm85, %v52, 0
  %v117 = vsel %vm85, %v53, 0
  %v120 = vsel %vm85, %v54, 0
  %v123 = vsel %vm85, %v55, 0
  %v126 = vsel %vm85, %v56, 0
  %v129 = vsel %vm85, %v57, 0
  %v132 = vsel %vm85, %v58, 0
  %v135 = vsel %vm85, %v59, 0
  %v138 = vsel %vm85, %v60, 0
  %v141 = vsel %vm85, %v61, 0
  %v144 = vsel %vm85, %v62, 0
  %v147 = vsel %vm85, %v63, 0
  %v150 = vsel %vm85, %v64, 0
  %v153 = vsel %vm85, %v65, 0
  %v156 = vsel %vm85, %v66, 0
  %v159 = vsel %vm85, %v67, 0
  %v162 = vsel %vm85, %v68, 0
  %v165 = vsel %vm85, %v69, 0
  %v168 = vsel %vm85, %v70, 0
  %v171 = vsel %vm85, %v71, 0
  %v174 = vsel %vm85, %v72, 0
  %v177 = vsel %vm85, %v73, 0
  %v180 = vsel %vm85, %v74, 0
  %v183 = vsel %vm85, %v75, 0
  %v186 = vsel %vm85, %v76, 0
  %v189 = vsel %vm85, %v77, 0
  %v192 = vsel %vm85, %v78, 0
  %vm194 = vcmask 1040384
  %v196 = vsel %vm194, %v41, 0
  %198 = vmatprep.subr.mxu0 0.0
  %199 = vmatpush1.msra.mxu0 %v38
  %200 = vmatprep.subr.mxu0 0.0
  %201 = vmatpush1.msra.mxu0 %v39
  %202 = vmatprep.subr.mxu0 0.0
  %203 = vmatpush1.msra.mxu0 %v40
  %204 = vmatprep.subr.mxu0 0.0
  %205 = vmatpush1.msra.mxu0 %v196
  %206 = vmatprep.subr.mxu0 0.0
  %207 = vmatpush1.msra.mxu0 0.0
  %208 = vmatprep.subr.mxu0 0.0
  %209 = vmatpush1.msra.mxu0 0.0
  %210 = vmatprep.subr.mxu0 0.0
  %211 = vmatpush1.msra.mxu0 0.0
  %212 = vmatprep.subr.mxu0 0.0
  %213 = vmatpush1.msra.mxu0 0.0
  %214 = vmatprep.subr.mxu0 0.0
  %215 = vmatpush1.msra.mxu0 0.0
  %216 = vmatprep.subr.mxu0 0.0
  %217 = vmatpush1.msra.mxu0 0.0
  %218 = vmatprep.subr.mxu0 0.0
  %219 = vmatpush1.msra.mxu0 0.0
  %220 = vmatprep.subr.mxu0 0.0
  %221 = vmatpush1.msra.mxu0 0.0
  %222 = vmatprep.subr.mxu0 0.0
  %223 = vmatpush1.msra.mxu0 0.0
  %224 = vmatprep.subr.mxu0 0.0
  %225 = vmatpush1.msra.mxu0 0.0
  %226 = vmatprep.subr.mxu0 0.0
  %227 = vmatpush1.msra.mxu0 0.0
  %228 = vmatprep.subr.mxu0 0.0
  %229 = vmatpush1.msra.mxu0 0.0
  %230 = vmatprep.subr.mxu0 0.0
  %231 = vmatpush1.msra.mxu0 0.0
  %232 = vmatprep.subr.mxu0 0.0
  %233 = vmatpush1.msra.mxu0 0.0
  %234 = vmatprep.subr.mxu0 0.0
  %235 = vmatpush1.msra.mxu0 0.0
  %236 = vmatprep.subr.mxu0 0.0
  %237 = vmatpush1.msra.mxu0 0.0
  %238 = vmatprep.subr.mxu0 0.0
  %239 = vmatpush1.msra.mxu0 0.0
  %240 = vmatprep.subr.mxu0 0.0
  %241 = vmatpush1.msra.mxu0 0.0
  %242 = vmatprep.subr.mxu0 0.0
  %243 = vmatpush1.msra.mxu0 0.0
  %244 = vmatprep.subr.mxu0 0.0
  %245 = vmatpush1.msra.mxu0 0.0
  %246 = vmatprep.subr.mxu0 0.0
  %247 = vmatpush1.msra.mxu0 0.0
  %248 = vmatprep.subr.mxu0 0.0
  %249 = vmatpush1.msra.mxu0 0.0
  %250 = vmatprep.subr.mxu0 0.0
  %251 = vmatpush1.msra.mxu0 0.0
  %252 = vmatprep.subr.mxu0 0.0
  %253 = vmatpush1.msra.mxu0 0.0
  %254 = vmatprep.subr.mxu0 0.0
  %255 = vmatpush1.msra.mxu0 0.0
  %256 = vmatprep.subr.mxu0 0.0
  %257 = vmatpush1.msra.mxu0 0.0
  %258 = vmatprep.subr.mxu0 0.0
  %259 = vmatpush1.msra.mxu0 0.0
  %260 = vmatprep.subr.mxu0 0.0
  %261 = vmatpush1.msra.mxu0 0.0
  %262 = vmatprep.mubr.f32.mxu0 0.0
  %263 = vmatmul.mubr.f32.gmra.mrb[0].mxu0 %v87
  %v264 = vpop.f32.mrb[0].mxu0
  %v265 = vadd.f32 %v83, %v264
  %v266 = vpop.f32.mrb[0].mxu0
  %267 = vmatprep.mubr.f32.mxu0 0.0
  %268 = vmatmul.mubr.f32.gmra.mrb[0].mxu0 %v90
  %v269 = vpop.f32.mrb[0].mxu0
  %v270 = vadd.f32 %v83, %v269
  %v271 = vpop.f32.mrb[0].mxu0
  %272 = vmatprep.mubr.f32.mxu0 0.0
  %273 = vmatmul.mubr.f32.gmra.mrb[0].mxu0 %v93
  %v274 = vpop.f32.mrb[0].mxu0
  %v275 = vadd.f32 %v83, %v274
  %v276 = vpop.f32.mrb[0].mxu0
  %277 = vmatprep.mubr.f32.mxu0 0.0
  %278 = vmatmul.mubr.f32.gmra.mrb[0].mxu0 %v96
  %v279 = vpop.f32.mrb[0].mxu0
  %v280 = vadd.f32 %v83, %v279
  %v281 = vpop.f32.mrb[0].mxu0
  %282 = vmatprep.mubr.f32.mxu0 0.0
  %283 = vmatmul.mubr.f32.gmra.mrb[0].mxu0 %v99
  %v284 = vpop.f32.mrb[0].mxu0
  %v285 = vadd.f32 %v83, %v284
  %v286 = vpop.f32.mrb[0].mxu0
  %287 = vmatprep.mubr.f32.mxu0 0.0
  %288 = vmatmul.mubr.f32.gmra.mrb[0].mxu0 %v102
  %v289 = vpop.f32.mrb[0].mxu0
  %v290 = vadd.f32 %v83, %v289
  %v291 = vpop.f32.mrb[0].mxu0
  %292 = vmatprep.mubr.f32.mxu0 0.0
  %293 = vmatmul.mubr.f32.gmra.mrb[0].mxu0 %v105
  %v294 = vpop.f32.mrb[0].mxu0
  %v295 = vadd.f32 %v83, %v294
  %v296 = vpop.f32.mrb[0].mxu0
  %297 = vmatprep.mubr.f32.mxu0 0.0
  %298 = vmatmul.mubr.f32.gmra.mrb[0].mxu0 %v108
  %v299 = vpop.f32.mrb[0].mxu0
  %v300 = vadd.f32 %v83, %v299
  %v301 = vpop.f32.mrb[0].mxu0
  %302 = vmatprep.mubr.f32.mxu0 0.0
  %303 = vmatmul.mubr.f32.gmra.mrb[0].mxu0 %v111
  %v304 = vpop.f32.mrb[0].mxu0
  %v305 = vadd.f32 %v83, %v304
  %v306 = vpop.f32.mrb[0].mxu0
  %307 = vmatprep.mubr.f32.mxu0 0.0
  %308 = vmatmul.mubr.f32.gmra.mrb[0].mxu0 %v114
  %v309 = vpop.f32.mrb[0].mxu0
  %v310 = vadd.f32 %v83, %v309
  %v311 = vpop.f32.mrb[0].mxu0
  %312 = vmatprep.mubr.f32.mxu0 0.0
  %313 = vmatmul.mubr.f32.gmra.mrb[0].mxu0 %v117
  %v314 = vpop.f32.mrb[0].mxu0
  %v315 = vadd.f32 %v83, %v314
  %v316 = vpop.f32.mrb[0].mxu0
  %317 = vmatprep.mubr.f32.mxu0 0.0
  %318 = vmatmul.mubr.f32.gmra.mrb[0].mxu0 %v120
  %v319 = vpop.f32.mrb[0].mxu0
  %v320 = vadd.f32 %v83, %v319
  %v321 = vpop.f32.mrb[0].mxu0
  %322 = vmatprep.mubr.f32.mxu0 0.0
  %323 = vmatmul.mubr.f32.gmra.mrb[0].mxu0 %v123
  %v324 = vpop.f32.mrb[0].mxu0
  %v325 = vadd.f32 %v83, %v324
  %v326 = vpop.f32.mrb[0].mxu0
  %327 = vmatprep.mubr.f32.mxu0 0.0
  %328 = vmatmul.mubr.f32.gmra.mrb[0].mxu0 %v126
  %v329 = vpop.f32.mrb[0].mxu0
  %v330 = vadd.f32 %v83, %v329
  %v331 = vpop.f32.mrb[0].mxu0
  %332 = vmatprep.mubr.f32.mxu0 0.0
  %333 = vmatmul.mubr.f32.gmra.mrb[0].mxu0 %v129
  %v334 = vpop.f32.mrb[0].mxu0
  %v335 = vadd.f32 %v83, %v334
  %v336 = vpop.f32.mrb[0].mxu0
  %337 = vmatprep.mubr.f32.mxu0 0.0
  %338 = vmatmul.mubr.f32.gmra.mrb[0].mxu0 %v132
  %v339 = vpop.f32.mrb[0].mxu0
  %v340 = vadd.f32 %v83, %v339
  %v341 = vpop.f32.mrb[0].mxu0
  %342 = vmatprep.mubr.f32.mxu0 0.0
  %343 = vmatmul.mubr.f32.gmra.mrb[0].mxu0 %v135
  %v344 = vpop.f32.mrb[0].mxu0
  %v345 = vadd.f32 %v83, %v344
  %v346 = vpop.f32.mrb[0].mxu0
  %347 = vmatprep.mubr.f32.mxu0 0.0
  %348 = vmatmul.mubr.f32.gmra.mrb[0].mxu0 %v138
  %v349 = vpop.f32.mrb[0].mxu0
  %v350 = vadd.f32 %v83, %v349
  %v351 = vpop.f32.mrb[0].mxu0
  %352 = vmatprep.mubr.f32.mxu0 0.0
  %353 = vmatmul.mubr.f32.gmra.mrb[0].mxu0 %v141
  %v354 = vpop.f32.mrb[0].mxu0
  %v355 = vadd.f32 %v83, %v354
  %v356 = vpop.f32.mrb[0].mxu0
  %357 = vmatprep.mubr.f32.mxu0 0.0
  %358 = vmatmul.mubr.f32.gmra.mrb[0].mxu0 %v144
  %v359 = vpop.f32.mrb[0].mxu0
  %v360 = vadd.f32 %v83, %v359
  %v361 = vpop.f32.mrb[0].mxu0
  %362 = vmatprep.mubr.f32.mxu0 0.0
  %363 = vmatmul.mubr.f32.gmra.mrb[0].mxu0 %v147
  %v364 = vpop.f32.mrb[0].mxu0
  %v365 = vadd.f32 %v83, %v364
  %v366 = vpop.f32.mrb[0].mxu0
  %367 = vmatprep.mubr.f32.mxu0 0.0
  %368 = vmatmul.mubr.f32.gmra.mrb[0].mxu0 %v150
  %v369 = vpop.f32.mrb[0].mxu0
  %v370 = vadd.f32 %v83, %v369
  %v371 = vpop.f32.mrb[0].mxu0
  %372 = vmatprep.mubr.f32.mxu0 0.0
  %373 = vmatmul.mubr.f32.gmra.mrb[0].mxu0 %v153
  %v374 = vpop.f32.mrb[0].mxu0
  %v375 = vadd.f32 %v83, %v374
  %v376 = vpop.f32.mrb[0].mxu0
  %377 = vmatprep.mubr.f32.mxu0 0.0
  %378 = vmatmul.mubr.f32.gmra.mrb[0].mxu0 %v156
  %v379 = vpop.f32.mrb[0].mxu0
  %v380 = vadd.f32 %v83, %v379
  %v381 = vpop.f32.mrb[0].mxu0
  %382 = vmatprep.mubr.f32.mxu0 0.0
  %383 = vmatmul.mubr.f32.gmra.mrb[0].mxu0 %v159
  %v384 = vpop.f32.mrb[0].mxu0
  %v385 = vadd.f32 %v83, %v384
  %v386 = vpop.f32.mrb[0].mxu0
  %387 = vmatprep.mubr.f32.mxu0 0.0
  %388 = vmatmul.mubr.f32.gmra.mrb[0].mxu0 %v162
  %v389 = vpop.f32.mrb[0].mxu0
  %v390 = vadd.f32 %v83, %v389
  %v391 = vpop.f32.mrb[0].mxu0
  %392 = vmatprep.mubr.f32.mxu0 0.0
  %393 = vmatmul.mubr.f32.gmra.mrb[0].mxu0 %v165
  %v394 = vpop.f32.mrb[0].mxu0
  %v395 = vadd.f32 %v83, %v394
  %v396 = vpop.f32.mrb[0].mxu0
  %397 = vmatprep.mubr.f32.mxu0 0.0
  %398 = vmatmul.mubr.f32.gmra.mrb[0].mxu0 %v168
  %v399 = vpop.f32.mrb[0].mxu0
  %v400 = vadd.f32 %v83, %v399
  %v401 = vpop.f32.mrb[0].mxu0
  %402 = vmatprep.mubr.f32.mxu0 0.0
  %403 = vmatmul.mubr.f32.gmra.mrb[0].mxu0 %v171
  %v404 = vpop.f32.mrb[0].mxu0
  %v405 = vadd.f32 %v83, %v404
  %v406 = vpop.f32.mrb[0].mxu0
  %407 = vmatprep.mubr.f32.mxu0 0.0
  %408 = vmatmul.mubr.f32.gmra.mrb[0].mxu0 %v174
  %v409 = vpop.f32.mrb[0].mxu0
  %v410 = vadd.f32 %v83, %v409
  %v411 = vpop.f32.mrb[0].mxu0
  %412 = vmatprep.mubr.f32.mxu0 0.0
  %413 = vmatmul.mubr.f32.gmra.mrb[0].mxu0 %v177
  %v414 = vpop.f32.mrb[0].mxu0
  %v415 = vadd.f32 %v83, %v414
  %v416 = vpop.f32.mrb[0].mxu0
  %417 = vmatprep.mubr.f32.mxu0 0.0
  %418 = vmatmul.mubr.f32.gmra.mrb[0].mxu0 %v180
  %v419 = vpop.f32.mrb[0].mxu0
  %v420 = vadd.f32 %v83, %v419
  %v421 = vpop.f32.mrb[0].mxu0
  %422 = vmatprep.mubr.f32.mxu0 0.0
  %423 = vmatmul.mubr.f32.gmra.mrb[0].mxu0 %v183
  %v424 = vpop.f32.mrb[0].mxu0
  %v425 = vadd.f32 %v83, %v424
  %v426 = vpop.f32.mrb[0].mxu0
  %427 = vmatprep.mubr.f32.mxu0 0.0
  %428 = vmatmul.mubr.f32.gmra.mrb[0].mxu0 %v186
  %v429 = vpop.f32.mrb[0].mxu0
  %v430 = vadd.f32 %v83, %v429
  %v431 = vpop.f32.mrb[0].mxu0
  %432 = vmatprep.mubr.f32.mxu0 0.0
  %433 = vmatmul.mubr.f32.gmra.mrb[0].mxu0 %v189
  %v434 = vpop.f32.mrb[0].mxu0
  %v435 = vadd.f32 %v83, %v434
  %v436 = vpop.f32.mrb[0].mxu0
  %437 = vmatprep.mubr.f32.mxu0 0.0
  %438 = vmatmul.mubr.f32.gmra.mrb[0].mxu0 %v192
  %v439 = vpop.f32.mrb[0].mxu0
  %v440 = vadd.f32 %v83, %v439
  %v441 = vpop.f32.mrb[0].mxu0
  %442 = vdwg.mxu0
  %v443 = vld [vmem:[%s1] sm:$0xff]
  %v444 = vld [vmem:[%s1 + $0x8] sm:$0xff]
  %v445 = vld [vmem:[%s1 + $0x10] sm:$0xff]
  %v446 = vld [vmem:[%s1 + $0x18] sm:$0xff]
  %v447 = vld [vmem:[%s1 + $0x20] sm:$0xff]
  %v448 = vld [vmem:[%s1 + $0x28] sm:$0xff]
  %v449 = vld [vmem:[%s1 + $0x30] sm:$0xff]
  %v450 = vld [vmem:[%s1 + $0x38] sm:$0xff]
  %v451 = vld [vmem:[%s1 + $0x40] sm:$0xff]
  %v452 = vld [vmem:[%s1 + $0x48] sm:$0xff]
  %v453 = vld [vmem:[%s1 + $0x50] sm:$0xff]
  %v454 = vld [vmem:[%s1 + $0x58] sm:$0xff]
  %v455 = vld [vmem:[%s1 + $0x60] sm:$0xff]
  %v456 = vld [vmem:[%s1 + $0x68] sm:$0xff]
  %v457 = vld [vmem:[%s1 + $0x70] sm:$0xff]
  %v458 = vld [vmem:[%s1 + $0x78] sm:$0xff]
  %v459 = vld [vmem:[%s1 + $0x80] sm:$0xff]
  %v460 = vld [vmem:[%s1 + $0x88] sm:$0xff]
  %v461 = vld [vmem:[%s1 + $0x90] sm:$0xff]
  %v462 = vld [vmem:[%s1 + $0x98] sm:$0xff]
  %v463 = vld [vmem:[%s1 + $0xa0] sm:$0xff]
  %v464 = vld [vmem:[%s1 + $0xa8] sm:$0xff]
  %v465 = vld [vmem:[%s1 + $0xb0] sm:$0xff]
  %v466 = vld [vmem:[%s1 + $0xb8] sm:$0xff]
  %v467 = vld [vmem:[%s1 + $0xc0] sm:$0xff]
  %v468 = vld [vmem:[%s1 + $0xc8] sm:$0xff]
  %v469 = vld [vmem:[%s1 + $0xd0] sm:$0xff]
  %v470 = vld [vmem:[%s1 + $0xd8] sm:$0xff]
  %v471 = vld [vmem:[%s1 + $0xe0] sm:$0xff]
  %v472 = vld [vmem:[%s1 + $0xe8] sm:$0xff]
  %v473 = vld [vmem:[%s1 + $0xf0] sm:$0xff]
  %v474 = vld [vmem:[%s1 + $0xf8] sm:$0xff]
  %v475 = vld [vmem:[%s1 + $0x100] sm:$0xff]
  %v476 = vld [vmem:[%s1 + $0x108] sm:$0xff]
  %v477 = vld [vmem:[%s1 + $0x110] sm:$0xff]
  %v478 = vld [vmem:[%s1 + $0x118] sm:$0xff]
  %v480 = vsel %vm85, %v443, 0
  %v483 = vsel %vm85, %v444, 0
  %v486 = vsel %vm85, %v445, 0
  %v489 = vsel %vm85, %v446, 0
  %v492 = vsel %vm85, %v447, 0
  %v495 = vsel %vm85, %v448, 0
  %v498 = vsel %vm85, %v449, 0
  %v501 = vsel %vm85, %v450, 0
  %v504 = vsel %vm85, %v451, 0
  %v507 = vsel %vm85, %v452, 0
  %v510 = vsel %vm85, %v453, 0
  %v513 = vsel %vm85, %v454, 0
  %v516 = vsel %vm85, %v455, 0
  %v519 = vsel %vm85, %v456, 0
  %v522 = vsel %vm85, %v457, 0
  %v525 = vsel %vm85, %v458, 0
  %v528 = vsel %vm85, %v459, 0
  %v531 = vsel %vm85, %v460, 0
  %v534 = vsel %vm85, %v461, 0
  %v537 = vsel %vm85, %v462, 0
  %v540 = vsel %vm85, %v463, 0
  %v543 = vsel %vm85, %v464, 0
  %v546 = vsel %vm85, %v465, 0
  %v549 = vsel %vm85, %v466, 0
  %v552 = vsel %vm85, %v467, 0
  %v555 = vsel %vm85, %v468, 0
  %v558 = vsel %vm85, %v469, 0
  %v561 = vsel %vm85, %v470, 0
  %v564 = vsel %vm85, %v471, 0
  %v567 = vsel %vm85, %v472, 0
  %v570 = vsel %vm85, %v473, 0
  %v573 = vsel %vm85, %v474, 0
  %v576 = vsel %vm85, %v475, 0
  %v579 = vsel %vm85, %v476, 0
  %v582 = vsel %vm85, %v477, 0
  %v585 = vsel %vm85, %v478, 0
  %587 = vmatprep.subr.mxu0 0.0
  %588 = vmatpush1.msra.mxu0 %v38
  %589 = vmatprep.subr.mxu0 0.0
  %590 = vmatpush1.msra.mxu0 %v39
  %591 = vmatprep.subr.mxu0 0.0
  %592 = vmatpush1.msra.mxu0 %v40
  %593 = vmatprep.subr.mxu0 0.0
  %594 = vmatpush1.msra.mxu0 %v196
  %595 = vmatprep.subr.mxu0 0.0
  %596 = vmatpush1.msra.mxu0 0.0
  %597 = vmatprep.subr.mxu0 0.0
  %598 = vmatpush1.msra.mxu0 0.0
  %599 = vmatprep.subr.mxu0 0.0
  %600 = vmatpush1.msra.mxu0 0.0
  %601 = vmatprep.subr.mxu0 0.0
  %602 = vmatpush1.msra.mxu0 0.0
  %603 = vmatprep.subr.mxu0 0.0
  %604 = vmatpush1.msra.mxu0 0.0
  %605 = vmatprep.subr.mxu0 0.0
  %606 = vmatpush1.msra.mxu0 0.0
  %607 = vmatprep.subr.mxu0 0.0
  %608 = vmatpush1.msra.mxu0 0.0
  %609 = vmatprep.subr.mxu0 0.0
  %610 = vmatpush1.msra.mxu0 0.0
  %611 = vmatprep.subr.mxu0 0.0
  %612 = vmatpush1.msra.mxu0 0.0
  %613 = vmatprep.subr.mxu0 0.0
  %614 = vmatpush1.msra.mxu0 0.0
  %615 = vmatprep.subr.mxu0 0.0
  %616 = vmatpush1.msra.mxu0 0.0
  %617 = vmatprep.subr.mxu0 0.0
  %618 = vmatpush1.msra.mxu0 0.0
  %619 = vmatprep.subr.mxu0 0.0
  %620 = vmatpush1.msra.mxu0 0.0
  %621 = vmatprep.subr.mxu0 0.0
  %622 = vmatpush1.msra.mxu0 0.0
  %623 = vmatprep.subr.mxu0 0.0
  %624 = vmatpush1.msra.mxu0 0.0
  %625 = vmatprep.subr.mxu0 0.0
  %626 = vmatpush1.msra.mxu0 0.0
  %627 = vmatprep.subr.mxu0 0.0
  %628 = vmatpush1.msra.mxu0 0.0
  %629 = vmatprep.subr.mxu0 0.0
  %630 = vmatpush1.msra.mxu0 0.0
  %631 = vmatprep.subr.mxu0 0.0
  %632 = vmatpush1.msra.mxu0 0.0
  %633 = vmatprep.subr.mxu0 0.0
  %634 = vmatpush1.msra.mxu0 0.0
  %635 = vmatprep.subr.mxu0 0.0
  %636 = vmatpush1.msra.mxu0 0.0
  %637 = vmatprep.subr.mxu0 0.0
  %638 = vmatpush1.msra.mxu0 0.0
  %639 = vmatprep.subr.mxu0 0.0
  %640 = vmatpush1.msra.mxu0 0.0
  %641 = vmatprep.subr.mxu0 0.0
  %642 = vmatpush1.msra.mxu0 0.0
  %643 = vmatprep.subr.mxu0 0.0
  %644 = vmatpush1.msra.mxu0 0.0
  %645 = vmatprep.subr.mxu0 0.0
  %646 = vmatpush1.msra.mxu0 0.0
  %647 = vmatprep.subr.mxu0 0.0
  %648 = vmatpush1.msra.mxu0 0.0
  %649 = vmatprep.subr.mxu0 0.0
  %650 = vmatpush1.msra.mxu0 0.0
  %651 = vmatprep.mubr.f32.mxu0 0.0
  %652 = vmatmul.mubr.f32.gmra.mrb[0].mxu0 %v480
  %v653 = vpop.f32.mrb[0].mxu0
  %v654 = vadd.f32 %v83, %v653
  %v655 = vpop.f32.mrb[0].mxu0
  %656 = vmatprep.mubr.f32.mxu0 0.0
  %657 = vmatmul.mubr.f32.gmra.mrb[0].mxu0 %v483
  %v658 = vpop.f32.mrb[0].mxu0
  %v659 = vadd.f32 %v83, %v658
  %v660 = vpop.f32.mrb[0].mxu0
  %661 = vmatprep.mubr.f32.mxu0 0.0
  %662 = vmatmul.mubr.f32.gmra.mrb[0].mxu0 %v486
  %v663 = vpop.f32.mrb[0].mxu0
  %v664 = vadd.f32 %v83, %v663
  %v665 = vpop.f32.mrb[0].mxu0
  %666 = vmatprep.mubr.f32.mxu0 0.0
  %667 = vmatmul.mubr.f32.gmra.mrb[0].mxu0 %v489
  %v668 = vpop.f32.mrb[0].mxu0
  %v669 = vadd.f32 %v83, %v668
  %v670 = vpop.f32.mrb[0].mxu0
  %671 = vmatprep.mubr.f32.mxu0 0.0
  %672 = vmatmul.mubr.f32.gmra.mrb[0].mxu0 %v492
  %v673 = vpop.f32.mrb[0].mxu0
  %v674 = vadd.f32 %v83, %v673
  %v675 = vpop.f32.mrb[0].mxu0
  %676 = vmatprep.mubr.f32.mxu0 0.0
  %677 = vmatmul.mubr.f32.gmra.mrb[0].mxu0 %v495
  %v678 = vpop.f32.mrb[0].mxu0
  %v679 = vadd.f32 %v83, %v678
  %v680 = vpop.f32.mrb[0].mxu0
  %681 = vmatprep.mubr.f32.mxu0 0.0
  %682 = vmatmul.mubr.f32.gmra.mrb[0].mxu0 %v498
  %v683 = vpop.f32.mrb[0].mxu0
  %v684 = vadd.f32 %v83, %v683
  %v685 = vpop.f32.mrb[0].mxu0
  %686 = vmatprep.mubr.f32.mxu0 0.0
  %687 = vmatmul.mubr.f32.gmra.mrb[0].mxu0 %v501
  %v688 = vpop.f32.mrb[0].mxu0
  %v689 = vadd.f32 %v83, %v688
  %v690 = vpop.f32.mrb[0].mxu0
  %691 = vmatprep.mubr.f32.mxu0 0.0
  %692 = vmatmul.mubr.f32.gmra.mrb[0].mxu0 %v504
  %v693 = vpop.f32.mrb[0].mxu0
  %v694 = vadd.f32 %v83, %v693
  %v695 = vpop.f32.mrb[0].mxu0
  %696 = vmatprep.mubr.f32.mxu0 0.0
  %697 = vmatmul.mubr.f32.gmra.mrb[0].mxu0 %v507
  %v698 = vpop.f32.mrb[0].mxu0
  %v699 = vadd.f32 %v83, %v698
  %v700 = vpop.f32.mrb[0].mxu0
  %701 = vmatprep.mubr.f32.mxu0 0.0
  %702 = vmatmul.mubr.f32.gmra.mrb[0].mxu0 %v510
  %v703 = vpop.f32.mrb[0].mxu0
  %v704 = vadd.f32 %v83, %v703
  %v705 = vpop.f32.mrb[0].mxu0
  %706 = vmatprep.mubr.f32.mxu0 0.0
  %707 = vmatmul.mubr.f32.gmra.mrb[0].mxu0 %v513
  %v708 = vpop.f32.mrb[0].mxu0
  %v709 = vadd.f32 %v83, %v708
  %v710 = vpop.f32.mrb[0].mxu0
  %711 = vmatprep.mubr.f32.mxu0 0.0
  %712 = vmatmul.mubr.f32.gmra.mrb[0].mxu0 %v516
  %v713 = vpop.f32.mrb[0].mxu0
  %v714 = vadd.f32 %v83, %v713
  %v715 = vpop.f32.mrb[0].mxu0
  %716 = vmatprep.mubr.f32.mxu0 0.0
  %717 = vmatmul.mubr.f32.gmra.mrb[0].mxu0 %v519
  %v718 = vpop.f32.mrb[0].mxu0
  %v719 = vadd.f32 %v83, %v718
  %v720 = vpop.f32.mrb[0].mxu0
  %721 = vmatprep.mubr.f32.mxu0 0.0
  %722 = vmatmul.mubr.f32.gmra.mrb[0].mxu0 %v522
  %v723 = vpop.f32.mrb[0].mxu0
  %v724 = vadd.f32 %v83, %v723
  %v725 = vpop.f32.mrb[0].mxu0
  %726 = vmatprep.mubr.f32.mxu0 0.0
  %727 = vmatmul.mubr.f32.gmra.mrb[0].mxu0 %v525
  %v728 = vpop.f32.mrb[0].mxu0
  %v729 = vadd.f32 %v83, %v728
  %v730 = vpop.f32.mrb[0].mxu0
  %731 = vmatprep.mubr.f32.mxu0 0.0
  %732 = vmatmul.mubr.f32.gmra.mrb[0].mxu0 %v528
  %v733 = vpop.f32.mrb[0].mxu0
  %v734 = vadd.f32 %v83, %v733
  %v735 = vpop.f32.mrb[0].mxu0
  %736 = vmatprep.mubr.f32.mxu0 0.0
  %737 = vmatmul.mubr.f32.gmra.mrb[0].mxu0 %v531
  %v738 = vpop.f32.mrb[0].mxu0
  %v739 = vadd.f32 %v83, %v738
  %v740 = vpop.f32.mrb[0].mxu0
  %741 = vmatprep.mubr.f32.mxu0 0.0
  %742 = vmatmul.mubr.f32.gmra.mrb[0].mxu0 %v534
  %v743 = vpop.f32.mrb[0].mxu0
  %v744 = vadd.f32 %v83, %v743
  %v745 = vpop.f32.mrb[0].mxu0
  %746 = vmatprep.mubr.f32.mxu0 0.0
  %747 = vmatmul.mubr.f32.gmra.mrb[0].mxu0 %v537
  %v748 = vpop.f32.mrb[0].mxu0
  %v749 = vadd.f32 %v83, %v748
  %v750 = vpop.f32.mrb[0].mxu0
  %751 = vmatprep.mubr.f32.mxu0 0.0
  %752 = vmatmul.mubr.f32.gmra.mrb[0].mxu0 %v540
  %v753 = vpop.f32.mrb[0].mxu0
  %v754 = vadd.f32 %v83, %v753
  %v755 = vpop.f32.mrb[0].mxu0
  %756 = vmatprep.mubr.f32.mxu0 0.0
  %757 = vmatmul.mubr.f32.gmra.mrb[0].mxu0 %v543
  %v758 = vpop.f32.mrb[0].mxu0
  %v759 = vadd.f32 %v83, %v758
  %v760 = vpop.f32.mrb[0].mxu0
  %761 = vmatprep.mubr.f32.mxu0 0.0
  %762 = vmatmul.mubr.f32.gmra.mrb[0].mxu0 %v546
  %v763 = vpop.f32.mrb[0].mxu0
  %v764 = vadd.f32 %v83, %v763
  %v765 = vpop.f32.mrb[0].mxu0
  %766 = vmatprep.mubr.f32.mxu0 0.0
  %767 = vmatmul.mubr.f32.gmra.mrb[0].mxu0 %v549
  %v768 = vpop.f32.mrb[0].mxu0
  %v769 = vadd.f32 %v83, %v768
  %v770 = vpop.f32.mrb[0].mxu0
  %771 = vmatprep.mubr.f32.mxu0 0.0
  %772 = vmatmul.mubr.f32.gmra.mrb[0].mxu0 %v552
  %v773 = vpop.f32.mrb[0].mxu0
  %v774 = vadd.f32 %v83, %v773
  %v775 = vpop.f32.mrb[0].mxu0
  %776 = vmatprep.mubr.f32.mxu0 0.0
  %777 = vmatmul.mubr.f32.gmra.mrb[0].mxu0 %v555
  %v778 = vpop.f32.mrb[0].mxu0
  %v779 = vadd.f32 %v83, %v778
  %v780 = vpop.f32.mrb[0].mxu0
  %781 = vmatprep.mubr.f32.mxu0 0.0
  %782 = vmatmul.mubr.f32.gmra.mrb[0].mxu0 %v558
  %v783 = vpop.f32.mrb[0].mxu0
  %v784 = vadd.f32 %v83, %v783
  %v785 = vpop.f32.mrb[0].mxu0
  %786 = vmatprep.mubr.f32.mxu0 0.0
  %787 = vmatmul.mubr.f32.gmra.mrb[0].mxu0 %v561
  %v788 = vpop.f32.mrb[0].mxu0
  %v789 = vadd.f32 %v83, %v788
  %v790 = vpop.f32.mrb[0].mxu0
  %791 = vmatprep.mubr.f32.mxu0 0.0
  %792 = vmatmul.mubr.f32.gmra.mrb[0].mxu0 %v564
  %v793 = vpop.f32.mrb[0].mxu0
  %v794 = vadd.f32 %v83, %v793
  %v795 = vpop.f32.mrb[0].mxu0
  %796 = vmatprep.mubr.f32.mxu0 0.0
  %797 = vmatmul.mubr.f32.gmra.mrb[0].mxu0 %v567
  %v798 = vpop.f32.mrb[0].mxu0
  %v799 = vadd.f32 %v83, %v798
  %v800 = vpop.f32.mrb[0].mxu0
  %801 = vmatprep.mubr.f32.mxu0 0.0
  %802 = vmatmul.mubr.f32.gmra.mrb[0].mxu0 %v570
  %v803 = vpop.f32.mrb[0].mxu0
  %v804 = vadd.f32 %v83, %v803
  %v805 = vpop.f32.mrb[0].mxu0
  %806 = vmatprep.mubr.f32.mxu0 0.0
  %807 = vmatmul.mubr.f32.gmra.mrb[0].mxu0 %v573
  %v808 = vpop.f32.mrb[0].mxu0
  %v809 = vadd.f32 %v83, %v808
  %v810 = vpop.f32.mrb[0].mxu0
  %811 = vmatprep.mubr.f32.mxu0 0.0
  %812 = vmatmul.mubr.f32.gmra.mrb[0].mxu0 %v576
  %v813 = vpop.f32.mrb[0].mxu0
  %v814 = vadd.f32 %v83, %v813
  %v815 = vpop.f32.mrb[0].mxu0
  %816 = vmatprep.mubr.f32.mxu0 0.0
  %817 = vmatmul.mubr.f32.gmra.mrb[0].mxu0 %v579
  %v818 = vpop.f32.mrb[0].mxu0
  %v819 = vadd.f32 %v83, %v818
  %v820 = vpop.f32.mrb[0].mxu0
  %821 = vmatprep.mubr.f32.mxu0 0.0
  %822 = vmatmul.mubr.f32.gmra.mrb[0].mxu0 %v582
  %v823 = vpop.f32.mrb[0].mxu0
  %v824 = vadd.f32 %v83, %v823
  %v825 = vpop.f32.mrb[0].mxu0
  %826 = vmatprep.mubr.f32.mxu0 0.0
  %827 = vmatmul.mubr.f32.gmra.mrb[0].mxu0 %v585
  %v828 = vpop.f32.mrb[0].mxu0
  %v829 = vadd.f32 %v83, %v828
  %v830 = vpop.f32.mrb[0].mxu0
  %831 = vdwg.mxu0
  %v832 = vld [vmem:[%s2] sm:$0xff]
  %v833 = vld [vmem:[%s2 + $0x8] sm:$0xff]
  %v834 = vld [vmem:[%s2 + $0x10] sm:$0xff]
  %v835 = vld [vmem:[%s2 + $0x18] sm:$0xff]
  %v836 = vld [vmem:[%s2 + $0x20] sm:$0xff]
  %v837 = vld [vmem:[%s2 + $0x28] sm:$0xff]
  %v838 = vld [vmem:[%s2 + $0x30] sm:$0xff]
  %v839 = vld [vmem:[%s2 + $0x38] sm:$0xff]
  %v840 = vld [vmem:[%s2 + $0x40] sm:$0xff]
  %v841 = vld [vmem:[%s2 + $0x48] sm:$0xff]
  %v842 = vld [vmem:[%s2 + $0x50] sm:$0xff]
  %v843 = vld [vmem:[%s2 + $0x58] sm:$0xff]
  %v844 = vld [vmem:[%s2 + $0x60] sm:$0xff]
  %v845 = vld [vmem:[%s2 + $0x68] sm:$0xff]
  %v846 = vld [vmem:[%s2 + $0x70] sm:$0xff]
  %v847 = vld [vmem:[%s2 + $0x78] sm:$0xff]
  %v848 = vld [vmem:[%s2 + $0x80] sm:$0xff]
  %v849 = vld [vmem:[%s2 + $0x88] sm:$0xff]
  %v850 = vld [vmem:[%s2 + $0x90] sm:$0xff]
  %v851 = vld [vmem:[%s2 + $0x98] sm:$0xff]
  %v852 = vld [vmem:[%s2 + $0xa0] sm:$0xff]
  %v853 = vld [vmem:[%s2 + $0xa8] sm:$0xff]
  %v854 = vld [vmem:[%s2 + $0xb0] sm:$0xff]
  %v855 = vld [vmem:[%s2 + $0xb8] sm:$0xff]
  %v856 = vld [vmem:[%s2 + $0xc0] sm:$0xff]
  %v857 = vld [vmem:[%s2 + $0xc8] sm:$0xff]
  %v858 = vld [vmem:[%s2 + $0xd0] sm:$0xff]
  %v859 = vld [vmem:[%s2 + $0xd8] sm:$0xff]
  %v860 = vld [vmem:[%s2 + $0xe0] sm:$0xff]
  %v861 = vld [vmem:[%s2 + $0xe8] sm:$0xff]
  %v862 = vld [vmem:[%s2 + $0xf0] sm:$0xff]
  %v863 = vld [vmem:[%s2 + $0xf8] sm:$0xff]
  %v864 = vld [vmem:[%s2 + $0x100] sm:$0xff]
  %v865 = vld [vmem:[%s2 + $0x108] sm:$0xff]
  %v866 = vld [vmem:[%s2 + $0x110] sm:$0xff]
  %v867 = vld [vmem:[%s2 + $0x118] sm:$0xff]
  %v869 = vsel %vm85, %v832, 0
  %v872 = vsel %vm85, %v833, 0
  %v875 = vsel %vm85, %v834, 0
  %v878 = vsel %vm85, %v835, 0
  %v881 = vsel %vm85, %v836, 0
  %v884 = vsel %vm85, %v837, 0
  %v887 = vsel %vm85, %v838, 0
  %v890 = vsel %vm85, %v839, 0
  %v893 = vsel %vm85, %v840, 0
  %v896 = vsel %vm85, %v841, 0
  %v899 = vsel %vm85, %v842, 0
  %v902 = vsel %vm85, %v843, 0
  %v905 = vsel %vm85, %v844, 0
  %v908 = vsel %vm85, %v845, 0
  %v911 = vsel %vm85, %v846, 0
  %v914 = vsel %vm85, %v847, 0
  %v917 = vsel %vm85, %v848, 0
  %v920 = vsel %vm85, %v849, 0
  %v923 = vsel %vm85, %v850, 0
  %v926 = vsel %vm85, %v851, 0
  %v929 = vsel %vm85, %v852, 0
  %v932 = vsel %vm85, %v853, 0
  %v935 = vsel %vm85, %v854, 0
  %v938 = vsel %vm85, %v855, 0
  %v941 = vsel %vm85, %v856, 0
  %v944 = vsel %vm85, %v857, 0
  %v947 = vsel %vm85, %v858, 0
  %v950 = vsel %vm85, %v859, 0
  %v953 = vsel %vm85, %v860, 0
  %v956 = vsel %vm85, %v861, 0
  %v959 = vsel %vm85, %v862, 0
  %v962 = vsel %vm85, %v863, 0
  %v965 = vsel %vm85, %v864, 0
  %v968 = vsel %vm85, %v865, 0
  %v971 = vsel %vm85, %v866, 0
  %v974 = vsel %vm85, %v867, 0
  %976 = vmatprep.subr.mxu0 0.0
  %977 = vmatpush1.msra.mxu0 %v38
  %978 = vmatprep.subr.mxu0 0.0
  %979 = vmatpush1.msra.mxu0 %v39
  %980 = vmatprep.subr.mxu0 0.0
  %981 = vmatpush1.msra.mxu0 %v40
  %982 = vmatprep.subr.mxu0 0.0
  %983 = vmatpush1.msra.mxu0 %v196
  %984 = vmatprep.subr.mxu0 0.0
  %985 = vmatpush1.msra.mxu0 0.0
  %986 = vmatprep.subr.mxu0 0.0
  %987 = vmatpush1.msra.mxu0 0.0
  %988 = vmatprep.subr.mxu0 0.0
  %989 = vmatpush1.msra.mxu0 0.0
  %990 = vmatprep.subr.mxu0 0.0
  %991 = vmatpush1.msra.mxu0 0.0
  %992 = vmatprep.subr.mxu0 0.0
  %993 = vmatpush1.msra.mxu0 0.0
  %994 = vmatprep.subr.mxu0 0.0
  %995 = vmatpush1.msra.mxu0 0.0
  %996 = vmatprep.subr.mxu0 0.0
  %997 = vmatpush1.msra.mxu0 0.0
  %998 = vmatprep.subr.mxu0 0.0
  %999 = vmatpush1.msra.mxu0 0.0
  %1000 = vmatprep.subr.mxu0 0.0
  %1001 = vmatpush1.msra.mxu0 0.0
  %1002 = vmatprep.subr.mxu0 0.0
  %1003 = vmatpush1.msra.mxu0 0.0
  %1004 = vmatprep.subr.mxu0 0.0
  %1005 = vmatpush1.msra.mxu0 0.0
  %1006 = vmatprep.subr.mxu0 0.0
  %1007 = vmatpush1.msra.mxu0 0.0
  %1008 = vmatprep.subr.mxu0 0.0
  %1009 = vmatpush1.msra.mxu0 0.0
  %1010 = vmatprep.subr.mxu0 0.0
  %1011 = vmatpush1.msra.mxu0 0.0
  %1012 = vmatprep.subr.mxu0 0.0
  %1013 = vmatpush1.msra.mxu0 0.0
  %1014 = vmatprep.subr.mxu0 0.0
  %1015 = vmatpush1.msra.mxu0 0.0
  %1016 = vmatprep.subr.mxu0 0.0
  %1017 = vmatpush1.msra.mxu0 0.0
  %1018 = vmatprep.subr.mxu0 0.0
  %1019 = vmatpush1.msra.mxu0 0.0
  %1020 = vmatprep.subr.mxu0 0.0
  %1021 = vmatpush1.msra.mxu0 0.0
  %1022 = vmatprep.subr.mxu0 0.0
  %1023 = vmatpush1.msra.mxu0 0.0
  %1024 = vmatprep.subr.mxu0 0.0
  %1025 = vmatpush1.msra.mxu0 0.0
  %1026 = vmatprep.subr.mxu0 0.0
  %1027 = vmatpush1.msra.mxu0 0.0
  %1028 = vmatprep.subr.mxu0 0.0
  %1029 = vmatpush1.msra.mxu0 0.0
  %1030 = vmatprep.subr.mxu0 0.0
  %1031 = vmatpush1.msra.mxu0 0.0
  %1032 = vmatprep.subr.mxu0 0.0
  %1033 = vmatpush1.msra.mxu0 0.0
  %1034 = vmatprep.subr.mxu0 0.0
  %1035 = vmatpush1.msra.mxu0 0.0
  %1036 = vmatprep.subr.mxu0 0.0
  %1037 = vmatpush1.msra.mxu0 0.0
  %1038 = vmatprep.subr.mxu0 0.0
  %1039 = vmatpush1.msra.mxu0 0.0
  %1040 = vmatprep.mubr.f32.mxu0 0.0
  %1041 = vmatmul.mubr.f32.gmra.mrb[0].mxu0 %v869
  %v1042 = vpop.f32.mrb[0].mxu0
  %v1043 = vadd.f32 %v83, %v1042
  %v1044 = vpop.f32.mrb[0].mxu0
  %1045 = vmatprep.mubr.f32.mxu0 0.0
  %1046 = vmatmul.mubr.f32.gmra.mrb[0].mxu0 %v872
  %v1047 = vpop.f32.mrb[0].mxu0
  %v1048 = vadd.f32 %v83, %v1047
  %v1049 = vpop.f32.mrb[0].mxu0
  %1050 = vmatprep.mubr.f32.mxu0 0.0
  %1051 = vmatmul.mubr.f32.gmra.mrb[0].mxu0 %v875
  %v1052 = vpop.f32.mrb[0].mxu0
  %v1053 = vadd.f32 %v83, %v1052
  %v1054 = vpop.f32.mrb[0].mxu0
  %1055 = vmatprep.mubr.f32.mxu0 0.0
  %1056 = vmatmul.mubr.f32.gmra.mrb[0].mxu0 %v878
  %v1057 = vpop.f32.mrb[0].mxu0
  %v1058 = vadd.f32 %v83, %v1057
  %v1059 = vpop.f32.mrb[0].mxu0
  %1060 = vmatprep.mubr.f32.mxu0 0.0
  %1061 = vmatmul.mubr.f32.gmra.mrb[0].mxu0 %v881
  %v1062 = vpop.f32.mrb[0].mxu0
  %v1063 = vadd.f32 %v83, %v1062
  %v1064 = vpop.f32.mrb[0].mxu0
  %1065 = vmatprep.mubr.f32.mxu0 0.0
  %1066 = vmatmul.mubr.f32.gmra.mrb[0].mxu0 %v884
  %v1067 = vpop.f32.mrb[0].mxu0
  %v1068 = vadd.f32 %v83, %v1067
  %v1069 = vpop.f32.mrb[0].mxu0
  %1070 = vmatprep.mubr.f32.mxu0 0.0
  %1071 = vmatmul.mubr.f32.gmra.mrb[0].mxu0 %v887
  %v1072 = vpop.f32.mrb[0].mxu0
  %v1073 = vadd.f32 %v83, %v1072
  %v1074 = vpop.f32.mrb[0].mxu0
  %1075 = vmatprep.mubr.f32.mxu0 0.0
  %1076 = vmatmul.mubr.f32.gmra.mrb[0].mxu0 %v890
  %v1077 = vpop.f32.mrb[0].mxu0
  %v1078 = vadd.f32 %v83, %v1077
  %v1079 = vpop.f32.mrb[0].mxu0
  %1080 = vmatprep.mubr.f32.mxu0 0.0
  %1081 = vmatmul.mubr.f32.gmra.mrb[0].mxu0 %v893
  %v1082 = vpop.f32.mrb[0].mxu0
  %v1083 = vadd.f32 %v83, %v1082
  %v1084 = vpop.f32.mrb[0].mxu0
  %1085 = vmatprep.mubr.f32.mxu0 0.0
  %1086 = vmatmul.mubr.f32.gmra.mrb[0].mxu0 %v896
  %v1087 = vpop.f32.mrb[0].mxu0
  %v1088 = vadd.f32 %v83, %v1087
  %v1089 = vpop.f32.mrb[0].mxu0
  %1090 = vmatprep.mubr.f32.mxu0 0.0
  %1091 = vmatmul.mubr.f32.gmra.mrb[0].mxu0 %v899
  %v1092 = vpop.f32.mrb[0].mxu0
  %v1093 = vadd.f32 %v83, %v1092
  %v1094 = vpop.f32.mrb[0].mxu0
  %1095 = vmatprep.mubr.f32.mxu0 0.0
  %1096 = vmatmul.mubr.f32.gmra.mrb[0].mxu0 %v902
  %v1097 = vpop.f32.mrb[0].mxu0
  %v1098 = vadd.f32 %v83, %v1097
  %v1099 = vpop.f32.mrb[0].mxu0
  %1100 = vmatprep.mubr.f32.mxu0 0.0
  %1101 = vmatmul.mubr.f32.gmra.mrb[0].mxu0 %v905
  %v1102 = vpop.f32.mrb[0].mxu0
  %v1103 = vadd.f32 %v83, %v1102
  %v1104 = vpop.f32.mrb[0].mxu0
  %1105 = vmatprep.mubr.f32.mxu0 0.0
  %1106 = vmatmul.mubr.f32.gmra.mrb[0].mxu0 %v908
  %v1107 = vpop.f32.mrb[0].mxu0
  %v1108 = vadd.f32 %v83, %v1107
  %v1109 = vpop.f32.mrb[0].mxu0
  %1110 = vmatprep.mubr.f32.mxu0 0.0
  %1111 = vmatmul.mubr.f32.gmra.mrb[0].mxu0 %v911
  %v1112 = vpop.f32.mrb[0].mxu0
  %v1113 = vadd.f32 %v83, %v1112
  %v1114 = vpop.f32.mrb[0].mxu0
  %1115 = vmatprep.mubr.f32.mxu0 0.0
  %1116 = vmatmul.mubr.f32.gmra.mrb[0].mxu0 %v914
  %v1117 = vpop.f32.mrb[0].mxu0
  %v1118 = vadd.f32 %v83, %v1117
  %v1119 = vpop.f32.mrb[0].mxu0
  %1120 = vmatprep.mubr.f32.mxu0 0.0
  %1121 = vmatmul.mubr.f32.gmra.mrb[0].mxu0 %v917
  %v1122 = vpop.f32.mrb[0].mxu0
  %v1123 = vadd.f32 %v83, %v1122
  %v1124 = vpop.f32.mrb[0].mxu0
  %1125 = vmatprep.mubr.f32.mxu0 0.0
  %1126 = vmatmul.mubr.f32.gmra.mrb[0].mxu0 %v920
  %v1127 = vpop.f32.mrb[0].mxu0
  %v1128 = vadd.f32 %v83, %v1127
  %v1129 = vpop.f32.mrb[0].mxu0
  %1130 = vmatprep.mubr.f32.mxu0 0.0
  %1131 = vmatmul.mubr.f32.gmra.mrb[0].mxu0 %v923
  %v1132 = vpop.f32.mrb[0].mxu0
  %v1133 = vadd.f32 %v83, %v1132
  %v1134 = vpop.f32.mrb[0].mxu0
  %1135 = vmatprep.mubr.f32.mxu0 0.0
  %1136 = vmatmul.mubr.f32.gmra.mrb[0].mxu0 %v926
  %v1137 = vpop.f32.mrb[0].mxu0
  %v1138 = vadd.f32 %v83, %v1137
  %v1139 = vpop.f32.mrb[0].mxu0
  %1140 = vmatprep.mubr.f32.mxu0 0.0
  %1141 = vmatmul.mubr.f32.gmra.mrb[0].mxu0 %v929
  %v1142 = vpop.f32.mrb[0].mxu0
  %v1143 = vadd.f32 %v83, %v1142
  %v1144 = vpop.f32.mrb[0].mxu0
  %1145 = vmatprep.mubr.f32.mxu0 0.0
  %1146 = vmatmul.mubr.f32.gmra.mrb[0].mxu0 %v932
  %v1147 = vpop.f32.mrb[0].mxu0
  %v1148 = vadd.f32 %v83, %v1147
  %v1149 = vpop.f32.mrb[0].mxu0
  %1150 = vmatprep.mubr.f32.mxu0 0.0
  %1151 = vmatmul.mubr.f32.gmra.mrb[0].mxu0 %v935
  %v1152 = vpop.f32.mrb[0].mxu0
  %v1153 = vadd.f32 %v83, %v1152
  %v1154 = vpop.f32.mrb[0].mxu0
  %1155 = vmatprep.mubr.f32.mxu0 0.0
  %1156 = vmatmul.mubr.f32.gmra.mrb[0].mxu0 %v938
  %v1157 = vpop.f32.mrb[0].mxu0
  %v1158 = vadd.f32 %v83, %v1157
  %v1159 = vpop.f32.mrb[0].mxu0
  %1160 = vmatprep.mubr.f32.mxu0 0.0
  %1161 = vmatmul.mubr.f32.gmra.mrb[0].mxu0 %v941
  %v1162 = vpop.f32.mrb[0].mxu0
  %v1163 = vadd.f32 %v83, %v1162
  %v1164 = vpop.f32.mrb[0].mxu0
  %1165 = vmatprep.mubr.f32.mxu0 0.0
  %1166 = vmatmul.mubr.f32.gmra.mrb[0].mxu0 %v944
  %v1167 = vpop.f32.mrb[0].mxu0
  %v1168 = vadd.f32 %v83, %v1167
  %v1169 = vpop.f32.mrb[0].mxu0
  %1170 = vmatprep.mubr.f32.mxu0 0.0
  %1171 = vmatmul.mubr.f32.gmra.mrb[0].mxu0 %v947
  %v1172 = vpop.f32.mrb[0].mxu0
  %v1173 = vadd.f32 %v83, %v1172
  %v1174 = vpop.f32.mrb[0].mxu0
  %1175 = vmatprep.mubr.f32.mxu0 0.0
  %1176 = vmatmul.mubr.f32.gmra.mrb[0].mxu0 %v950
  %v1177 = vpop.f32.mrb[0].mxu0
  %v1178 = vadd.f32 %v83, %v1177
  %v1179 = vpop.f32.mrb[0].mxu0
  %1180 = vmatprep.mubr.f32.mxu0 0.0
  %1181 = vmatmul.mubr.f32.gmra.mrb[0].mxu0 %v953
  %v1182 = vpop.f32.mrb[0].mxu0
  %v1183 = vadd.f32 %v83, %v1182
  %v1184 = vpop.f32.mrb[0].mxu0
  %1185 = vmatprep.mubr.f32.mxu0 0.0
  %1186 = vmatmul.mubr.f32.gmra.mrb[0].mxu0 %v956
  %v1187 = vpop.f32.mrb[0].mxu0
  %v1188 = vadd.f32 %v83, %v1187
  %v1189 = vpop.f32.mrb[0].mxu0
  %1190 = vmatprep.mubr.f32.mxu0 0.0
  %1191 = vmatmul.mubr.f32.gmra.mrb[0].mxu0 %v959
  %v1192 = vpop.f32.mrb[0].mxu0
  %v1193 = vadd.f32 %v83, %v1192
  %v1194 = vpop.f32.mrb[0].mxu0
  %1195 = vmatprep.mubr.f32.mxu0 0.0
  %1196 = vmatmul.mubr.f32.gmra.mrb[0].mxu0 %v962
  %v1197 = vpop.f32.mrb[0].mxu0
  %v1198 = vadd.f32 %v83, %v1197
  %v1199 = vpop.f32.mrb[0].mxu0
  %1200 = vmatprep.mubr.f32.mxu0 0.0
  %1201 = vmatmul.mubr.f32.gmra.mrb[0].mxu0 %v965
  %v1202 = vpop.f32.mrb[0].mxu0
  %v1203 = vadd.f32 %v83, %v1202
  %v1204 = vpop.f32.mrb[0].mxu0
  %1205 = vmatprep.mubr.f32.mxu0 0.0
  %1206 = vmatmul.mubr.f32.gmra.mrb[0].mxu0 %v968
  %v1207 = vpop.f32.mrb[0].mxu0
  %v1208 = vadd.f32 %v83, %v1207
  %v1209 = vpop.f32.mrb[0].mxu0
  %1210 = vmatprep.mubr.f32.mxu0 0.0
  %1211 = vmatmul.mubr.f32.gmra.mrb[0].mxu0 %v971
  %v1212 = vpop.f32.mrb[0].mxu0
  %v1213 = vadd.f32 %v83, %v1212
  %v1214 = vpop.f32.mrb[0].mxu0
  %1215 = vmatprep.mubr.f32.mxu0 0.0
  %1216 = vmatmul.mubr.f32.gmra.mrb[0].mxu0 %v974
  %v1217 = vpop.f32.mrb[0].mxu0
  %v1218 = vadd.f32 %v83, %v1217
  %v1219 = vpop.f32.mrb[0].mxu0
  %1220 = vdwg.mxu0
  %v1221 = vld [vmem:[%s3] sm:$0xff]
  %v1222 = vld [vmem:[%s3 + $0x8] sm:$0xff]
  %v1223 = vld [vmem:[%s3 + $0x10] sm:$0xff]
  %v1224 = vld [vmem:[%s3 + $0x18] sm:$0xff]
  %v1225 = vld [vmem:[%s3 + $0x20] sm:$0xff]
  %v1226 = vld [vmem:[%s3 + $0x28] sm:$0xff]
  %v1227 = vld [vmem:[%s3 + $0x30] sm:$0xff]
  %v1228 = vld [vmem:[%s3 + $0x38] sm:$0xff]
  %v1229 = vld [vmem:[%s3 + $0x40] sm:$0xff]
  %v1230 = vld [vmem:[%s3 + $0x48] sm:$0xff]
  %v1231 = vld [vmem:[%s3 + $0x50] sm:$0xff]
  %v1232 = vld [vmem:[%s3 + $0x58] sm:$0xff]
  %v1233 = vld [vmem:[%s3 + $0x60] sm:$0xff]
  %v1234 = vld [vmem:[%s3 + $0x68] sm:$0xff]
  %v1235 = vld [vmem:[%s3 + $0x70] sm:$0xff]
  %v1236 = vld [vmem:[%s3 + $0x78] sm:$0xff]
  %v1237 = vld [vmem:[%s3 + $0x80] sm:$0xff]
  %v1238 = vld [vmem:[%s3 + $0x88] sm:$0xff]
  %v1239 = vld [vmem:[%s3 + $0x90] sm:$0xff]
  %v1240 = vld [vmem:[%s3 + $0x98] sm:$0xff]
  %v1241 = vld [vmem:[%s3 + $0xa0] sm:$0xff]
  %v1242 = vld [vmem:[%s3 + $0xa8] sm:$0xff]
  %v1243 = vld [vmem:[%s3 + $0xb0] sm:$0xff]
  %v1244 = vld [vmem:[%s3 + $0xb8] sm:$0xff]
  %v1245 = vld [vmem:[%s3 + $0xc0] sm:$0xff]
  %v1246 = vld [vmem:[%s3 + $0xc8] sm:$0xff]
  %v1247 = vld [vmem:[%s3 + $0xd0] sm:$0xff]
  %v1248 = vld [vmem:[%s3 + $0xd8] sm:$0xff]
  %v1249 = vld [vmem:[%s3 + $0xe0] sm:$0xff]
  %v1250 = vld [vmem:[%s3 + $0xe8] sm:$0xff]
  %v1251 = vld [vmem:[%s3 + $0xf0] sm:$0xff]
  %v1252 = vld [vmem:[%s3 + $0xf8] sm:$0xff]
  %v1253 = vld [vmem:[%s3 + $0x100] sm:$0xff]
  %v1254 = vld [vmem:[%s3 + $0x108] sm:$0xff]
  %v1255 = vld [vmem:[%s3 + $0x110] sm:$0xff]
  %v1256 = vld [vmem:[%s3 + $0x118] sm:$0xff]
  %v1258 = vsel %vm85, %v1221, 0
  %v1261 = vsel %vm85, %v1222, 0
  %v1264 = vsel %vm85, %v1223, 0
  %v1267 = vsel %vm85, %v1224, 0
  %v1270 = vsel %vm85, %v1225, 0
  %v1273 = vsel %vm85, %v1226, 0
  %v1276 = vsel %vm85, %v1227, 0
  %v1279 = vsel %vm85, %v1228, 0
  %v1282 = vsel %vm85, %v1229, 0
  %v1285 = vsel %vm85, %v1230, 0
  %v1288 = vsel %vm85, %v1231, 0
  %v1291 = vsel %vm85, %v1232, 0
  %v1294 = vsel %vm85, %v1233, 0
  %v1297 = vsel %vm85, %v1234, 0
  %v1300 = vsel %vm85, %v1235, 0
  %v1303 = vsel %vm85, %v1236, 0
  %v1306 = vsel %vm85, %v1237, 0
  %v1309 = vsel %vm85, %v1238, 0
  %v1312 = vsel %vm85, %v1239, 0
  %v1315 = vsel %vm85, %v1240, 0
  %v1318 = vsel %vm85, %v1241, 0
  %v1321 = vsel %vm85, %v1242, 0
  %v1324 = vsel %vm85, %v1243, 0
  %v1327 = vsel %vm85, %v1244, 0
  %v1330 = vsel %vm85, %v1245, 0
  %v1333 = vsel %vm85, %v1246, 0
  %v1336 = vsel %vm85, %v1247, 0
  %v1339 = vsel %vm85, %v1248, 0
  %v1342 = vsel %vm85, %v1249, 0
  %v1345 = vsel %vm85, %v1250, 0
  %v1348 = vsel %vm85, %v1251, 0
  %v1351 = vsel %vm85, %v1252, 0
  %v1354 = vsel %vm85, %v1253, 0
  %v1357 = vsel %vm85, %v1254, 0
  %v1360 = vsel %vm85, %v1255, 0
  %v1363 = vsel %vm85, %v1256, 0
  %1365 = vmatprep.subr.mxu0 0.0
  %1366 = vmatpush1.msra.mxu0 %v38
  %1367 = vmatprep.subr.mxu0 0.0
  %1368 = vmatpush1.msra.mxu0 %v39
  %1369 = vmatprep.subr.mxu0 0.0
  %1370 = vmatpush1.msra.mxu0 %v40
  %1371 = vmatprep.subr.mxu0 0.0
  %1372 = vmatpush1.msra.mxu0 %v196
  %1373 = vmatprep.subr.mxu0 0.0
  %1374 = vmatpush1.msra.mxu0 0.0
  %1375 = vmatprep.subr.mxu0 0.0
  %1376 = vmatpush1.msra.mxu0 0.0
  %1377 = vmatprep.subr.mxu0 0.0
  %1378 = vmatpush1.msra.mxu0 0.0
  %1379 = vmatprep.subr.mxu0 0.0
  %1380 = vmatpush1.msra.mxu0 0.0
  %1381 = vmatprep.subr.mxu0 0.0
  %1382 = vmatpush1.msra.mxu0 0.0
  %1383 = vmatprep.subr.mxu0 0.0
  %1384 = vmatpush1.msra.mxu0 0.0
  %1385 = vmatprep.subr.mxu0 0.0
  %1386 = vmatpush1.msra.mxu0 0.0
  %1387 = vmatprep.subr.mxu0 0.0
  %1388 = vmatpush1.msra.mxu0 0.0
  %1389 = vmatprep.subr.mxu0 0.0
  %1390 = vmatpush1.msra.mxu0 0.0
  %1391 = vmatprep.subr.mxu0 0.0
  %1392 = vmatpush1.msra.mxu0 0.0
  %1393 = vmatprep.subr.mxu0 0.0
  %1394 = vmatpush1.msra.mxu0 0.0
  %1395 = vmatprep.subr.mxu0 0.0
  %1396 = vmatpush1.msra.mxu0 0.0
  %1397 = vmatprep.subr.mxu0 0.0
  %1398 = vmatpush1.msra.mxu0 0.0
  %1399 = vmatprep.subr.mxu0 0.0
  %1400 = vmatpush1.msra.mxu0 0.0
  %1401 = vmatprep.subr.mxu0 0.0
  %1402 = vmatpush1.msra.mxu0 0.0
  %1403 = vmatprep.subr.mxu0 0.0
  %1404 = vmatpush1.msra.mxu0 0.0
  %1405 = vmatprep.subr.mxu0 0.0
  %1406 = vmatpush1.msra.mxu0 0.0
  %1407 = vmatprep.subr.mxu0 0.0
  %1408 = vmatpush1.msra.mxu0 0.0
  %1409 = vmatprep.subr.mxu0 0.0
  %1410 = vmatpush1.msra.mxu0 0.0
  %1411 = vmatprep.subr.mxu0 0.0
  %1412 = vmatpush1.msra.mxu0 0.0
  %1413 = vmatprep.subr.mxu0 0.0
  %1414 = vmatpush1.msra.mxu0 0.0
  %1415 = vmatprep.subr.mxu0 0.0
  %1416 = vmatpush1.msra.mxu0 0.0
  %1417 = vmatprep.subr.mxu0 0.0
  %1418 = vmatpush1.msra.mxu0 0.0
  %1419 = vmatprep.subr.mxu0 0.0
  %1420 = vmatpush1.msra.mxu0 0.0
  %1421 = vmatprep.subr.mxu0 0.0
  %1422 = vmatpush1.msra.mxu0 0.0
  %1423 = vmatprep.subr.mxu0 0.0
  %1424 = vmatpush1.msra.mxu0 0.0
  %1425 = vmatprep.subr.mxu0 0.0
  %1426 = vmatpush1.msra.mxu0 0.0
  %1427 = vmatprep.subr.mxu0 0.0
  %1428 = vmatpush1.msra.mxu0 0.0
  %1429 = vmatprep.mubr.f32.mxu0 0.0
  %1430 = vmatmul.mubr.f32.gmra.mrb[0].mxu0 %v1258
  %v1431 = vpop.f32.mrb[0].mxu0
  %v1432 = vadd.f32 %v83, %v1431
  %v1433 = vpop.f32.mrb[0].mxu0
  %1434 = vmatprep.mubr.f32.mxu0 0.0
  %1435 = vmatmul.mubr.f32.gmra.mrb[0].mxu0 %v1261
  %v1436 = vpop.f32.mrb[0].mxu0
  %v1437 = vadd.f32 %v83, %v1436
  %v1438 = vpop.f32.mrb[0].mxu0
  %1439 = vmatprep.mubr.f32.mxu0 0.0
  %1440 = vmatmul.mubr.f32.gmra.mrb[0].mxu0 %v1264
  %v1441 = vpop.f32.mrb[0].mxu0
  %v1442 = vadd.f32 %v83, %v1441
  %v1443 = vpop.f32.mrb[0].mxu0
  %1444 = vmatprep.mubr.f32.mxu0 0.0
  %1445 = vmatmul.mubr.f32.gmra.mrb[0].mxu0 %v1267
  %v1446 = vpop.f32.mrb[0].mxu0
  %v1447 = vadd.f32 %v83, %v1446
  %v1448 = vpop.f32.mrb[0].mxu0
  %1449 = vmatprep.mubr.f32.mxu0 0.0
  %1450 = vmatmul.mubr.f32.gmra.mrb[0].mxu0 %v1270
  %v1451 = vpop.f32.mrb[0].mxu0
  %v1452 = vadd.f32 %v83, %v1451
  %v1453 = vpop.f32.mrb[0].mxu0
  %1454 = vmatprep.mubr.f32.mxu0 0.0
  %1455 = vmatmul.mubr.f32.gmra.mrb[0].mxu0 %v1273
  %v1456 = vpop.f32.mrb[0].mxu0
  %v1457 = vadd.f32 %v83, %v1456
  %v1458 = vpop.f32.mrb[0].mxu0
  %1459 = vmatprep.mubr.f32.mxu0 0.0
  %1460 = vmatmul.mubr.f32.gmra.mrb[0].mxu0 %v1276
  %v1461 = vpop.f32.mrb[0].mxu0
  %v1462 = vadd.f32 %v83, %v1461
  %v1463 = vpop.f32.mrb[0].mxu0
  %1464 = vmatprep.mubr.f32.mxu0 0.0
  %1465 = vmatmul.mubr.f32.gmra.mrb[0].mxu0 %v1279
  %v1466 = vpop.f32.mrb[0].mxu0
  %v1467 = vadd.f32 %v83, %v1466
  %v1468 = vpop.f32.mrb[0].mxu0
  %1469 = vmatprep.mubr.f32.mxu0 0.0
  %1470 = vmatmul.mubr.f32.gmra.mrb[0].mxu0 %v1282
  %v1471 = vpop.f32.mrb[0].mxu0
  %v1472 = vadd.f32 %v83, %v1471
  %v1473 = vpop.f32.mrb[0].mxu0
  %1474 = vmatprep.mubr.f32.mxu0 0.0
  %1475 = vmatmul.mubr.f32.gmra.mrb[0].mxu0 %v1285
  %v1476 = vpop.f32.mrb[0].mxu0
  %v1477 = vadd.f32 %v83, %v1476
  %v1478 = vpop.f32.mrb[0].mxu0
  %1479 = vmatprep.mubr.f32.mxu0 0.0
  %1480 = vmatmul.mubr.f32.gmra.mrb[0].mxu0 %v1288
  %v1481 = vpop.f32.mrb[0].mxu0
  %v1482 = vadd.f32 %v83, %v1481
  %v1483 = vpop.f32.mrb[0].mxu0
  %1484 = vmatprep.mubr.f32.mxu0 0.0
  %1485 = vmatmul.mubr.f32.gmra.mrb[0].mxu0 %v1291
  %v1486 = vpop.f32.mrb[0].mxu0
  %v1487 = vadd.f32 %v83, %v1486
  %v1488 = vpop.f32.mrb[0].mxu0
  %1489 = vmatprep.mubr.f32.mxu0 0.0
  %1490 = vmatmul.mubr.f32.gmra.mrb[0].mxu0 %v1294
  %v1491 = vpop.f32.mrb[0].mxu0
  %v1492 = vadd.f32 %v83, %v1491
  %v1493 = vpop.f32.mrb[0].mxu0
  %1494 = vmatprep.mubr.f32.mxu0 0.0
  %1495 = vmatmul.mubr.f32.gmra.mrb[0].mxu0 %v1297
  %v1496 = vpop.f32.mrb[0].mxu0
  %v1497 = vadd.f32 %v83, %v1496
  %v1498 = vpop.f32.mrb[0].mxu0
  %1499 = vmatprep.mubr.f32.mxu0 0.0
  %1500 = vmatmul.mubr.f32.gmra.mrb[0].mxu0 %v1300
  %v1501 = vpop.f32.mrb[0].mxu0
  %v1502 = vadd.f32 %v83, %v1501
  %v1503 = vpop.f32.mrb[0].mxu0
  %1504 = vmatprep.mubr.f32.mxu0 0.0
  %1505 = vmatmul.mubr.f32.gmra.mrb[0].mxu0 %v1303
  %v1506 = vpop.f32.mrb[0].mxu0
  %v1507 = vadd.f32 %v83, %v1506
  %v1508 = vpop.f32.mrb[0].mxu0
  %1509 = vmatprep.mubr.f32.mxu0 0.0
  %1510 = vmatmul.mubr.f32.gmra.mrb[0].mxu0 %v1306
  %v1511 = vpop.f32.mrb[0].mxu0
  %v1512 = vadd.f32 %v83, %v1511
  %v1513 = vpop.f32.mrb[0].mxu0
  %1514 = vmatprep.mubr.f32.mxu0 0.0
  %1515 = vmatmul.mubr.f32.gmra.mrb[0].mxu0 %v1309
  %v1516 = vpop.f32.mrb[0].mxu0
  %v1517 = vadd.f32 %v83, %v1516
  %v1518 = vpop.f32.mrb[0].mxu0
  %1519 = vmatprep.mubr.f32.mxu0 0.0
  %1520 = vmatmul.mubr.f32.gmra.mrb[0].mxu0 %v1312
  %v1521 = vpop.f32.mrb[0].mxu0
  %v1522 = vadd.f32 %v83, %v1521
  %v1523 = vpop.f32.mrb[0].mxu0
  %1524 = vmatprep.mubr.f32.mxu0 0.0
  %1525 = vmatmul.mubr.f32.gmra.mrb[0].mxu0 %v1315
  %v1526 = vpop.f32.mrb[0].mxu0
  %v1527 = vadd.f32 %v83, %v1526
  %v1528 = vpop.f32.mrb[0].mxu0
  %1529 = vmatprep.mubr.f32.mxu0 0.0
  %1530 = vmatmul.mubr.f32.gmra.mrb[0].mxu0 %v1318
  %v1531 = vpop.f32.mrb[0].mxu0
  %v1532 = vadd.f32 %v83, %v1531
  %v1533 = vpop.f32.mrb[0].mxu0
  %1534 = vmatprep.mubr.f32.mxu0 0.0
  %1535 = vmatmul.mubr.f32.gmra.mrb[0].mxu0 %v1321
  %v1536 = vpop.f32.mrb[0].mxu0
  %v1537 = vadd.f32 %v83, %v1536
  %v1538 = vpop.f32.mrb[0].mxu0
  %1539 = vmatprep.mubr.f32.mxu0 0.0
  %1540 = vmatmul.mubr.f32.gmra.mrb[0].mxu0 %v1324
  %v1541 = vpop.f32.mrb[0].mxu0
  %v1542 = vadd.f32 %v83, %v1541
  %v1543 = vpop.f32.mrb[0].mxu0
  %1544 = vmatprep.mubr.f32.mxu0 0.0
  %1545 = vmatmul.mubr.f32.gmra.mrb[0].mxu0 %v1327
  %v1546 = vpop.f32.mrb[0].mxu0
  %v1547 = vadd.f32 %v83, %v1546
  %v1548 = vpop.f32.mrb[0].mxu0
  %1549 = vmatprep.mubr.f32.mxu0 0.0
  %1550 = vmatmul.mubr.f32.gmra.mrb[0].mxu0 %v1330
  %v1551 = vpop.f32.mrb[0].mxu0
  %v1552 = vadd.f32 %v83, %v1551
  %v1553 = vpop.f32.mrb[0].mxu0
  %1554 = vmatprep.mubr.f32.mxu0 0.0
  %1555 = vmatmul.mubr.f32.gmra.mrb[0].mxu0 %v1333
  %v1556 = vpop.f32.mrb[0].mxu0
  %v1557 = vadd.f32 %v83, %v1556
  %v1558 = vpop.f32.mrb[0].mxu0
  %1559 = vmatprep.mubr.f32.mxu0 0.0
  %1560 = vmatmul.mubr.f32.gmra.mrb[0].mxu0 %v1336
  %v1561 = vpop.f32.mrb[0].mxu0
  %v1562 = vadd.f32 %v83, %v1561
  %v1563 = vpop.f32.mrb[0].mxu0
  %1564 = vmatprep.mubr.f32.mxu0 0.0
  %1565 = vmatmul.mubr.f32.gmra.mrb[0].mxu0 %v1339
  %v1566 = vpop.f32.mrb[0].mxu0
  %v1567 = vadd.f32 %v83, %v1566
  %v1568 = vpop.f32.mrb[0].mxu0
  %1569 = vmatprep.mubr.f32.mxu0 0.0
  %1570 = vmatmul.mubr.f32.gmra.mrb[0].mxu0 %v1342
  %v1571 = vpop.f32.mrb[0].mxu0
  %v1572 = vadd.f32 %v83, %v1571
  %v1573 = vpop.f32.mrb[0].mxu0
  %1574 = vmatprep.mubr.f32.mxu0 0.0
  %1575 = vmatmul.mubr.f32.gmra.mrb[0].mxu0 %v1345
  %v1576 = vpop.f32.mrb[0].mxu0
  %v1577 = vadd.f32 %v83, %v1576
  %v1578 = vpop.f32.mrb[0].mxu0
  %1579 = vmatprep.mubr.f32.mxu0 0.0
  %1580 = vmatmul.mubr.f32.gmra.mrb[0].mxu0 %v1348
  %v1581 = vpop.f32.mrb[0].mxu0
  %v1582 = vadd.f32 %v83, %v1581
  %v1583 = vpop.f32.mrb[0].mxu0
  %1584 = vmatprep.mubr.f32.mxu0 0.0
  %1585 = vmatmul.mubr.f32.gmra.mrb[0].mxu0 %v1351
  %v1586 = vpop.f32.mrb[0].mxu0
  %v1587 = vadd.f32 %v83, %v1586
  %v1588 = vpop.f32.mrb[0].mxu0
  %1589 = vmatprep.mubr.f32.mxu0 0.0
  %1590 = vmatmul.mubr.f32.gmra.mrb[0].mxu0 %v1354
  %v1591 = vpop.f32.mrb[0].mxu0
  %v1592 = vadd.f32 %v83, %v1591
  %v1593 = vpop.f32.mrb[0].mxu0
  %1594 = vmatprep.mubr.f32.mxu0 0.0
  %1595 = vmatmul.mubr.f32.gmra.mrb[0].mxu0 %v1357
  %v1596 = vpop.f32.mrb[0].mxu0
  %v1597 = vadd.f32 %v83, %v1596
  %v1598 = vpop.f32.mrb[0].mxu0
  %1599 = vmatprep.mubr.f32.mxu0 0.0
  %1600 = vmatmul.mubr.f32.gmra.mrb[0].mxu0 %v1360
  %v1601 = vpop.f32.mrb[0].mxu0
  %v1602 = vadd.f32 %v83, %v1601
  %v1603 = vpop.f32.mrb[0].mxu0
  %1604 = vmatprep.mubr.f32.mxu0 0.0
  %1605 = vmatmul.mubr.f32.gmra.mrb[0].mxu0 %v1363
  %v1606 = vpop.f32.mrb[0].mxu0
  %v1607 = vadd.f32 %v83, %v1606
  %v1608 = vpop.f32.mrb[0].mxu0
  %1609 = vdwg.mxu0
  %v1610 = vld [vmem:[%s9] sm:$0x3f]
  %v1611 = vadd.f32 %v265, %v654
  %v1612 = vadd.f32 %v270, %v659
  %v1613 = vadd.f32 %v275, %v664
  %v1614 = vadd.f32 %v280, %v669
  %v1615 = vadd.f32 %v285, %v674
  %v1616 = vadd.f32 %v290, %v679
  %v1617 = vadd.f32 %v295, %v684
  %v1618 = vadd.f32 %v300, %v689
  %v1619 = vadd.f32 %v305, %v694
  %v1620 = vadd.f32 %v310, %v699
  %v1621 = vadd.f32 %v315, %v704
  %v1622 = vadd.f32 %v320, %v709
  %v1623 = vadd.f32 %v325, %v714
  %v1624 = vadd.f32 %v330, %v719
  %v1625 = vadd.f32 %v335, %v724
  %v1626 = vadd.f32 %v340, %v729
  %v1627 = vadd.f32 %v345, %v734
  %v1628 = vadd.f32 %v350, %v739
  %v1629 = vadd.f32 %v355, %v744
  %v1630 = vadd.f32 %v360, %v749
  %v1631 = vadd.f32 %v365, %v754
  %v1632 = vadd.f32 %v370, %v759
  %v1633 = vadd.f32 %v375, %v764
  %v1634 = vadd.f32 %v380, %v769
  %v1635 = vadd.f32 %v385, %v774
  %v1636 = vadd.f32 %v390, %v779
  %v1637 = vadd.f32 %v395, %v784
  %v1638 = vadd.f32 %v400, %v789
  %v1639 = vadd.f32 %v405, %v794
  %v1640 = vadd.f32 %v410, %v799
  %v1641 = vadd.f32 %v415, %v804
  %v1642 = vadd.f32 %v420, %v809
  %v1643 = vadd.f32 %v425, %v814
  %v1644 = vadd.f32 %v430, %v819
  %v1645 = vadd.f32 %v435, %v824
  %v1646 = vadd.f32 %v440, %v829
  %v1647 = vadd.f32 %v1611, %v1043
  %v1648 = vadd.f32 %v1612, %v1048
  %v1649 = vadd.f32 %v1613, %v1053
  %v1650 = vadd.f32 %v1614, %v1058
  %v1651 = vadd.f32 %v1615, %v1063
  %v1652 = vadd.f32 %v1616, %v1068
  %v1653 = vadd.f32 %v1617, %v1073
  %v1654 = vadd.f32 %v1618, %v1078
  %v1655 = vadd.f32 %v1619, %v1083
  %v1656 = vadd.f32 %v1620, %v1088
  %v1657 = vadd.f32 %v1621, %v1093
  %v1658 = vadd.f32 %v1622, %v1098
  %v1659 = vadd.f32 %v1623, %v1103
  %v1660 = vadd.f32 %v1624, %v1108
  %v1661 = vadd.f32 %v1625, %v1113
  %v1662 = vadd.f32 %v1626, %v1118
  %v1663 = vadd.f32 %v1627, %v1123
  %v1664 = vadd.f32 %v1628, %v1128
  %v1665 = vadd.f32 %v1629, %v1133
  %v1666 = vadd.f32 %v1630, %v1138
  %v1667 = vadd.f32 %v1631, %v1143
  %v1668 = vadd.f32 %v1632, %v1148
  %v1669 = vadd.f32 %v1633, %v1153
  %v1670 = vadd.f32 %v1634, %v1158
  %v1671 = vadd.f32 %v1635, %v1163
  %v1672 = vadd.f32 %v1636, %v1168
  %v1673 = vadd.f32 %v1637, %v1173
  %v1674 = vadd.f32 %v1638, %v1178
  %v1675 = vadd.f32 %v1639, %v1183
  %v1676 = vadd.f32 %v1640, %v1188
  %v1677 = vadd.f32 %v1641, %v1193
  %v1678 = vadd.f32 %v1642, %v1198
  %v1679 = vadd.f32 %v1643, %v1203
  %v1680 = vadd.f32 %v1644, %v1208
  %v1681 = vadd.f32 %v1645, %v1213
  %v1682 = vadd.f32 %v1646, %v1218
  %v1683 = vadd.f32 %v1647, %v1432
  %v1684 = vadd.f32 %v1648, %v1437
  %v1685 = vadd.f32 %v1649, %v1442
  %v1686 = vadd.f32 %v1650, %v1447
  %v1687 = vadd.f32 %v1651, %v1452
  %v1688 = vadd.f32 %v1652, %v1457
  %v1689 = vadd.f32 %v1653, %v1462
  %v1690 = vadd.f32 %v1654, %v1467
  %v1691 = vadd.f32 %v1655, %v1472
  %v1692 = vadd.f32 %v1656, %v1477
  %v1693 = vadd.f32 %v1657, %v1482
  %v1694 = vadd.f32 %v1658, %v1487
  %v1695 = vadd.f32 %v1659, %v1492
  %v1696 = vadd.f32 %v1660, %v1497
  %v1697 = vadd.f32 %v1661, %v1502
  %v1698 = vadd.f32 %v1662, %v1507
  %v1699 = vadd.f32 %v1663, %v1512
  %v1700 = vadd.f32 %v1664, %v1517
  %v1701 = vadd.f32 %v1665, %v1522
  %v1702 = vadd.f32 %v1666, %v1527
  %v1703 = vadd.f32 %v1667, %v1532
  %v1704 = vadd.f32 %v1668, %v1537
  %v1705 = vadd.f32 %v1669, %v1542
  %v1706 = vadd.f32 %v1670, %v1547
  %v1707 = vadd.f32 %v1671, %v1552
  %v1708 = vadd.f32 %v1672, %v1557
  %v1709 = vadd.f32 %v1673, %v1562
  %v1710 = vadd.f32 %v1674, %v1567
  %v1711 = vadd.f32 %v1675, %v1572
  %v1712 = vadd.f32 %v1676, %v1577
  %v1713 = vadd.f32 %v1677, %v1582
  %v1714 = vadd.f32 %v1678, %v1587
  %v1715 = vadd.f32 %v1679, %v1592
  %v1716 = vadd.f32 %v1680, %v1597
  %v1717 = vadd.f32 %v1681, %v1602
  %v1718 = vadd.f32 %v1682, %v1607
  %v1720 = vcombine.high %v1610, %v1610
  %v1722 = vunpack.c.l.s4 1983009808
  %v1723 = vunpack.c.0.s8 %v1722
  %v1724 = vlaneseq
  %v1725 = vshrl.u32 %v1724, 7
  %v1726 = vsub.s32 %v1723, %v1725
  %v1727 = vrot.slane %v1610, %v1726
  %v1729 = vunpack.c.l.s4 1983009808
  %v1730 = vunpack.c.0.s8 %v1729
  %v1731 = vlaneseq
  %v1732 = vshrl.u32 %v1731, 7
  %v1733 = vsub.s32 %v1730, %v1732
  %v1734 = vrot.slane %v1720, %v1733
  %v1735 = vcombine.high %v1727, %v1727
  %vm1738 = vcmask 261120
  %v1739 = vsel %vm1738, %v1734, 0
  %1741 = vmatprep.subr.mxu0 0.0
  %1742 = vmatpush1.msra.mxu0 %v1683
  %1743 = vmatprep.subr.mxu0 0.0
  %1744 = vmatpush1.msra.mxu0 %v1684
  %1745 = vmatprep.subr.mxu0 0.0
  %1746 = vmatpush1.msra.mxu0 %v1685
  %1747 = vmatprep.subr.mxu0 0.0
  %1748 = vmatpush1.msra.mxu0 %v1686
  %1749 = vmatprep.subr.mxu0 0.0
  %1750 = vmatpush1.msra.mxu0 %v1687
  %1751 = vmatprep.subr.mxu0 0.0
  %1752 = vmatpush1.msra.mxu0 %v1688
  %1753 = vmatprep.subr.mxu0 0.0
  %1754 = vmatpush1.msra.mxu0 %v1689
  %1755 = vmatprep.subr.mxu0 0.0
  %1756 = vmatpush1.msra.mxu0 %v1690
  %1757 = vmatprep.subr.mxu0 0.0
  %1758 = vmatpush1.msra.mxu0 %v1691
  %1759 = vmatprep.subr.mxu0 0.0
  %1760 = vmatpush1.msra.mxu0 %v1692
  %1761 = vmatprep.subr.mxu0 0.0
  %1762 = vmatpush1.msra.mxu0 %v1693
  %1763 = vmatprep.subr.mxu0 0.0
  %1764 = vmatpush1.msra.mxu0 %v1694
  %1765 = vmatprep.subr.mxu0 0.0
  %1766 = vmatpush1.msra.mxu0 %v1695
  %1767 = vmatprep.subr.mxu0 0.0
  %1768 = vmatpush1.msra.mxu0 %v1696
  %1769 = vmatprep.subr.mxu0 0.0
  %1770 = vmatpush1.msra.mxu0 %v1697
  %1771 = vmatprep.subr.mxu0 0.0
  %1772 = vmatpush1.msra.mxu0 %v1698
  %1773 = vmatprep.subr.mxu0 0.0
  %1774 = vmatpush1.msra.mxu0 %v1699
  %1775 = vmatprep.subr.mxu0 0.0
  %1776 = vmatpush1.msra.mxu0 %v1700
  %1777 = vmatprep.subr.mxu0 0.0
  %1778 = vmatpush1.msra.mxu0 %v1701
  %1779 = vmatprep.subr.mxu0 0.0
  %1780 = vmatpush1.msra.mxu0 %v1702
  %1781 = vmatprep.subr.mxu0 0.0
  %1782 = vmatpush1.msra.mxu0 %v1703
  %1783 = vmatprep.subr.mxu0 0.0
  %1784 = vmatpush1.msra.mxu0 %v1704
  %1785 = vmatprep.subr.mxu0 0.0
  %1786 = vmatpush1.msra.mxu0 %v1705
  %1787 = vmatprep.subr.mxu0 0.0
  %1788 = vmatpush1.msra.mxu0 %v1706
  %1789 = vmatprep.subr.mxu0 0.0
  %1790 = vmatpush1.msra.mxu0 %v1707
  %1791 = vmatprep.subr.mxu0 0.0
  %1792 = vmatpush1.msra.mxu0 %v1708
  %1793 = vmatprep.subr.mxu0 0.0
  %1794 = vmatpush1.msra.mxu0 %v1709
  %1795 = vmatprep.subr.mxu0 0.0
  %1796 = vmatpush1.msra.mxu0 %v1710
  %1797 = vmatprep.subr.mxu0 0.0
  %1798 = vmatpush1.msra.mxu0 %v1711
  %1799 = vmatprep.subr.mxu0 0.0
  %1800 = vmatpush1.msra.mxu0 %v1712
  %1801 = vmatprep.subr.mxu0 0.0
  %1802 = vmatpush1.msra.mxu0 %v1713
  %1803 = vmatprep.subr.mxu0 0.0
  %1804 = vmatpush1.msra.mxu0 %v1714
  %1805 = vmatprep.mubr.f32.mxu0 %v1735
  %1806 = vmatmul.mubr.f32.gmra.mrb[0].mxu0 %v1727
  %v1807 = vpop.f32.mrb[0].mxu0
  %v1808 = vadd.f32 0.0, %v1807
  %v1809 = vpop.f32.mrb[0].mxu0
  %1810 = vdwg.mxu0
  %1811 = vmatprep.subr.mxu0 0.0
  %1812 = vmatpush1.msra.mxu0 %v1715
  %1813 = vmatprep.subr.mxu0 0.0
  %1814 = vmatpush1.msra.mxu0 %v1716
  %1815 = vmatprep.subr.mxu0 0.0
  %1816 = vmatpush1.msra.mxu0 %v1717
  %1817 = vmatprep.subr.mxu0 0.0
  %1818 = vmatpush1.msra.mxu0 %v1718
  %1819 = vmatprep.subr.mxu0 0.0
  %1820 = vmatpush1.msra.mxu0 0.0
  %1821 = vmatprep.subr.mxu0 0.0
  %1822 = vmatpush1.msra.mxu0 0.0
  %1823 = vmatprep.subr.mxu0 0.0
  %1824 = vmatpush1.msra.mxu0 0.0
  %1825 = vmatprep.subr.mxu0 0.0
  %1826 = vmatpush1.msra.mxu0 0.0
  %1827 = vmatprep.subr.mxu0 0.0
  %1828 = vmatpush1.msra.mxu0 0.0
  %1829 = vmatprep.subr.mxu0 0.0
  %1830 = vmatpush1.msra.mxu0 0.0
  %1831 = vmatprep.subr.mxu0 0.0
  %1832 = vmatpush1.msra.mxu0 0.0
  %1833 = vmatprep.subr.mxu0 0.0
  %1834 = vmatpush1.msra.mxu0 0.0
  %1835 = vmatprep.subr.mxu0 0.0
  %1836 = vmatpush1.msra.mxu0 0.0
  %1837 = vmatprep.subr.mxu0 0.0
  %1838 = vmatpush1.msra.mxu0 0.0
  %1839 = vmatprep.subr.mxu0 0.0
  %1840 = vmatpush1.msra.mxu0 0.0
  %1841 = vmatprep.subr.mxu0 0.0
  %1842 = vmatpush1.msra.mxu0 0.0
  %1843 = vmatprep.subr.mxu0 0.0
  %1844 = vmatpush1.msra.mxu0 0.0
  %1845 = vmatprep.subr.mxu0 0.0
  %1846 = vmatpush1.msra.mxu0 0.0
  %1847 = vmatprep.subr.mxu0 0.0
  %1848 = vmatpush1.msra.mxu0 0.0
  %1849 = vmatprep.subr.mxu0 0.0
  %1850 = vmatpush1.msra.mxu0 0.0
  %1851 = vmatprep.subr.mxu0 0.0
  %1852 = vmatpush1.msra.mxu0 0.0
  %1853 = vmatprep.subr.mxu0 0.0
  %1854 = vmatpush1.msra.mxu0 0.0
  %1855 = vmatprep.subr.mxu0 0.0
  %1856 = vmatpush1.msra.mxu0 0.0
  %1857 = vmatprep.subr.mxu0 0.0
  %1858 = vmatpush1.msra.mxu0 0.0
  %1859 = vmatprep.subr.mxu0 0.0
  %1860 = vmatpush1.msra.mxu0 0.0
  %1861 = vmatprep.subr.mxu0 0.0
  %1862 = vmatpush1.msra.mxu0 0.0
  %1863 = vmatprep.subr.mxu0 0.0
  %1864 = vmatpush1.msra.mxu0 0.0
  %1865 = vmatprep.subr.mxu0 0.0
  %1866 = vmatpush1.msra.mxu0 0.0
  %1867 = vmatprep.subr.mxu0 0.0
  %1868 = vmatpush1.msra.mxu0 0.0
  %1869 = vmatprep.subr.mxu0 0.0
  %1870 = vmatpush1.msra.mxu0 0.0
  %1871 = vmatprep.subr.mxu0 0.0
  %1872 = vmatpush1.msra.mxu0 0.0
  %1873 = vmatprep.subr.mxu0 0.0
  %1874 = vmatpush1.msra.mxu0 0.0
  %1875 = vmatprep.mubr.f32.mxu0 0.0
  %1876 = vmatmul.mubr.f32.gmra.mrb[0].mxu0 %v1739
  %v1877 = vpop.f32.mrb[0].mxu0
  %v1878 = vadd.f32 %v1808, %v1877
  %v1879 = vpop.f32.mrb[0].mxu0
  %1880 = vdwg.mxu0
  %v1881 = vmul.f32 %v265, %v265
  %v1882 = vmul.f32 %v270, %v270
  %v1883 = vmul.f32 %v275, %v275
  %v1884 = vmul.f32 %v280, %v280
  %v1885 = vmul.f32 %v285, %v285
  %v1886 = vmul.f32 %v290, %v290
  %v1887 = vmul.f32 %v295, %v295
  %v1888 = vmul.f32 %v300, %v300
  %v1889 = vmul.f32 %v305, %v305
  %v1890 = vmul.f32 %v310, %v310
  %v1891 = vmul.f32 %v315, %v315
  %v1892 = vmul.f32 %v320, %v320
  %v1893 = vmul.f32 %v325, %v325
  %v1894 = vmul.f32 %v330, %v330
  %v1895 = vmul.f32 %v335, %v335
  %v1896 = vmul.f32 %v340, %v340
  %v1897 = vmul.f32 %v345, %v345
  %v1898 = vmul.f32 %v350, %v350
  %v1899 = vmul.f32 %v355, %v355
  %v1900 = vmul.f32 %v360, %v360
  %v1901 = vmul.f32 %v365, %v365
  %v1902 = vmul.f32 %v370, %v370
  %v1903 = vmul.f32 %v375, %v375
  %v1904 = vmul.f32 %v380, %v380
  %v1905 = vmul.f32 %v385, %v385
  %v1906 = vmul.f32 %v390, %v390
  %v1907 = vmul.f32 %v395, %v395
  %v1908 = vmul.f32 %v400, %v400
  %v1909 = vmul.f32 %v405, %v405
  %v1910 = vmul.f32 %v410, %v410
  %v1911 = vmul.f32 %v415, %v415
  %v1912 = vmul.f32 %v420, %v420
  %v1913 = vmul.f32 %v425, %v425
  %v1914 = vmul.f32 %v430, %v430
  %v1915 = vmul.f32 %v435, %v435
  %v1916 = vmul.f32 %v440, %v440
  %v1917 = vmul.f32 %v654, %v654
  %v1918 = vmul.f32 %v659, %v659
  %v1919 = vmul.f32 %v664, %v664
  %v1920 = vmul.f32 %v669, %v669
  %v1921 = vmul.f32 %v674, %v674
  %v1922 = vmul.f32 %v679, %v679
  %v1923 = vmul.f32 %v684, %v684
  %v1924 = vmul.f32 %v689, %v689
  %v1925 = vmul.f32 %v694, %v694
  %v1926 = vmul.f32 %v699, %v699
  %v1927 = vmul.f32 %v704, %v704
  %v1928 = vmul.f32 %v709, %v709
  %v1929 = vmul.f32 %v714, %v714
  %v1930 = vmul.f32 %v719, %v719
  %v1931 = vmul.f32 %v724, %v724
  %v1932 = vmul.f32 %v729, %v729
  %v1933 = vmul.f32 %v734, %v734
  %v1934 = vmul.f32 %v739, %v739
  %v1935 = vmul.f32 %v744, %v744
  %v1936 = vmul.f32 %v749, %v749
  %v1937 = vmul.f32 %v754, %v754
  %v1938 = vmul.f32 %v759, %v759
  %v1939 = vmul.f32 %v764, %v764
  %v1940 = vmul.f32 %v769, %v769
  %v1941 = vmul.f32 %v774, %v774
  %v1942 = vmul.f32 %v779, %v779
  %v1943 = vmul.f32 %v784, %v784
  %v1944 = vmul.f32 %v789, %v789
  %v1945 = vmul.f32 %v794, %v794
  %v1946 = vmul.f32 %v799, %v799
  %v1947 = vmul.f32 %v804, %v804
  %v1948 = vmul.f32 %v809, %v809
  %v1949 = vmul.f32 %v814, %v814
  %v1950 = vmul.f32 %v819, %v819
  %v1951 = vmul.f32 %v824, %v824
  %v1952 = vmul.f32 %v829, %v829
  %v1953 = vadd.f32 %v1881, %v1917
  %v1954 = vadd.f32 %v1882, %v1918
  %v1955 = vadd.f32 %v1883, %v1919
  %v1956 = vadd.f32 %v1884, %v1920
  %v1957 = vadd.f32 %v1885, %v1921
  %v1958 = vadd.f32 %v1886, %v1922
  %v1959 = vadd.f32 %v1887, %v1923
  %v1960 = vadd.f32 %v1888, %v1924
  %v1961 = vadd.f32 %v1889, %v1925
  %v1962 = vadd.f32 %v1890, %v1926
  %v1963 = vadd.f32 %v1891, %v1927
  %v1964 = vadd.f32 %v1892, %v1928
  %v1965 = vadd.f32 %v1893, %v1929
  %v1966 = vadd.f32 %v1894, %v1930
  %v1967 = vadd.f32 %v1895, %v1931
  %v1968 = vadd.f32 %v1896, %v1932
  %v1969 = vadd.f32 %v1897, %v1933
  %v1970 = vadd.f32 %v1898, %v1934
  %v1971 = vadd.f32 %v1899, %v1935
  %v1972 = vadd.f32 %v1900, %v1936
  %v1973 = vadd.f32 %v1901, %v1937
  %v1974 = vadd.f32 %v1902, %v1938
  %v1975 = vadd.f32 %v1903, %v1939
  %v1976 = vadd.f32 %v1904, %v1940
  %v1977 = vadd.f32 %v1905, %v1941
  %v1978 = vadd.f32 %v1906, %v1942
  %v1979 = vadd.f32 %v1907, %v1943
  %v1980 = vadd.f32 %v1908, %v1944
  %v1981 = vadd.f32 %v1909, %v1945
  %v1982 = vadd.f32 %v1910, %v1946
  %v1983 = vadd.f32 %v1911, %v1947
  %v1984 = vadd.f32 %v1912, %v1948
  %v1985 = vadd.f32 %v1913, %v1949
  %v1986 = vadd.f32 %v1914, %v1950
  %v1987 = vadd.f32 %v1915, %v1951
  %v1988 = vadd.f32 %v1916, %v1952
  %v1989 = vmul.f32 %v1043, %v1043
  %v1990 = vmul.f32 %v1048, %v1048
  %v1991 = vmul.f32 %v1053, %v1053
  %v1992 = vmul.f32 %v1058, %v1058
  %v1993 = vmul.f32 %v1063, %v1063
  %v1994 = vmul.f32 %v1068, %v1068
  %v1995 = vmul.f32 %v1073, %v1073
  %v1996 = vmul.f32 %v1078, %v1078
  %v1997 = vmul.f32 %v1083, %v1083
  %v1998 = vmul.f32 %v1088, %v1088
  %v1999 = vmul.f32 %v1093, %v1093
  %v2000 = vmul.f32 %v1098, %v1098
  %v2001 = vmul.f32 %v1103, %v1103
  %v2002 = vmul.f32 %v1108, %v1108
  %v2003 = vmul.f32 %v1113, %v1113
  %v2004 = vmul.f32 %v1118, %v1118
  %v2005 = vmul.f32 %v1123, %v1123
  %v2006 = vmul.f32 %v1128, %v1128
  %v2007 = vmul.f32 %v1133, %v1133
  %v2008 = vmul.f32 %v1138, %v1138
  %v2009 = vmul.f32 %v1143, %v1143
  %v2010 = vmul.f32 %v1148, %v1148
  %v2011 = vmul.f32 %v1153, %v1153
  %v2012 = vmul.f32 %v1158, %v1158
  %v2013 = vmul.f32 %v1163, %v1163
  %v2014 = vmul.f32 %v1168, %v1168
  %v2015 = vmul.f32 %v1173, %v1173
  %v2016 = vmul.f32 %v1178, %v1178
  %v2017 = vmul.f32 %v1183, %v1183
  %v2018 = vmul.f32 %v1188, %v1188
  %v2019 = vmul.f32 %v1193, %v1193
  %v2020 = vmul.f32 %v1198, %v1198
  %v2021 = vmul.f32 %v1203, %v1203
  %v2022 = vmul.f32 %v1208, %v1208
  %v2023 = vmul.f32 %v1213, %v1213
  %v2024 = vmul.f32 %v1218, %v1218
  %v2025 = vadd.f32 %v1953, %v1989
  %v2026 = vadd.f32 %v1954, %v1990
  %v2027 = vadd.f32 %v1955, %v1991
  %v2028 = vadd.f32 %v1956, %v1992
  %v2029 = vadd.f32 %v1957, %v1993
  %v2030 = vadd.f32 %v1958, %v1994
  %v2031 = vadd.f32 %v1959, %v1995
  %v2032 = vadd.f32 %v1960, %v1996
  %v2033 = vadd.f32 %v1961, %v1997
  %v2034 = vadd.f32 %v1962, %v1998
  %v2035 = vadd.f32 %v1963, %v1999
  %v2036 = vadd.f32 %v1964, %v2000
  %v2037 = vadd.f32 %v1965, %v2001
  %v2038 = vadd.f32 %v1966, %v2002
  %v2039 = vadd.f32 %v1967, %v2003
  %v2040 = vadd.f32 %v1968, %v2004
  %v2041 = vadd.f32 %v1969, %v2005
  %v2042 = vadd.f32 %v1970, %v2006
  %v2043 = vadd.f32 %v1971, %v2007
  %v2044 = vadd.f32 %v1972, %v2008
  %v2045 = vadd.f32 %v1973, %v2009
  %v2046 = vadd.f32 %v1974, %v2010
  %v2047 = vadd.f32 %v1975, %v2011
  %v2048 = vadd.f32 %v1976, %v2012
  %v2049 = vadd.f32 %v1977, %v2013
  %v2050 = vadd.f32 %v1978, %v2014
  %v2051 = vadd.f32 %v1979, %v2015
  %v2052 = vadd.f32 %v1980, %v2016
  %v2053 = vadd.f32 %v1981, %v2017
  %v2054 = vadd.f32 %v1982, %v2018
  %v2055 = vadd.f32 %v1983, %v2019
  %v2056 = vadd.f32 %v1984, %v2020
  %v2057 = vadd.f32 %v1985, %v2021
  %v2058 = vadd.f32 %v1986, %v2022
  %v2059 = vadd.f32 %v1987, %v2023
  %v2060 = vadd.f32 %v1988, %v2024
  %v2061 = vmul.f32 %v1432, %v1432
  %v2062 = vmul.f32 %v1437, %v1437
  %v2063 = vmul.f32 %v1442, %v1442
  %v2064 = vmul.f32 %v1447, %v1447
  %v2065 = vmul.f32 %v1452, %v1452
  %v2066 = vmul.f32 %v1457, %v1457
  %v2067 = vmul.f32 %v1462, %v1462
  %v2068 = vmul.f32 %v1467, %v1467
  %v2069 = vmul.f32 %v1472, %v1472
  %v2070 = vmul.f32 %v1477, %v1477
  %v2071 = vmul.f32 %v1482, %v1482
  %v2072 = vmul.f32 %v1487, %v1487
  %v2073 = vmul.f32 %v1492, %v1492
  %v2074 = vmul.f32 %v1497, %v1497
  %v2075 = vmul.f32 %v1502, %v1502
  %v2076 = vmul.f32 %v1507, %v1507
  %v2077 = vmul.f32 %v1512, %v1512
  %v2078 = vmul.f32 %v1517, %v1517
  %v2079 = vmul.f32 %v1522, %v1522
  %v2080 = vmul.f32 %v1527, %v1527
  %v2081 = vmul.f32 %v1532, %v1532
  %v2082 = vmul.f32 %v1537, %v1537
  %v2083 = vmul.f32 %v1542, %v1542
  %v2084 = vmul.f32 %v1547, %v1547
  %v2085 = vmul.f32 %v1552, %v1552
  %v2086 = vmul.f32 %v1557, %v1557
  %v2087 = vmul.f32 %v1562, %v1562
  %v2088 = vmul.f32 %v1567, %v1567
  %v2089 = vmul.f32 %v1572, %v1572
  %v2090 = vmul.f32 %v1577, %v1577
  %v2091 = vmul.f32 %v1582, %v1582
  %v2092 = vmul.f32 %v1587, %v1587
  %v2093 = vmul.f32 %v1592, %v1592
  %v2094 = vmul.f32 %v1597, %v1597
  %v2095 = vmul.f32 %v1602, %v1602
  %v2096 = vmul.f32 %v1607, %v1607
  %v2097 = vadd.f32 %v2025, %v2061
  %v2098 = vadd.f32 %v2026, %v2062
  %v2099 = vadd.f32 %v2027, %v2063
  %v2100 = vadd.f32 %v2028, %v2064
  %v2101 = vadd.f32 %v2029, %v2065
  %v2102 = vadd.f32 %v2030, %v2066
  %v2103 = vadd.f32 %v2031, %v2067
  %v2104 = vadd.f32 %v2032, %v2068
  %v2105 = vadd.f32 %v2033, %v2069
  %v2106 = vadd.f32 %v2034, %v2070
  %v2107 = vadd.f32 %v2035, %v2071
  %v2108 = vadd.f32 %v2036, %v2072
  %v2109 = vadd.f32 %v2037, %v2073
  %v2110 = vadd.f32 %v2038, %v2074
  %v2111 = vadd.f32 %v2039, %v2075
  %v2112 = vadd.f32 %v2040, %v2076
  %v2113 = vadd.f32 %v2041, %v2077
  %v2114 = vadd.f32 %v2042, %v2078
  %v2115 = vadd.f32 %v2043, %v2079
  %v2116 = vadd.f32 %v2044, %v2080
  %v2117 = vadd.f32 %v2045, %v2081
  %v2118 = vadd.f32 %v2046, %v2082
  %v2119 = vadd.f32 %v2047, %v2083
  %v2120 = vadd.f32 %v2048, %v2084
  %v2121 = vadd.f32 %v2049, %v2085
  %v2122 = vadd.f32 %v2050, %v2086
  %v2123 = vadd.f32 %v2051, %v2087
  %v2124 = vadd.f32 %v2052, %v2088
  %v2125 = vadd.f32 %v2053, %v2089
  %v2126 = vadd.f32 %v2054, %v2090
  %v2127 = vadd.f32 %v2055, %v2091
  %v2128 = vadd.f32 %v2056, %v2092
  %v2129 = vadd.f32 %v2057, %v2093
  %v2130 = vadd.f32 %v2058, %v2094
  %v2131 = vadd.f32 %v2059, %v2095
  %v2132 = vadd.f32 %v2060, %v2096
  %2133 = vmatprep.subr.mxu0 0.0
  %2134 = vmatpush1.msra.mxu0 %v2097
  %2135 = vmatprep.subr.mxu0 0.0
  %2136 = vmatpush1.msra.mxu0 %v2098
  %2137 = vmatprep.subr.mxu0 0.0
  %2138 = vmatpush1.msra.mxu0 %v2099
  %2139 = vmatprep.subr.mxu0 0.0
  %2140 = vmatpush1.msra.mxu0 %v2100
  %2141 = vmatprep.subr.mxu0 0.0
  %2142 = vmatpush1.msra.mxu0 %v2101
  %2143 = vmatprep.subr.mxu0 0.0
  %2144 = vmatpush1.msra.mxu0 %v2102
  %2145 = vmatprep.subr.mxu0 0.0
  %2146 = vmatpush1.msra.mxu0 %v2103
  %2147 = vmatprep.subr.mxu0 0.0
  %2148 = vmatpush1.msra.mxu0 %v2104
  %2149 = vmatprep.subr.mxu0 0.0
  %2150 = vmatpush1.msra.mxu0 %v2105
  %2151 = vmatprep.subr.mxu0 0.0
  %2152 = vmatpush1.msra.mxu0 %v2106
  %2153 = vmatprep.subr.mxu0 0.0
  %2154 = vmatpush1.msra.mxu0 %v2107
  %2155 = vmatprep.subr.mxu0 0.0
  %2156 = vmatpush1.msra.mxu0 %v2108
  %2157 = vmatprep.subr.mxu0 0.0
  %2158 = vmatpush1.msra.mxu0 %v2109
  %2159 = vmatprep.subr.mxu0 0.0
  %2160 = vmatpush1.msra.mxu0 %v2110
  %2161 = vmatprep.subr.mxu0 0.0
  %2162 = vmatpush1.msra.mxu0 %v2111
  %2163 = vmatprep.subr.mxu0 0.0
  %2164 = vmatpush1.msra.mxu0 %v2112
  %2165 = vmatprep.subr.mxu0 0.0
  %2166 = vmatpush1.msra.mxu0 %v2113
  %2167 = vmatprep.subr.mxu0 0.0
  %2168 = vmatpush1.msra.mxu0 %v2114
  %2169 = vmatprep.subr.mxu0 0.0
  %2170 = vmatpush1.msra.mxu0 %v2115
  %2171 = vmatprep.subr.mxu0 0.0
  %2172 = vmatpush1.msra.mxu0 %v2116
  %2173 = vmatprep.subr.mxu0 0.0
  %2174 = vmatpush1.msra.mxu0 %v2117
  %2175 = vmatprep.subr.mxu0 0.0
  %2176 = vmatpush1.msra.mxu0 %v2118
  %2177 = vmatprep.subr.mxu0 0.0
  %2178 = vmatpush1.msra.mxu0 %v2119
  %2179 = vmatprep.subr.mxu0 0.0
  %2180 = vmatpush1.msra.mxu0 %v2120
  %2181 = vmatprep.subr.mxu0 0.0
  %2182 = vmatpush1.msra.mxu0 %v2121
  %2183 = vmatprep.subr.mxu0 0.0
  %2184 = vmatpush1.msra.mxu0 %v2122
  %2185 = vmatprep.subr.mxu0 0.0
  %2186 = vmatpush1.msra.mxu0 %v2123
  %2187 = vmatprep.subr.mxu0 0.0
  %2188 = vmatpush1.msra.mxu0 %v2124
  %2189 = vmatprep.subr.mxu0 0.0
  %2190 = vmatpush1.msra.mxu0 %v2125
  %2191 = vmatprep.subr.mxu0 0.0
  %2192 = vmatpush1.msra.mxu0 %v2126
  %2193 = vmatprep.subr.mxu0 0.0
  %2194 = vmatpush1.msra.mxu0 %v2127
  %2195 = vmatprep.subr.mxu0 0.0
  %2196 = vmatpush1.msra.mxu0 %v2128
  %2197 = vmatprep.mubr.f32.mxu0 %v1735
  %2198 = vmatmul.mubr.f32.gmra.mrb[0].mxu0 %v1727
  %v2199 = vpop.f32.mrb[0].mxu0
  %v2200 = vadd.f32 0.0, %v2199
  %v2201 = vpop.f32.mrb[0].mxu0
  %2202 = vdwg.mxu0
  %2203 = vmatprep.subr.mxu0 0.0
  %2204 = vmatpush1.msra.mxu0 %v2129
  %2205 = vmatprep.subr.mxu0 0.0
  %2206 = vmatpush1.msra.mxu0 %v2130
  %2207 = vmatprep.subr.mxu0 0.0
  %2208 = vmatpush1.msra.mxu0 %v2131
  %2209 = vmatprep.subr.mxu0 0.0
  %2210 = vmatpush1.msra.mxu0 %v2132
  %2211 = vmatprep.subr.mxu0 0.0
  %2212 = vmatpush1.msra.mxu0 0.0
  %2213 = vmatprep.subr.mxu0 0.0
  %2214 = vmatpush1.msra.mxu0 0.0
  %2215 = vmatprep.subr.mxu0 0.0
  %2216 = vmatpush1.msra.mxu0 0.0
  %2217 = vmatprep.subr.mxu0 0.0
  %2218 = vmatpush1.msra.mxu0 0.0
  %2219 = vmatprep.subr.mxu0 0.0
  %2220 = vmatpush1.msra.mxu0 0.0
  %2221 = vmatprep.subr.mxu0 0.0
  %2222 = vmatpush1.msra.mxu0 0.0
  %2223 = vmatprep.subr.mxu0 0.0
  %2224 = vmatpush1.msra.mxu0 0.0
  %2225 = vmatprep.subr.mxu0 0.0
  %2226 = vmatpush1.msra.mxu0 0.0
  %2227 = vmatprep.subr.mxu0 0.0
  %2228 = vmatpush1.msra.mxu0 0.0
  %2229 = vmatprep.subr.mxu0 0.0
  %2230 = vmatpush1.msra.mxu0 0.0
  %2231 = vmatprep.subr.mxu0 0.0
  %2232 = vmatpush1.msra.mxu0 0.0
  %2233 = vmatprep.subr.mxu0 0.0
  %2234 = vmatpush1.msra.mxu0 0.0
  %2235 = vmatprep.subr.mxu0 0.0
  %2236 = vmatpush1.msra.mxu0 0.0
  %2237 = vmatprep.subr.mxu0 0.0
  %2238 = vmatpush1.msra.mxu0 0.0
  %2239 = vmatprep.subr.mxu0 0.0
  %2240 = vmatpush1.msra.mxu0 0.0
  %2241 = vmatprep.subr.mxu0 0.0
  %2242 = vmatpush1.msra.mxu0 0.0
  %2243 = vmatprep.subr.mxu0 0.0
  %2244 = vmatpush1.msra.mxu0 0.0
  %2245 = vmatprep.subr.mxu0 0.0
  %2246 = vmatpush1.msra.mxu0 0.0
  %2247 = vmatprep.subr.mxu0 0.0
  %2248 = vmatpush1.msra.mxu0 0.0
  %2249 = vmatprep.subr.mxu0 0.0
  %2250 = vmatpush1.msra.mxu0 0.0
  %2251 = vmatprep.subr.mxu0 0.0
  %2252 = vmatpush1.msra.mxu0 0.0
  %2253 = vmatprep.subr.mxu0 0.0
  %2254 = vmatpush1.msra.mxu0 0.0
  %2255 = vmatprep.subr.mxu0 0.0
  %2256 = vmatpush1.msra.mxu0 0.0
  %2257 = vmatprep.subr.mxu0 0.0
  %2258 = vmatpush1.msra.mxu0 0.0
  %2259 = vmatprep.subr.mxu0 0.0
  %2260 = vmatpush1.msra.mxu0 0.0
  %2261 = vmatprep.subr.mxu0 0.0
  %2262 = vmatpush1.msra.mxu0 0.0
  %2263 = vmatprep.subr.mxu0 0.0
  %2264 = vmatpush1.msra.mxu0 0.0
  %2265 = vmatprep.subr.mxu0 0.0
  %2266 = vmatpush1.msra.mxu0 0.0
  %2267 = vmatprep.mubr.f32.mxu0 0.0
  %2268 = vmatmul.mubr.f32.gmra.mrb[0].mxu0 %v1739
  %v2269 = vpop.f32.mrb[0].mxu0
  %v2270 = vadd.f32 %v2200, %v2269
  %v2271 = vpop.f32.mrb[0].mxu0
  %2272 = vdwg.mxu0
  %v2273 = vld [vmem:[%s8] sm:$0xff]
  %v2274 = vld [vmem:[%s8 + $0x8] sm:$0xff]
  %v2275 = vld [vmem:[%s8 + $0x10] sm:$0xff]
  %v2276 = vld [vmem:[%s8 + $0x18] sm:$0xff]
  %v2278 = vsel %vm1738, %v1878, 0
  %2280 = vmatprep.subr.mxu0 0.0
  %2281 = vmatpush1.msra.mxu0 %v2273
  %2282 = vmatprep.subr.mxu0 0.0
  %2283 = vmatpush1.msra.mxu0 %v2274
  %2284 = vmatprep.subr.mxu0 0.0
  %2285 = vmatpush1.msra.mxu0 %v2275
  %2286 = vmatprep.subr.mxu0 0.0
  %2287 = vmatpush1.msra.mxu0 %v2276
  %2288 = vmatprep.subr.mxu0 0.0
  %2289 = vmatpush1.msra.mxu0 0.0
  %2290 = vmatprep.subr.mxu0 0.0
  %2291 = vmatpush1.msra.mxu0 0.0
  %2292 = vmatprep.subr.mxu0 0.0
  %2293 = vmatpush1.msra.mxu0 0.0
  %2294 = vmatprep.subr.mxu0 0.0
  %2295 = vmatpush1.msra.mxu0 0.0
  %2296 = vmatprep.subr.mxu0 0.0
  %2297 = vmatpush1.msra.mxu0 0.0
  %2298 = vmatprep.subr.mxu0 0.0
  %2299 = vmatpush1.msra.mxu0 0.0
  %2300 = vmatprep.subr.mxu0 0.0
  %2301 = vmatpush1.msra.mxu0 0.0
  %2302 = vmatprep.subr.mxu0 0.0
  %2303 = vmatpush1.msra.mxu0 0.0
  %2304 = vmatprep.subr.mxu0 0.0
  %2305 = vmatpush1.msra.mxu0 0.0
  %2306 = vmatprep.subr.mxu0 0.0
  %2307 = vmatpush1.msra.mxu0 0.0
  %2308 = vmatprep.subr.mxu0 0.0
  %2309 = vmatpush1.msra.mxu0 0.0
  %2310 = vmatprep.subr.mxu0 0.0
  %2311 = vmatpush1.msra.mxu0 0.0
  %2312 = vmatprep.subr.mxu0 0.0
  %2313 = vmatpush1.msra.mxu0 0.0
  %2314 = vmatprep.subr.mxu0 0.0
  %2315 = vmatpush1.msra.mxu0 0.0
  %2316 = vmatprep.subr.mxu0 0.0
  %2317 = vmatpush1.msra.mxu0 0.0
  %2318 = vmatprep.subr.mxu0 0.0
  %2319 = vmatpush1.msra.mxu0 0.0
  %2320 = vmatprep.subr.mxu0 0.0
  %2321 = vmatpush1.msra.mxu0 0.0
  %2322 = vmatprep.subr.mxu0 0.0
  %2323 = vmatpush1.msra.mxu0 0.0
  %2324 = vmatprep.subr.mxu0 0.0
  %2325 = vmatpush1.msra.mxu0 0.0
  %2326 = vmatprep.subr.mxu0 0.0
  %2327 = vmatpush1.msra.mxu0 0.0
  %2328 = vmatprep.subr.mxu0 0.0
  %2329 = vmatpush1.msra.mxu0 0.0
  %2330 = vmatprep.subr.mxu0 0.0
  %2331 = vmatpush1.msra.mxu0 0.0
  %2332 = vmatprep.subr.mxu0 0.0
  %2333 = vmatpush1.msra.mxu0 0.0
  %2334 = vmatprep.subr.mxu0 0.0
  %2335 = vmatpush1.msra.mxu0 0.0
  %2336 = vmatprep.subr.mxu0 0.0
  %2337 = vmatpush1.msra.mxu0 0.0
  %2338 = vmatprep.subr.mxu0 0.0
  %2339 = vmatpush1.msra.mxu0 0.0
  %2340 = vmatprep.subr.mxu0 0.0
  %2341 = vmatpush1.msra.mxu0 0.0
  %2342 = vmatprep.subr.mxu0 0.0
  %2343 = vmatpush1.msra.mxu0 0.0
  %2344 = vmatprep.mubr.f32.mxu0 0.0
  %2345 = vmatmul.mubr.f32.gmra.mrb[0].mxu0 %v2278
  %v2346 = vpop.f32.mrb[0].mxu0
  %v2347 = vadd.f32 0.0, %v2346
  %v2348 = vpop.f32.mrb[0].mxu0
  %2349 = vdwg.mxu0
  %v2351 = vsel %vm1738, %v2270, 0
  %2353 = vmatprep.subr.mxu0 0.0
  %2354 = vmatpush1.msra.mxu0 %v2273
  %2355 = vmatprep.subr.mxu0 0.0
  %2356 = vmatpush1.msra.mxu0 %v2274
  %2357 = vmatprep.subr.mxu0 0.0
  %2358 = vmatpush1.msra.mxu0 %v2275
  %2359 = vmatprep.subr.mxu0 0.0
  %2360 = vmatpush1.msra.mxu0 %v2276
  %2361 = vmatprep.subr.mxu0 0.0
  %2362 = vmatpush1.msra.mxu0 0.0
  %2363 = vmatprep.subr.mxu0 0.0
  %2364 = vmatpush1.msra.mxu0 0.0
  %2365 = vmatprep.subr.mxu0 0.0
  %2366 = vmatpush1.msra.mxu0 0.0
  %2367 = vmatprep.subr.mxu0 0.0
  %2368 = vmatpush1.msra.mxu0 0.0
  %2369 = vmatprep.subr.mxu0 0.0
  %2370 = vmatpush1.msra.mxu0 0.0
  %2371 = vmatprep.subr.mxu0 0.0
  %2372 = vmatpush1.msra.mxu0 0.0
  %2373 = vmatprep.subr.mxu0 0.0
  %2374 = vmatpush1.msra.mxu0 0.0
  %2375 = vmatprep.subr.mxu0 0.0
  %2376 = vmatpush1.msra.mxu0 0.0
  %2377 = vmatprep.subr.mxu0 0.0
  %2378 = vmatpush1.msra.mxu0 0.0
  %2379 = vmatprep.subr.mxu0 0.0
  %2380 = vmatpush1.msra.mxu0 0.0
  %2381 = vmatprep.subr.mxu0 0.0
  %2382 = vmatpush1.msra.mxu0 0.0
  %2383 = vmatprep.subr.mxu0 0.0
  %2384 = vmatpush1.msra.mxu0 0.0
  %2385 = vmatprep.subr.mxu0 0.0
  %2386 = vmatpush1.msra.mxu0 0.0
  %2387 = vmatprep.subr.mxu0 0.0
  %2388 = vmatpush1.msra.mxu0 0.0
  %2389 = vmatprep.subr.mxu0 0.0
  %2390 = vmatpush1.msra.mxu0 0.0
  %2391 = vmatprep.subr.mxu0 0.0
  %2392 = vmatpush1.msra.mxu0 0.0
  %2393 = vmatprep.subr.mxu0 0.0
  %2394 = vmatpush1.msra.mxu0 0.0
  %2395 = vmatprep.subr.mxu0 0.0
  %2396 = vmatpush1.msra.mxu0 0.0
  %2397 = vmatprep.subr.mxu0 0.0
  %2398 = vmatpush1.msra.mxu0 0.0
  %2399 = vmatprep.subr.mxu0 0.0
  %2400 = vmatpush1.msra.mxu0 0.0
  %2401 = vmatprep.subr.mxu0 0.0
  %2402 = vmatpush1.msra.mxu0 0.0
  %2403 = vmatprep.subr.mxu0 0.0
  %2404 = vmatpush1.msra.mxu0 0.0
  %2405 = vmatprep.subr.mxu0 0.0
  %2406 = vmatpush1.msra.mxu0 0.0
  %2407 = vmatprep.subr.mxu0 0.0
  %2408 = vmatpush1.msra.mxu0 0.0
  %2409 = vmatprep.subr.mxu0 0.0
  %2410 = vmatpush1.msra.mxu0 0.0
  %2411 = vmatprep.subr.mxu0 0.0
  %2412 = vmatpush1.msra.mxu0 0.0
  %2413 = vmatprep.subr.mxu0 0.0
  %2414 = vmatpush1.msra.mxu0 0.0
  %2415 = vmatprep.subr.mxu0 0.0
  %2416 = vmatpush1.msra.mxu0 0.0
  %2417 = vmatprep.mubr.f32.mxu0 0.0
  %2418 = vmatmul.mubr.f32.gmra.mrb[0].mxu0 %v2351
  %v2419 = vpop.f32.mrb[0].mxu0
  %v2420 = vadd.f32 0.0, %v2419
  %v2421 = vpop.f32.mrb[0].mxu0
  %2422 = vdwg.mxu0
  %v2423 = vmul.f32 %v2347, 0.00043402778
  %v2424 = vmul.f32 %v2420, 0.00043402778
  %v2425 = vmul.f32 %v2423, %v2423
  %v2426 = vsub.f32 %v2424, %v2425
  %v2427 = vadd.f32 %v2426, 1e-05
  %v2428 = vrsqrt.pop %v2427
  %v2429 = vld [vmem:[%s6] sm:$0x1]
  %v2431 = vlaneseq
  %v2432 = vshrl.u32 %v2431, 7
  %v2433 = vsub.s32 0, %v2432
  %v2434 = vrot.slane %v2429, %v2433
  %v2436 = vmul.f32 %v2428, %v2434
  %v2437 = vld [vmem:[%s7] sm:$0x1]
  %v2438 = vmul.f32 %v2423, %v2436
  %v2440 = vlaneseq
  %v2441 = vshrl.u32 %v2440, 7
  %v2442 = vsub.s32 0, %v2441
  %v2443 = vrot.slane %v2437, %v2442
  %v2445 = vsub.f32 %v2443, %v2438
  %v2446 = vld [vmem:[%s10] sm:$0xff]
  %v2447 = vld [vmem:[%s10 + $0x8] sm:$0xff]
  %v2448 = vld [vmem:[%s10 + $0x10] sm:$0xff]
  %v2449 = vld [vmem:[%s10 + $0x18] sm:$0xff]
  %v2450 = vld [vmem:[%s10 + $0x20] sm:$0xff]
  %v2451 = vld [vmem:[%s10 + $0x28] sm:$0xff]
  %v2452 = vld [vmem:[%s10 + $0x30] sm:$0xff]
  %v2453 = vld [vmem:[%s10 + $0x38] sm:$0xff]
  %v2454 = vld [vmem:[%s10 + $0x40] sm:$0xff]
  %v2455 = vld [vmem:[%s10 + $0x48] sm:$0xff]
  %v2456 = vld [vmem:[%s10 + $0x50] sm:$0xff]
  %v2457 = vld [vmem:[%s10 + $0x58] sm:$0xff]
  %v2458 = vld [vmem:[%s10 + $0x60] sm:$0xff]
  %v2459 = vld [vmem:[%s10 + $0x68] sm:$0xff]
  %v2460 = vld [vmem:[%s10 + $0x70] sm:$0xff]
  %v2461 = vld [vmem:[%s10 + $0x78] sm:$0xff]
  %v2462 = vld [vmem:[%s10 + $0x80] sm:$0xff]
  %v2463 = vld [vmem:[%s10 + $0x88] sm:$0xff]
  %v2464 = vld [vmem:[%s10 + $0x90] sm:$0xff]
  %v2465 = vld [vmem:[%s10 + $0x98] sm:$0xff]
  %v2466 = vld [vmem:[%s10 + $0xa0] sm:$0xff]
  %v2467 = vld [vmem:[%s10 + $0xa8] sm:$0xff]
  %v2468 = vld [vmem:[%s10 + $0xb0] sm:$0xff]
  %v2469 = vld [vmem:[%s10 + $0xb8] sm:$0xff]
  %v2470 = vld [vmem:[%s10 + $0xc0] sm:$0xff]
  %v2471 = vld [vmem:[%s10 + $0xc8] sm:$0xff]
  %v2472 = vld [vmem:[%s10 + $0xd0] sm:$0xff]
  %v2473 = vld [vmem:[%s10 + $0xd8] sm:$0xff]
  %v2474 = vld [vmem:[%s10 + $0xe0] sm:$0xff]
  %v2475 = vld [vmem:[%s10 + $0xe8] sm:$0xff]
  %v2476 = vld [vmem:[%s10 + $0xf0] sm:$0xff]
  %v2477 = vld [vmem:[%s10 + $0xf8] sm:$0xff]
  %v2478 = vld [vmem:[%s10 + $0x100] sm:$0xff]
  %v2479 = vld [vmem:[%s10 + $0x108] sm:$0xff]
  %v2480 = vld [vmem:[%s10 + $0x110] sm:$0xff]
  %v2481 = vld [vmem:[%s10 + $0x118] sm:$0xff]
  %vm2482 = vcmask 15360
  %v2484 = vsel %vm2482, %v2446, 0
  %v2487 = vsel %vm2482, %v2447, 0
  %v2490 = vsel %vm2482, %v2448, 0
  %v2493 = vsel %vm2482, %v2449, 0
  %v2496 = vsel %vm2482, %v2450, 0
  %v2499 = vsel %vm2482, %v2451, 0
  %v2502 = vsel %vm2482, %v2452, 0
  %v2505 = vsel %vm2482, %v2453, 0
  %v2508 = vsel %vm2482, %v2454, 0
  %v2511 = vsel %vm2482, %v2455, 0
  %v2514 = vsel %vm2482, %v2456, 0
  %v2517 = vsel %vm2482, %v2457, 0
  %v2520 = vsel %vm2482, %v2458, 0
  %v2523 = vsel %vm2482, %v2459, 0
  %v2526 = vsel %vm2482, %v2460, 0
  %v2529 = vsel %vm2482, %v2461, 0
  %v2532 = vsel %vm2482, %v2462, 0
  %v2535 = vsel %vm2482, %v2463, 0
  %v2538 = vsel %vm2482, %v2464, 0
  %v2541 = vsel %vm2482, %v2465, 0
  %v2544 = vsel %vm2482, %v2466, 0
  %v2547 = vsel %vm2482, %v2467, 0
  %v2550 = vsel %vm2482, %v2468, 0
  %v2553 = vsel %vm2482, %v2469, 0
  %v2556 = vsel %vm2482, %v2470, 0
  %v2559 = vsel %vm2482, %v2471, 0
  %v2562 = vsel %vm2482, %v2472, 0
  %v2565 = vsel %vm2482, %v2473, 0
  %v2568 = vsel %vm2482, %v2474, 0
  %v2571 = vsel %vm2482, %v2475, 0
  %v2574 = vsel %vm2482, %v2476, 0
  %v2577 = vsel %vm2482, %v2477, 0
  %v2580 = vsel %vm2482, %v2478, 0
  %v2583 = vsel %vm2482, %v2479, 0
  %v2586 = vsel %vm2482, %v2480, 0
  %v2589 = vsel %vm2482, %v2481, 0
  %vm2591 = vcmask 1041408
  %v2593 = vsel %vm2591, %v2436, 0
  %2595 = vmatprep.subr.mxu0 0.0
  %2596 = vmatpush1.msra.mxu0 %v2593
  %2597 = vmatprep.subr.mxu0 0.0
  %2598 = vmatpush1.msra.mxu0 0.0
  %2599 = vmatprep.subr.mxu0 0.0
  %2600 = vmatpush1.msra.mxu0 0.0
  %2601 = vmatprep.subr.mxu0 0.0
  %2602 = vmatpush1.msra.mxu0 0.0
  %2603 = vmatprep.subr.mxu0 0.0
  %2604 = vmatpush1.msra.mxu0 0.0
  %2605 = vmatprep.subr.mxu0 0.0
  %2606 = vmatpush1.msra.mxu0 0.0
  %2607 = vmatprep.subr.mxu0 0.0
  %2608 = vmatpush1.msra.mxu0 0.0
  %2609 = vmatprep.subr.mxu0 0.0
  %2610 = vmatpush1.msra.mxu0 0.0
  %2611 = vmatprep.subr.mxu0 0.0
  %2612 = vmatpush1.msra.mxu0 0.0
  %2613 = vmatprep.subr.mxu0 0.0
  %2614 = vmatpush1.msra.mxu0 0.0
  %2615 = vmatprep.subr.mxu0 0.0
  %2616 = vmatpush1.msra.mxu0 0.0
  %2617 = vmatprep.subr.mxu0 0.0
  %2618 = vmatpush1.msra.mxu0 0.0
  %2619 = vmatprep.subr.mxu0 0.0
  %2620 = vmatpush1.msra.mxu0 0.0
  %2621 = vmatprep.subr.mxu0 0.0
  %2622 = vmatpush1.msra.mxu0 0.0
  %2623 = vmatprep.subr.mxu0 0.0
  %2624 = vmatpush1.msra.mxu0 0.0
  %2625 = vmatprep.subr.mxu0 0.0
  %2626 = vmatpush1.msra.mxu0 0.0
  %2627 = vmatprep.subr.mxu0 0.0
  %2628 = vmatpush1.msra.mxu0 0.0
  %2629 = vmatprep.subr.mxu0 0.0
  %2630 = vmatpush1.msra.mxu0 0.0
  %2631 = vmatprep.subr.mxu0 0.0
  %2632 = vmatpush1.msra.mxu0 0.0
  %2633 = vmatprep.subr.mxu0 0.0
  %2634 = vmatpush1.msra.mxu0 0.0
  %2635 = vmatprep.subr.mxu0 0.0
  %2636 = vmatpush1.msra.mxu0 0.0
  %2637 = vmatprep.subr.mxu0 0.0
  %2638 = vmatpush1.msra.mxu0 0.0
  %2639 = vmatprep.subr.mxu0 0.0
  %2640 = vmatpush1.msra.mxu0 0.0
  %2641 = vmatprep.subr.mxu0 0.0
  %2642 = vmatpush1.msra.mxu0 0.0
  %2643 = vmatprep.subr.mxu0 0.0
  %2644 = vmatpush1.msra.mxu0 0.0
  %2645 = vmatprep.subr.mxu0 0.0
  %2646 = vmatpush1.msra.mxu0 0.0
  %2647 = vmatprep.subr.mxu0 0.0
  %2648 = vmatpush1.msra.mxu0 0.0
  %2649 = vmatprep.subr.mxu0 0.0
  %2650 = vmatpush1.msra.mxu0 0.0
  %2651 = vmatprep.subr.mxu0 0.0
  %2652 = vmatpush1.msra.mxu0 0.0
  %2653 = vmatprep.subr.mxu0 0.0
  %2654 = vmatpush1.msra.mxu0 0.0
  %2655 = vmatprep.subr.mxu0 0.0
  %2656 = vmatpush1.msra.mxu0 0.0
  %2657 = vmatprep.subr.mxu0 0.0
  %2658 = vmatpush1.msra.mxu0 0.0
  %2659 = vmatprep.mubr.f32.mxu0 0.0
  %2660 = vmatmul.mubr.f32.gmra.mrb[0].mxu0 %v2484
  %v2661 = vpop.f32.mrb[0].mxu0
  %v2662 = vadd.f32 0.0, %v2661
  %v2663 = vpop.f32.mrb[0].mxu0
  %2664 = vmatprep.mubr.f32.mxu0 0.0
  %2665 = vmatmul.mubr.f32.gmra.mrb[0].mxu0 %v2487
  %v2666 = vpop.f32.mrb[0].mxu0
  %v2667 = vadd.f32 0.0, %v2666
  %v2668 = vpop.f32.mrb[0].mxu0
  %2669 = vmatprep.mubr.f32.mxu0 0.0
  %2670 = vmatmul.mubr.f32.gmra.mrb[0].mxu0 %v2490
  %v2671 = vpop.f32.mrb[0].mxu0
  %v2672 = vadd.f32 0.0, %v2671
  %v2673 = vpop.f32.mrb[0].mxu0
  %2674 = vmatprep.mubr.f32.mxu0 0.0
  %2675 = vmatmul.mubr.f32.gmra.mrb[0].mxu0 %v2493
  %v2676 = vpop.f32.mrb[0].mxu0
  %v2677 = vadd.f32 0.0, %v2676
  %v2678 = vpop.f32.mrb[0].mxu0
  %2679 = vmatprep.mubr.f32.mxu0 0.0
  %2680 = vmatmul.mubr.f32.gmra.mrb[0].mxu0 %v2496
  %v2681 = vpop.f32.mrb[0].mxu0
  %v2682 = vadd.f32 0.0, %v2681
  %v2683 = vpop.f32.mrb[0].mxu0
  %2684 = vmatprep.mubr.f32.mxu0 0.0
  %2685 = vmatmul.mubr.f32.gmra.mrb[0].mxu0 %v2499
  %v2686 = vpop.f32.mrb[0].mxu0
  %v2687 = vadd.f32 0.0, %v2686
  %v2688 = vpop.f32.mrb[0].mxu0
  %2689 = vmatprep.mubr.f32.mxu0 0.0
  %2690 = vmatmul.mubr.f32.gmra.mrb[0].mxu0 %v2502
  %v2691 = vpop.f32.mrb[0].mxu0
  %v2692 = vadd.f32 0.0, %v2691
  %v2693 = vpop.f32.mrb[0].mxu0
  %2694 = vmatprep.mubr.f32.mxu0 0.0
  %2695 = vmatmul.mubr.f32.gmra.mrb[0].mxu0 %v2505
  %v2696 = vpop.f32.mrb[0].mxu0
  %v2697 = vadd.f32 0.0, %v2696
  %v2698 = vpop.f32.mrb[0].mxu0
  %2699 = vmatprep.mubr.f32.mxu0 0.0
  %2700 = vmatmul.mubr.f32.gmra.mrb[0].mxu0 %v2508
  %v2701 = vpop.f32.mrb[0].mxu0
  %v2702 = vadd.f32 0.0, %v2701
  %v2703 = vpop.f32.mrb[0].mxu0
  %2704 = vmatprep.mubr.f32.mxu0 0.0
  %2705 = vmatmul.mubr.f32.gmra.mrb[0].mxu0 %v2511
  %v2706 = vpop.f32.mrb[0].mxu0
  %v2707 = vadd.f32 0.0, %v2706
  %v2708 = vpop.f32.mrb[0].mxu0
  %2709 = vmatprep.mubr.f32.mxu0 0.0
  %2710 = vmatmul.mubr.f32.gmra.mrb[0].mxu0 %v2514
  %v2711 = vpop.f32.mrb[0].mxu0
  %v2712 = vadd.f32 0.0, %v2711
  %v2713 = vpop.f32.mrb[0].mxu0
  %2714 = vmatprep.mubr.f32.mxu0 0.0
  %2715 = vmatmul.mubr.f32.gmra.mrb[0].mxu0 %v2517
  %v2716 = vpop.f32.mrb[0].mxu0
  %v2717 = vadd.f32 0.0, %v2716
  %v2718 = vpop.f32.mrb[0].mxu0
  %2719 = vmatprep.mubr.f32.mxu0 0.0
  %2720 = vmatmul.mubr.f32.gmra.mrb[0].mxu0 %v2520
  %v2721 = vpop.f32.mrb[0].mxu0
  %v2722 = vadd.f32 0.0, %v2721
  %v2723 = vpop.f32.mrb[0].mxu0
  %2724 = vmatprep.mubr.f32.mxu0 0.0
  %2725 = vmatmul.mubr.f32.gmra.mrb[0].mxu0 %v2523
  %v2726 = vpop.f32.mrb[0].mxu0
  %v2727 = vadd.f32 0.0, %v2726
  %v2728 = vpop.f32.mrb[0].mxu0
  %2729 = vmatprep.mubr.f32.mxu0 0.0
  %2730 = vmatmul.mubr.f32.gmra.mrb[0].mxu0 %v2526
  %v2731 = vpop.f32.mrb[0].mxu0
  %v2732 = vadd.f32 0.0, %v2731
  %v2733 = vpop.f32.mrb[0].mxu0
  %2734 = vmatprep.mubr.f32.mxu0 0.0
  %2735 = vmatmul.mubr.f32.gmra.mrb[0].mxu0 %v2529
  %v2736 = vpop.f32.mrb[0].mxu0
  %v2737 = vadd.f32 0.0, %v2736
  %v2738 = vpop.f32.mrb[0].mxu0
  %2739 = vmatprep.mubr.f32.mxu0 0.0
  %2740 = vmatmul.mubr.f32.gmra.mrb[0].mxu0 %v2532
  %v2741 = vpop.f32.mrb[0].mxu0
  %v2742 = vadd.f32 0.0, %v2741
  %v2743 = vpop.f32.mrb[0].mxu0
  %2744 = vmatprep.mubr.f32.mxu0 0.0
  %2745 = vmatmul.mubr.f32.gmra.mrb[0].mxu0 %v2535
  %v2746 = vpop.f32.mrb[0].mxu0
  %v2747 = vadd.f32 0.0, %v2746
  %v2748 = vpop.f32.mrb[0].mxu0
  %2749 = vmatprep.mubr.f32.mxu0 0.0
  %2750 = vmatmul.mubr.f32.gmra.mrb[0].mxu0 %v2538
  %v2751 = vpop.f32.mrb[0].mxu0
  %v2752 = vadd.f32 0.0, %v2751
  %v2753 = vpop.f32.mrb[0].mxu0
  %2754 = vmatprep.mubr.f32.mxu0 0.0
  %2755 = vmatmul.mubr.f32.gmra.mrb[0].mxu0 %v2541
  %v2756 = vpop.f32.mrb[0].mxu0
  %v2757 = vadd.f32 0.0, %v2756
  %v2758 = vpop.f32.mrb[0].mxu0
  %2759 = vmatprep.mubr.f32.mxu0 0.0
  %2760 = vmatmul.mubr.f32.gmra.mrb[0].mxu0 %v2544
  %v2761 = vpop.f32.mrb[0].mxu0
  %v2762 = vadd.f32 0.0, %v2761
  %v2763 = vpop.f32.mrb[0].mxu0
  %2764 = vmatprep.mubr.f32.mxu0 0.0
  %2765 = vmatmul.mubr.f32.gmra.mrb[0].mxu0 %v2547
  %v2766 = vpop.f32.mrb[0].mxu0
  %v2767 = vadd.f32 0.0, %v2766
  %v2768 = vpop.f32.mrb[0].mxu0
  %2769 = vmatprep.mubr.f32.mxu0 0.0
  %2770 = vmatmul.mubr.f32.gmra.mrb[0].mxu0 %v2550
  %v2771 = vpop.f32.mrb[0].mxu0
  %v2772 = vadd.f32 0.0, %v2771
  %v2773 = vpop.f32.mrb[0].mxu0
  %2774 = vmatprep.mubr.f32.mxu0 0.0
  %2775 = vmatmul.mubr.f32.gmra.mrb[0].mxu0 %v2553
  %v2776 = vpop.f32.mrb[0].mxu0
  %v2777 = vadd.f32 0.0, %v2776
  %v2778 = vpop.f32.mrb[0].mxu0
  %2779 = vmatprep.mubr.f32.mxu0 0.0
  %2780 = vmatmul.mubr.f32.gmra.mrb[0].mxu0 %v2556
  %v2781 = vpop.f32.mrb[0].mxu0
  %v2782 = vadd.f32 0.0, %v2781
  %v2783 = vpop.f32.mrb[0].mxu0
  %2784 = vmatprep.mubr.f32.mxu0 0.0
  %2785 = vmatmul.mubr.f32.gmra.mrb[0].mxu0 %v2559
  %v2786 = vpop.f32.mrb[0].mxu0
  %v2787 = vadd.f32 0.0, %v2786
  %v2788 = vpop.f32.mrb[0].mxu0
  %2789 = vmatprep.mubr.f32.mxu0 0.0
  %2790 = vmatmul.mubr.f32.gmra.mrb[0].mxu0 %v2562
  %v2791 = vpop.f32.mrb[0].mxu0
  %v2792 = vadd.f32 0.0, %v2791
  %v2793 = vpop.f32.mrb[0].mxu0
  %2794 = vmatprep.mubr.f32.mxu0 0.0
  %2795 = vmatmul.mubr.f32.gmra.mrb[0].mxu0 %v2565
  %v2796 = vpop.f32.mrb[0].mxu0
  %v2797 = vadd.f32 0.0, %v2796
  %v2798 = vpop.f32.mrb[0].mxu0
  %2799 = vmatprep.mubr.f32.mxu0 0.0
  %2800 = vmatmul.mubr.f32.gmra.mrb[0].mxu0 %v2568
  %v2801 = vpop.f32.mrb[0].mxu0
  %v2802 = vadd.f32 0.0, %v2801
  %v2803 = vpop.f32.mrb[0].mxu0
  %2804 = vmatprep.mubr.f32.mxu0 0.0
  %2805 = vmatmul.mubr.f32.gmra.mrb[0].mxu0 %v2571
  %v2806 = vpop.f32.mrb[0].mxu0
  %v2807 = vadd.f32 0.0, %v2806
  %v2808 = vpop.f32.mrb[0].mxu0
  %2809 = vmatprep.mubr.f32.mxu0 0.0
  %2810 = vmatmul.mubr.f32.gmra.mrb[0].mxu0 %v2574
  %v2811 = vpop.f32.mrb[0].mxu0
  %v2812 = vadd.f32 0.0, %v2811
  %v2813 = vpop.f32.mrb[0].mxu0
  %2814 = vmatprep.mubr.f32.mxu0 0.0
  %2815 = vmatmul.mubr.f32.gmra.mrb[0].mxu0 %v2577
  %v2816 = vpop.f32.mrb[0].mxu0
  %v2817 = vadd.f32 0.0, %v2816
  %v2818 = vpop.f32.mrb[0].mxu0
  %2819 = vmatprep.mubr.f32.mxu0 0.0
  %2820 = vmatmul.mubr.f32.gmra.mrb[0].mxu0 %v2580
  %v2821 = vpop.f32.mrb[0].mxu0
  %v2822 = vadd.f32 0.0, %v2821
  %v2823 = vpop.f32.mrb[0].mxu0
  %2824 = vmatprep.mubr.f32.mxu0 0.0
  %2825 = vmatmul.mubr.f32.gmra.mrb[0].mxu0 %v2583
  %v2826 = vpop.f32.mrb[0].mxu0
  %v2827 = vadd.f32 0.0, %v2826
  %v2828 = vpop.f32.mrb[0].mxu0
  %2829 = vmatprep.mubr.f32.mxu0 0.0
  %2830 = vmatmul.mubr.f32.gmra.mrb[0].mxu0 %v2586
  %v2831 = vpop.f32.mrb[0].mxu0
  %v2832 = vadd.f32 0.0, %v2831
  %v2833 = vpop.f32.mrb[0].mxu0
  %2834 = vmatprep.mubr.f32.mxu0 0.0
  %2835 = vmatmul.mubr.f32.gmra.mrb[0].mxu0 %v2589
  %v2836 = vpop.f32.mrb[0].mxu0
  %v2837 = vadd.f32 0.0, %v2836
  %v2838 = vpop.f32.mrb[0].mxu0
  %2839 = vdwg.mxu0
  %v2841 = vsel %vm2591, %v2445, 0
  %2843 = vmatprep.subr.mxu0 0.0
  %2844 = vmatpush1.msra.mxu0 %v2841
  %2845 = vmatprep.subr.mxu0 0.0
  %2846 = vmatpush1.msra.mxu0 0.0
  %2847 = vmatprep.subr.mxu0 0.0
  %2848 = vmatpush1.msra.mxu0 0.0
  %2849 = vmatprep.subr.mxu0 0.0
  %2850 = vmatpush1.msra.mxu0 0.0
  %2851 = vmatprep.subr.mxu0 0.0
  %2852 = vmatpush1.msra.mxu0 0.0
  %2853 = vmatprep.subr.mxu0 0.0
  %2854 = vmatpush1.msra.mxu0 0.0
  %2855 = vmatprep.subr.mxu0 0.0
  %2856 = vmatpush1.msra.mxu0 0.0
  %2857 = vmatprep.subr.mxu0 0.0
  %2858 = vmatpush1.msra.mxu0 0.0
  %2859 = vmatprep.subr.mxu0 0.0
  %2860 = vmatpush1.msra.mxu0 0.0
  %2861 = vmatprep.subr.mxu0 0.0
  %2862 = vmatpush1.msra.mxu0 0.0
  %2863 = vmatprep.subr.mxu0 0.0
  %2864 = vmatpush1.msra.mxu0 0.0
  %2865 = vmatprep.subr.mxu0 0.0
  %2866 = vmatpush1.msra.mxu0 0.0
  %2867 = vmatprep.subr.mxu0 0.0
  %2868 = vmatpush1.msra.mxu0 0.0
  %2869 = vmatprep.subr.mxu0 0.0
  %2870 = vmatpush1.msra.mxu0 0.0
  %2871 = vmatprep.subr.mxu0 0.0
  %2872 = vmatpush1.msra.mxu0 0.0
  %2873 = vmatprep.subr.mxu0 0.0
  %2874 = vmatpush1.msra.mxu0 0.0
  %2875 = vmatprep.subr.mxu0 0.0
  %2876 = vmatpush1.msra.mxu0 0.0
  %2877 = vmatprep.subr.mxu0 0.0
  %2878 = vmatpush1.msra.mxu0 0.0
  %2879 = vmatprep.subr.mxu0 0.0
  %2880 = vmatpush1.msra.mxu0 0.0
  %2881 = vmatprep.subr.mxu0 0.0
  %2882 = vmatpush1.msra.mxu0 0.0
  %2883 = vmatprep.subr.mxu0 0.0
  %2884 = vmatpush1.msra.mxu0 0.0
  %2885 = vmatprep.subr.mxu0 0.0
  %2886 = vmatpush1.msra.mxu0 0.0
  %2887 = vmatprep.subr.mxu0 0.0
  %2888 = vmatpush1.msra.mxu0 0.0
  %2889 = vmatprep.subr.mxu0 0.0
  %2890 = vmatpush1.msra.mxu0 0.0
  %2891 = vmatprep.subr.mxu0 0.0
  %2892 = vmatpush1.msra.mxu0 0.0
  %2893 = vmatprep.subr.mxu0 0.0
  %2894 = vmatpush1.msra.mxu0 0.0
  %2895 = vmatprep.subr.mxu0 0.0
  %2896 = vmatpush1.msra.mxu0 0.0
  %2897 = vmatprep.subr.mxu0 0.0
  %2898 = vmatpush1.msra.mxu0 0.0
  %2899 = vmatprep.subr.mxu0 0.0
  %2900 = vmatpush1.msra.mxu0 0.0
  %2901 = vmatprep.subr.mxu0 0.0
  %2902 = vmatpush1.msra.mxu0 0.0
  %2903 = vmatprep.subr.mxu0 0.0
  %2904 = vmatpush1.msra.mxu0 0.0
  %2905 = vmatprep.subr.mxu0 0.0
  %2906 = vmatpush1.msra.mxu0 0.0
  %2907 = vmatprep.mubr.f32.mxu0 0.0
  %2908 = vmatmul.mubr.f32.gmra.mrb[0].mxu0 %v2484
  %v2909 = vpop.f32.mrb[0].mxu0
  %v2910 = vadd.f32 0.0, %v2909
  %v2911 = vpop.f32.mrb[0].mxu0
  %2912 = vmatprep.mubr.f32.mxu0 0.0
  %2913 = vmatmul.mubr.f32.gmra.mrb[0].mxu0 %v2487
  %v2914 = vpop.f32.mrb[0].mxu0
  %v2915 = vadd.f32 0.0, %v2914
  %v2916 = vpop.f32.mrb[0].mxu0
  %2917 = vmatprep.mubr.f32.mxu0 0.0
  %2918 = vmatmul.mubr.f32.gmra.mrb[0].mxu0 %v2490
  %v2919 = vpop.f32.mrb[0].mxu0
  %v2920 = vadd.f32 0.0, %v2919
  %v2921 = vpop.f32.mrb[0].mxu0
  %2922 = vmatprep.mubr.f32.mxu0 0.0
  %2923 = vmatmul.mubr.f32.gmra.mrb[0].mxu0 %v2493
  %v2924 = vpop.f32.mrb[0].mxu0
  %v2925 = vadd.f32 0.0, %v2924
  %v2926 = vpop.f32.mrb[0].mxu0
  %2927 = vmatprep.mubr.f32.mxu0 0.0
  %2928 = vmatmul.mubr.f32.gmra.mrb[0].mxu0 %v2496
  %v2929 = vpop.f32.mrb[0].mxu0
  %v2930 = vadd.f32 0.0, %v2929
  %v2931 = vpop.f32.mrb[0].mxu0
  %2932 = vmatprep.mubr.f32.mxu0 0.0
  %2933 = vmatmul.mubr.f32.gmra.mrb[0].mxu0 %v2499
  %v2934 = vpop.f32.mrb[0].mxu0
  %v2935 = vadd.f32 0.0, %v2934
  %v2936 = vpop.f32.mrb[0].mxu0
  %2937 = vmatprep.mubr.f32.mxu0 0.0
  %2938 = vmatmul.mubr.f32.gmra.mrb[0].mxu0 %v2502
  %v2939 = vpop.f32.mrb[0].mxu0
  %v2940 = vadd.f32 0.0, %v2939
  %v2941 = vpop.f32.mrb[0].mxu0
  %2942 = vmatprep.mubr.f32.mxu0 0.0
  %2943 = vmatmul.mubr.f32.gmra.mrb[0].mxu0 %v2505
  %v2944 = vpop.f32.mrb[0].mxu0
  %v2945 = vadd.f32 0.0, %v2944
  %v2946 = vpop.f32.mrb[0].mxu0
  %2947 = vmatprep.mubr.f32.mxu0 0.0
  %2948 = vmatmul.mubr.f32.gmra.mrb[0].mxu0 %v2508
  %v2949 = vpop.f32.mrb[0].mxu0
  %v2950 = vadd.f32 0.0, %v2949
  %v2951 = vpop.f32.mrb[0].mxu0
  %2952 = vmatprep.mubr.f32.mxu0 0.0
  %2953 = vmatmul.mubr.f32.gmra.mrb[0].mxu0 %v2511
  %v2954 = vpop.f32.mrb[0].mxu0
  %v2955 = vadd.f32 0.0, %v2954
  %v2956 = vpop.f32.mrb[0].mxu0
  %2957 = vmatprep.mubr.f32.mxu0 0.0
  %2958 = vmatmul.mubr.f32.gmra.mrb[0].mxu0 %v2514
  %v2959 = vpop.f32.mrb[0].mxu0
  %v2960 = vadd.f32 0.0, %v2959
  %v2961 = vpop.f32.mrb[0].mxu0
  %2962 = vmatprep.mubr.f32.mxu0 0.0
  %2963 = vmatmul.mubr.f32.gmra.mrb[0].mxu0 %v2517
  %v2964 = vpop.f32.mrb[0].mxu0
  %v2965 = vadd.f32 0.0, %v2964
  %v2966 = vpop.f32.mrb[0].mxu0
  %2967 = vmatprep.mubr.f32.mxu0 0.0
  %2968 = vmatmul.mubr.f32.gmra.mrb[0].mxu0 %v2520
  %v2969 = vpop.f32.mrb[0].mxu0
  %v2970 = vadd.f32 0.0, %v2969
  %v2971 = vpop.f32.mrb[0].mxu0
  %2972 = vmatprep.mubr.f32.mxu0 0.0
  %2973 = vmatmul.mubr.f32.gmra.mrb[0].mxu0 %v2523
  %v2974 = vpop.f32.mrb[0].mxu0
  %v2975 = vadd.f32 0.0, %v2974
  %v2976 = vpop.f32.mrb[0].mxu0
  %2977 = vmatprep.mubr.f32.mxu0 0.0
  %2978 = vmatmul.mubr.f32.gmra.mrb[0].mxu0 %v2526
  %v2979 = vpop.f32.mrb[0].mxu0
  %v2980 = vadd.f32 0.0, %v2979
  %v2981 = vpop.f32.mrb[0].mxu0
  %2982 = vmatprep.mubr.f32.mxu0 0.0
  %2983 = vmatmul.mubr.f32.gmra.mrb[0].mxu0 %v2529
  %v2984 = vpop.f32.mrb[0].mxu0
  %v2985 = vadd.f32 0.0, %v2984
  %v2986 = vpop.f32.mrb[0].mxu0
  %2987 = vmatprep.mubr.f32.mxu0 0.0
  %2988 = vmatmul.mubr.f32.gmra.mrb[0].mxu0 %v2532
  %v2989 = vpop.f32.mrb[0].mxu0
  %v2990 = vadd.f32 0.0, %v2989
  %v2991 = vpop.f32.mrb[0].mxu0
  %2992 = vmatprep.mubr.f32.mxu0 0.0
  %2993 = vmatmul.mubr.f32.gmra.mrb[0].mxu0 %v2535
  %v2994 = vpop.f32.mrb[0].mxu0
  %v2995 = vadd.f32 0.0, %v2994
  %v2996 = vpop.f32.mrb[0].mxu0
  %2997 = vmatprep.mubr.f32.mxu0 0.0
  %2998 = vmatmul.mubr.f32.gmra.mrb[0].mxu0 %v2538
  %v2999 = vpop.f32.mrb[0].mxu0
  %v3000 = vadd.f32 0.0, %v2999
  %v3001 = vpop.f32.mrb[0].mxu0
  %3002 = vmatprep.mubr.f32.mxu0 0.0
  %3003 = vmatmul.mubr.f32.gmra.mrb[0].mxu0 %v2541
  %v3004 = vpop.f32.mrb[0].mxu0
  %v3005 = vadd.f32 0.0, %v3004
  %v3006 = vpop.f32.mrb[0].mxu0
  %3007 = vmatprep.mubr.f32.mxu0 0.0
  %3008 = vmatmul.mubr.f32.gmra.mrb[0].mxu0 %v2544
  %v3009 = vpop.f32.mrb[0].mxu0
  %v3010 = vadd.f32 0.0, %v3009
  %v3011 = vpop.f32.mrb[0].mxu0
  %3012 = vmatprep.mubr.f32.mxu0 0.0
  %3013 = vmatmul.mubr.f32.gmra.mrb[0].mxu0 %v2547
  %v3014 = vpop.f32.mrb[0].mxu0
  %v3015 = vadd.f32 0.0, %v3014
  %v3016 = vpop.f32.mrb[0].mxu0
  %3017 = vmatprep.mubr.f32.mxu0 0.0
  %3018 = vmatmul.mubr.f32.gmra.mrb[0].mxu0 %v2550
  %v3019 = vpop.f32.mrb[0].mxu0
  %v3020 = vadd.f32 0.0, %v3019
  %v3021 = vpop.f32.mrb[0].mxu0
  %3022 = vmatprep.mubr.f32.mxu0 0.0
  %3023 = vmatmul.mubr.f32.gmra.mrb[0].mxu0 %v2553
  %v3024 = vpop.f32.mrb[0].mxu0
  %v3025 = vadd.f32 0.0, %v3024
  %v3026 = vpop.f32.mrb[0].mxu0
  %3027 = vmatprep.mubr.f32.mxu0 0.0
  %3028 = vmatmul.mubr.f32.gmra.mrb[0].mxu0 %v2556
  %v3029 = vpop.f32.mrb[0].mxu0
  %v3030 = vadd.f32 0.0, %v3029
  %v3031 = vpop.f32.mrb[0].mxu0
  %3032 = vmatprep.mubr.f32.mxu0 0.0
  %3033 = vmatmul.mubr.f32.gmra.mrb[0].mxu0 %v2559
  %v3034 = vpop.f32.mrb[0].mxu0
  %v3035 = vadd.f32 0.0, %v3034
  %v3036 = vpop.f32.mrb[0].mxu0
  %3037 = vmatprep.mubr.f32.mxu0 0.0
  %3038 = vmatmul.mubr.f32.gmra.mrb[0].mxu0 %v2562
  %v3039 = vpop.f32.mrb[0].mxu0
  %v3040 = vadd.f32 0.0, %v3039
  %v3041 = vpop.f32.mrb[0].mxu0
  %3042 = vmatprep.mubr.f32.mxu0 0.0
  %3043 = vmatmul.mubr.f32.gmra.mrb[0].mxu0 %v2565
  %v3044 = vpop.f32.mrb[0].mxu0
  %v3045 = vadd.f32 0.0, %v3044
  %v3046 = vpop.f32.mrb[0].mxu0
  %3047 = vmatprep.mubr.f32.mxu0 0.0
  %3048 = vmatmul.mubr.f32.gmra.mrb[0].mxu0 %v2568
  %v3049 = vpop.f32.mrb[0].mxu0
  %v3050 = vadd.f32 0.0, %v3049
  %v3051 = vpop.f32.mrb[0].mxu0
  %3052 = vmatprep.mubr.f32.mxu0 0.0
  %3053 = vmatmul.mubr.f32.gmra.mrb[0].mxu0 %v2571
  %v3054 = vpop.f32.mrb[0].mxu0
  %v3055 = vadd.f32 0.0, %v3054
  %v3056 = vpop.f32.mrb[0].mxu0
  %3057 = vmatprep.mubr.f32.mxu0 0.0
  %3058 = vmatmul.mubr.f32.gmra.mrb[0].mxu0 %v2574
  %v3059 = vpop.f32.mrb[0].mxu0
  %v3060 = vadd.f32 0.0, %v3059
  %v3061 = vpop.f32.mrb[0].mxu0
  %3062 = vmatprep.mubr.f32.mxu0 0.0
  %3063 = vmatmul.mubr.f32.gmra.mrb[0].mxu0 %v2577
  %v3064 = vpop.f32.mrb[0].mxu0
  %v3065 = vadd.f32 0.0, %v3064
  %v3066 = vpop.f32.mrb[0].mxu0
  %3067 = vmatprep.mubr.f32.mxu0 0.0
  %3068 = vmatmul.mubr.f32.gmra.mrb[0].mxu0 %v2580
  %v3069 = vpop.f32.mrb[0].mxu0
  %v3070 = vadd.f32 0.0, %v3069
  %v3071 = vpop.f32.mrb[0].mxu0
  %3072 = vmatprep.mubr.f32.mxu0 0.0
  %3073 = vmatmul.mubr.f32.gmra.mrb[0].mxu0 %v2583
  %v3074 = vpop.f32.mrb[0].mxu0
  %v3075 = vadd.f32 0.0, %v3074
  %v3076 = vpop.f32.mrb[0].mxu0
  %3077 = vmatprep.mubr.f32.mxu0 0.0
  %3078 = vmatmul.mubr.f32.gmra.mrb[0].mxu0 %v2586
  %v3079 = vpop.f32.mrb[0].mxu0
  %v3080 = vadd.f32 0.0, %v3079
  %v3081 = vpop.f32.mrb[0].mxu0
  %3082 = vmatprep.mubr.f32.mxu0 0.0
  %3083 = vmatmul.mubr.f32.gmra.mrb[0].mxu0 %v2589
  %v3084 = vpop.f32.mrb[0].mxu0
  %v3085 = vadd.f32 0.0, %v3084
  %v3086 = vpop.f32.mrb[0].mxu0
  %3087 = vdwg.mxu0
  %v3088 = vmul.f32 %v265, %v2662
  %v3089 = vmul.f32 %v270, %v2667
  %v3090 = vmul.f32 %v275, %v2672
  %v3091 = vmul.f32 %v280, %v2677
  %v3092 = vmul.f32 %v285, %v2682
  %v3093 = vmul.f32 %v290, %v2687
  %v3094 = vmul.f32 %v295, %v2692
  %v3095 = vmul.f32 %v300, %v2697
  %v3096 = vmul.f32 %v305, %v2702
  %v3097 = vmul.f32 %v310, %v2707
  %v3098 = vmul.f32 %v315, %v2712
  %v3099 = vmul.f32 %v320, %v2717
  %v3100 = vmul.f32 %v325, %v2722
  %v3101 = vmul.f32 %v330, %v2727
  %v3102 = vmul.f32 %v335, %v2732
  %v3103 = vmul.f32 %v340, %v2737
  %v3104 = vmul.f32 %v345, %v2742
  %v3105 = vmul.f32 %v350, %v2747
  %v3106 = vmul.f32 %v355, %v2752
  %v3107 = vmul.f32 %v360, %v2757
  %v3108 = vmul.f32 %v365, %v2762
  %v3109 = vmul.f32 %v370, %v2767
  %v3110 = vmul.f32 %v375, %v2772
  %v3111 = vmul.f32 %v380, %v2777
  %v3112 = vmul.f32 %v385, %v2782
  %v3113 = vmul.f32 %v390, %v2787
  %v3114 = vmul.f32 %v395, %v2792
  %v3115 = vmul.f32 %v400, %v2797
  %v3116 = vmul.f32 %v405, %v2802
  %v3117 = vmul.f32 %v410, %v2807
  %v3118 = vmul.f32 %v415, %v2812
  %v3119 = vmul.f32 %v420, %v2817
  %v3120 = vmul.f32 %v425, %v2822
  %v3121 = vmul.f32 %v430, %v2827
  %v3122 = vmul.f32 %v435, %v2832
  %v3123 = vmul.f32 %v440, %v2837
  %v3124 = vadd.f32 %v3088, %v2910
  %v3125 = vadd.f32 %v3089, %v2915
  %v3126 = vadd.f32 %v3090, %v2920
  %v3127 = vadd.f32 %v3091, %v2925
  %v3128 = vadd.f32 %v3092, %v2930
  %v3129 = vadd.f32 %v3093, %v2935
  %v3130 = vadd.f32 %v3094, %v2940
  %v3131 = vadd.f32 %v3095, %v2945
  %v3132 = vadd.f32 %v3096, %v2950
  %v3133 = vadd.f32 %v3097, %v2955
  %v3134 = vadd.f32 %v3098, %v2960
  %v3135 = vadd.f32 %v3099, %v2965
  %v3136 = vadd.f32 %v3100, %v2970
  %v3137 = vadd.f32 %v3101, %v2975
  %v3138 = vadd.f32 %v3102, %v2980
  %v3139 = vadd.f32 %v3103, %v2985
  %v3140 = vadd.f32 %v3104, %v2990
  %v3141 = vadd.f32 %v3105, %v2995
  %v3142 = vadd.f32 %v3106, %v3000
  %v3143 = vadd.f32 %v3107, %v3005
  %v3144 = vadd.f32 %v3108, %v3010
  %v3145 = vadd.f32 %v3109, %v3015
  %v3146 = vadd.f32 %v3110, %v3020
  %v3147 = vadd.f32 %v3111, %v3025
  %v3148 = vadd.f32 %v3112, %v3030
  %v3149 = vadd.f32 %v3113, %v3035
  %v3150 = vadd.f32 %v3114, %v3040
  %v3151 = vadd.f32 %v3115, %v3045
  %v3152 = vadd.f32 %v3116, %v3050
  %v3153 = vadd.f32 %v3117, %v3055
  %v3154 = vadd.f32 %v3118, %v3060
  %v3155 = vadd.f32 %v3119, %v3065
  %v3156 = vadd.f32 %v3120, %v3070
  %v3157 = vadd.f32 %v3121, %v3075
  %v3158 = vadd.f32 %v3122, %v3080
  %v3159 = vadd.f32 %v3123, %v3085
  %v3160 = vmul.f32 %v654, %v2662
  %v3161 = vmul.f32 %v659, %v2667
  %v3162 = vmul.f32 %v664, %v2672
  %v3163 = vmul.f32 %v669, %v2677
  %v3164 = vmul.f32 %v674, %v2682
  %v3165 = vmul.f32 %v679, %v2687
  %v3166 = vmul.f32 %v684, %v2692
  %v3167 = vmul.f32 %v689, %v2697
  %v3168 = vmul.f32 %v694, %v2702
  %v3169 = vmul.f32 %v699, %v2707
  %v3170 = vmul.f32 %v704, %v2712
  %v3171 = vmul.f32 %v709, %v2717
  %v3172 = vmul.f32 %v714, %v2722
  %v3173 = vmul.f32 %v719, %v2727
  %v3174 = vmul.f32 %v724, %v2732
  %v3175 = vmul.f32 %v729, %v2737
  %v3176 = vmul.f32 %v734, %v2742
  %v3177 = vmul.f32 %v739, %v2747
  %v3178 = vmul.f32 %v744, %v2752
  %v3179 = vmul.f32 %v749, %v2757
  %v3180 = vmul.f32 %v754, %v2762
  %v3181 = vmul.f32 %v759, %v2767
  %v3182 = vmul.f32 %v764, %v2772
  %v3183 = vmul.f32 %v769, %v2777
  %v3184 = vmul.f32 %v774, %v2782
  %v3185 = vmul.f32 %v779, %v2787
  %v3186 = vmul.f32 %v784, %v2792
  %v3187 = vmul.f32 %v789, %v2797
  %v3188 = vmul.f32 %v794, %v2802
  %v3189 = vmul.f32 %v799, %v2807
  %v3190 = vmul.f32 %v804, %v2812
  %v3191 = vmul.f32 %v809, %v2817
  %v3192 = vmul.f32 %v814, %v2822
  %v3193 = vmul.f32 %v819, %v2827
  %v3194 = vmul.f32 %v824, %v2832
  %v3195 = vmul.f32 %v829, %v2837
  %v3196 = vadd.f32 %v3160, %v2910
  %v3197 = vadd.f32 %v3161, %v2915
  %v3198 = vadd.f32 %v3162, %v2920
  %v3199 = vadd.f32 %v3163, %v2925
  %v3200 = vadd.f32 %v3164, %v2930
  %v3201 = vadd.f32 %v3165, %v2935
  %v3202 = vadd.f32 %v3166, %v2940
  %v3203 = vadd.f32 %v3167, %v2945
  %v3204 = vadd.f32 %v3168, %v2950
  %v3205 = vadd.f32 %v3169, %v2955
  %v3206 = vadd.f32 %v3170, %v2960
  %v3207 = vadd.f32 %v3171, %v2965
  %v3208 = vadd.f32 %v3172, %v2970
  %v3209 = vadd.f32 %v3173, %v2975
  %v3210 = vadd.f32 %v3174, %v2980
  %v3211 = vadd.f32 %v3175, %v2985
  %v3212 = vadd.f32 %v3176, %v2990
  %v3213 = vadd.f32 %v3177, %v2995
  %v3214 = vadd.f32 %v3178, %v3000
  %v3215 = vadd.f32 %v3179, %v3005
  %v3216 = vadd.f32 %v3180, %v3010
  %v3217 = vadd.f32 %v3181, %v3015
  %v3218 = vadd.f32 %v3182, %v3020
  %v3219 = vadd.f32 %v3183, %v3025
  %v3220 = vadd.f32 %v3184, %v3030
  %v3221 = vadd.f32 %v3185, %v3035
  %v3222 = vadd.f32 %v3186, %v3040
  %v3223 = vadd.f32 %v3187, %v3045
  %v3224 = vadd.f32 %v3188, %v3050
  %v3225 = vadd.f32 %v3189, %v3055
  %v3226 = vadd.f32 %v3190, %v3060
  %v3227 = vadd.f32 %v3191, %v3065
  %v3228 = vadd.f32 %v3192, %v3070
  %v3229 = vadd.f32 %v3193, %v3075
  %v3230 = vadd.f32 %v3194, %v3080
  %v3231 = vadd.f32 %v3195, %v3085
  %v3232 = vmax.f32 %v3124, %v3196
  %v3233 = vmax.f32 %v3125, %v3197
  %v3234 = vmax.f32 %v3126, %v3198
  %v3235 = vmax.f32 %v3127, %v3199
  %v3236 = vmax.f32 %v3128, %v3200
  %v3237 = vmax.f32 %v3129, %v3201
  %v3238 = vmax.f32 %v3130, %v3202
  %v3239 = vmax.f32 %v3131, %v3203
  %v3240 = vmax.f32 %v3132, %v3204
  %v3241 = vmax.f32 %v3133, %v3205
  %v3242 = vmax.f32 %v3134, %v3206
  %v3243 = vmax.f32 %v3135, %v3207
  %v3244 = vmax.f32 %v3136, %v3208
  %v3245 = vmax.f32 %v3137, %v3209
  %v3246 = vmax.f32 %v3138, %v3210
  %v3247 = vmax.f32 %v3139, %v3211
  %v3248 = vmax.f32 %v3140, %v3212
  %v3249 = vmax.f32 %v3141, %v3213
  %v3250 = vmax.f32 %v3142, %v3214
  %v3251 = vmax.f32 %v3143, %v3215
  %v3252 = vmax.f32 %v3144, %v3216
  %v3253 = vmax.f32 %v3145, %v3217
  %v3254 = vmax.f32 %v3146, %v3218
  %v3255 = vmax.f32 %v3147, %v3219
  %v3256 = vmax.f32 %v3148, %v3220
  %v3257 = vmax.f32 %v3149, %v3221
  %v3258 = vmax.f32 %v3150, %v3222
  %v3259 = vmax.f32 %v3151, %v3223
  %v3260 = vmax.f32 %v3152, %v3224
  %v3261 = vmax.f32 %v3153, %v3225
  %v3262 = vmax.f32 %v3154, %v3226
  %v3263 = vmax.f32 %v3155, %v3227
  %v3264 = vmax.f32 %v3156, %v3228
  %v3265 = vmax.f32 %v3157, %v3229
  %v3266 = vmax.f32 %v3158, %v3230
  %v3267 = vmax.f32 %v3159, %v3231
  %v3268 = vmul.f32 %v1043, %v2662
  %v3269 = vmul.f32 %v1048, %v2667
  %v3270 = vmul.f32 %v1053, %v2672
  %v3271 = vmul.f32 %v1058, %v2677
  %v3272 = vmul.f32 %v1063, %v2682
  %v3273 = vmul.f32 %v1068, %v2687
  %v3274 = vmul.f32 %v1073, %v2692
  %v3275 = vmul.f32 %v1078, %v2697
  %v3276 = vmul.f32 %v1083, %v2702
  %v3277 = vmul.f32 %v1088, %v2707
  %v3278 = vmul.f32 %v1093, %v2712
  %v3279 = vmul.f32 %v1098, %v2717
  %v3280 = vmul.f32 %v1103, %v2722
  %v3281 = vmul.f32 %v1108, %v2727
  %v3282 = vmul.f32 %v1113, %v2732
  %v3283 = vmul.f32 %v1118, %v2737
  %v3284 = vmul.f32 %v1123, %v2742
  %v3285 = vmul.f32 %v1128, %v2747
  %v3286 = vmul.f32 %v1133, %v2752
  %v3287 = vmul.f32 %v1138, %v2757
  %v3288 = vmul.f32 %v1143, %v2762
  %v3289 = vmul.f32 %v1148, %v2767
  %v3290 = vmul.f32 %v1153, %v2772
  %v3291 = vmul.f32 %v1158, %v2777
  %v3292 = vmul.f32 %v1163, %v2782
  %v3293 = vmul.f32 %v1168, %v2787
  %v3294 = vmul.f32 %v1173, %v2792
  %v3295 = vmul.f32 %v1178, %v2797
  %v3296 = vmul.f32 %v1183, %v2802
  %v3297 = vmul.f32 %v1188, %v2807
  %v3298 = vmul.f32 %v1193, %v2812
  %v3299 = vmul.f32 %v1198, %v2817
  %v3300 = vmul.f32 %v1203, %v2822
  %v3301 = vmul.f32 %v1208, %v2827
  %v3302 = vmul.f32 %v1213, %v2832
  %v3303 = vmul.f32 %v1218, %v2837
  %v3304 = vadd.f32 %v3268, %v2910
  %v3305 = vadd.f32 %v3269, %v2915
  %v3306 = vadd.f32 %v3270, %v2920
  %v3307 = vadd.f32 %v3271, %v2925
  %v3308 = vadd.f32 %v3272, %v2930
  %v3309 = vadd.f32 %v3273, %v2935
  %v3310 = vadd.f32 %v3274, %v2940
  %v3311 = vadd.f32 %v3275, %v2945
  %v3312 = vadd.f32 %v3276, %v2950
  %v3313 = vadd.f32 %v3277, %v2955
  %v3314 = vadd.f32 %v3278, %v2960
  %v3315 = vadd.f32 %v3279, %v2965
  %v3316 = vadd.f32 %v3280, %v2970
  %v3317 = vadd.f32 %v3281, %v2975
  %v3318 = vadd.f32 %v3282, %v2980
  %v3319 = vadd.f32 %v3283, %v2985
  %v3320 = vadd.f32 %v3284, %v2990
  %v3321 = vadd.f32 %v3285, %v2995
  %v3322 = vadd.f32 %v3286, %v3000
  %v3323 = vadd.f32 %v3287, %v3005
  %v3324 = vadd.f32 %v3288, %v3010
  %v3325 = vadd.f32 %v3289, %v3015
  %v3326 = vadd.f32 %v3290, %v3020
  %v3327 = vadd.f32 %v3291, %v3025
  %v3328 = vadd.f32 %v3292, %v3030
  %v3329 = vadd.f32 %v3293, %v3035
  %v3330 = vadd.f32 %v3294, %v3040
  %v3331 = vadd.f32 %v3295, %v3045
  %v3332 = vadd.f32 %v3296, %v3050
  %v3333 = vadd.f32 %v3297, %v3055
  %v3334 = vadd.f32 %v3298, %v3060
  %v3335 = vadd.f32 %v3299, %v3065
  %v3336 = vadd.f32 %v3300, %v3070
  %v3337 = vadd.f32 %v3301, %v3075
  %v3338 = vadd.f32 %v3302, %v3080
  %v3339 = vadd.f32 %v3303, %v3085
  %v3340 = vmul.f32 %v1432, %v2662
  %v3341 = vmul.f32 %v1437, %v2667
  %v3342 = vmul.f32 %v1442, %v2672
  %v3343 = vmul.f32 %v1447, %v2677
  %v3344 = vmul.f32 %v1452, %v2682
  %v3345 = vmul.f32 %v1457, %v2687
  %v3346 = vmul.f32 %v1462, %v2692
  %v3347 = vmul.f32 %v1467, %v2697
  %v3348 = vmul.f32 %v1472, %v2702
  %v3349 = vmul.f32 %v1477, %v2707
  %v3350 = vmul.f32 %v1482, %v2712
  %v3351 = vmul.f32 %v1487, %v2717
  %v3352 = vmul.f32 %v1492, %v2722
  %v3353 = vmul.f32 %v1497, %v2727
  %v3354 = vmul.f32 %v1502, %v2732
  %v3355 = vmul.f32 %v1507, %v2737
  %v3356 = vmul.f32 %v1512, %v2742
  %v3357 = vmul.f32 %v1517, %v2747
  %v3358 = vmul.f32 %v1522, %v2752
  %v3359 = vmul.f32 %v1527, %v2757
  %v3360 = vmul.f32 %v1532, %v2762
  %v3361 = vmul.f32 %v1537, %v2767
  %v3362 = vmul.f32 %v1542, %v2772
  %v3363 = vmul.f32 %v1547, %v2777
  %v3364 = vmul.f32 %v1552, %v2782
  %v3365 = vmul.f32 %v1557, %v2787
  %v3366 = vmul.f32 %v1562, %v2792
  %v3367 = vmul.f32 %v1567, %v2797
  %v3368 = vmul.f32 %v1572, %v2802
  %v3369 = vmul.f32 %v1577, %v2807
  %v3370 = vmul.f32 %v1582, %v2812
  %v3371 = vmul.f32 %v1587, %v2817
  %v3372 = vmul.f32 %v1592, %v2822
  %v3373 = vmul.f32 %v1597, %v2827
  %v3374 = vmul.f32 %v1602, %v2832
  %v3375 = vmul.f32 %v1607, %v2837
  %v3376 = vadd.f32 %v3340, %v2910
  %v3377 = vadd.f32 %v3341, %v2915
  %v3378 = vadd.f32 %v3342, %v2920
  %v3379 = vadd.f32 %v3343, %v2925
  %v3380 = vadd.f32 %v3344, %v2930
  %v3381 = vadd.f32 %v3345, %v2935
  %v3382 = vadd.f32 %v3346, %v2940
  %v3383 = vadd.f32 %v3347, %v2945
  %v3384 = vadd.f32 %v3348, %v2950
  %v3385 = vadd.f32 %v3349, %v2955
  %v3386 = vadd.f32 %v3350, %v2960
  %v3387 = vadd.f32 %v3351, %v2965
  %v3388 = vadd.f32 %v3352, %v2970
  %v3389 = vadd.f32 %v3353, %v2975
  %v3390 = vadd.f32 %v3354, %v2980
  %v3391 = vadd.f32 %v3355, %v2985
  %v3392 = vadd.f32 %v3356, %v2990
  %v3393 = vadd.f32 %v3357, %v2995
  %v3394 = vadd.f32 %v3358, %v3000
  %v3395 = vadd.f32 %v3359, %v3005
  %v3396 = vadd.f32 %v3360, %v3010
  %v3397 = vadd.f32 %v3361, %v3015
  %v3398 = vadd.f32 %v3362, %v3020
  %v3399 = vadd.f32 %v3363, %v3025
  %v3400 = vadd.f32 %v3364, %v3030
  %v3401 = vadd.f32 %v3365, %v3035
  %v3402 = vadd.f32 %v3366, %v3040
  %v3403 = vadd.f32 %v3367, %v3045
  %v3404 = vadd.f32 %v3368, %v3050
  %v3405 = vadd.f32 %v3369, %v3055
  %v3406 = vadd.f32 %v3370, %v3060
  %v3407 = vadd.f32 %v3371, %v3065
  %v3408 = vadd.f32 %v3372, %v3070
  %v3409 = vadd.f32 %v3373, %v3075
  %v3410 = vadd.f32 %v3374, %v3080
  %v3411 = vadd.f32 %v3375, %v3085
  %v3412 = vmax.f32 %v3304, %v3376
  %v3413 = vmax.f32 %v3305, %v3377
  %v3414 = vmax.f32 %v3306, %v3378
  %v3415 = vmax.f32 %v3307, %v3379
  %v3416 = vmax.f32 %v3308, %v3380
  %v3417 = vmax.f32 %v3309, %v3381
  %v3418 = vmax.f32 %v3310, %v3382
  %v3419 = vmax.f32 %v3311, %v3383
  %v3420 = vmax.f32 %v3312, %v3384
  %v3421 = vmax.f32 %v3313, %v3385
  %v3422 = vmax.f32 %v3314, %v3386
  %v3423 = vmax.f32 %v3315, %v3387
  %v3424 = vmax.f32 %v3316, %v3388
  %v3425 = vmax.f32 %v3317, %v3389
  %v3426 = vmax.f32 %v3318, %v3390
  %v3427 = vmax.f32 %v3319, %v3391
  %v3428 = vmax.f32 %v3320, %v3392
  %v3429 = vmax.f32 %v3321, %v3393
  %v3430 = vmax.f32 %v3322, %v3394
  %v3431 = vmax.f32 %v3323, %v3395
  %v3432 = vmax.f32 %v3324, %v3396
  %v3433 = vmax.f32 %v3325, %v3397
  %v3434 = vmax.f32 %v3326, %v3398
  %v3435 = vmax.f32 %v3327, %v3399
  %v3436 = vmax.f32 %v3328, %v3400
  %v3437 = vmax.f32 %v3329, %v3401
  %v3438 = vmax.f32 %v3330, %v3402
  %v3439 = vmax.f32 %v3331, %v3403
  %v3440 = vmax.f32 %v3332, %v3404
  %v3441 = vmax.f32 %v3333, %v3405
  %v3442 = vmax.f32 %v3334, %v3406
  %v3443 = vmax.f32 %v3335, %v3407
  %v3444 = vmax.f32 %v3336, %v3408
  %v3445 = vmax.f32 %v3337, %v3409
  %v3446 = vmax.f32 %v3338, %v3410
  %v3447 = vmax.f32 %v3339, %v3411
  %v3448 = vmax.f32 %v3232, %v3412
  %v3449 = vmax.f32 %v3233, %v3413
  %v3450 = vmax.f32 %v3234, %v3414
  %v3451 = vmax.f32 %v3235, %v3415
  %v3452 = vmax.f32 %v3236, %v3416
  %v3453 = vmax.f32 %v3237, %v3417
  %v3454 = vmax.f32 %v3238, %v3418
  %v3455 = vmax.f32 %v3239, %v3419
  %v3456 = vmax.f32 %v3240, %v3420
  %v3457 = vmax.f32 %v3241, %v3421
  %v3458 = vmax.f32 %v3242, %v3422
  %v3459 = vmax.f32 %v3243, %v3423
  %v3460 = vmax.f32 %v3244, %v3424
  %v3461 = vmax.f32 %v3245, %v3425
  %v3462 = vmax.f32 %v3246, %v3426
  %v3463 = vmax.f32 %v3247, %v3427
  %v3464 = vmax.f32 %v3248, %v3428
  %v3465 = vmax.f32 %v3249, %v3429
  %v3466 = vmax.f32 %v3250, %v3430
  %v3467 = vmax.f32 %v3251, %v3431
  %v3468 = vmax.f32 %v3252, %v3432
  %v3469 = vmax.f32 %v3253, %v3433
  %v3470 = vmax.f32 %v3254, %v3434
  %v3471 = vmax.f32 %v3255, %v3435
  %v3472 = vmax.f32 %v3256, %v3436
  %v3473 = vmax.f32 %v3257, %v3437
  %v3474 = vmax.f32 %v3258, %v3438
  %v3475 = vmax.f32 %v3259, %v3439
  %v3476 = vmax.f32 %v3260, %v3440
  %v3477 = vmax.f32 %v3261, %v3441
  %v3478 = vmax.f32 %v3262, %v3442
  %v3479 = vmax.f32 %v3263, %v3443
  %v3480 = vmax.f32 %v3264, %v3444
  %v3481 = vmax.f32 %v3265, %v3445
  %v3482 = vmax.f32 %v3266, %v3446
  %v3483 = vmax.f32 %v3267, %v3447
  %v3484 = vmax.f32 %v3448, 0.0
  %v3485 = vmax.f32 %v3449, 0.0
  %v3486 = vmax.f32 %v3450, 0.0
  %v3487 = vmax.f32 %v3451, 0.0
  %v3488 = vmax.f32 %v3452, 0.0
  %v3489 = vmax.f32 %v3453, 0.0
  %v3490 = vmax.f32 %v3454, 0.0
  %v3491 = vmax.f32 %v3455, 0.0
  %v3492 = vmax.f32 %v3456, 0.0
  %v3493 = vmax.f32 %v3457, 0.0
  %v3494 = vmax.f32 %v3458, 0.0
  %v3495 = vmax.f32 %v3459, 0.0
  %v3496 = vmax.f32 %v3460, 0.0
  %v3497 = vmax.f32 %v3461, 0.0
  %v3498 = vmax.f32 %v3462, 0.0
  %v3499 = vmax.f32 %v3463, 0.0
  %v3500 = vmax.f32 %v3464, 0.0
  %v3501 = vmax.f32 %v3465, 0.0
  %v3502 = vmax.f32 %v3466, 0.0
  %v3503 = vmax.f32 %v3467, 0.0
  %v3504 = vmax.f32 %v3468, 0.0
  %v3505 = vmax.f32 %v3469, 0.0
  %v3506 = vmax.f32 %v3470, 0.0
  %v3507 = vmax.f32 %v3471, 0.0
  %v3508 = vmax.f32 %v3472, 0.0
  %v3509 = vmax.f32 %v3473, 0.0
  %v3510 = vmax.f32 %v3474, 0.0
  %v3511 = vmax.f32 %v3475, 0.0
  %v3512 = vmax.f32 %v3476, 0.0
  %v3513 = vmax.f32 %v3477, 0.0
  %v3514 = vmax.f32 %v3478, 0.0
  %v3515 = vmax.f32 %v3479, 0.0
  %v3516 = vmax.f32 %v3480, 0.0
  %v3517 = vmax.f32 %v3481, 0.0
  %v3518 = vmax.f32 %v3482, 0.0
  %v3519 = vmax.f32 %v3483, 0.0
  %3520 = vst.msk [vmem:[%s11] sm:$0xff] %vm1738, %v3484
  %3521 = vst.msk [vmem:[%s11 + $0x8] sm:$0xff] %vm1738, %v3485
  %3522 = vst.msk [vmem:[%s11 + $0x10] sm:$0xff] %vm1738, %v3486
  %3523 = vst.msk [vmem:[%s11 + $0x18] sm:$0xff] %vm1738, %v3487
  %3524 = vst.msk [vmem:[%s11 + $0x20] sm:$0xff] %vm1738, %v3488
  %3525 = vst.msk [vmem:[%s11 + $0x28] sm:$0xff] %vm1738, %v3489
  %3526 = vst.msk [vmem:[%s11 + $0x30] sm:$0xff] %vm1738, %v3490
  %3527 = vst.msk [vmem:[%s11 + $0x38] sm:$0xff] %vm1738, %v3491
  %3528 = vst.msk [vmem:[%s11 + $0x40] sm:$0xff] %vm1738, %v3492
  %3529 = vst.msk [vmem:[%s11 + $0x48] sm:$0xff] %vm1738, %v3493
  %3530 = vst.msk [vmem:[%s11 + $0x50] sm:$0xff] %vm1738, %v3494
  %3531 = vst.msk [vmem:[%s11 + $0x58] sm:$0xff] %vm1738, %v3495
  %3532 = vst.msk [vmem:[%s11 + $0x60] sm:$0xff] %vm1738, %v3496
  %3533 = vst.msk [vmem:[%s11 + $0x68] sm:$0xff] %vm1738, %v3497
  %3534 = vst.msk [vmem:[%s11 + $0x70] sm:$0xff] %vm1738, %v3498
  %3535 = vst.msk [vmem:[%s11 + $0x78] sm:$0xff] %vm1738, %v3499
  %3536 = vst.msk [vmem:[%s11 + $0x80] sm:$0xff] %vm1738, %v3500
  %3537 = vst.msk [vmem:[%s11 + $0x88] sm:$0xff] %vm1738, %v3501
  %3538 = vst.msk [vmem:[%s11 + $0x90] sm:$0xff] %vm1738, %v3502
  %3539 = vst.msk [vmem:[%s11 + $0x98] sm:$0xff] %vm1738, %v3503
  %3540 = vst.msk [vmem:[%s11 + $0xa0] sm:$0xff] %vm1738, %v3504
  %3541 = vst.msk [vmem:[%s11 + $0xa8] sm:$0xff] %vm1738, %v3505
  %3542 = vst.msk [vmem:[%s11 + $0xb0] sm:$0xff] %vm1738, %v3506
  %3543 = vst.msk [vmem:[%s11 + $0xb8] sm:$0xff] %vm1738, %v3507
  %3544 = vst.msk [vmem:[%s11 + $0xc0] sm:$0xff] %vm1738, %v3508
  %3545 = vst.msk [vmem:[%s11 + $0xc8] sm:$0xff] %vm1738, %v3509
  %3546 = vst.msk [vmem:[%s11 + $0xd0] sm:$0xff] %vm1738, %v3510
  %3547 = vst.msk [vmem:[%s11 + $0xd8] sm:$0xff] %vm1738, %v3511
  %3548 = vst.msk [vmem:[%s11 + $0xe0] sm:$0xff] %vm1738, %v3512
  %3549 = vst.msk [vmem:[%s11 + $0xe8] sm:$0xff] %vm1738, %v3513
  %3550 = vst.msk [vmem:[%s11 + $0xf0] sm:$0xff] %vm1738, %v3514
  %3551 = vst.msk [vmem:[%s11 + $0xf8] sm:$0xff] %vm1738, %v3515
  %3552 = vst.msk [vmem:[%s11 + $0x100] sm:$0xff] %vm1738, %v3516
  %3553 = vst.msk [vmem:[%s11 + $0x108] sm:$0xff] %vm1738, %v3517
  %3554 = vst.msk [vmem:[%s11 + $0x110] sm:$0xff] %vm1738, %v3518
  %3555 = vst.msk [vmem:[%s11 + $0x118] sm:$0xff] %vm1738, %v3519
  // Predicated region
  $region46: #{fedavg_cnn_forward.3} parent=0 // pred_check
    _
  $region47: #{fedavg_cnn_forward.3} parent=0 // pred_check_branch
    %3557 = sbr.rel (0) target = $region49
  $region48: #{fedavg_cnn_forward.3} parent=0 // pred_region
    _
  $region49: #{fedavg_cnn_forward.3} parent=0 // pred_fallthru
    _
  // Predicated region
  $region50: #{fedavg_cnn_forward.3} parent=0 // pred_check
    _
  $region51: #{fedavg_cnn_forward.3} parent=0 // pred_check_branch
    %3559 = sbr.rel (0) target = $region53
  $region52: #{fedavg_cnn_forward.3} parent=0 // pred_region
    _
  $region53: #{fedavg_cnn_forward.3} parent=0 // pred_fallthru
    _

// kernel: eq.22
$region0: #{eq.22}
  %s0 = inlined_call_operand.vmem [shape: s32[2,16], index: 0, kind: input, shape index: {}]
  %s1 = inlined_call_operand.vmem [shape: s32[32], index: 1, kind: output, shape index: {}]
  $region1: #{eq.22} parent=0
    #allocation0 [shape = 'u8[4096]{0}', space=vmem, size = 0x1000, scoped, tag = 'scoped mem for output reshape']
    #allocation1 [shape = 'u8[4096]{0}', space=vmem, size = 0x1000, scoped, tag = 'scoped mem for input reshape']
    %s3 = sshllo.u32 0, 2
    %v4 = vld [vmem:[%s0] sm:%s3]
    %5 = vst [vmem:[#allocation1] sm:%s3] %v4
    %v6 = vld [vmem:[#allocation1] sm:$0x1]
    %vm7 = vcmask 130048
    %8 = vst.msk [vmem:[#allocation0] sm:$0x1] %vm7, %v6
    %s9 = scalar_lea.vmem [#allocation1], 1
    %v10 = vld [vmem:[%s9] sm:$0x1]
    %11 = vrot.lane.b32.xlu0 %v10, 16
    %v12 = vpop.permute.xlu0 %11
    %vm13 = vcmask 261248
    %14 = vst.msk [vmem:[#allocation0] sm:$0x1] %vm13, %v12
    %s16 = sshllo.u32 0, 1
    %v18 = vld [vmem:[#allocation0] sm:%s16]
    %s19 = sshllo.u32 0, 1
    %20 = vst [vmem:[%s1] sm:%s19] %v18

// kernel: fedavg_cnn_forward.4
$region0: #{fedavg_cnn_forward.4}
  #allocation0 [shape = 'u32[]', space=smem, size = 0x4, offset = 0x4, fixed_abs, tag = 'smem constant byte address 0x4 - core index']
  #allocation1 [shape = 'u32[144,128]{1,0:T(1,128)}', space=vmem, size = 0x12000, scoped, tag = 'internal scratch']
  %s0 = inlined_call_operand.vmem [shape: f32[32,800], index: 0, kind: input, shape index: {}]
  %s1 = inlined_call_operand.vmem [shape: f32[32,800], index: 1, kind: input, shape index: {}]
  %s2 = inlined_call_operand.vmem [shape: f32[32,800], index: 2, kind: input, shape index: {}]
  %s3 = inlined_call_operand.vmem [shape: f32[32,800], index: 3, kind: input, shape index: {}]
  %s4 = inlined_call_operand.vmem [shape: f32[800,64], index: 4, kind: input, shape index: {}]
  %s5 = inlined_call_operand.vmem [shape: f32[1,64], index: 5, kind: input, shape index: {}]
  %s6 = inlined_call_operand.vmem [shape: f32[1,64], index: 6, kind: input, shape index: {}]
  %s7 = inlined_call_operand.vmem [shape: f32[1,64], index: 7, kind: input, shape index: {}]
  %s8 = inlined_call_operand.vmem [shape: f32[64,64], index: 8, kind: input, shape index: {}]
  %s9 = inlined_call_operand.vmem [shape: f32[2,32], index: 9, kind: input, shape index: {}]
  %s10 = inlined_call_operand.vmem [shape: f32[32,2], index: 10, kind: input, shape index: {}]
  %s11 = inlined_call_operand.vmem [shape: f32[32,64], index: 11, kind: output, shape index: {}]
  %s12 = sld [smem:[#allocation0]]
  $region54: #{fedavg_cnn_forward.4} parent=0
    _
  %s14 = ssub.s32 1, %s12
  %s15 = scalar_select 0, %s14, %s12
  // Predicated region
  $region2: #{fedavg_cnn_forward.4} parent=0 // pred_check
    _
  $region3: #{fedavg_cnn_forward.4} parent=0 // pred_check_branch
    %17 = sbr.rel (0) target = $region5
  $region4: #{fedavg_cnn_forward.4} parent=0 // pred_region
    _
  $region5: #{fedavg_cnn_forward.4} parent=0 // pred_fallthru
    _
  // Predicated region
  $region6: #{fedavg_cnn_forward.4} parent=0 // pred_check
    _
  $region7: #{fedavg_cnn_forward.4} parent=0 // pred_check_branch
    %19 = sbr.rel (0) target = $region9
  $region8: #{fedavg_cnn_forward.4} parent=0 // pred_region
    _
  $region9: #{fedavg_cnn_forward.4} parent=0 // pred_fallthru
    _
  // Predicated region
  $region10: #{fedavg_cnn_forward.4} parent=0 // pred_check
    _
  $region11: #{fedavg_cnn_forward.4} parent=0 // pred_check_branch
    %21 = sbr.rel (0) target = $region13
  $region12: #{fedavg_cnn_forward.4} parent=0 // pred_region
    _
  $region13: #{fedavg_cnn_forward.4} parent=0 // pred_fallthru
    _
  // Predicated region
  $region14: #{fedavg_cnn_forward.4} parent=0 // pred_check
    _
  $region15: #{fedavg_cnn_forward.4} parent=0 // pred_check_branch
    %23 = sbr.rel (0) target = $region17
  $region16: #{fedavg_cnn_forward.4} parent=0 // pred_region
    _
  $region17: #{fedavg_cnn_forward.4} parent=0 // pred_fallthru
    _
  // Predicated region
  $region18: #{fedavg_cnn_forward.4} parent=0 // pred_check
    _
  $region19: #{fedavg_cnn_forward.4} parent=0 // pred_check_branch
    %25 = sbr.rel (0) target = $region21
  $region20: #{fedavg_cnn_forward.4} parent=0 // pred_region
    _
  $region21: #{fedavg_cnn_forward.4} parent=0 // pred_fallthru
    _
  // Predicated region
  $region22: #{fedavg_cnn_forward.4} parent=0 // pred_check
    _
  $region23: #{fedavg_cnn_forward.4} parent=0 // pred_check_branch
    %27 = sbr.rel (0) target = $region25
  $region24: #{fedavg_cnn_forward.4} parent=0 // pred_region
    _
  $region25: #{fedavg_cnn_forward.4} parent=0 // pred_fallthru
    _
  // Predicated region
  $region26: #{fedavg_cnn_forward.4} parent=0 // pred_check
    _
  $region27: #{fedavg_cnn_forward.4} parent=0 // pred_check_branch
    %29 = sbr.rel (0) target = $region29
  $region28: #{fedavg_cnn_forward.4} parent=0 // pred_region
    _
  $region29: #{fedavg_cnn_forward.4} parent=0 // pred_fallthru
    _
  // Predicated region
  $region30: #{fedavg_cnn_forward.4} parent=0 // pred_check
    _
  $region31: #{fedavg_cnn_forward.4} parent=0 // pred_check_branch
    %31 = sbr.rel (0) target = $region33
  $region32: #{fedavg_cnn_forward.4} parent=0 // pred_region
    _
  $region33: #{fedavg_cnn_forward.4} parent=0 // pred_fallthru
    _
  // Predicated region
  $region34: #{fedavg_cnn_forward.4} parent=0 // pred_check
    _
  $region35: #{fedavg_cnn_forward.4} parent=0 // pred_check_branch
    %33 = sbr.rel (0) target = $region37
  $region36: #{fedavg_cnn_forward.4} parent=0 // pred_region
    _
  $region37: #{fedavg_cnn_forward.4} parent=0 // pred_fallthru
    _
  // Predicated region
  $region38: #{fedavg_cnn_forward.4} parent=0 // pred_check
    _
  $region39: #{fedavg_cnn_forward.4} parent=0 // pred_check_branch
    %35 = sbr.rel (0) target = $region41
  $region40: #{fedavg_cnn_forward.4} parent=0 // pred_region
    _
  $region41: #{fedavg_cnn_forward.4} parent=0 // pred_fallthru
    _
  // Predicated region
  $region42: #{fedavg_cnn_forward.4} parent=0 // pred_check
    _
  $region43: #{fedavg_cnn_forward.4} parent=0 // pred_check_branch
    %37 = sbr.rel (0) target = $region45
  $region44: #{fedavg_cnn_forward.4} parent=0 // pred_region
    _
  $region45: #{fedavg_cnn_forward.4} parent=0 // pred_fallthru
    _
  %v38 = vld [vmem:[%s4] sm:$0xff]
  %v39 = vld [vmem:[%s4 + $0x8] sm:$0xff]
  %v40 = vld [vmem:[%s4 + $0x10] sm:$0xff]
  %v41 = vld [vmem:[%s4 + $0x18] sm:$0xff]
  %v42 = vld [vmem:[%s4 + $0x20] sm:$0xff]
  %v43 = vld [vmem:[%s4 + $0x28] sm:$0xff]
  %v44 = vld [vmem:[%s4 + $0x30] sm:$0xff]
  %v45 = vld [vmem:[%s4 + $0x38] sm:$0xff]
  %v46 = vld [vmem:[%s4 + $0x40] sm:$0xff]
  %v47 = vld [vmem:[%s4 + $0x48] sm:$0xff]
  %v48 = vld [vmem:[%s4 + $0x50] sm:$0xff]
  %v49 = vld [vmem:[%s4 + $0x58] sm:$0xff]
  %v50 = vld [vmem:[%s4 + $0x60] sm:$0xff]
  %v51 = vld [vmem:[%s4 + $0x68] sm:$0xff]
  %v52 = vld [vmem:[%s4 + $0x70] sm:$0xff]
  %v53 = vld [vmem:[%s4 + $0x78] sm:$0xff]
  %v54 = vld [vmem:[%s4 + $0x80] sm:$0xff]
  %v55 = vld [vmem:[%s4 + $0x88] sm:$0xff]
  %v56 = vld [vmem:[%s4 + $0x90] sm:$0xff]
  %v57 = vld [vmem:[%s4 + $0x98] sm:$0xff]
  %v58 = vld [vmem:[%s4 + $0xa0] sm:$0xff]
  %v59 = vld [vmem:[%s4 + $0xa8] sm:$0xff]
  %v60 = vld [vmem:[%s4 + $0xb0] sm:$0xff]
  %v61 = vld [vmem:[%s4 + $0xb8] sm:$0xff]
  %v62 = vld [vmem:[%s4 + $0xc0] sm:$0xff]
  %v63 = vld [vmem:[%s4 + $0xc8] sm:$0xff]
  %v64 = vld [vmem:[%s4 + $0xd0] sm:$0xff]
  %v65 = vld [vmem:[%s4 + $0xd8] sm:$0xff]
  %v66 = vld [vmem:[%s4 + $0xe0] sm:$0xff]
  %v67 = vld [vmem:[%s4 + $0xe8] sm:$0xff]
  %v68 = vld [vmem:[%s4 + $0xf0] sm:$0xff]
  %v69 = vld [vmem:[%s4 + $0xf8] sm:$0xff]
  %v70 = vld [vmem:[%s4 + $0x100] sm:$0xff]
  %v71 = vld [vmem:[%s4 + $0x108] sm:$0xff]
  %v72 = vld [vmem:[%s4 + $0x110] sm:$0xff]
  %v73 = vld [vmem:[%s4 + $0x118] sm:$0xff]
  %v74 = vld [vmem:[%s4 + $0x120] sm:$0xff]
  %v75 = vld [vmem:[%s4 + $0x128] sm:$0xff]
  %v76 = vld [vmem:[%s4 + $0x130] sm:$0xff]
  %v77 = vld [vmem:[%s4 + $0x138] sm:$0xff]
  %v78 = vld [vmem:[%s4 + $0x140] sm:$0xff]
  %v79 = vld [vmem:[%s4 + $0x148] sm:$0xff]
  %v80 = vld [vmem:[%s4 + $0x150] sm:$0xff]
  %v81 = vld [vmem:[%s4 + $0x158] sm:$0xff]
  %v82 = vld [vmem:[%s4 + $0x160] sm:$0xff]
  %v83 = vld [vmem:[%s4 + $0x168] sm:$0xff]
  %v84 = vld [vmem:[%s4 + $0x170] sm:$0xff]
  %v85 = vld [vmem:[%s4 + $0x178] sm:$0xff]
  %v86 = vld [vmem:[%s4 + $0x180] sm:$0xff]
  %v87 = vld [vmem:[%s4 + $0x188] sm:$0xff]
  %v88 = vld [vmem:[%s4 + $0x190] sm:$0xff]
  %v89 = vld [vmem:[%s4 + $0x198] sm:$0xff]
  %v90 = vld [vmem:[%s4 + $0x1a0] sm:$0xff]
  %v91 = vld [vmem:[%s4 + $0x1a8] sm:$0xff]
  %v92 = vld [vmem:[%s4 + $0x1b0] sm:$0xff]
  %v93 = vld [vmem:[%s4 + $0x1b8] sm:$0xff]
  %v94 = vld [vmem:[%s4 + $0x1c0] sm:$0xff]
  %v95 = vld [vmem:[%s4 + $0x1c8] sm:$0xff]
  %v96 = vld [vmem:[%s4 + $0x1d0] sm:$0xff]
  %v97 = vld [vmem:[%s4 + $0x1d8] sm:$0xff]
  %v98 = vld [vmem:[%s4 + $0x1e0] sm:$0xff]
  %v99 = vld [vmem:[%s4 + $0x1e8] sm:$0xff]
  %v100 = vld [vmem:[%s4 + $0x1f0] sm:$0xff]
  %v101 = vld [vmem:[%s4 + $0x1f8] sm:$0xff]
  %v102 = vld [vmem:[%s4 + $0x200] sm:$0xff]
  %v103 = vld [vmem:[%s4 + $0x208] sm:$0xff]
  %v104 = vld [vmem:[%s4 + $0x210] sm:$0xff]
  %v105 = vld [vmem:[%s4 + $0x218] sm:$0xff]
  %v106 = vld [vmem:[%s4 + $0x220] sm:$0xff]
  %v107 = vld [vmem:[%s4 + $0x228] sm:$0xff]
  %v108 = vld [vmem:[%s4 + $0x230] sm:$0xff]
  %v109 = vld [vmem:[%s4 + $0x238] sm:$0xff]
  %v110 = vld [vmem:[%s4 + $0x240] sm:$0xff]
  %v111 = vld [vmem:[%s4 + $0x248] sm:$0xff]
  %v112 = vld [vmem:[%s4 + $0x250] sm:$0xff]
  %v113 = vld [vmem:[%s4 + $0x258] sm:$0xff]
  %v114 = vld [vmem:[%s4 + $0x260] sm:$0xff]
  %v115 = vld [vmem:[%s4 + $0x268] sm:$0xff]
  %v116 = vld [vmem:[%s4 + $0x270] sm:$0xff]
  %v117 = vld [vmem:[%s4 + $0x278] sm:$0xff]
  %v118 = vld [vmem:[%s4 + $0x280] sm:$0xff]
  %v119 = vld [vmem:[%s4 + $0x288] sm:$0xff]
  %v120 = vld [vmem:[%s4 + $0x290] sm:$0xff]
  %v121 = vld [vmem:[%s4 + $0x298] sm:$0xff]
  %v122 = vld [vmem:[%s4 + $0x2a0] sm:$0xff]
  %v123 = vld [vmem:[%s4 + $0x2a8] sm:$0xff]
  %v124 = vld [vmem:[%s4 + $0x2b0] sm:$0xff]
  %v125 = vld [vmem:[%s4 + $0x2b8] sm:$0xff]
  %v126 = vld [vmem:[%s4 + $0x2c0] sm:$0xff]
  %v127 = vld [vmem:[%s4 + $0x2c8] sm:$0xff]
  %v128 = vld [vmem:[%s4 + $0x2d0] sm:$0xff]
  %v129 = vld [vmem:[%s4 + $0x2d8] sm:$0xff]
  %v130 = vld [vmem:[%s4 + $0x2e0] sm:$0xff]
  %v131 = vld [vmem:[%s4 + $0x2e8] sm:$0xff]
  %v132 = vld [vmem:[%s4 + $0x2f0] sm:$0xff]
  %v133 = vld [vmem:[%s4 + $0x2f8] sm:$0xff]
  %v134 = vld [vmem:[%s4 + $0x300] sm:$0xff]
  %v135 = vld [vmem:[%s4 + $0x308] sm:$0xff]
  %v136 = vld [vmem:[%s4 + $0x310] sm:$0xff]
  %v137 = vld [vmem:[%s4 + $0x318] sm:$0xff]
  %v138 = vld [vmem:[%s5] sm:$0x1]
  %v139 = vld [vmem:[%s0] sm:$0xff]
  %v140 = vld [vmem:[%s0 + $0x8] sm:$0xff]
  %v141 = vld [vmem:[%s0 + $0x10] sm:$0xff]
  %v142 = vld [vmem:[%s0 + $0x18] sm:$0xff]
  %v143 = vld [vmem:[%s0 + $0x20] sm:$0xff]
  %v144 = vld [vmem:[%s0 + $0x28] sm:$0xff]
  %v145 = vld [vmem:[%s0 + $0x30] sm:$0xff]
  %v146 = vld [vmem:[%s0 + $0x38] sm:$0xff]
  %v147 = vld [vmem:[%s0 + $0x40] sm:$0xff]
  %v148 = vld [vmem:[%s0 + $0x48] sm:$0xff]
  %v149 = vld [vmem:[%s0 + $0x50] sm:$0xff]
  %v150 = vld [vmem:[%s0 + $0x58] sm:$0xff]
  %v151 = vld [vmem:[%s0 + $0x60] sm:$0xff]
  %v152 = vld [vmem:[%s0 + $0x68] sm:$0xff]
  %v153 = vld [vmem:[%s0 + $0x70] sm:$0xff]
  %v154 = vld [vmem:[%s0 + $0x78] sm:$0xff]
  %v155 = vld [vmem:[%s0 + $0x80] sm:$0xff]
  %v156 = vld [vmem:[%s0 + $0x88] sm:$0xff]
  %v157 = vld [vmem:[%s0 + $0x90] sm:$0xff]
  %v158 = vld [vmem:[%s0 + $0x98] sm:$0xff]
  %v159 = vld [vmem:[%s0 + $0xa0] sm:$0xff]
  %v160 = vld [vmem:[%s0 + $0xa8] sm:$0xff]
  %v161 = vld [vmem:[%s0 + $0xb0] sm:$0xff]
  %v162 = vld [vmem:[%s0 + $0xb8] sm:$0xff]
  %v163 = vld [vmem:[%s0 + $0xc0] sm:$0xff]
  %v164 = vld [vmem:[%s0 + $0xc8] sm:$0xff]
  %v165 = vld [vmem:[%s0 + $0xd0] sm:$0xff]
  %v166 = vld [vmem:[%s0 + $0xd8] sm:$0xff]
  %v168 = vlaneseq
  %v169 = vshrl.u32 %v168, 7
  %v170 = vsub.s32 0, %v169
  %v171 = vrot.slane %v138, %v170
  %vm173 = vcmask 261120
  %v175 = vsel %vm173, %v145, 0
  %v178 = vsel %vm173, %v152, 0
  %v181 = vsel %vm173, %v159, 0
  %v184 = vsel %vm173, %v166, 0
  %186 = vmatprep.subr.mxu0 0.0
  %187 = vmatpush1.msra.mxu0 %v38
  %188 = vmatprep.subr.mxu0 0.0
  %189 = vmatpush1.msra.mxu0 %v39
  %190 = vmatprep.subr.mxu0 0.0
  %191 = vmatpush1.msra.mxu0 %v40
  %192 = vmatprep.subr.mxu0 0.0
  %193 = vmatpush1.msra.mxu0 %v41
  %194 = vmatprep.subr.mxu0 0.0
  %195 = vmatpush1.msra.mxu0 %v42
  %196 = vmatprep.subr.mxu0 0.0
  %197 = vmatpush1.msra.mxu0 %v43
  %198 = vmatprep.subr.mxu0 0.0
  %199 = vmatpush1.msra.mxu0 %v44
  %200 = vmatprep.subr.mxu0 0.0
  %201 = vmatpush1.msra.mxu0 %v45
  %202 = vmatprep.subr.mxu0 0.0
  %203 = vmatpush1.msra.mxu0 %v46
  %204 = vmatprep.subr.mxu0 0.0
  %205 = vmatpush1.msra.mxu0 %v47
  %206 = vmatprep.subr.mxu0 0.0
  %207 = vmatpush1.msra.mxu0 %v48
  %208 = vmatprep.subr.mxu0 0.0
  %209 = vmatpush1.msra.mxu0 %v49
  %210 = vmatprep.subr.mxu0 0.0
  %211 = vmatpush1.msra.mxu0 %v50
  %212 = vmatprep.subr.mxu0 0.0
  %213 = vmatpush1.msra.mxu0 %v51
  %214 = vmatprep.subr.mxu0 0.0
  %215 = vmatpush1.msra.mxu0 %v52
  %216 = vmatprep.subr.mxu0 0.0
  %217 = vmatpush1.msra.mxu0 %v53
  %218 = vmatprep.subr.mxu0 0.0
  %219 = vmatpush1.msra.mxu0 %v54
  %220 = vmatprep.subr.mxu0 0.0
  %221 = vmatpush1.msra.mxu0 %v55
  %222 = vmatprep.subr.mxu0 0.0
  %223 = vmatpush1.msra.mxu0 %v56
  %224 = vmatprep.subr.mxu0 0.0
  %225 = vmatpush1.msra.mxu0 %v57
  %226 = vmatprep.subr.mxu0 0.0
  %227 = vmatpush1.msra.mxu0 %v58
  %228 = vmatprep.subr.mxu0 0.0
  %229 = vmatpush1.msra.mxu0 %v59
  %230 = vmatprep.subr.mxu0 0.0
  %231 = vmatpush1.msra.mxu0 %v60
  %232 = vmatprep.subr.mxu0 0.0
  %233 = vmatpush1.msra.mxu0 %v61
  %234 = vmatprep.subr.mxu0 0.0
  %235 = vmatpush1.msra.mxu0 %v62
  %236 = vmatprep.subr.mxu0 0.0
  %237 = vmatpush1.msra.mxu0 %v63
  %238 = vmatprep.subr.mxu0 0.0
  %239 = vmatpush1.msra.mxu0 %v64
  %240 = vmatprep.subr.mxu0 0.0
  %241 = vmatpush1.msra.mxu0 %v65
  %242 = vmatprep.subr.mxu0 0.0
  %243 = vmatpush1.msra.mxu0 %v66
  %244 = vmatprep.subr.mxu0 0.0
  %245 = vmatpush1.msra.mxu0 %v67
  %246 = vmatprep.subr.mxu0 0.0
  %247 = vmatpush1.msra.mxu0 %v68
  %248 = vmatprep.subr.mxu0 0.0
  %249 = vmatpush1.msra.mxu0 %v69
  %250 = vmatprep.mubr.f32.mxu0 %v140
  %251 = vmatmul.mubr.f32.gmra.mrb[0].mxu0 %v139
  %v252 = vpop.f32.mrb[0].mxu0
  %v253 = vadd.f32 %v171, %v252
  %v254 = vpop.f32.mrb[0].mxu0
  %255 = vmatprep.mubr.f32.mxu0 %v147
  %256 = vmatmul.mubr.f32.gmra.mrb[0].mxu0 %v146
  %v257 = vpop.f32.mrb[0].mxu0
  %v258 = vadd.f32 %v171, %v257
  %v259 = vpop.f32.mrb[0].mxu0
  %260 = vmatprep.mubr.f32.mxu0 %v154
  %261 = vmatmul.mubr.f32.gmra.mrb[0].mxu0 %v153
  %v262 = vpop.f32.mrb[0].mxu0
  %v263 = vadd.f32 %v171, %v262
  %v264 = vpop.f32.mrb[0].mxu0
  %265 = vmatprep.mubr.f32.mxu0 %v161
  %266 = vmatmul.mubr.f32.gmra.mrb[0].mxu0 %v160
  %v267 = vpop.f32.mrb[0].mxu0
  %v268 = vadd.f32 %v171, %v267
  %v269 = vpop.f32.mrb[0].mxu0
  %270 = vdwg.mxu0
  %271 = vmatprep.subr.mxu0 0.0
  %272 = vmatpush1.msra.mxu0 %v70
  %273 = vmatprep.subr.mxu0 0.0
  %274 = vmatpush1.msra.mxu0 %v71
  %275 = vmatprep.subr.mxu0 0.0
  %276 = vmatpush1.msra.mxu0 %v72
  %277 = vmatprep.subr.mxu0 0.0
  %278 = vmatpush1.msra.mxu0 %v73
  %279 = vmatprep.subr.mxu0 0.0
  %280 = vmatpush1.msra.mxu0 %v74
  %281 = vmatprep.subr.mxu0 0.0
  %282 = vmatpush1.msra.mxu0 %v75
  %283 = vmatprep.subr.mxu0 0.0
  %284 = vmatpush1.msra.mxu0 %v76
  %285 = vmatprep.subr.mxu0 0.0
  %286 = vmatpush1.msra.mxu0 %v77
  %287 = vmatprep.subr.mxu0 0.0
  %288 = vmatpush1.msra.mxu0 %v78
  %289 = vmatprep.subr.mxu0 0.0
  %290 = vmatpush1.msra.mxu0 %v79
  %291 = vmatprep.subr.mxu0 0.0
  %292 = vmatpush1.msra.mxu0 %v80
  %293 = vmatprep.subr.mxu0 0.0
  %294 = vmatpush1.msra.mxu0 %v81
  %295 = vmatprep.subr.mxu0 0.0
  %296 = vmatpush1.msra.mxu0 %v82
  %297 = vmatprep.subr.mxu0 0.0
  %298 = vmatpush1.msra.mxu0 %v83
  %299 = vmatprep.subr.mxu0 0.0
  %300 = vmatpush1.msra.mxu0 %v84
  %301 = vmatprep.subr.mxu0 0.0
  %302 = vmatpush1.msra.mxu0 %v85
  %303 = vmatprep.subr.mxu0 0.0
  %304 = vmatpush1.msra.mxu0 %v86
  %305 = vmatprep.subr.mxu0 0.0
  %306 = vmatpush1.msra.mxu0 %v87
  %307 = vmatprep.subr.mxu0 0.0
  %308 = vmatpush1.msra.mxu0 %v88
  %309 = vmatprep.subr.mxu0 0.0
  %310 = vmatpush1.msra.mxu0 %v89
  %311 = vmatprep.subr.mxu0 0.0
  %312 = vmatpush1.msra.mxu0 %v90
  %313 = vmatprep.subr.mxu0 0.0
  %314 = vmatpush1.msra.mxu0 %v91
  %315 = vmatprep.subr.mxu0 0.0
  %316 = vmatpush1.msra.mxu0 %v92
  %317 = vmatprep.subr.mxu0 0.0
  %318 = vmatpush1.msra.mxu0 %v93
  %319 = vmatprep.subr.mxu0 0.0
  %320 = vmatpush1.msra.mxu0 %v94
  %321 = vmatprep.subr.mxu0 0.0
  %322 = vmatpush1.msra.mxu0 %v95
  %323 = vmatprep.subr.mxu0 0.0
  %324 = vmatpush1.msra.mxu0 %v96
  %325 = vmatprep.subr.mxu0 0.0
  %326 = vmatpush1.msra.mxu0 %v97
  %327 = vmatprep.subr.mxu0 0.0
  %328 = vmatpush1.msra.mxu0 %v98
  %329 = vmatprep.subr.mxu0 0.0
  %330 = vmatpush1.msra.mxu0 %v99
  %331 = vmatprep.subr.mxu0 0.0
  %332 = vmatpush1.msra.mxu0 %v100
  %333 = vmatprep.subr.mxu0 0.0
  %334 = vmatpush1.msra.mxu0 %v101
  %335 = vmatprep.mubr.f32.mxu0 %v142
  %336 = vmatmul.mubr.f32.gmra.mrb[0].mxu0 %v141
  %v337 = vpop.f32.mrb[0].mxu0
  %v338 = vadd.f32 %v253, %v337
  %v339 = vpop.f32.mrb[0].mxu0
  %340 = vmatprep.mubr.f32.mxu0 %v149
  %341 = vmatmul.mubr.f32.gmra.mrb[0].mxu0 %v148
  %v342 = vpop.f32.mrb[0].mxu0
  %v343 = vadd.f32 %v258, %v342
  %v344 = vpop.f32.mrb[0].mxu0
  %345 = vmatprep.mubr.f32.mxu0 %v156
  %346 = vmatmul.mubr.f32.gmra.mrb[0].mxu0 %v155
  %v347 = vpop.f32.mrb[0].mxu0
  %v348 = vadd.f32 %v263, %v347
  %v349 = vpop.f32.mrb[0].mxu0
  %350 = vmatprep.mubr.f32.mxu0 %v163
  %351 = vmatmul.mubr.f32.gmra.mrb[0].mxu0 %v162
  %v352 = vpop.f32.mrb[0].mxu0
  %v353 = vadd.f32 %v268, %v352
  %v354 = vpop.f32.mrb[0].mxu0
  %355 = vdwg.mxu0
  %356 = vmatprep.subr.mxu0 0.0
  %357 = vmatpush1.msra.mxu0 %v102
  %358 = vmatprep.subr.mxu0 0.0
  %359 = vmatpush1.msra.mxu0 %v103
  %360 = vmatprep.subr.mxu0 0.0
  %361 = vmatpush1.msra.mxu0 %v104
  %362 = vmatprep.subr.mxu0 0.0
  %363 = vmatpush1.msra.mxu0 %v105
  %364 = vmatprep.subr.mxu0 0.0
  %365 = vmatpush1.msra.mxu0 %v106
  %366 = vmatprep.subr.mxu0 0.0
  %367 = vmatpush1.msra.mxu0 %v107
  %368 = vmatprep.subr.mxu0 0.0
  %369 = vmatpush1.msra.mxu0 %v108
  %370 = vmatprep.subr.mxu0 0.0
  %371 = vmatpush1.msra.mxu0 %v109
  %372 = vmatprep.subr.mxu0 0.0
  %373 = vmatpush1.msra.mxu0 %v110
  %374 = vmatprep.subr.mxu0 0.0
  %375 = vmatpush1.msra.mxu0 %v111
  %376 = vmatprep.subr.mxu0 0.0
  %377 = vmatpush1.msra.mxu0 %v112
  %378 = vmatprep.subr.mxu0 0.0
  %379 = vmatpush1.msra.mxu0 %v113
  %380 = vmatprep.subr.mxu0 0.0
  %381 = vmatpush1.msra.mxu0 %v114
  %382 = vmatprep.subr.mxu0 0.0
  %383 = vmatpush1.msra.mxu0 %v115
  %384 = vmatprep.subr.mxu0 0.0
  %385 = vmatpush1.msra.mxu0 %v116
  %386 = vmatprep.subr.mxu0 0.0
  %387 = vmatpush1.msra.mxu0 %v117
  %388 = vmatprep.subr.mxu0 0.0
  %389 = vmatpush1.msra.mxu0 %v118
  %390 = vmatprep.subr.mxu0 0.0
  %391 = vmatpush1.msra.mxu0 %v119
  %392 = vmatprep.subr.mxu0 0.0
  %393 = vmatpush1.msra.mxu0 %v120
  %394 = vmatprep.subr.mxu0 0.0
  %395 = vmatpush1.msra.mxu0 %v121
  %396 = vmatprep.subr.mxu0 0.0
  %397 = vmatpush1.msra.mxu0 %v122
  %398 = vmatprep.subr.mxu0 0.0
  %399 = vmatpush1.msra.mxu0 %v123
  %400 = vmatprep.subr.mxu0 0.0
  %401 = vmatpush1.msra.mxu0 %v124
  %402 = vmatprep.subr.mxu0 0.0
  %403 = vmatpush1.msra.mxu0 %v125
  %404 = vmatprep.subr.mxu0 0.0
  %405 = vmatpush1.msra.mxu0 %v126
  %406 = vmatprep.subr.mxu0 0.0
  %407 = vmatpush1.msra.mxu0 %v127
  %408 = vmatprep.subr.mxu0 0.0
  %409 = vmatpush1.msra.mxu0 %v128
  %410 = vmatprep.subr.mxu0 0.0
  %411 = vmatpush1.msra.mxu0 %v129
  %412 = vmatprep.subr.mxu0 0.0
  %413 = vmatpush1.msra.mxu0 %v130
  %414 = vmatprep.subr.mxu0 0.0
  %415 = vmatpush1.msra.mxu0 %v131
  %416 = vmatprep.subr.mxu0 0.0
  %417 = vmatpush1.msra.mxu0 %v132
  %418 = vmatprep.subr.mxu0 0.0
  %419 = vmatpush1.msra.mxu0 %v133
  %420 = vmatprep.mubr.f32.mxu0 %v144
  %421 = vmatmul.mubr.f32.gmra.mrb[0].mxu0 %v143
  %v422 = vpop.f32.mrb[0].mxu0
  %v423 = vadd.f32 %v338, %v422
  %v424 = vpop.f32.mrb[0].mxu0
  %425 = vmatprep.mubr.f32.mxu0 %v151
  %426 = vmatmul.mubr.f32.gmra.mrb[0].mxu0 %v150
  %v427 = vpop.f32.mrb[0].mxu0
  %v428 = vadd.f32 %v343, %v427
  %v429 = vpop.f32.mrb[0].mxu0
  %430 = vmatprep.mubr.f32.mxu0 %v158
  %431 = vmatmul.mubr.f32.gmra.mrb[0].mxu0 %v157
  %v432 = vpop.f32.mrb[0].mxu0
  %v433 = vadd.f32 %v348, %v432
  %v434 = vpop.f32.mrb[0].mxu0
  %435 = vmatprep.mubr.f32.mxu0 %v165
  %436 = vmatmul.mubr.f32.gmra.mrb[0].mxu0 %v164
  %v437 = vpop.f32.mrb[0].mxu0
  %v438 = vadd.f32 %v353, %v437
  %v439 = vpop.f32.mrb[0].mxu0
  %440 = vdwg.mxu0
  %441 = vmatprep.subr.mxu0 0.0
  %442 = vmatpush1.msra.mxu0 %v134
  %443 = vmatprep.subr.mxu0 0.0
  %444 = vmatpush1.msra.mxu0 %v135
  %445 = vmatprep.subr.mxu0 0.0
  %446 = vmatpush1.msra.mxu0 %v136
  %447 = vmatprep.subr.mxu0 0.0
  %448 = vmatpush1.msra.mxu0 %v137
  %449 = vmatprep.subr.mxu0 0.0
  %450 = vmatpush1.msra.mxu0 0.0
  %451 = vmatprep.subr.mxu0 0.0
  %452 = vmatpush1.msra.mxu0 0.0
  %453 = vmatprep.subr.mxu0 0.0
  %454 = vmatpush1.msra.mxu0 0.0
  %455 = vmatprep.subr.mxu0 0.0
  %456 = vmatpush1.msra.mxu0 0.0
  %457 = vmatprep.subr.mxu0 0.0
  %458 = vmatpush1.msra.mxu0 0.0
  %459 = vmatprep.subr.mxu0 0.0
  %460 = vmatpush1.msra.mxu0 0.0
  %461 = vmatprep.subr.mxu0 0.0
  %462 = vmatpush1.msra.mxu0 0.0
  %463 = vmatprep.subr.mxu0 0.0
  %464 = vmatpush1.msra.mxu0 0.0
  %465 = vmatprep.subr.mxu0 0.0
  %466 = vmatpush1.msra.mxu0 0.0
  %467 = vmatprep.subr.mxu0 0.0
  %468 = vmatpush1.msra.mxu0 0.0
  %469 = vmatprep.subr.mxu0 0.0
  %470 = vmatpush1.msra.mxu0 0.0
  %471 = vmatprep.subr.mxu0 0.0
  %472 = vmatpush1.msra.mxu0 0.0
  %473 = vmatprep.subr.mxu0 0.0
  %474 = vmatpush1.msra.mxu0 0.0
  %475 = vmatprep.subr.mxu0 0.0
  %476 = vmatpush1.msra.mxu0 0.0
  %477 = vmatprep.subr.mxu0 0.0
  %478 = vmatpush1.msra.mxu0 0.0
  %479 = vmatprep.subr.mxu0 0.0
  %480 = vmatpush1.msra.mxu0 0.0
  %481 = vmatprep.subr.mxu0 0.0
  %482 = vmatpush1.msra.mxu0 0.0
  %483 = vmatprep.subr.mxu0 0.0
  %484 = vmatpush1.msra.mxu0 0.0
  %485 = vmatprep.subr.mxu0 0.0
  %486 = vmatpush1.msra.mxu0 0.0
  %487 = vmatprep.subr.mxu0 0.0
  %488 = vmatpush1.msra.mxu0 0.0
  %489 = vmatprep.subr.mxu0 0.0
  %490 = vmatpush1.msra.mxu0 0.0
  %491 = vmatprep.subr.mxu0 0.0
  %492 = vmatpush1.msra.mxu0 0.0
  %493 = vmatprep.subr.mxu0 0.0
  %494 = vmatpush1.msra.mxu0 0.0
  %495 = vmatprep.subr.mxu0 0.0
  %496 = vmatpush1.msra.mxu0 0.0
  %497 = vmatprep.subr.mxu0 0.0
  %498 = vmatpush1.msra.mxu0 0.0
  %499 = vmatprep.subr.mxu0 0.0
  %500 = vmatpush1.msra.mxu0 0.0
  %501 = vmatprep.subr.mxu0 0.0
  %502 = vmatpush1.msra.mxu0 0.0
  %503 = vmatprep.subr.mxu0 0.0
  %504 = vmatpush1.msra.mxu0 0.0
  %505 = vmatprep.mubr.f32.mxu0 0.0
  %506 = vmatmul.mubr.f32.gmra.mrb[0].mxu0 %v175
  %v507 = vpop.f32.mrb[0].mxu0
  %v508 = vadd.f32 %v423, %v507
  %v509 = vpop.f32.mrb[0].mxu0
  %510 = vmatprep.mubr.f32.mxu0 0.0
  %511 = vmatmul.mubr.f32.gmra.mrb[0].mxu0 %v178
  %v512 = vpop.f32.mrb[0].mxu0
  %v513 = vadd.f32 %v428, %v512
  %v514 = vpop.f32.mrb[0].mxu0
  %515 = vmatprep.mubr.f32.mxu0 0.0
  %516 = vmatmul.mubr.f32.gmra.mrb[0].mxu0 %v181
  %v517 = vpop.f32.mrb[0].mxu0
  %v518 = vadd.f32 %v433, %v517
  %v519 = vpop.f32.mrb[0].mxu0
  %520 = vmatprep.mubr.f32.mxu0 0.0
  %521 = vmatmul.mubr.f32.gmra.mrb[0].mxu0 %v184
  %v522 = vpop.f32.mrb[0].mxu0
  %v523 = vadd.f32 %v438, %v522
  %v524 = vpop.f32.mrb[0].mxu0
  %525 = vdwg.mxu0
  %v526 = vld [vmem:[%s1] sm:$0xff]
  %v527 = vld [vmem:[%s1 + $0x8] sm:$0xff]
  %v528 = vld [vmem:[%s1 + $0x10] sm:$0xff]
  %v529 = vld [vmem:[%s1 + $0x18] sm:$0xff]
  %v530 = vld [vmem:[%s1 + $0x20] sm:$0xff]
  %v531 = vld [vmem:[%s1 + $0x28] sm:$0xff]
  %v532 = vld [vmem:[%s1 + $0x30] sm:$0xff]
  %v533 = vld [vmem:[%s1 + $0x38] sm:$0xff]
  %v534 = vld [vmem:[%s1 + $0x40] sm:$0xff]
  %v535 = vld [vmem:[%s1 + $0x48] sm:$0xff]
  %v536 = vld [vmem:[%s1 + $0x50] sm:$0xff]
  %v537 = vld [vmem:[%s1 + $0x58] sm:$0xff]
  %v538 = vld [vmem:[%s1 + $0x60] sm:$0xff]
  %v539 = vld [vmem:[%s1 + $0x68] sm:$0xff]
  %v540 = vld [vmem:[%s1 + $0x70] sm:$0xff]
  %v541 = vld [vmem:[%s1 + $0x78] sm:$0xff]
  %v542 = vld [vmem:[%s1 + $0x80] sm:$0xff]
  %v543 = vld [vmem:[%s1 + $0x88] sm:$0xff]
  %v544 = vld [vmem:[%s1 + $0x90] sm:$0xff]
  %v545 = vld [vmem:[%s1 + $0x98] sm:$0xff]
  %v546 = vld [vmem:[%s1 + $0xa0] sm:$0xff]
  %v547 = vld [vmem:[%s1 + $0xa8] sm:$0xff]
  %v548 = vld [vmem:[%s1 + $0xb0] sm:$0xff]
  %v549 = vld [vmem:[%s1 + $0xb8] sm:$0xff]
  %v550 = vld [vmem:[%s1 + $0xc0] sm:$0xff]
  %v551 = vld [vmem:[%s1 + $0xc8] sm:$0xff]
  %v552 = vld [vmem:[%s1 + $0xd0] sm:$0xff]
  %v553 = vld [vmem:[%s1 + $0xd8] sm:$0xff]
  %v555 = vsel %vm173, %v532, 0
  %v558 = vsel %vm173, %v539, 0
  %v561 = vsel %vm173, %v546, 0
  %v564 = vsel %vm173, %v553, 0
  %566 = vmatprep.subr.mxu0 0.0
  %567 = vmatpush1.msra.mxu0 %v38
  %568 = vmatprep.subr.mxu0 0.0
  %569 = vmatpush1.msra.mxu0 %v39
  %570 = vmatprep.subr.mxu0 0.0
  %571 = vmatpush1.msra.mxu0 %v40
  %572 = vmatprep.subr.mxu0 0.0
  %573 = vmatpush1.msra.mxu0 %v41
  %574 = vmatprep.subr.mxu0 0.0
  %575 = vmatpush1.msra.mxu0 %v42
  %576 = vmatprep.subr.mxu0 0.0
  %577 = vmatpush1.msra.mxu0 %v43
  %578 = vmatprep.subr.mxu0 0.0
  %579 = vmatpush1.msra.mxu0 %v44
  %580 = vmatprep.subr.mxu0 0.0
  %581 = vmatpush1.msra.mxu0 %v45
  %582 = vmatprep.subr.mxu0 0.0
  %583 = vmatpush1.msra.mxu0 %v46
  %584 = vmatprep.subr.mxu0 0.0
  %585 = vmatpush1.msra.mxu0 %v47
  %586 = vmatprep.subr.mxu0 0.0
  %587 = vmatpush1.msra.mxu0 %v48
  %588 = vmatprep.subr.mxu0 0.0
  %589 = vmatpush1.msra.mxu0 %v49
  %590 = vmatprep.subr.mxu0 0.0
  %591 = vmatpush1.msra.mxu0 %v50
  %592 = vmatprep.subr.mxu0 0.0
  %593 = vmatpush1.msra.mxu0 %v51
  %594 = vmatprep.subr.mxu0 0.0
  %595 = vmatpush1.msra.mxu0 %v52
  %596 = vmatprep.subr.mxu0 0.0
  %597 = vmatpush1.msra.mxu0 %v53
  %598 = vmatprep.subr.mxu0 0.0
  %599 = vmatpush1.msra.mxu0 %v54
  %600 = vmatprep.subr.mxu0 0.0
  %601 = vmatpush1.msra.mxu0 %v55
  %602 = vmatprep.subr.mxu0 0.0
  %603 = vmatpush1.msra.mxu0 %v56
  %604 = vmatprep.subr.mxu0 0.0
  %605 = vmatpush1.msra.mxu0 %v57
  %606 = vmatprep.subr.mxu0 0.0
  %607 = vmatpush1.msra.mxu0 %v58
  %608 = vmatprep.subr.mxu0 0.0
  %609 = vmatpush1.msra.mxu0 %v59
  %610 = vmatprep.subr.mxu0 0.0
  %611 = vmatpush1.msra.mxu0 %v60
  %612 = vmatprep.subr.mxu0 0.0
  %613 = vmatpush1.msra.mxu0 %v61
  %614 = vmatprep.subr.mxu0 0.0
  %615 = vmatpush1.msra.mxu0 %v62
  %616 = vmatprep.subr.mxu0 0.0
  %617 = vmatpush1.msra.mxu0 %v63
  %618 = vmatprep.subr.mxu0 0.0
  %619 = vmatpush1.msra.mxu0 %v64
  %620 = vmatprep.subr.mxu0 0.0
  %621 = vmatpush1.msra.mxu0 %v65
  %622 = vmatprep.subr.mxu0 0.0
  %623 = vmatpush1.msra.mxu0 %v66
  %624 = vmatprep.subr.mxu0 0.0
  %625 = vmatpush1.msra.mxu0 %v67
  %626 = vmatprep.subr.mxu0 0.0
  %627 = vmatpush1.msra.mxu0 %v68
  %628 = vmatprep.subr.mxu0 0.0
  %629 = vmatpush1.msra.mxu0 %v69
  %630 = vmatprep.mubr.f32.mxu0 %v527
  %631 = vmatmul.mubr.f32.gmra.mrb[0].mxu0 %v526
  %v632 = vpop.f32.mrb[0].mxu0
  %v633 = vadd.f32 %v171, %v632
  %v634 = vpop.f32.mrb[0].mxu0
  %635 = vmatprep.mubr.f32.mxu0 %v534
  %636 = vmatmul.mubr.f32.gmra.mrb[0].mxu0 %v533
  %v637 = vpop.f32.mrb[0].mxu0
  %v638 = vadd.f32 %v171, %v637
  %v639 = vpop.f32.mrb[0].mxu0
  %640 = vmatprep.mubr.f32.mxu0 %v541
  %641 = vmatmul.mubr.f32.gmra.mrb[0].mxu0 %v540
  %v642 = vpop.f32.mrb[0].mxu0
  %v643 = vadd.f32 %v171, %v642
  %v644 = vpop.f32.mrb[0].mxu0
  %645 = vmatprep.mubr.f32.mxu0 %v548
  %646 = vmatmul.mubr.f32.gmra.mrb[0].mxu0 %v547
  %v647 = vpop.f32.mrb[0].mxu0
  %v648 = vadd.f32 %v171, %v647
  %v649 = vpop.f32.mrb[0].mxu0
  %650 = vdwg.mxu0
  %651 = vmatprep.subr.mxu0 0.0
  %652 = vmatpush1.msra.mxu0 %v70
  %653 = vmatprep.subr.mxu0 0.0
  %654 = vmatpush1.msra.mxu0 %v71
  %655 = vmatprep.subr.mxu0 0.0
  %656 = vmatpush1.msra.mxu0 %v72
  %657 = vmatprep.subr.mxu0 0.0
  %658 = vmatpush1.msra.mxu0 %v73
  %659 = vmatprep.subr.mxu0 0.0
  %660 = vmatpush1.msra.mxu0 %v74
  %661 = vmatprep.subr.mxu0 0.0
  %662 = vmatpush1.msra.mxu0 %v75
  %663 = vmatprep.subr.mxu0 0.0
  %664 = vmatpush1.msra.mxu0 %v76
  %665 = vmatprep.subr.mxu0 0.0
  %666 = vmatpush1.msra.mxu0 %v77
  %667 = vmatprep.subr.mxu0 0.0
  %668 = vmatpush1.msra.mxu0 %v78
  %669 = vmatprep.subr.mxu0 0.0
  %670 = vmatpush1.msra.mxu0 %v79
  %671 = vmatprep.subr.mxu0 0.0
  %672 = vmatpush1.msra.mxu0 %v80
  %673 = vmatprep.subr.mxu0 0.0
  %674 = vmatpush1.msra.mxu0 %v81
  %675 = vmatprep.subr.mxu0 0.0
  %676 = vmatpush1.msra.mxu0 %v82
  %677 = vmatprep.subr.mxu0 0.0
  %678 = vmatpush1.msra.mxu0 %v83
  %679 = vmatprep.subr.mxu0 0.0
  %680 = vmatpush1.msra.mxu0 %v84
  %681 = vmatprep.subr.mxu0 0.0
  %682 = vmatpush1.msra.mxu0 %v85
  %683 = vmatprep.subr.mxu0 0.0
  %684 = vmatpush1.msra.mxu0 %v86
  %685 = vmatprep.subr.mxu0 0.0
  %686 = vmatpush1.msra.mxu0 %v87
  %687 = vmatprep.subr.mxu0 0.0
  %688 = vmatpush1.msra.mxu0 %v88
  %689 = vmatprep.subr.mxu0 0.0
  %690 = vmatpush1.msra.mxu0 %v89
  %691 = vmatprep.subr.mxu0 0.0
  %692 = vmatpush1.msra.mxu0 %v90
  %693 = vmatprep.subr.mxu0 0.0
  %694 = vmatpush1.msra.mxu0 %v91
  %695 = vmatprep.subr.mxu0 0.0
  %696 = vmatpush1.msra.mxu0 %v92
  %697 = vmatprep.subr.mxu0 0.0
  %698 = vmatpush1.msra.mxu0 %v93
  %699 = vmatprep.subr.mxu0 0.0
  %700 = vmatpush1.msra.mxu0 %v94
  %701 = vmatprep.subr.mxu0 0.0
  %702 = vmatpush1.msra.mxu0 %v95
  %703 = vmatprep.subr.mxu0 0.0
  %704 = vmatpush1.msra.mxu0 %v96
  %705 = vmatprep.subr.mxu0 0.0
  %706 = vmatpush1.msra.mxu0 %v97
  %707 = vmatprep.subr.mxu0 0.0
  %708 = vmatpush1.msra.mxu0 %v98
  %709 = vmatprep.subr.mxu0 0.0
  %710 = vmatpush1.msra.mxu0 %v99
  %711 = vmatprep.subr.mxu0 0.0
  %712 = vmatpush1.msra.mxu0 %v100
  %713 = vmatprep.subr.mxu0 0.0
  %714 = vmatpush1.msra.mxu0 %v101
  %715 = vmatprep.mubr.f32.mxu0 %v529
  %716 = vmatmul.mubr.f32.gmra.mrb[0].mxu0 %v528
  %v717 = vpop.f32.mrb[0].mxu0
  %v718 = vadd.f32 %v633, %v717
  %v719 = vpop.f32.mrb[0].mxu0
  %720 = vmatprep.mubr.f32.mxu0 %v536
  %721 = vmatmul.mubr.f32.gmra.mrb[0].mxu0 %v535
  %v722 = vpop.f32.mrb[0].mxu0
  %v723 = vadd.f32 %v638, %v722
  %v724 = vpop.f32.mrb[0].mxu0
  %725 = vmatprep.mubr.f32.mxu0 %v543
  %726 = vmatmul.mubr.f32.gmra.mrb[0].mxu0 %v542
  %v727 = vpop.f32.mrb[0].mxu0
  %v728 = vadd.f32 %v643, %v727
  %v729 = vpop.f32.mrb[0].mxu0
  %730 = vmatprep.mubr.f32.mxu0 %v550
  %731 = vmatmul.mubr.f32.gmra.mrb[0].mxu0 %v549
  %v732 = vpop.f32.mrb[0].mxu0
  %v733 = vadd.f32 %v648, %v732
  %v734 = vpop.f32.mrb[0].mxu0
  %735 = vdwg.mxu0
  %736 = vmatprep.subr.mxu0 0.0
  %737 = vmatpush1.msra.mxu0 %v102
  %738 = vmatprep.subr.mxu0 0.0
  %739 = vmatpush1.msra.mxu0 %v103
  %740 = vmatprep.subr.mxu0 0.0
  %741 = vmatpush1.msra.mxu0 %v104
  %742 = vmatprep.subr.mxu0 0.0
  %743 = vmatpush1.msra.mxu0 %v105
  %744 = vmatprep.subr.mxu0 0.0
  %745 = vmatpush1.msra.mxu0 %v106
  %746 = vmatprep.subr.mxu0 0.0
  %747 = vmatpush1.msra.mxu0 %v107
  %748 = vmatprep.subr.mxu0 0.0
  %749 = vmatpush1.msra.mxu0 %v108
  %750 = vmatprep.subr.mxu0 0.0
  %751 = vmatpush1.msra.mxu0 %v109
  %752 = vmatprep.subr.mxu0 0.0
  %753 = vmatpush1.msra.mxu0 %v110
  %754 = vmatprep.subr.mxu0 0.0
  %755 = vmatpush1.msra.mxu0 %v111
  %756 = vmatprep.subr.mxu0 0.0
  %757 = vmatpush1.msra.mxu0 %v112
  %758 = vmatprep.subr.mxu0 0.0
  %759 = vmatpush1.msra.mxu0 %v113
  %760 = vmatprep.subr.mxu0 0.0
  %761 = vmatpush1.msra.mxu0 %v114
  %762 = vmatprep.subr.mxu0 0.0
  %763 = vmatpush1.msra.mxu0 %v115
  %764 = vmatprep.subr.mxu0 0.0
  %765 = vmatpush1.msra.mxu0 %v116
  %766 = vmatprep.subr.mxu0 0.0
  %767 = vmatpush1.msra.mxu0 %v117
  %768 = vmatprep.subr.mxu0 0.0
  %769 = vmatpush1.msra.mxu0 %v118
  %770 = vmatprep.subr.mxu0 0.0
  %771 = vmatpush1.msra.mxu0 %v119
  %772 = vmatprep.subr.mxu0 0.0
  %773 = vmatpush1.msra.mxu0 %v120
  %774 = vmatprep.subr.mxu0 0.0
  %775 = vmatpush1.msra.mxu0 %v121
  %776 = vmatprep.subr.mxu0 0.0
  %777 = vmatpush1.msra.mxu0 %v122
  %778 = vmatprep.subr.mxu0 0.0
  %779 = vmatpush1.msra.mxu0 %v123
  %780 = vmatprep.subr.mxu0 0.0
  %781 = vmatpush1.msra.mxu0 %v124
  %782 = vmatprep.subr.mxu0 0.0
  %783 = vmatpush1.msra.mxu0 %v125
  %784 = vmatprep.subr.mxu0 0.0
  %785 = vmatpush1.msra.mxu0 %v126
  %786 = vmatprep.subr.mxu0 0.0
  %787 = vmatpush1.msra.mxu0 %v127
  %788 = vmatprep.subr.mxu0 0.0
  %789 = vmatpush1.msra.mxu0 %v128
  %790 = vmatprep.subr.mxu0 0.0
  %791 = vmatpush1.msra.mxu0 %v129
  %792 = vmatprep.subr.mxu0 0.0
  %793 = vmatpush1.msra.mxu0 %v130
  %794 = vmatprep.subr.mxu0 0.0
  %795 = vmatpush1.msra.mxu0 %v131
  %796 = vmatprep.subr.mxu0 0.0
  %797 = vmatpush1.msra.mxu0 %v132
  %798 = vmatprep.subr.mxu0 0.0
  %799 = vmatpush1.msra.mxu0 %v133
  %800 = vmatprep.mubr.f32.mxu0 %v531
  %801 = vmatmul.mubr.f32.gmra.mrb[0].mxu0 %v530
  %v802 = vpop.f32.mrb[0].mxu0
  %v803 = vadd.f32 %v718, %v802
  %v804 = vpop.f32.mrb[0].mxu0
  %805 = vmatprep.mubr.f32.mxu0 %v538
  %806 = vmatmul.mubr.f32.gmra.mrb[0].mxu0 %v537
  %v807 = vpop.f32.mrb[0].mxu0
  %v808 = vadd.f32 %v723, %v807
  %v809 = vpop.f32.mrb[0].mxu0
  %810 = vmatprep.mubr.f32.mxu0 %v545
  %811 = vmatmul.mubr.f32.gmra.mrb[0].mxu0 %v544
  %v812 = vpop.f32.mrb[0].mxu0
  %v813 = vadd.f32 %v728, %v812
  %v814 = vpop.f32.mrb[0].mxu0
  %815 = vmatprep.mubr.f32.mxu0 %v552
  %816 = vmatmul.mubr.f32.gmra.mrb[0].mxu0 %v551
  %v817 = vpop.f32.mrb[0].mxu0
  %v818 = vadd.f32 %v733, %v817
  %v819 = vpop.f32.mrb[0].mxu0
  %820 = vdwg.mxu0
  %821 = vmatprep.subr.mxu0 0.0
  %822 = vmatpush1.msra.mxu0 %v134
  %823 = vmatprep.subr.mxu0 0.0
  %824 = vmatpush1.msra.mxu0 %v135
  %825 = vmatprep.subr.mxu0 0.0
  %826 = vmatpush1.msra.mxu0 %v136
  %827 = vmatprep.subr.mxu0 0.0
  %828 = vmatpush1.msra.mxu0 %v137
  %829 = vmatprep.subr.mxu0 0.0
  %830 = vmatpush1.msra.mxu0 0.0
  %831 = vmatprep.subr.mxu0 0.0
  %832 = vmatpush1.msra.mxu0 0.0
  %833 = vmatprep.subr.mxu0 0.0
  %834 = vmatpush1.msra.mxu0 0.0
  %835 = vmatprep.subr.mxu0 0.0
  %836 = vmatpush1.msra.mxu0 0.0
  %837 = vmatprep.subr.mxu0 0.0
  %838 = vmatpush1.msra.mxu0 0.0
  %839 = vmatprep.subr.mxu0 0.0
  %840 = vmatpush1.msra.mxu0 0.0
  %841 = vmatprep.subr.mxu0 0.0
  %842 = vmatpush1.msra.mxu0 0.0
  %843 = vmatprep.subr.mxu0 0.0
  %844 = vmatpush1.msra.mxu0 0.0
  %845 = vmatprep.subr.mxu0 0.0
  %846 = vmatpush1.msra.mxu0 0.0
  %847 = vmatprep.subr.mxu0 0.0
  %848 = vmatpush1.msra.mxu0 0.0
  %849 = vmatprep.subr.mxu0 0.0
  %850 = vmatpush1.msra.mxu0 0.0
  %851 = vmatprep.subr.mxu0 0.0
  %852 = vmatpush1.msra.mxu0 0.0
  %853 = vmatprep.subr.mxu0 0.0
  %854 = vmatpush1.msra.mxu0 0.0
  %855 = vmatprep.subr.mxu0 0.0
  %856 = vmatpush1.msra.mxu0 0.0
  %857 = vmatprep.subr.mxu0 0.0
  %858 = vmatpush1.msra.mxu0 0.0
  %859 = vmatprep.subr.mxu0 0.0
  %860 = vmatpush1.msra.mxu0 0.0
  %861 = vmatprep.subr.mxu0 0.0
  %862 = vmatpush1.msra.mxu0 0.0
  %863 = vmatprep.subr.mxu0 0.0
  %864 = vmatpush1.msra.mxu0 0.0
  %865 = vmatprep.subr.mxu0 0.0
  %866 = vmatpush1.msra.mxu0 0.0
  %867 = vmatprep.subr.mxu0 0.0
  %868 = vmatpush1.msra.mxu0 0.0
  %869 = vmatprep.subr.mxu0 0.0
  %870 = vmatpush1.msra.mxu0 0.0
  %871 = vmatprep.subr.mxu0 0.0
  %872 = vmatpush1.msra.mxu0 0.0
  %873 = vmatprep.subr.mxu0 0.0
  %874 = vmatpush1.msra.mxu0 0.0
  %875 = vmatprep.subr.mxu0 0.0
  %876 = vmatpush1.msra.mxu0 0.0
  %877 = vmatprep.subr.mxu0 0.0
  %878 = vmatpush1.msra.mxu0 0.0
  %879 = vmatprep.subr.mxu0 0.0
  %880 = vmatpush1.msra.mxu0 0.0
  %881 = vmatprep.subr.mxu0 0.0
  %882 = vmatpush1.msra.mxu0 0.0
  %883 = vmatprep.subr.mxu0 0.0
  %884 = vmatpush1.msra.mxu0 0.0
  %885 = vmatprep.mubr.f32.mxu0 0.0
  %886 = vmatmul.mubr.f32.gmra.mrb[0].mxu0 %v555
  %v887 = vpop.f32.mrb[0].mxu0
  %v888 = vadd.f32 %v803, %v887
  %v889 = vpop.f32.mrb[0].mxu0
  %890 = vmatprep.mubr.f32.mxu0 0.0
  %891 = vmatmul.mubr.f32.gmra.mrb[0].mxu0 %v558
  %v892 = vpop.f32.mrb[0].mxu0
  %v893 = vadd.f32 %v808, %v892
  %v894 = vpop.f32.mrb[0].mxu0
  %895 = vmatprep.mubr.f32.mxu0 0.0
  %896 = vmatmul.mubr.f32.gmra.mrb[0].mxu0 %v561
  %v897 = vpop.f32.mrb[0].mxu0
  %v898 = vadd.f32 %v813, %v897
  %v899 = vpop.f32.mrb[0].mxu0
  %900 = vmatprep.mubr.f32.mxu0 0.0
  %901 = vmatmul.mubr.f32.gmra.mrb[0].mxu0 %v564
  %v902 = vpop.f32.mrb[0].mxu0
  %v903 = vadd.f32 %v818, %v902
  %v904 = vpop.f32.mrb[0].mxu0
  %905 = vdwg.mxu0
  %v906 = vld [vmem:[%s2] sm:$0xff]
  %v907 = vld [vmem:[%s2 + $0x8] sm:$0xff]
  %v908 = vld [vmem:[%s2 + $0x10] sm:$0xff]
  %v909 = vld [vmem:[%s2 + $0x18] sm:$0xff]
  %v910 = vld [vmem:[%s2 + $0x20] sm:$0xff]
  %v911 = vld [vmem:[%s2 + $0x28] sm:$0xff]
  %v912 = vld [vmem:[%s2 + $0x30] sm:$0xff]
  %v913 = vld [vmem:[%s2 + $0x38] sm:$0xff]
  %v914 = vld [vmem:[%s2 + $0x40] sm:$0xff]
  %v915 = vld [vmem:[%s2 + $0x48] sm:$0xff]
  %v916 = vld [vmem:[%s2 + $0x50] sm:$0xff]
  %v917 = vld [vmem:[%s2 + $0x58] sm:$0xff]
  %v918 = vld [vmem:[%s2 + $0x60] sm:$0xff]
  %v919 = vld [vmem:[%s2 + $0x68] sm:$0xff]
  %v920 = vld [vmem:[%s2 + $0x70] sm:$0xff]
  %v921 = vld [vmem:[%s2 + $0x78] sm:$0xff]
  %v922 = vld [vmem:[%s2 + $0x80] sm:$0xff]
  %v923 = vld [vmem:[%s2 + $0x88] sm:$0xff]
  %v924 = vld [vmem:[%s2 + $0x90] sm:$0xff]
  %v925 = vld [vmem:[%s2 + $0x98] sm:$0xff]
  %v926 = vld [vmem:[%s2 + $0xa0] sm:$0xff]
  %v927 = vld [vmem:[%s2 + $0xa8] sm:$0xff]
  %v928 = vld [vmem:[%s2 + $0xb0] sm:$0xff]
  %v929 = vld [vmem:[%s2 + $0xb8] sm:$0xff]
  %v930 = vld [vmem:[%s2 + $0xc0] sm:$0xff]
  %v931 = vld [vmem:[%s2 + $0xc8] sm:$0xff]
  %v932 = vld [vmem:[%s2 + $0xd0] sm:$0xff]
  %v933 = vld [vmem:[%s2 + $0xd8] sm:$0xff]
  %v935 = vsel %vm173, %v912, 0
  %v938 = vsel %vm173, %v919, 0
  %v941 = vsel %vm173, %v926, 0
  %v944 = vsel %vm173, %v933, 0
  %946 = vmatprep.subr.mxu0 0.0
  %947 = vmatpush1.msra.mxu0 %v38
  %948 = vmatprep.subr.mxu0 0.0
  %949 = vmatpush1.msra.mxu0 %v39
  %950 = vmatprep.subr.mxu0 0.0
  %951 = vmatpush1.msra.mxu0 %v40
  %952 = vmatprep.subr.mxu0 0.0
  %953 = vmatpush1.msra.mxu0 %v41
  %954 = vmatprep.subr.mxu0 0.0
  %955 = vmatpush1.msra.mxu0 %v42
  %956 = vmatprep.subr.mxu0 0.0
  %957 = vmatpush1.msra.mxu0 %v43
  %958 = vmatprep.subr.mxu0 0.0
  %959 = vmatpush1.msra.mxu0 %v44
  %960 = vmatprep.subr.mxu0 0.0
  %961 = vmatpush1.msra.mxu0 %v45
  %962 = vmatprep.subr.mxu0 0.0
  %963 = vmatpush1.msra.mxu0 %v46
  %964 = vmatprep.subr.mxu0 0.0
  %965 = vmatpush1.msra.mxu0 %v47
  %966 = vmatprep.subr.mxu0 0.0
  %967 = vmatpush1.msra.mxu0 %v48
  %968 = vmatprep.subr.mxu0 0.0
  %969 = vmatpush1.msra.mxu0 %v49
  %970 = vmatprep.subr.mxu0 0.0
  %971 = vmatpush1.msra.mxu0 %v50
  %972 = vmatprep.subr.mxu0 0.0
  %973 = vmatpush1.msra.mxu0 %v51
  %974 = vmatprep.subr.mxu0 0.0
  %975 = vmatpush1.msra.mxu0 %v52
  %976 = vmatprep.subr.mxu0 0.0
  %977 = vmatpush1.msra.mxu0 %v53
  %978 = vmatprep.subr.mxu0 0.0
  %979 = vmatpush1.msra.mxu0 %v54
  %980 = vmatprep.subr.mxu0 0.0
  %981 = vmatpush1.msra.mxu0 %v55
  %982 = vmatprep.subr.mxu0 0.0
  %983 = vmatpush1.msra.mxu0 %v56
  %984 = vmatprep.subr.mxu0 0.0
  %985 = vmatpush1.msra.mxu0 %v57
  %986 = vmatprep.subr.mxu0 0.0
  %987 = vmatpush1.msra.mxu0 %v58
  %988 = vmatprep.subr.mxu0 0.0
  %989 = vmatpush1.msra.mxu0 %v59
  %990 = vmatprep.subr.mxu0 0.0
  %991 = vmatpush1.msra.mxu0 %v60
  %992 = vmatprep.subr.mxu0 0.0
  %993 = vmatpush1.msra.mxu0 %v61
  %994 = vmatprep.subr.mxu0 0.0
  %995 = vmatpush1.msra.mxu0 %v62
  %996 = vmatprep.subr.mxu0 0.0
  %997 = vmatpush1.msra.mxu0 %v63
  %998 = vmatprep.subr.mxu0 0.0
  %999 = vmatpush1.msra.mxu0 %v64
  %1000 = vmatprep.subr.mxu0 0.0
  %1001 = vmatpush1.msra.mxu0 %v65
  %1002 = vmatprep.subr.mxu0 0.0
  %1003 = vmatpush1.msra.mxu0 %v66
  %1004 = vmatprep.subr.mxu0 0.0
  %1005 = vmatpush1.msra.mxu0 %v67
  %1006 = vmatprep.subr.mxu0 0.0
  %1007 = vmatpush1.msra.mxu0 %v68
  %1008 = vmatprep.subr.mxu0 0.0
  %1009 = vmatpush1.msra.mxu0 %v69
  %1010 = vmatprep.mubr.f32.mxu0 %v907
  %1011 = vmatmul.mubr.f32.gmra.mrb[0].mxu0 %v906
  %v1012 = vpop.f32.mrb[0].mxu0
  %v1013 = vadd.f32 %v171, %v1012
  %v1014 = vpop.f32.mrb[0].mxu0
  %1015 = vmatprep.mubr.f32.mxu0 %v914
  %1016 = vmatmul.mubr.f32.gmra.mrb[0].mxu0 %v913
  %v1017 = vpop.f32.mrb[0].mxu0
  %v1018 = vadd.f32 %v171, %v1017
  %v1019 = vpop.f32.mrb[0].mxu0
  %1020 = vmatprep.mubr.f32.mxu0 %v921
  %1021 = vmatmul.mubr.f32.gmra.mrb[0].mxu0 %v920
  %v1022 = vpop.f32.mrb[0].mxu0
  %v1023 = vadd.f32 %v171, %v1022
  %v1024 = vpop.f32.mrb[0].mxu0
  %1025 = vmatprep.mubr.f32.mxu0 %v928
  %1026 = vmatmul.mubr.f32.gmra.mrb[0].mxu0 %v927
  %v1027 = vpop.f32.mrb[0].mxu0
  %v1028 = vadd.f32 %v171, %v1027
  %v1029 = vpop.f32.mrb[0].mxu0
  %1030 = vdwg.mxu0
  %1031 = vmatprep.subr.mxu0 0.0
  %1032 = vmatpush1.msra.mxu0 %v70
  %1033 = vmatprep.subr.mxu0 0.0
  %1034 = vmatpush1.msra.mxu0 %v71
  %1035 = vmatprep.subr.mxu0 0.0
  %1036 = vmatpush1.msra.mxu0 %v72
  %1037 = vmatprep.subr.mxu0 0.0
  %1038 = vmatpush1.msra.mxu0 %v73
  %1039 = vmatprep.subr.mxu0 0.0
  %1040 = vmatpush1.msra.mxu0 %v74
  %1041 = vmatprep.subr.mxu0 0.0
  %1042 = vmatpush1.msra.mxu0 %v75
  %1043 = vmatprep.subr.mxu0 0.0
  %1044 = vmatpush1.msra.mxu0 %v76
  %1045 = vmatprep.subr.mxu0 0.0
  %1046 = vmatpush1.msra.mxu0 %v77
  %1047 = vmatprep.subr.mxu0 0.0
  %1048 = vmatpush1.msra.mxu0 %v78
  %1049 = vmatprep.subr.mxu0 0.0
  %1050 = vmatpush1.msra.mxu0 %v79
  %1051 = vmatprep.subr.mxu0 0.0
  %1052 = vmatpush1.msra.mxu0 %v80
  %1053 = vmatprep.subr.mxu0 0.0
  %1054 = vmatpush1.msra.mxu0 %v81
  %1055 = vmatprep.subr.mxu0 0.0
  %1056 = vmatpush1.msra.mxu0 %v82
  %1057 = vmatprep.subr.mxu0 0.0
  %1058 = vmatpush1.msra.mxu0 %v83
  %1059 = vmatprep.subr.mxu0 0.0
  %1060 = vmatpush1.msra.mxu0 %v84
  %1061 = vmatprep.subr.mxu0 0.0
  %1062 = vmatpush1.msra.mxu0 %v85
  %1063 = vmatprep.subr.mxu0 0.0
  %1064 = vmatpush1.msra.mxu0 %v86
  %1065 = vmatprep.subr.mxu0 0.0
  %1066 = vmatpush1.msra.mxu0 %v87
  %1067 = vmatprep.subr.mxu0 0.0
  %1068 = vmatpush1.msra.mxu0 %v88
  %1069 = vmatprep.subr.mxu0 0.0
  %1070 = vmatpush1.msra.mxu0 %v89
  %1071 = vmatprep.subr.mxu0 0.0
  %1072 = vmatpush1.msra.mxu0 %v90
  %1073 = vmatprep.subr.mxu0 0.0
  %1074 = vmatpush1.msra.mxu0 %v91
  %1075 = vmatprep.subr.mxu0 0.0
  %1076 = vmatpush1.msra.mxu0 %v92
  %1077 = vmatprep.subr.mxu0 0.0
  %1078 = vmatpush1.msra.mxu0 %v93
  %1079 = vmatprep.subr.mxu0 0.0
  %1080 = vmatpush1.msra.mxu0 %v94
  %1081 = vmatprep.subr.mxu0 0.0
  %1082 = vmatpush1.msra.mxu0 %v95
  %1083 = vmatprep.subr.mxu0 0.0
  %1084 = vmatpush1.msra.mxu0 %v96
  %1085 = vmatprep.subr.mxu0 0.0
  %1086 = vmatpush1.msra.mxu0 %v97
  %1087 = vmatprep.subr.mxu0 0.0
  %1088 = vmatpush1.msra.mxu0 %v98
  %1089 = vmatprep.subr.mxu0 0.0
  %1090 = vmatpush1.msra.mxu0 %v99
  %1091 = vmatprep.subr.mxu0 0.0
  %1092 = vmatpush1.msra.mxu0 %v100
  %1093 = vmatprep.subr.mxu0 0.0
  %1094 = vmatpush1.msra.mxu0 %v101
  %1095 = vmatprep.mubr.f32.mxu0 %v909
  %1096 = vmatmul.mubr.f32.gmra.mrb[0].mxu0 %v908
  %v1097 = vpop.f32.mrb[0].mxu0
  %v1098 = vadd.f32 %v1013, %v1097
  %v1099 = vpop.f32.mrb[0].mxu0
  %1100 = vmatprep.mubr.f32.mxu0 %v916
  %1101 = vmatmul.mubr.f32.gmra.mrb[0].mxu0 %v915
  %v1102 = vpop.f32.mrb[0].mxu0
  %v1103 = vadd.f32 %v1018, %v1102
  %v1104 = vpop.f32.mrb[0].mxu0
  %1105 = vmatprep.mubr.f32.mxu0 %v923
  %1106 = vmatmul.mubr.f32.gmra.mrb[0].mxu0 %v922
  %v1107 = vpop.f32.mrb[0].mxu0
  %v1108 = vadd.f32 %v1023, %v1107
  %v1109 = vpop.f32.mrb[0].mxu0
  %1110 = vmatprep.mubr.f32.mxu0 %v930
  %1111 = vmatmul.mubr.f32.gmra.mrb[0].mxu0 %v929
  %v1112 = vpop.f32.mrb[0].mxu0
  %v1113 = vadd.f32 %v1028, %v1112
  %v1114 = vpop.f32.mrb[0].mxu0
  %1115 = vdwg.mxu0
  %1116 = vmatprep.subr.mxu0 0.0
  %1117 = vmatpush1.msra.mxu0 %v102
  %1118 = vmatprep.subr.mxu0 0.0
  %1119 = vmatpush1.msra.mxu0 %v103
  %1120 = vmatprep.subr.mxu0 0.0
  %1121 = vmatpush1.msra.mxu0 %v104
  %1122 = vmatprep.subr.mxu0 0.0
  %1123 = vmatpush1.msra.mxu0 %v105
  %1124 = vmatprep.subr.mxu0 0.0
  %1125 = vmatpush1.msra.mxu0 %v106
  %1126 = vmatprep.subr.mxu0 0.0
  %1127 = vmatpush1.msra.mxu0 %v107
  %1128 = vmatprep.subr.mxu0 0.0
  %1129 = vmatpush1.msra.mxu0 %v108
  %1130 = vmatprep.subr.mxu0 0.0
  %1131 = vmatpush1.msra.mxu0 %v109
  %1132 = vmatprep.subr.mxu0 0.0
  %1133 = vmatpush1.msra.mxu0 %v110
  %1134 = vmatprep.subr.mxu0 0.0
  %1135 = vmatpush1.msra.mxu0 %v111
  %1136 = vmatprep.subr.mxu0 0.0
  %1137 = vmatpush1.msra.mxu0 %v112
  %1138 = vmatprep.subr.mxu0 0.0
  %1139 = vmatpush1.msra.mxu0 %v113
  %1140 = vmatprep.subr.mxu0 0.0
  %1141 = vmatpush1.msra.mxu0 %v114
  %1142 = vmatprep.subr.mxu0 0.0
  %1143 = vmatpush1.msra.mxu0 %v115
  %1144 = vmatprep.subr.mxu0 0.0
  %1145 = vmatpush1.msra.mxu0 %v116
  %1146 = vmatprep.subr.mxu0 0.0
  %1147 = vmatpush1.msra.mxu0 %v117
  %1148 = vmatprep.subr.mxu0 0.0
  %1149 = vmatpush1.msra.mxu0 %v118
  %1150 = vmatprep.subr.mxu0 0.0
  %1151 = vmatpush1.msra.mxu0 %v119
  %1152 = vmatprep.subr.mxu0 0.0
  %1153 = vmatpush1.msra.mxu0 %v120
  %1154 = vmatprep.subr.mxu0 0.0
  %1155 = vmatpush1.msra.mxu0 %v121
  %1156 = vmatprep.subr.mxu0 0.0
  %1157 = vmatpush1.msra.mxu0 %v122
  %1158 = vmatprep.subr.mxu0 0.0
  %1159 = vmatpush1.msra.mxu0 %v123
  %1160 = vmatprep.subr.mxu0 0.0
  %1161 = vmatpush1.msra.mxu0 %v124
  %1162 = vmatprep.subr.mxu0 0.0
  %1163 = vmatpush1.msra.mxu0 %v125
  %1164 = vmatprep.subr.mxu0 0.0
  %1165 = vmatpush1.msra.mxu0 %v126
  %1166 = vmatprep.subr.mxu0 0.0
  %1167 = vmatpush1.msra.mxu0 %v127
  %1168 = vmatprep.subr.mxu0 0.0
  %1169 = vmatpush1.msra.mxu0 %v128
  %1170 = vmatprep.subr.mxu0 0.0
  %1171 = vmatpush1.msra.mxu0 %v129
  %1172 = vmatprep.subr.mxu0 0.0
  %1173 = vmatpush1.msra.mxu0 %v130
  %1174 = vmatprep.subr.mxu0 0.0
  %1175 = vmatpush1.msra.mxu0 %v131
  %1176 = vmatprep.subr.mxu0 0.0
  %1177 = vmatpush1.msra.mxu0 %v132
  %1178 = vmatprep.subr.mxu0 0.0
  %1179 = vmatpush1.msra.mxu0 %v133
  %1180 = vmatprep.mubr.f32.mxu0 %v911
  %1181 = vmatmul.mubr.f32.gmra.mrb[0].mxu0 %v910
  %v1182 = vpop.f32.mrb[0].mxu0
  %v1183 = vadd.f32 %v1098, %v1182
  %v1184 = vpop.f32.mrb[0].mxu0
  %1185 = vmatprep.mubr.f32.mxu0 %v918
  %1186 = vmatmul.mubr.f32.gmra.mrb[0].mxu0 %v917
  %v1187 = vpop.f32.mrb[0].mxu0
  %v1188 = vadd.f32 %v1103, %v1187
  %v1189 = vpop.f32.mrb[0].mxu0
  %1190 = vmatprep.mubr.f32.mxu0 %v925
  %1191 = vmatmul.mubr.f32.gmra.mrb[0].mxu0 %v924
  %v1192 = vpop.f32.mrb[0].mxu0
  %v1193 = vadd.f32 %v1108, %v1192
  %v1194 = vpop.f32.mrb[0].mxu0
  %1195 = vmatprep.mubr.f32.mxu0 %v932
  %1196 = vmatmul.mubr.f32.gmra.mrb[0].mxu0 %v931
  %v1197 = vpop.f32.mrb[0].mxu0
  %v1198 = vadd.f32 %v1113, %v1197
  %v1199 = vpop.f32.mrb[0].mxu0
  %1200 = vdwg.mxu0
  %1201 = vmatprep.subr.mxu0 0.0
  %1202 = vmatpush1.msra.mxu0 %v134
  %1203 = vmatprep.subr.mxu0 0.0
  %1204 = vmatpush1.msra.mxu0 %v135
  %1205 = vmatprep.subr.mxu0 0.0
  %1206 = vmatpush1.msra.mxu0 %v136
  %1207 = vmatprep.subr.mxu0 0.0
  %1208 = vmatpush1.msra.mxu0 %v137
  %1209 = vmatprep.subr.mxu0 0.0
  %1210 = vmatpush1.msra.mxu0 0.0
  %1211 = vmatprep.subr.mxu0 0.0
  %1212 = vmatpush1.msra.mxu0 0.0
  %1213 = vmatprep.subr.mxu0 0.0
  %1214 = vmatpush1.msra.mxu0 0.0
  %1215 = vmatprep.subr.mxu0 0.0
  %1216 = vmatpush1.msra.mxu0 0.0
  %1217 = vmatprep.subr.mxu0 0.0
  %1218 = vmatpush1.msra.mxu0 0.0
  %1219 = vmatprep.subr.mxu0 0.0
  %1220 = vmatpush1.msra.mxu0 0.0
  %1221 = vmatprep.subr.mxu0 0.0
  %1222 = vmatpush1.msra.mxu0 0.0
  %1223 = vmatprep.subr.mxu0 0.0
  %1224 = vmatpush1.msra.mxu0 0.0
  %1225 = vmatprep.subr.mxu0 0.0
  %1226 = vmatpush1.msra.mxu0 0.0
  %1227 = vmatprep.subr.mxu0 0.0
  %1228 = vmatpush1.msra.mxu0 0.0
  %1229 = vmatprep.subr.mxu0 0.0
  %1230 = vmatpush1.msra.mxu0 0.0
  %1231 = vmatprep.subr.mxu0 0.0
  %1232 = vmatpush1.msra.mxu0 0.0
  %1233 = vmatprep.subr.mxu0 0.0
  %1234 = vmatpush1.msra.mxu0 0.0
  %1235 = vmatprep.subr.mxu0 0.0
  %1236 = vmatpush1.msra.mxu0 0.0
  %1237 = vmatprep.subr.mxu0 0.0
  %1238 = vmatpush1.msra.mxu0 0.0
  %1239 = vmatprep.subr.mxu0 0.0
  %1240 = vmatpush1.msra.mxu0 0.0
  %1241 = vmatprep.subr.mxu0 0.0
  %1242 = vmatpush1.msra.mxu0 0.0
  %1243 = vmatprep.subr.mxu0 0.0
  %1244 = vmatpush1.msra.mxu0 0.0
  %1245 = vmatprep.subr.mxu0 0.0
  %1246 = vmatpush1.msra.mxu0 0.0
  %1247 = vmatprep.subr.mxu0 0.0
  %1248 = vmatpush1.msra.mxu0 0.0
  %1249 = vmatprep.subr.mxu0 0.0
  %1250 = vmatpush1.msra.mxu0 0.0
  %1251 = vmatprep.subr.mxu0 0.0
  %1252 = vmatpush1.msra.mxu0 0.0
  %1253 = vmatprep.subr.mxu0 0.0
  %1254 = vmatpush1.msra.mxu0 0.0
  %1255 = vmatprep.subr.mxu0 0.0
  %1256 = vmatpush1.msra.mxu0 0.0
  %1257 = vmatprep.subr.mxu0 0.0
  %1258 = vmatpush1.msra.mxu0 0.0
  %1259 = vmatprep.subr.mxu0 0.0
  %1260 = vmatpush1.msra.mxu0 0.0
  %1261 = vmatprep.subr.mxu0 0.0
  %1262 = vmatpush1.msra.mxu0 0.0
  %1263 = vmatprep.subr.mxu0 0.0
  %1264 = vmatpush1.msra.mxu0 0.0
  %1265 = vmatprep.mubr.f32.mxu0 0.0
  %1266 = vmatmul.mubr.f32.gmra.mrb[0].mxu0 %v935
  %v1267 = vpop.f32.mrb[0].mxu0
  %v1268 = vadd.f32 %v1183, %v1267
  %v1269 = vpop.f32.mrb[0].mxu0
  %1270 = vmatprep.mubr.f32.mxu0 0.0
  %1271 = vmatmul.mubr.f32.gmra.mrb[0].mxu0 %v938
  %v1272 = vpop.f32.mrb[0].mxu0
  %v1273 = vadd.f32 %v1188, %v1272
  %v1274 = vpop.f32.mrb[0].mxu0
  %1275 = vmatprep.mubr.f32.mxu0 0.0
  %1276 = vmatmul.mubr.f32.gmra.mrb[0].mxu0 %v941
  %v1277 = vpop.f32.mrb[0].mxu0
  %v1278 = vadd.f32 %v1193, %v1277
  %v1279 = vpop.f32.mrb[0].mxu0
  %1280 = vmatprep.mubr.f32.mxu0 0.0
  %1281 = vmatmul.mubr.f32.gmra.mrb[0].mxu0 %v944
  %v1282 = vpop.f32.mrb[0].mxu0
  %v1283 = vadd.f32 %v1198, %v1282
  %v1284 = vpop.f32.mrb[0].mxu0
  %1285 = vdwg.mxu0
  %v1286 = vld [vmem:[%s3] sm:$0xff]
  %v1287 = vld [vmem:[%s3 + $0x8] sm:$0xff]
  %v1288 = vld [vmem:[%s3 + $0x10] sm:$0xff]
  %v1289 = vld [vmem:[%s3 + $0x18] sm:$0xff]
  %v1290 = vld [vmem:[%s3 + $0x20] sm:$0xff]
  %v1291 = vld [vmem:[%s3 + $0x28] sm:$0xff]
  %v1292 = vld [vmem:[%s3 + $0x30] sm:$0xff]
  %v1293 = vld [vmem:[%s3 + $0x38] sm:$0xff]
  %v1294 = vld [vmem:[%s3 + $0x40] sm:$0xff]
  %v1295 = vld [vmem:[%s3 + $0x48] sm:$0xff]
  %v1296 = vld [vmem:[%s3 + $0x50] sm:$0xff]
  %v1297 = vld [vmem:[%s3 + $0x58] sm:$0xff]
  %v1298 = vld [vmem:[%s3 + $0x60] sm:$0xff]
  %v1299 = vld [vmem:[%s3 + $0x68] sm:$0xff]
  %v1300 = vld [vmem:[%s3 + $0x70] sm:$0xff]
  %v1301 = vld [vmem:[%s3 + $0x78] sm:$0xff]
  %v1302 = vld [vmem:[%s3 + $0x80] sm:$0xff]
  %v1303 = vld [vmem:[%s3 + $0x88] sm:$0xff]
  %v1304 = vld [vmem:[%s3 + $0x90] sm:$0xff]
  %v1305 = vld [vmem:[%s3 + $0x98] sm:$0xff]
  %v1306 = vld [vmem:[%s3 + $0xa0] sm:$0xff]
  %v1307 = vld [vmem:[%s3 + $0xa8] sm:$0xff]
  %v1308 = vld [vmem:[%s3 + $0xb0] sm:$0xff]
  %v1309 = vld [vmem:[%s3 + $0xb8] sm:$0xff]
  %v1310 = vld [vmem:[%s3 + $0xc0] sm:$0xff]
  %v1311 = vld [vmem:[%s3 + $0xc8] sm:$0xff]
  %v1312 = vld [vmem:[%s3 + $0xd0] sm:$0xff]
  %v1313 = vld [vmem:[%s3 + $0xd8] sm:$0xff]
  %v1315 = vsel %vm173, %v1292, 0
  %v1318 = vsel %vm173, %v1299, 0
  %v1321 = vsel %vm173, %v1306, 0
  %v1324 = vsel %vm173, %v1313, 0
  %1326 = vmatprep.subr.mxu0 0.0
  %1327 = vmatpush1.msra.mxu0 %v38
  %1328 = vmatprep.subr.mxu0 0.0
  %1329 = vmatpush1.msra.mxu0 %v39
  %1330 = vmatprep.subr.mxu0 0.0
  %1331 = vmatpush1.msra.mxu0 %v40
  %1332 = vmatprep.subr.mxu0 0.0
  %1333 = vmatpush1.msra.mxu0 %v41
  %1334 = vmatprep.subr.mxu0 0.0
  %1335 = vmatpush1.msra.mxu0 %v42
  %1336 = vmatprep.subr.mxu0 0.0
  %1337 = vmatpush1.msra.mxu0 %v43
  %1338 = vmatprep.subr.mxu0 0.0
  %1339 = vmatpush1.msra.mxu0 %v44
  %1340 = vmatprep.subr.mxu0 0.0
  %1341 = vmatpush1.msra.mxu0 %v45
  %1342 = vmatprep.subr.mxu0 0.0
  %1343 = vmatpush1.msra.mxu0 %v46
  %1344 = vmatprep.subr.mxu0 0.0
  %1345 = vmatpush1.msra.mxu0 %v47
  %1346 = vmatprep.subr.mxu0 0.0
  %1347 = vmatpush1.msra.mxu0 %v48
  %1348 = vmatprep.subr.mxu0 0.0
  %1349 = vmatpush1.msra.mxu0 %v49
  %1350 = vmatprep.subr.mxu0 0.0
  %1351 = vmatpush1.msra.mxu0 %v50
  %1352 = vmatprep.subr.mxu0 0.0
  %1353 = vmatpush1.msra.mxu0 %v51
  %1354 = vmatprep.subr.mxu0 0.0
  %1355 = vmatpush1.msra.mxu0 %v52
  %1356 = vmatprep.subr.mxu0 0.0
  %1357 = vmatpush1.msra.mxu0 %v53
  %1358 = vmatprep.subr.mxu0 0.0
  %1359 = vmatpush1.msra.mxu0 %v54
  %1360 = vmatprep.subr.mxu0 0.0
  %1361 = vmatpush1.msra.mxu0 %v55
  %1362 = vmatprep.subr.mxu0 0.0
  %1363 = vmatpush1.msra.mxu0 %v56
  %1364 = vmatprep.subr.mxu0 0.0
  %1365 = vmatpush1.msra.mxu0 %v57
  %1366 = vmatprep.subr.mxu0 0.0
  %1367 = vmatpush1.msra.mxu0 %v58
  %1368 = vmatprep.subr.mxu0 0.0
  %1369 = vmatpush1.msra.mxu0 %v59
  %1370 = vmatprep.subr.mxu0 0.0
  %1371 = vmatpush1.msra.mxu0 %v60
  %1372 = vmatprep.subr.mxu0 0.0
  %1373 = vmatpush1.msra.mxu0 %v61
  %1374 = vmatprep.subr.mxu0 0.0
  %1375 = vmatpush1.msra.mxu0 %v62
  %1376 = vmatprep.subr.mxu0 0.0
  %1377 = vmatpush1.msra.mxu0 %v63
  %1378 = vmatprep.subr.mxu0 0.0
  %1379 = vmatpush1.msra.mxu0 %v64
  %1380 = vmatprep.subr.mxu0 0.0
  %1381 = vmatpush1.msra.mxu0 %v65
  %1382 = vmatprep.subr.mxu0 0.0
  %1383 = vmatpush1.msra.mxu0 %v66
  %1384 = vmatprep.subr.mxu0 0.0
  %1385 = vmatpush1.msra.mxu0 %v67
  %1386 = vmatprep.subr.mxu0 0.0
  %1387 = vmatpush1.msra.mxu0 %v68
  %1388 = vmatprep.subr.mxu0 0.0
  %1389 = vmatpush1.msra.mxu0 %v69
  %1390 = vmatprep.mubr.f32.mxu0 %v1287
  %1391 = vmatmul.mubr.f32.gmra.mrb[0].mxu0 %v1286
  %v1392 = vpop.f32.mrb[0].mxu0
  %v1393 = vadd.f32 %v171, %v1392
  %v1394 = vpop.f32.mrb[0].mxu0
  %1395 = vmatprep.mubr.f32.mxu0 %v1294
  %1396 = vmatmul.mubr.f32.gmra.mrb[0].mxu0 %v1293
  %v1397 = vpop.f32.mrb[0].mxu0
  %v1398 = vadd.f32 %v171, %v1397
  %v1399 = vpop.f32.mrb[0].mxu0
  %1400 = vmatprep.mubr.f32.mxu0 %v1301
  %1401 = vmatmul.mubr.f32.gmra.mrb[0].mxu0 %v1300
  %v1402 = vpop.f32.mrb[0].mxu0
  %v1403 = vadd.f32 %v171, %v1402
  %v1404 = vpop.f32.mrb[0].mxu0
  %1405 = vmatprep.mubr.f32.mxu0 %v1308
  %1406 = vmatmul.mubr.f32.gmra.mrb[0].mxu0 %v1307
  %v1407 = vpop.f32.mrb[0].mxu0
  %v1408 = vadd.f32 %v171, %v1407
  %v1409 = vpop.f32.mrb[0].mxu0
  %1410 = vdwg.mxu0
  %1411 = vmatprep.subr.mxu0 0.0
  %1412 = vmatpush1.msra.mxu0 %v70
  %1413 = vmatprep.subr.mxu0 0.0
  %1414 = vmatpush1.msra.mxu0 %v71
  %1415 = vmatprep.subr.mxu0 0.0
  %1416 = vmatpush1.msra.mxu0 %v72
  %1417 = vmatprep.subr.mxu0 0.0
  %1418 = vmatpush1.msra.mxu0 %v73
  %1419 = vmatprep.subr.mxu0 0.0
  %1420 = vmatpush1.msra.mxu0 %v74
  %1421 = vmatprep.subr.mxu0 0.0
  %1422 = vmatpush1.msra.mxu0 %v75
  %1423 = vmatprep.subr.mxu0 0.0
  %1424 = vmatpush1.msra.mxu0 %v76
  %1425 = vmatprep.subr.mxu0 0.0
  %1426 = vmatpush1.msra.mxu0 %v77
  %1427 = vmatprep.subr.mxu0 0.0
  %1428 = vmatpush1.msra.mxu0 %v78
  %1429 = vmatprep.subr.mxu0 0.0
  %1430 = vmatpush1.msra.mxu0 %v79
  %1431 = vmatprep.subr.mxu0 0.0
  %1432 = vmatpush1.msra.mxu0 %v80
  %1433 = vmatprep.subr.mxu0 0.0
  %1434 = vmatpush1.msra.mxu0 %v81
  %1435 = vmatprep.subr.mxu0 0.0
  %1436 = vmatpush1.msra.mxu0 %v82
  %1437 = vmatprep.subr.mxu0 0.0
  %1438 = vmatpush1.msra.mxu0 %v83
  %1439 = vmatprep.subr.mxu0 0.0
  %1440 = vmatpush1.msra.mxu0 %v84
  %1441 = vmatprep.subr.mxu0 0.0
  %1442 = vmatpush1.msra.mxu0 %v85
  %1443 = vmatprep.subr.mxu0 0.0
  %1444 = vmatpush1.msra.mxu0 %v86
  %1445 = vmatprep.subr.mxu0 0.0
  %1446 = vmatpush1.msra.mxu0 %v87
  %1447 = vmatprep.subr.mxu0 0.0
  %1448 = vmatpush1.msra.mxu0 %v88
  %1449 = vmatprep.subr.mxu0 0.0
  %1450 = vmatpush1.msra.mxu0 %v89
  %1451 = vmatprep.subr.mxu0 0.0
  %1452 = vmatpush1.msra.mxu0 %v90
  %1453 = vmatprep.subr.mxu0 0.0
  %1454 = vmatpush1.msra.mxu0 %v91
  %1455 = vmatprep.subr.mxu0 0.0
  %1456 = vmatpush1.msra.mxu0 %v92
  %1457 = vmatprep.subr.mxu0 0.0
  %1458 = vmatpush1.msra.mxu0 %v93
  %1459 = vmatprep.subr.mxu0 0.0
  %1460 = vmatpush1.msra.mxu0 %v94
  %1461 = vmatprep.subr.mxu0 0.0
  %1462 = vmatpush1.msra.mxu0 %v95
  %1463 = vmatprep.subr.mxu0 0.0
  %1464 = vmatpush1.msra.mxu0 %v96
  %1465 = vmatprep.subr.mxu0 0.0
  %1466 = vmatpush1.msra.mxu0 %v97
  %1467 = vmatprep.subr.mxu0 0.0
  %1468 = vmatpush1.msra.mxu0 %v98
  %1469 = vmatprep.subr.mxu0 0.0
  %1470 = vmatpush1.msra.mxu0 %v99
  %1471 = vmatprep.subr.mxu0 0.0
  %1472 = vmatpush1.msra.mxu0 %v100
  %1473 = vmatprep.subr.mxu0 0.0
  %1474 = vmatpush1.msra.mxu0 %v101
  %1475 = vmatprep.mubr.f32.mxu0 %v1289
  %1476 = vmatmul.mubr.f32.gmra.mrb[0].mxu0 %v1288
  %v1477 = vpop.f32.mrb[0].mxu0
  %v1478 = vadd.f32 %v1393, %v1477
  %v1479 = vpop.f32.mrb[0].mxu0
  %1480 = vmatprep.mubr.f32.mxu0 %v1296
  %1481 = vmatmul.mubr.f32.gmra.mrb[0].mxu0 %v1295
  %v1482 = vpop.f32.mrb[0].mxu0
  %v1483 = vadd.f32 %v1398, %v1482
  %v1484 = vpop.f32.mrb[0].mxu0
  %1485 = vmatprep.mubr.f32.mxu0 %v1303
  %1486 = vmatmul.mubr.f32.gmra.mrb[0].mxu0 %v1302
  %v1487 = vpop.f32.mrb[0].mxu0
  %v1488 = vadd.f32 %v1403, %v1487
  %v1489 = vpop.f32.mrb[0].mxu0
  %1490 = vmatprep.mubr.f32.mxu0 %v1310
  %1491 = vmatmul.mubr.f32.gmra.mrb[0].mxu0 %v1309
  %v1492 = vpop.f32.mrb[0].mxu0
  %v1493 = vadd.f32 %v1408, %v1492
  %v1494 = vpop.f32.mrb[0].mxu0
  %1495 = vdwg.mxu0
  %1496 = vmatprep.subr.mxu0 0.0
  %1497 = vmatpush1.msra.mxu0 %v102
  %1498 = vmatprep.subr.mxu0 0.0
  %1499 = vmatpush1.msra.mxu0 %v103
  %1500 = vmatprep.subr.mxu0 0.0
  %1501 = vmatpush1.msra.mxu0 %v104
  %1502 = vmatprep.subr.mxu0 0.0
  %1503 = vmatpush1.msra.mxu0 %v105
  %1504 = vmatprep.subr.mxu0 0.0
  %1505 = vmatpush1.msra.mxu0 %v106
  %1506 = vmatprep.subr.mxu0 0.0
  %1507 = vmatpush1.msra.mxu0 %v107
  %1508 = vmatprep.subr.mxu0 0.0
  %1509 = vmatpush1.msra.mxu0 %v108
  %1510 = vmatprep.subr.mxu0 0.0
  %1511 = vmatpush1.msra.mxu0 %v109
  %1512 = vmatprep.subr.mxu0 0.0
  %1513 = vmatpush1.msra.mxu0 %v110
  %1514 = vmatprep.subr.mxu0 0.0
  %1515 = vmatpush1.msra.mxu0 %v111
  %1516 = vmatprep.subr.mxu0 0.0
  %1517 = vmatpush1.msra.mxu0 %v112
  %1518 = vmatprep.subr.mxu0 0.0
  %1519 = vmatpush1.msra.mxu0 %v113
  %1520 = vmatprep.subr.mxu0 0.0
  %1521 = vmatpush1.msra.mxu0 %v114
  %1522 = vmatprep.subr.mxu0 0.0
  %1523 = vmatpush1.msra.mxu0 %v115
  %1524 = vmatprep.subr.mxu0 0.0
  %1525 = vmatpush1.msra.mxu0 %v116
  %1526 = vmatprep.subr.mxu0 0.0
  %1527 = vmatpush1.msra.mxu0 %v117
  %1528 = vmatprep.subr.mxu0 0.0
  %1529 = vmatpush1.msra.mxu0 %v118
  %1530 = vmatprep.subr.mxu0 0.0
  %1531 = vmatpush1.msra.mxu0 %v119
  %1532 = vmatprep.subr.mxu0 0.0
  %1533 = vmatpush1.msra.mxu0 %v120
  %1534 = vmatprep.subr.mxu0 0.0
  %1535 = vmatpush1.msra.mxu0 %v121
  %1536 = vmatprep.subr.mxu0 0.0
  %1537 = vmatpush1.msra.mxu0 %v122
  %1538 = vmatprep.subr.mxu0 0.0
  %1539 = vmatpush1.msra.mxu0 %v123
  %1540 = vmatprep.subr.mxu0 0.0
  %1541 = vmatpush1.msra.mxu0 %v124
  %1542 = vmatprep.subr.mxu0 0.0
  %1543 = vmatpush1.msra.mxu0 %v125
  %1544 = vmatprep.subr.mxu0 0.0
  %1545 = vmatpush1.msra.mxu0 %v126
  %1546 = vmatprep.subr.mxu0 0.0
  %1547 = vmatpush1.msra.mxu0 %v127
  %1548 = vmatprep.subr.mxu0 0.0
  %1549 = vmatpush1.msra.mxu0 %v128
  %1550 = vmatprep.subr.mxu0 0.0
  %1551 = vmatpush1.msra.mxu0 %v129
  %1552 = vmatprep.subr.mxu0 0.0
  %1553 = vmatpush1.msra.mxu0 %v130
  %1554 = vmatprep.subr.mxu0 0.0
  %1555 = vmatpush1.msra.mxu0 %v131
  %1556 = vmatprep.subr.mxu0 0.0
  %1557 = vmatpush1.msra.mxu0 %v132
  %1558 = vmatprep.subr.mxu0 0.0
  %1559 = vmatpush1.msra.mxu0 %v133
  %1560 = vmatprep.mubr.f32.mxu0 %v1291
  %1561 = vmatmul.mubr.f32.gmra.mrb[0].mxu0 %v1290
  %v1562 = vpop.f32.mrb[0].mxu0
  %v1563 = vadd.f32 %v1478, %v1562
  %v1564 = vpop.f32.mrb[0].mxu0
  %1565 = vmatprep.mubr.f32.mxu0 %v1298
  %1566 = vmatmul.mubr.f32.gmra.mrb[0].mxu0 %v1297
  %v1567 = vpop.f32.mrb[0].mxu0
  %v1568 = vadd.f32 %v1483, %v1567
  %v1569 = vpop.f32.mrb[0].mxu0
  %1570 = vmatprep.mubr.f32.mxu0 %v1305
  %1571 = vmatmul.mubr.f32.gmra.mrb[0].mxu0 %v1304
  %v1572 = vpop.f32.mrb[0].mxu0
  %v1573 = vadd.f32 %v1488, %v1572
  %v1574 = vpop.f32.mrb[0].mxu0
  %1575 = vmatprep.mubr.f32.mxu0 %v1312
  %1576 = vmatmul.mubr.f32.gmra.mrb[0].mxu0 %v1311
  %v1577 = vpop.f32.mrb[0].mxu0
  %v1578 = vadd.f32 %v1493, %v1577
  %v1579 = vpop.f32.mrb[0].mxu0
  %1580 = vdwg.mxu0
  %1581 = vmatprep.subr.mxu0 0.0
  %1582 = vmatpush1.msra.mxu0 %v134
  %1583 = vmatprep.subr.mxu0 0.0
  %1584 = vmatpush1.msra.mxu0 %v135
  %1585 = vmatprep.subr.mxu0 0.0
  %1586 = vmatpush1.msra.mxu0 %v136
  %1587 = vmatprep.subr.mxu0 0.0
  %1588 = vmatpush1.msra.mxu0 %v137
  %1589 = vmatprep.subr.mxu0 0.0
  %1590 = vmatpush1.msra.mxu0 0.0
  %1591 = vmatprep.subr.mxu0 0.0
  %1592 = vmatpush1.msra.mxu0 0.0
  %1593 = vmatprep.subr.mxu0 0.0
  %1594 = vmatpush1.msra.mxu0 0.0
  %1595 = vmatprep.subr.mxu0 0.0
  %1596 = vmatpush1.msra.mxu0 0.0
  %1597 = vmatprep.subr.mxu0 0.0
  %1598 = vmatpush1.msra.mxu0 0.0
  %1599 = vmatprep.subr.mxu0 0.0
  %1600 = vmatpush1.msra.mxu0 0.0
  %1601 = vmatprep.subr.mxu0 0.0
  %1602 = vmatpush1.msra.mxu0 0.0
  %1603 = vmatprep.subr.mxu0 0.0
  %1604 = vmatpush1.msra.mxu0 0.0
  %1605 = vmatprep.subr.mxu0 0.0
  %1606 = vmatpush1.msra.mxu0 0.0
  %1607 = vmatprep.subr.mxu0 0.0
  %1608 = vmatpush1.msra.mxu0 0.0
  %1609 = vmatprep.subr.mxu0 0.0
  %1610 = vmatpush1.msra.mxu0 0.0
  %1611 = vmatprep.subr.mxu0 0.0
  %1612 = vmatpush1.msra.mxu0 0.0
  %1613 = vmatprep.subr.mxu0 0.0
  %1614 = vmatpush1.msra.mxu0 0.0
  %1615 = vmatprep.subr.mxu0 0.0
  %1616 = vmatpush1.msra.mxu0 0.0
  %1617 = vmatprep.subr.mxu0 0.0
  %1618 = vmatpush1.msra.mxu0 0.0
  %1619 = vmatprep.subr.mxu0 0.0
  %1620 = vmatpush1.msra.mxu0 0.0
  %1621 = vmatprep.subr.mxu0 0.0
  %1622 = vmatpush1.msra.mxu0 0.0
  %1623 = vmatprep.subr.mxu0 0.0
  %1624 = vmatpush1.msra.mxu0 0.0
  %1625 = vmatprep.subr.mxu0 0.0
  %1626 = vmatpush1.msra.mxu0 0.0
  %1627 = vmatprep.subr.mxu0 0.0
  %1628 = vmatpush1.msra.mxu0 0.0
  %1629 = vmatprep.subr.mxu0 0.0
  %1630 = vmatpush1.msra.mxu0 0.0
  %1631 = vmatprep.subr.mxu0 0.0
  %1632 = vmatpush1.msra.mxu0 0.0
  %1633 = vmatprep.subr.mxu0 0.0
  %1634 = vmatpush1.msra.mxu0 0.0
  %1635 = vmatprep.subr.mxu0 0.0
  %1636 = vmatpush1.msra.mxu0 0.0
  %1637 = vmatprep.subr.mxu0 0.0
  %1638 = vmatpush1.msra.mxu0 0.0
  %1639 = vmatprep.subr.mxu0 0.0
  %1640 = vmatpush1.msra.mxu0 0.0
  %1641 = vmatprep.subr.mxu0 0.0
  %1642 = vmatpush1.msra.mxu0 0.0
  %1643 = vmatprep.subr.mxu0 0.0
  %1644 = vmatpush1.msra.mxu0 0.0
  %1645 = vmatprep.mubr.f32.mxu0 0.0
  %1646 = vmatmul.mubr.f32.gmra.mrb[0].mxu0 %v1315
  %v1647 = vpop.f32.mrb[0].mxu0
  %v1648 = vadd.f32 %v1563, %v1647
  %v1649 = vpop.f32.mrb[0].mxu0
  %1650 = vmatprep.mubr.f32.mxu0 0.0
  %1651 = vmatmul.mubr.f32.gmra.mrb[0].mxu0 %v1318
  %v1652 = vpop.f32.mrb[0].mxu0
  %v1653 = vadd.f32 %v1568, %v1652
  %v1654 = vpop.f32.mrb[0].mxu0
  %1655 = vmatprep.mubr.f32.mxu0 0.0
  %1656 = vmatmul.mubr.f32.gmra.mrb[0].mxu0 %v1321
  %v1657 = vpop.f32.mrb[0].mxu0
  %v1658 = vadd.f32 %v1573, %v1657
  %v1659 = vpop.f32.mrb[0].mxu0
  %1660 = vmatprep.mubr.f32.mxu0 0.0
  %1661 = vmatmul.mubr.f32.gmra.mrb[0].mxu0 %v1324
  %v1662 = vpop.f32.mrb[0].mxu0
  %v1663 = vadd.f32 %v1578, %v1662
  %v1664 = vpop.f32.mrb[0].mxu0
  %1665 = vdwg.mxu0
  %v1666 = vld [vmem:[%s9] sm:$0x3]
  %v1667 = vadd.f32 %v508, %v888
  %v1668 = vadd.f32 %v513, %v893
  %v1669 = vadd.f32 %v518, %v898
  %v1670 = vadd.f32 %v523, %v903
  %v1671 = vadd.f32 %v1667, %v1268
  %v1672 = vadd.f32 %v1668, %v1273
  %v1673 = vadd.f32 %v1669, %v1278
  %v1674 = vadd.f32 %v1670, %v1283
  %v1675 = vadd.f32 %v1671, %v1648
  %v1676 = vadd.f32 %v1672, %v1653
  %v1677 = vadd.f32 %v1673, %v1658
  %v1678 = vadd.f32 %v1674, %v1663
  %v1680 = vsel %vm173, %v1666, 0
  %1682 = vmatprep.subr.mxu0 0.0
  %1683 = vmatpush1.msra.mxu0 %v1675
  %1684 = vmatprep.subr.mxu0 0.0
  %1685 = vmatpush1.msra.mxu0 %v1676
  %1686 = vmatprep.subr.mxu0 0.0
  %1687 = vmatpush1.msra.mxu0 %v1677
  %1688 = vmatprep.subr.mxu0 0.0
  %1689 = vmatpush1.msra.mxu0 %v1678
  %1690 = vmatprep.subr.mxu0 0.0
  %1691 = vmatpush1.msra.mxu0 0.0
  %1692 = vmatprep.subr.mxu0 0.0
  %1693 = vmatpush1.msra.mxu0 0.0
  %1694 = vmatprep.subr.mxu0 0.0
  %1695 = vmatpush1.msra.mxu0 0.0
  %1696 = vmatprep.subr.mxu0 0.0
  %1697 = vmatpush1.msra.mxu0 0.0
  %1698 = vmatprep.subr.mxu0 0.0
  %1699 = vmatpush1.msra.mxu0 0.0
  %1700 = vmatprep.subr.mxu0 0.0
  %1701 = vmatpush1.msra.mxu0 0.0
  %1702 = vmatprep.subr.mxu0 0.0
  %1703 = vmatpush1.msra.mxu0 0.0
  %1704 = vmatprep.subr.mxu0 0.0
  %1705 = vmatpush1.msra.mxu0 0.0
  %1706 = vmatprep.subr.mxu0 0.0
  %1707 = vmatpush1.msra.mxu0 0.0
  %1708 = vmatprep.subr.mxu0 0.0
  %1709 = vmatpush1.msra.mxu0 0.0
  %1710 = vmatprep.subr.mxu0 0.0
  %1711 = vmatpush1.msra.mxu0 0.0
  %1712 = vmatprep.subr.mxu0 0.0
  %1713 = vmatpush1.msra.mxu0 0.0
  %1714 = vmatprep.subr.mxu0 0.0
  %1715 = vmatpush1.msra.mxu0 0.0
  %1716 = vmatprep.subr.mxu0 0.0
  %1717 = vmatpush1.msra.mxu0 0.0
  %1718 = vmatprep.subr.mxu0 0.0
  %1719 = vmatpush1.msra.mxu0 0.0
  %1720 = vmatprep.subr.mxu0 0.0
  %1721 = vmatpush1.msra.mxu0 0.0
  %1722 = vmatprep.subr.mxu0 0.0
  %1723 = vmatpush1.msra.mxu0 0.0
  %1724 = vmatprep.subr.mxu0 0.0
  %1725 = vmatpush1.msra.mxu0 0.0
  %1726 = vmatprep.subr.mxu0 0.0
  %1727 = vmatpush1.msra.mxu0 0.0
  %1728 = vmatprep.subr.mxu0 0.0
  %1729 = vmatpush1.msra.mxu0 0.0
  %1730 = vmatprep.subr.mxu0 0.0
  %1731 = vmatpush1.msra.mxu0 0.0
  %1732 = vmatprep.subr.mxu0 0.0
  %1733 = vmatpush1.msra.mxu0 0.0
  %1734 = vmatprep.subr.mxu0 0.0
  %1735 = vmatpush1.msra.mxu0 0.0
  %1736 = vmatprep.subr.mxu0 0.0
  %1737 = vmatpush1.msra.mxu0 0.0
  %1738 = vmatprep.subr.mxu0 0.0
  %1739 = vmatpush1.msra.mxu0 0.0
  %1740 = vmatprep.subr.mxu0 0.0
  %1741 = vmatpush1.msra.mxu0 0.0
  %1742 = vmatprep.subr.mxu0 0.0
  %1743 = vmatpush1.msra.mxu0 0.0
  %1744 = vmatprep.subr.mxu0 0.0
  %1745 = vmatpush1.msra.mxu0 0.0
  %1746 = vmatprep.mubr.f32.mxu0 0.0
  %1747 = vmatmul.mubr.f32.gmra.mrb[0].mxu0 %v1680
  %v1748 = vpop.f32.mrb[0].mxu0
  %v1749 = vadd.f32 0.0, %v1748
  %v1750 = vpop.f32.mrb[0].mxu0
  %1751 = vdwg.mxu0
  %v1752 = vmul.f32 %v508, %v508
  %v1753 = vmul.f32 %v513, %v513
  %v1754 = vmul.f32 %v518, %v518
  %v1755 = vmul.f32 %v523, %v523
  %v1756 = vmul.f32 %v888, %v888
  %v1757 = vmul.f32 %v893, %v893
  %v1758 = vmul.f32 %v898, %v898
  %v1759 = vmul.f32 %v903, %v903
  %v1760 = vadd.f32 %v1752, %v1756
  %v1761 = vadd.f32 %v1753, %v1757
  %v1762 = vadd.f32 %v1754, %v1758
  %v1763 = vadd.f32 %v1755, %v1759
  %v1764 = vmul.f32 %v1268, %v1268
  %v1765 = vmul.f32 %v1273, %v1273
  %v1766 = vmul.f32 %v1278, %v1278
  %v1767 = vmul.f32 %v1283, %v1283
  %v1768 = vadd.f32 %v1760, %v1764
  %v1769 = vadd.f32 %v1761, %v1765
  %v1770 = vadd.f32 %v1762, %v1766
  %v1771 = vadd.f32 %v1763, %v1767
  %v1772 = vmul.f32 %v1648, %v1648
  %v1773 = vmul.f32 %v1653, %v1653
  %v1774 = vmul.f32 %v1658, %v1658
  %v1775 = vmul.f32 %v1663, %v1663
  %v1776 = vadd.f32 %v1768, %v1772
  %v1777 = vadd.f32 %v1769, %v1773
  %v1778 = vadd.f32 %v1770, %v1774
  %v1779 = vadd.f32 %v1771, %v1775
  %1780 = vmatprep.subr.mxu0 0.0
  %1781 = vmatpush1.msra.mxu0 %v1776
  %1782 = vmatprep.subr.mxu0 0.0
  %1783 = vmatpush1.msra.mxu0 %v1777
  %1784 = vmatprep.subr.mxu0 0.0
  %1785 = vmatpush1.msra.mxu0 %v1778
  %1786 = vmatprep.subr.mxu0 0.0
  %1787 = vmatpush1.msra.mxu0 %v1779
  %1788 = vmatprep.subr.mxu0 0.0
  %1789 = vmatpush1.msra.mxu0 0.0
  %1790 = vmatprep.subr.mxu0 0.0
  %1791 = vmatpush1.msra.mxu0 0.0
  %1792 = vmatprep.subr.mxu0 0.0
  %1793 = vmatpush1.msra.mxu0 0.0
  %1794 = vmatprep.subr.mxu0 0.0
  %1795 = vmatpush1.msra.mxu0 0.0
  %1796 = vmatprep.subr.mxu0 0.0
  %1797 = vmatpush1.msra.mxu0 0.0
  %1798 = vmatprep.subr.mxu0 0.0
  %1799 = vmatpush1.msra.mxu0 0.0
  %1800 = vmatprep.subr.mxu0 0.0
  %1801 = vmatpush1.msra.mxu0 0.0
  %1802 = vmatprep.subr.mxu0 0.0
  %1803 = vmatpush1.msra.mxu0 0.0
  %1804 = vmatprep.subr.mxu0 0.0
  %1805 = vmatpush1.msra.mxu0 0.0
  %1806 = vmatprep.subr.mxu0 0.0
  %1807 = vmatpush1.msra.mxu0 0.0
  %1808 = vmatprep.subr.mxu0 0.0
  %1809 = vmatpush1.msra.mxu0 0.0
  %1810 = vmatprep.subr.mxu0 0.0
  %1811 = vmatpush1.msra.mxu0 0.0
  %1812 = vmatprep.subr.mxu0 0.0
  %1813 = vmatpush1.msra.mxu0 0.0
  %1814 = vmatprep.subr.mxu0 0.0
  %1815 = vmatpush1.msra.mxu0 0.0
  %1816 = vmatprep.subr.mxu0 0.0
  %1817 = vmatpush1.msra.mxu0 0.0
  %1818 = vmatprep.subr.mxu0 0.0
  %1819 = vmatpush1.msra.mxu0 0.0
  %1820 = vmatprep.subr.mxu0 0.0
  %1821 = vmatpush1.msra.mxu0 0.0
  %1822 = vmatprep.subr.mxu0 0.0
  %1823 = vmatpush1.msra.mxu0 0.0
  %1824 = vmatprep.subr.mxu0 0.0
  %1825 = vmatpush1.msra.mxu0 0.0
  %1826 = vmatprep.subr.mxu0 0.0
  %1827 = vmatpush1.msra.mxu0 0.0
  %1828 = vmatprep.subr.mxu0 0.0
  %1829 = vmatpush1.msra.mxu0 0.0
  %1830 = vmatprep.subr.mxu0 0.0
  %1831 = vmatpush1.msra.mxu0 0.0
  %1832 = vmatprep.subr.mxu0 0.0
  %1833 = vmatpush1.msra.mxu0 0.0
  %1834 = vmatprep.subr.mxu0 0.0
  %1835 = vmatpush1.msra.mxu0 0.0
  %1836 = vmatprep.subr.mxu0 0.0
  %1837 = vmatpush1.msra.mxu0 0.0
  %1838 = vmatprep.subr.mxu0 0.0
  %1839 = vmatpush1.msra.mxu0 0.0
  %1840 = vmatprep.subr.mxu0 0.0
  %1841 = vmatpush1.msra.mxu0 0.0
  %1842 = vmatprep.subr.mxu0 0.0
  %1843 = vmatpush1.msra.mxu0 0.0
  %1844 = vmatprep.mubr.f32.mxu0 0.0
  %1845 = vmatmul.mubr.f32.gmra.mrb[0].mxu0 %v1680
  %v1846 = vpop.f32.mrb[0].mxu0
  %v1847 = vadd.f32 0.0, %v1846
  %v1848 = vpop.f32.mrb[0].mxu0
  %1849 = vdwg.mxu0
  %v1850 = vld [vmem:[%s8] sm:$0xff]
  %v1851 = vld [vmem:[%s8 + $0x8] sm:$0xff]
  %v1852 = vld [vmem:[%s8 + $0x10] sm:$0xff]
  %v1853 = vld [vmem:[%s8 + $0x18] sm:$0xff]
  %v1854 = vld [vmem:[%s8 + $0x20] sm:$0xff]
  %v1855 = vld [vmem:[%s8 + $0x28] sm:$0xff]
  %v1856 = vld [vmem:[%s8 + $0x30] sm:$0xff]
  %v1857 = vld [vmem:[%s8 + $0x38] sm:$0xff]
  %vm1858 = vcmask 523264
  %v1860 = vsel %vm1858, %v1749, 0
  %1862 = vmatprep.subr.mxu0 0.0
  %1863 = vmatpush1.msra.mxu0 %v1850
  %1864 = vmatprep.subr.mxu0 0.0
  %1865 = vmatpush1.msra.mxu0 %v1851
  %1866 = vmatprep.subr.mxu0 0.0
  %1867 = vmatpush1.msra.mxu0 %v1852
  %1868 = vmatprep.subr.mxu0 0.0
  %1869 = vmatpush1.msra.mxu0 %v1853
  %1870 = vmatprep.subr.mxu0 0.0
  %1871 = vmatpush1.msra.mxu0 %v1854
  %1872 = vmatprep.subr.mxu0 0.0
  %1873 = vmatpush1.msra.mxu0 %v1855
  %1874 = vmatprep.subr.mxu0 0.0
  %1875 = vmatpush1.msra.mxu0 %v1856
  %1876 = vmatprep.subr.mxu0 0.0
  %1877 = vmatpush1.msra.mxu0 %v1857
  %1878 = vmatprep.subr.mxu0 0.0
  %1879 = vmatpush1.msra.mxu0 0.0
  %1880 = vmatprep.subr.mxu0 0.0
  %1881 = vmatpush1.msra.mxu0 0.0
  %1882 = vmatprep.subr.mxu0 0.0
  %1883 = vmatpush1.msra.mxu0 0.0
  %1884 = vmatprep.subr.mxu0 0.0
  %1885 = vmatpush1.msra.mxu0 0.0
  %1886 = vmatprep.subr.mxu0 0.0
  %1887 = vmatpush1.msra.mxu0 0.0
  %1888 = vmatprep.subr.mxu0 0.0
  %1889 = vmatpush1.msra.mxu0 0.0
  %1890 = vmatprep.subr.mxu0 0.0
  %1891 = vmatpush1.msra.mxu0 0.0
  %1892 = vmatprep.subr.mxu0 0.0
  %1893 = vmatpush1.msra.mxu0 0.0
  %1894 = vmatprep.subr.mxu0 0.0
  %1895 = vmatpush1.msra.mxu0 0.0
  %1896 = vmatprep.subr.mxu0 0.0
  %1897 = vmatpush1.msra.mxu0 0.0
  %1898 = vmatprep.subr.mxu0 0.0
  %1899 = vmatpush1.msra.mxu0 0.0
  %1900 = vmatprep.subr.mxu0 0.0
  %1901 = vmatpush1.msra.mxu0 0.0
  %1902 = vmatprep.subr.mxu0 0.0
  %1903 = vmatpush1.msra.mxu0 0.0
  %1904 = vmatprep.subr.mxu0 0.0
  %1905 = vmatpush1.msra.mxu0 0.0
  %1906 = vmatprep.subr.mxu0 0.0
  %1907 = vmatpush1.msra.mxu0 0.0
  %1908 = vmatprep.subr.mxu0 0.0
  %1909 = vmatpush1.msra.mxu0 0.0
  %1910 = vmatprep.subr.mxu0 0.0
  %1911 = vmatpush1.msra.mxu0 0.0
  %1912 = vmatprep.subr.mxu0 0.0
  %1913 = vmatpush1.msra.mxu0 0.0
  %1914 = vmatprep.subr.mxu0 0.0
  %1915 = vmatpush1.msra.mxu0 0.0
  %1916 = vmatprep.subr.mxu0 0.0
  %1917 = vmatpush1.msra.mxu0 0.0
  %1918 = vmatprep.subr.mxu0 0.0
  %1919 = vmatpush1.msra.mxu0 0.0
  %1920 = vmatprep.subr.mxu0 0.0
  %1921 = vmatpush1.msra.mxu0 0.0
  %1922 = vmatprep.subr.mxu0 0.0
  %1923 = vmatpush1.msra.mxu0 0.0
  %1924 = vmatprep.subr.mxu0 0.0
  %1925 = vmatpush1.msra.mxu0 0.0
  %1926 = vmatprep.mubr.f32.mxu0 0.0
  %1927 = vmatmul.mubr.f32.gmra.mrb[0].mxu0 %v1860
  %v1928 = vpop.f32.mrb[0].mxu0
  %v1929 = vadd.f32 0.0, %v1928
  %v1930 = vpop.f32.mrb[0].mxu0
  %1931 = vdwg.mxu0
  %v1933 = vsel %vm1858, %v1847, 0
  %1935 = vmatprep.subr.mxu0 0.0
  %1936 = vmatpush1.msra.mxu0 %v1850
  %1937 = vmatprep.subr.mxu0 0.0
  %1938 = vmatpush1.msra.mxu0 %v1851
  %1939 = vmatprep.subr.mxu0 0.0
  %1940 = vmatpush1.msra.mxu0 %v1852
  %1941 = vmatprep.subr.mxu0 0.0
  %1942 = vmatpush1.msra.mxu0 %v1853
  %1943 = vmatprep.subr.mxu0 0.0
  %1944 = vmatpush1.msra.mxu0 %v1854
  %1945 = vmatprep.subr.mxu0 0.0
  %1946 = vmatpush1.msra.mxu0 %v1855
  %1947 = vmatprep.subr.mxu0 0.0
  %1948 = vmatpush1.msra.mxu0 %v1856
  %1949 = vmatprep.subr.mxu0 0.0
  %1950 = vmatpush1.msra.mxu0 %v1857
  %1951 = vmatprep.subr.mxu0 0.0
  %1952 = vmatpush1.msra.mxu0 0.0
  %1953 = vmatprep.subr.mxu0 0.0
  %1954 = vmatpush1.msra.mxu0 0.0
  %1955 = vmatprep.subr.mxu0 0.0
  %1956 = vmatpush1.msra.mxu0 0.0
  %1957 = vmatprep.subr.mxu0 0.0
  %1958 = vmatpush1.msra.mxu0 0.0
  %1959 = vmatprep.subr.mxu0 0.0
  %1960 = vmatpush1.msra.mxu0 0.0
  %1961 = vmatprep.subr.mxu0 0.0
  %1962 = vmatpush1.msra.mxu0 0.0
  %1963 = vmatprep.subr.mxu0 0.0
  %1964 = vmatpush1.msra.mxu0 0.0
  %1965 = vmatprep.subr.mxu0 0.0
  %1966 = vmatpush1.msra.mxu0 0.0
  %1967 = vmatprep.subr.mxu0 0.0
  %1968 = vmatpush1.msra.mxu0 0.0
  %1969 = vmatprep.subr.mxu0 0.0
  %1970 = vmatpush1.msra.mxu0 0.0
  %1971 = vmatprep.subr.mxu0 0.0
  %1972 = vmatpush1.msra.mxu0 0.0
  %1973 = vmatprep.subr.mxu0 0.0
  %1974 = vmatpush1.msra.mxu0 0.0
  %1975 = vmatprep.subr.mxu0 0.0
  %1976 = vmatpush1.msra.mxu0 0.0
  %1977 = vmatprep.subr.mxu0 0.0
  %1978 = vmatpush1.msra.mxu0 0.0
  %1979 = vmatprep.subr.mxu0 0.0
  %1980 = vmatpush1.msra.mxu0 0.0
  %1981 = vmatprep.subr.mxu0 0.0
  %1982 = vmatpush1.msra.mxu0 0.0
  %1983 = vmatprep.subr.mxu0 0.0
  %1984 = vmatpush1.msra.mxu0 0.0
  %1985 = vmatprep.subr.mxu0 0.0
  %1986 = vmatpush1.msra.mxu0 0.0
  %1987 = vmatprep.subr.mxu0 0.0
  %1988 = vmatpush1.msra.mxu0 0.0
  %1989 = vmatprep.subr.mxu0 0.0
  %1990 = vmatpush1.msra.mxu0 0.0
  %1991 = vmatprep.subr.mxu0 0.0
  %1992 = vmatpush1.msra.mxu0 0.0
  %1993 = vmatprep.subr.mxu0 0.0
  %1994 = vmatpush1.msra.mxu0 0.0
  %1995 = vmatprep.subr.mxu0 0.0
  %1996 = vmatpush1.msra.mxu0 0.0
  %1997 = vmatprep.subr.mxu0 0.0
  %1998 = vmatpush1.msra.mxu0 0.0
  %1999 = vmatprep.mubr.f32.mxu0 0.0
  %2000 = vmatmul.mubr.f32.gmra.mrb[0].mxu0 %v1933
  %v2001 = vpop.f32.mrb[0].mxu0
  %v2002 = vadd.f32 0.0, %v2001
  %v2003 = vpop.f32.mrb[0].mxu0
  %2004 = vdwg.mxu0
  %v2005 = vmul.f32 %v1929, 0.001953125
  %v2006 = vmul.f32 %v2002, 0.001953125
  %v2007 = vmul.f32 %v2005, %v2005
  %v2008 = vsub.f32 %v2006, %v2007
  %v2009 = vadd.f32 %v2008, 1e-05
  %v2010 = vrsqrt.pop %v2009
  %v2011 = vld [vmem:[%s6] sm:$0x1]
  %v2013 = vlaneseq
  %v2014 = vshrl.u32 %v2013, 7
  %v2015 = vsub.s32 0, %v2014
  %v2016 = vrot.slane %v2011, %v2015
  %v2018 = vmul.f32 %v2010, %v2016
  %v2019 = vld [vmem:[%s7] sm:$0x1]
  %v2020 = vmul.f32 %v2005, %v2018
  %v2022 = vlaneseq
  %v2023 = vshrl.u32 %v2022, 7
  %v2024 = vsub.s32 0, %v2023
  %v2025 = vrot.slane %v2019, %v2024
  %v2027 = vsub.f32 %v2025, %v2020
  %v2028 = vld [vmem:[%s10] sm:$0xff]
  %v2029 = vld [vmem:[%s10 + $0x8] sm:$0xff]
  %v2030 = vld [vmem:[%s10 + $0x10] sm:$0xff]
  %v2031 = vld [vmem:[%s10 + $0x18] sm:$0xff]
  %vm2032 = vcmask 15360
  %v2034 = vsel %vm2032, %v2028, 0
  %v2037 = vsel %vm2032, %v2029, 0
  %v2040 = vsel %vm2032, %v2030, 0
  %v2043 = vsel %vm2032, %v2031, 0
  %vm2045 = vcmask 1041408
  %v2047 = vsel %vm2045, %v2018, 0
  %2049 = vmatprep.subr.mxu0 0.0
  %2050 = vmatpush1.msra.mxu0 %v2047
  %2051 = vmatprep.subr.mxu0 0.0
  %2052 = vmatpush1.msra.mxu0 0.0
  %2053 = vmatprep.subr.mxu0 0.0
  %2054 = vmatpush1.msra.mxu0 0.0
  %2055 = vmatprep.subr.mxu0 0.0
  %2056 = vmatpush1.msra.mxu0 0.0
  %2057 = vmatprep.subr.mxu0 0.0
  %2058 = vmatpush1.msra.mxu0 0.0
  %2059 = vmatprep.subr.mxu0 0.0
  %2060 = vmatpush1.msra.mxu0 0.0
  %2061 = vmatprep.subr.mxu0 0.0
  %2062 = vmatpush1.msra.mxu0 0.0
  %2063 = vmatprep.subr.mxu0 0.0
  %2064 = vmatpush1.msra.mxu0 0.0
  %2065 = vmatprep.subr.mxu0 0.0
  %2066 = vmatpush1.msra.mxu0 0.0
  %2067 = vmatprep.subr.mxu0 0.0
  %2068 = vmatpush1.msra.mxu0 0.0
  %2069 = vmatprep.subr.mxu0 0.0
  %2070 = vmatpush1.msra.mxu0 0.0
  %2071 = vmatprep.subr.mxu0 0.0
  %2072 = vmatpush1.msra.mxu0 0.0
  %2073 = vmatprep.subr.mxu0 0.0
  %2074 = vmatpush1.msra.mxu0 0.0
  %2075 = vmatprep.subr.mxu0 0.0
  %2076 = vmatpush1.msra.mxu0 0.0
  %2077 = vmatprep.subr.mxu0 0.0
  %2078 = vmatpush1.msra.mxu0 0.0
  %2079 = vmatprep.subr.mxu0 0.0
  %2080 = vmatpush1.msra.mxu0 0.0
  %2081 = vmatprep.subr.mxu0 0.0
  %2082 = vmatpush1.msra.mxu0 0.0
  %2083 = vmatprep.subr.mxu0 0.0
  %2084 = vmatpush1.msra.mxu0 0.0
  %2085 = vmatprep.subr.mxu0 0.0
  %2086 = vmatpush1.msra.mxu0 0.0
  %2087 = vmatprep.subr.mxu0 0.0
  %2088 = vmatpush1.msra.mxu0 0.0
  %2089 = vmatprep.subr.mxu0 0.0
  %2090 = vmatpush1.msra.mxu0 0.0
  %2091 = vmatprep.subr.mxu0 0.0
  %2092 = vmatpush1.msra.mxu0 0.0
  %2093 = vmatprep.subr.mxu0 0.0
  %2094 = vmatpush1.msra.mxu0 0.0
  %2095 = vmatprep.subr.mxu0 0.0
  %2096 = vmatpush1.msra.mxu0 0.0
  %2097 = vmatprep.subr.mxu0 0.0
  %2098 = vmatpush1.msra.mxu0 0.0
  %2099 = vmatprep.subr.mxu0 0.0
  %2100 = vmatpush1.msra.mxu0 0.0
  %2101 = vmatprep.subr.mxu0 0.0
  %2102 = vmatpush1.msra.mxu0 0.0
  %2103 = vmatprep.subr.mxu0 0.0
  %2104 = vmatpush1.msra.mxu0 0.0
  %2105 = vmatprep.subr.mxu0 0.0
  %2106 = vmatpush1.msra.mxu0 0.0
  %2107 = vmatprep.subr.mxu0 0.0
  %2108 = vmatpush1.msra.mxu0 0.0
  %2109 = vmatprep.subr.mxu0 0.0
  %2110 = vmatpush1.msra.mxu0 0.0
  %2111 = vmatprep.subr.mxu0 0.0
  %2112 = vmatpush1.msra.mxu0 0.0
  %2113 = vmatprep.mubr.f32.mxu0 0.0
  %2114 = vmatmul.mubr.f32.gmra.mrb[0].mxu0 %v2034
  %v2115 = vpop.f32.mrb[0].mxu0
  %v2116 = vadd.f32 0.0, %v2115
  %v2117 = vpop.f32.mrb[0].mxu0
  %2118 = vmatprep.mubr.f32.mxu0 0.0
  %2119 = vmatmul.mubr.f32.gmra.mrb[0].mxu0 %v2037
  %v2120 = vpop.f32.mrb[0].mxu0
  %v2121 = vadd.f32 0.0, %v2120
  %v2122 = vpop.f32.mrb[0].mxu0
  %2123 = vmatprep.mubr.f32.mxu0 0.0
  %2124 = vmatmul.mubr.f32.gmra.mrb[0].mxu0 %v2040
  %v2125 = vpop.f32.mrb[0].mxu0
  %v2126 = vadd.f32 0.0, %v2125
  %v2127 = vpop.f32.mrb[0].mxu0
  %2128 = vmatprep.mubr.f32.mxu0 0.0
  %2129 = vmatmul.mubr.f32.gmra.mrb[0].mxu0 %v2043
  %v2130 = vpop.f32.mrb[0].mxu0
  %v2131 = vadd.f32 0.0, %v2130
  %v2132 = vpop.f32.mrb[0].mxu0
  %2133 = vdwg.mxu0
  %v2135 = vsel %vm2045, %v2027, 0
  %2137 = vmatprep.subr.mxu0 0.0
  %2138 = vmatpush1.msra.mxu0 %v2135
  %2139 = vmatprep.subr.mxu0 0.0
  %2140 = vmatpush1.msra.mxu0 0.0
  %2141 = vmatprep.subr.mxu0 0.0
  %2142 = vmatpush1.msra.mxu0 0.0
  %2143 = vmatprep.subr.mxu0 0.0
  %2144 = vmatpush1.msra.mxu0 0.0
  %2145 = vmatprep.subr.mxu0 0.0
  %2146 = vmatpush1.msra.mxu0 0.0
  %2147 = vmatprep.subr.mxu0 0.0
  %2148 = vmatpush1.msra.mxu0 0.0
  %2149 = vmatprep.subr.mxu0 0.0
  %2150 = vmatpush1.msra.mxu0 0.0
  %2151 = vmatprep.subr.mxu0 0.0
  %2152 = vmatpush1.msra.mxu0 0.0
  %2153 = vmatprep.subr.mxu0 0.0
  %2154 = vmatpush1.msra.mxu0 0.0
  %2155 = vmatprep.subr.mxu0 0.0
  %2156 = vmatpush1.msra.mxu0 0.0
  %2157 = vmatprep.subr.mxu0 0.0
  %2158 = vmatpush1.msra.mxu0 0.0
  %2159 = vmatprep.subr.mxu0 0.0
  %2160 = vmatpush1.msra.mxu0 0.0
  %2161 = vmatprep.subr.mxu0 0.0
  %2162 = vmatpush1.msra.mxu0 0.0
  %2163 = vmatprep.subr.mxu0 0.0
  %2164 = vmatpush1.msra.mxu0 0.0
  %2165 = vmatprep.subr.mxu0 0.0
  %2166 = vmatpush1.msra.mxu0 0.0
  %2167 = vmatprep.subr.mxu0 0.0
  %2168 = vmatpush1.msra.mxu0 0.0
  %2169 = vmatprep.subr.mxu0 0.0
  %2170 = vmatpush1.msra.mxu0 0.0
  %2171 = vmatprep.subr.mxu0 0.0
  %2172 = vmatpush1.msra.mxu0 0.0
  %2173 = vmatprep.subr.mxu0 0.0
  %2174 = vmatpush1.msra.mxu0 0.0
  %2175 = vmatprep.subr.mxu0 0.0
  %2176 = vmatpush1.msra.mxu0 0.0
  %2177 = vmatprep.subr.mxu0 0.0
  %2178 = vmatpush1.msra.mxu0 0.0
  %2179 = vmatprep.subr.mxu0 0.0
  %2180 = vmatpush1.msra.mxu0 0.0
  %2181 = vmatprep.subr.mxu0 0.0
  %2182 = vmatpush1.msra.mxu0 0.0
  %2183 = vmatprep.subr.mxu0 0.0
  %2184 = vmatpush1.msra.mxu0 0.0
  %2185 = vmatprep.subr.mxu0 0.0
  %2186 = vmatpush1.msra.mxu0 0.0
  %2187 = vmatprep.subr.mxu0 0.0
  %2188 = vmatpush1.msra.mxu0 0.0
  %2189 = vmatprep.subr.mxu0 0.0
  %2190 = vmatpush1.msra.mxu0 0.0
  %2191 = vmatprep.subr.mxu0 0.0
  %2192 = vmatpush1.msra.mxu0 0.0
  %2193 = vmatprep.subr.mxu0 0.0
  %2194 = vmatpush1.msra.mxu0 0.0
  %2195 = vmatprep.subr.mxu0 0.0
  %2196 = vmatpush1.msra.mxu0 0.0
  %2197 = vmatprep.subr.mxu0 0.0
  %2198 = vmatpush1.msra.mxu0 0.0
  %2199 = vmatprep.subr.mxu0 0.0
  %2200 = vmatpush1.msra.mxu0 0.0
  %2201 = vmatprep.mubr.f32.mxu0 0.0
  %2202 = vmatmul.mubr.f32.gmra.mrb[0].mxu0 %v2034
  %v2203 = vpop.f32.mrb[0].mxu0
  %v2204 = vadd.f32 0.0, %v2203
  %v2205 = vpop.f32.mrb[0].mxu0
  %2206 = vmatprep.mubr.f32.mxu0 0.0
  %2207 = vmatmul.mubr.f32.gmra.mrb[0].mxu0 %v2037
  %v2208 = vpop.f32.mrb[0].mxu0
  %v2209 = vadd.f32 0.0, %v2208
  %v2210 = vpop.f32.mrb[0].mxu0
  %2211 = vmatprep.mubr.f32.mxu0 0.0
  %2212 = vmatmul.mubr.f32.gmra.mrb[0].mxu0 %v2040
  %v2213 = vpop.f32.mrb[0].mxu0
  %v2214 = vadd.f32 0.0, %v2213
  %v2215 = vpop.f32.mrb[0].mxu0
  %2216 = vmatprep.mubr.f32.mxu0 0.0
  %2217 = vmatmul.mubr.f32.gmra.mrb[0].mxu0 %v2043
  %v2218 = vpop.f32.mrb[0].mxu0
  %v2219 = vadd.f32 0.0, %v2218
  %v2220 = vpop.f32.mrb[0].mxu0
  %2221 = vdwg.mxu0
  %v2222 = vmul.f32 %v508, %v2116
  %v2223 = vmul.f32 %v513, %v2121
  %v2224 = vmul.f32 %v518, %v2126
  %v2225 = vmul.f32 %v523, %v2131
  %v2226 = vadd.f32 %v2222, %v2204
  %v2227 = vadd.f32 %v2223, %v2209
  %v2228 = vadd.f32 %v2224, %v2214
  %v2229 = vadd.f32 %v2225, %v2219
  %v2230 = vmul.f32 %v888, %v2116
  %v2231 = vmul.f32 %v893, %v2121
  %v2232 = vmul.f32 %v898, %v2126
  %v2233 = vmul.f32 %v903, %v2131
  %v2234 = vadd.f32 %v2230, %v2204
  %v2235 = vadd.f32 %v2231, %v2209
  %v2236 = vadd.f32 %v2232, %v2214
  %v2237 = vadd.f32 %v2233, %v2219
  %v2238 = vmax.f32 %v2226, %v2234
  %v2239 = vmax.f32 %v2227, %v2235
  %v2240 = vmax.f32 %v2228, %v2236
  %v2241 = vmax.f32 %v2229, %v2237
  %v2242 = vmul.f32 %v1268, %v2116
  %v2243 = vmul.f32 %v1273, %v2121
  %v2244 = vmul.f32 %v1278, %v2126
  %v2245 = vmul.f32 %v1283, %v2131
  %v2246 = vadd.f32 %v2242, %v2204
  %v2247 = vadd.f32 %v2243, %v2209
  %v2248 = vadd.f32 %v2244, %v2214
  %v2249 = vadd.f32 %v2245, %v2219
  %v2250 = vmul.f32 %v1648, %v2116
  %v2251 = vmul.f32 %v1653, %v2121
  %v2252 = vmul.f32 %v1658, %v2126
  %v2253 = vmul.f32 %v1663, %v2131
  %v2254 = vadd.f32 %v2250, %v2204
  %v2255 = vadd.f32 %v2251, %v2209
  %v2256 = vadd.f32 %v2252, %v2214
  %v2257 = vadd.f32 %v2253, %v2219
  %v2258 = vmax.f32 %v2246, %v2254
  %v2259 = vmax.f32 %v2247, %v2255
  %v2260 = vmax.f32 %v2248, %v2256
  %v2261 = vmax.f32 %v2249, %v2257
  %v2262 = vmax.f32 %v2238, %v2258
  %v2263 = vmax.f32 %v2239, %v2259
  %v2264 = vmax.f32 %v2240, %v2260
  %v2265 = vmax.f32 %v2241, %v2261
  %v2266 = vmax.f32 %v2262, 0.0
  %v2267 = vmax.f32 %v2263, 0.0
  %v2268 = vmax.f32 %v2264, 0.0
  %v2269 = vmax.f32 %v2265, 0.0
  %2270 = vst.msk [vmem:[%s11] sm:$0xff] %vm1858, %v2266
  %2271 = vst.msk [vmem:[%s11 + $0x8] sm:$0xff] %vm1858, %v2267
  %2272 = vst.msk [vmem:[%s11 + $0x10] sm:$0xff] %vm1858, %v2268
  %2273 = vst.msk [vmem:[%s11 + $0x18] sm:$0xff] %vm1858, %v2269
  // Predicated region
  $region46: #{fedavg_cnn_forward.4} parent=0 // pred_check
    _
  $region47: #{fedavg_cnn_forward.4} parent=0 // pred_check_branch
    %2275 = sbr.rel (0) target = $region49
  $region48: #{fedavg_cnn_forward.4} parent=0 // pred_region
    _
  $region49: #{fedavg_cnn_forward.4} parent=0 // pred_fallthru
    _
  // Predicated region
  $region50: #{fedavg_cnn_forward.4} parent=0 // pred_check
    _
  $region51: #{fedavg_cnn_forward.4} parent=0 // pred_check_branch
    %2277 = sbr.rel (0) target = $region53
  $region52: #{fedavg_cnn_forward.4} parent=0 // pred_region
    _
  $region53: #{fedavg_cnn_forward.4} parent=0 // pred_fallthru
    _

// kernel: fedavg_cnn_forward.5
$region0: #{fedavg_cnn_forward.5}
  #allocation0 [shape = 'u32[]', space=smem, size = 0x4, offset = 0x4, fixed_abs, tag = 'smem constant byte address 0x4 - core index']
  #allocation1 [shape = 'u32[144,128]{1,0:T(1,128)}', space=vmem, size = 0x12000, scoped, tag = 'internal scratch']
  %s0 = inlined_call_operand.vmem [shape: f32[8,1024], index: 0, kind: input, shape index: {}]
  %s1 = inlined_call_operand.vmem [shape: f32[1024,512], index: 1, kind: input, shape index: {}]
  %s2 = inlined_call_operand.vmem [shape: f32[1,512], index: 2, kind: input, shape index: {}]
  %s3 = inlined_call_operand.vmem [shape: f32[512,128], index: 3, kind: input, shape index: {}]
  %s4 = inlined_call_operand.vmem [shape: f32[1,128], index: 4, kind: input, shape index: {}]
  %s5 = inlined_call_operand.vmem [shape: f32[8,128], index: 5, kind: output, shape index: {}]
  %s6 = sld [smem:[#allocation0]]
  $region30: #{fedavg_cnn_forward.5} parent=0
    _
  %s8 = ssub.s32 1, %s6
  %s9 = scalar_select 0, %s8, %s6
  // Predicated region
  $region2: #{fedavg_cnn_forward.5} parent=0 // pred_check
    _
  $region3: #{fedavg_cnn_forward.5} parent=0 // pred_check_branch
    %11 = sbr.rel (0) target = $region5
  $region4: #{fedavg_cnn_forward.5} parent=0 // pred_region
    _
  $region5: #{fedavg_cnn_forward.5} parent=0 // pred_fallthru
    _
  // Predicated region
  $region6: #{fedavg_cnn_forward.5} parent=0 // pred_check
    _
  $region7: #{fedavg_cnn_forward.5} parent=0 // pred_check_branch
    %13 = sbr.rel (0) target = $region9
  $region8: #{fedavg_cnn_forward.5} parent=0 // pred_region
    _
  $region9: #{fedavg_cnn_forward.5} parent=0 // pred_fallthru
    _
  // Predicated region
  $region10: #{fedavg_cnn_forward.5} parent=0 // pred_check
    _
  $region11: #{fedavg_cnn_forward.5} parent=0 // pred_check_branch
    %15 = sbr.rel (0) target = $region13
  $region12: #{fedavg_cnn_forward.5} parent=0 // pred_region
    _
  $region13: #{fedavg_cnn_forward.5} parent=0 // pred_fallthru
    _
  // Predicated region
  $region14: #{fedavg_cnn_forward.5} parent=0 // pred_check
    _
  $region15: #{fedavg_cnn_forward.5} parent=0 // pred_check_branch
    %17 = sbr.rel (0) target = $region17
  $region16: #{fedavg_cnn_forward.5} parent=0 // pred_region
    _
  $region17: #{fedavg_cnn_forward.5} parent=0 // pred_fallthru
    _
  // Predicated region
  $region18: #{fedavg_cnn_forward.5} parent=0 // pred_check
    _
  $region19: #{fedavg_cnn_forward.5} parent=0 // pred_check_branch
    %19 = sbr.rel (0) target = $region21
  $region20: #{fedavg_cnn_forward.5} parent=0 // pred_region
    _
  $region21: #{fedavg_cnn_forward.5} parent=0 // pred_fallthru
    _
  %v20 = vld [vmem:[%s0] sm:$0xff]
  %v21 = vld [vmem:[%s0 + $0x8] sm:$0xff]
  %v22 = vld [vmem:[%s0 + $0x10] sm:$0xff]
  %v23 = vld [vmem:[%s0 + $0x18] sm:$0xff]
  %v24 = vld [vmem:[%s0 + $0x20] sm:$0xff]
  %v25 = vld [vmem:[%s0 + $0x28] sm:$0xff]
  %v26 = vld [vmem:[%s0 + $0x30] sm:$0xff]
  %v27 = vld [vmem:[%s0 + $0x38] sm:$0xff]
  %v28 = vld [vmem:[%s1] sm:$0xff]
  %v29 = vld [vmem:[%s1 + $0x8] sm:$0xff]
  %v30 = vld [vmem:[%s1 + $0x10] sm:$0xff]
  %v31 = vld [vmem:[%s1 + $0x18] sm:$0xff]
  %v32 = vld [vmem:[%s1 + $0x20] sm:$0xff]
  %v33 = vld [vmem:[%s1 + $0x28] sm:$0xff]
  %v34 = vld [vmem:[%s1 + $0x30] sm:$0xff]
  %v35 = vld [vmem:[%s1 + $0x38] sm:$0xff]
  %v36 = vld [vmem:[%s1 + $0x40] sm:$0xff]
  %v37 = vld [vmem:[%s1 + $0x48] sm:$0xff]
  %v38 = vld [vmem:[%s1 + $0x50] sm:$0xff]
  %v39 = vld [vmem:[%s1 + $0x58] sm:$0xff]
  %v40 = vld [vmem:[%s1 + $0x60] sm:$0xff]
  %v41 = vld [vmem:[%s1 + $0x68] sm:$0xff]
  %v42 = vld [vmem:[%s1 + $0x70] sm:$0xff]
  %v43 = vld [vmem:[%s1 + $0x78] sm:$0xff]
  %v44 = vld [vmem:[%s1 + $0x80] sm:$0xff]
  %v45 = vld [vmem:[%s1 + $0x88] sm:$0xff]
  %v46 = vld [vmem:[%s1 + $0x90] sm:$0xff]
  %v47 = vld [vmem:[%s1 + $0x98] sm:$0xff]
  %v48 = vld [vmem:[%s1 + $0xa0] sm:$0xff]
  %v49 = vld [vmem:[%s1 + $0xa8] sm:$0xff]
  %v50 = vld [vmem:[%s1 + $0xb0] sm:$0xff]
  %v51 = vld [vmem:[%s1 + $0xb8] sm:$0xff]
  %v52 = vld [vmem:[%s1 + $0xc0] sm:$0xff]
  %v53 = vld [vmem:[%s1 + $0xc8] sm:$0xff]
  %v54 = vld [vmem:[%s1 + $0xd0] sm:$0xff]
  %v55 = vld [vmem:[%s1 + $0xd8] sm:$0xff]
  %v56 = vld [vmem:[%s1 + $0xe0] sm:$0xff]
  %v57 = vld [vmem:[%s1 + $0xe8] sm:$0xff]
  %v58 = vld [vmem:[%s1 + $0xf0] sm:$0xff]
  %v59 = vld [vmem:[%s1 + $0xf8] sm:$0xff]
  %v60 = vld [vmem:[%s1 + $0x100] sm:$0xff]
  %v61 = vld [vmem:[%s1 + $0x108] sm:$0xff]
  %v62 = vld [vmem:[%s1 + $0x110] sm:$0xff]
  %v63 = vld [vmem:[%s1 + $0x118] sm:$0xff]
  %v64 = vld [vmem:[%s1 + $0x120] sm:$0xff]
  %v65 = vld [vmem:[%s1 + $0x128] sm:$0xff]
  %v66 = vld [vmem:[%s1 + $0x130] sm:$0xff]
  %v67 = vld [vmem:[%s1 + $0x138] sm:$0xff]
  %v68 = vld [vmem:[%s1 + $0x140] sm:$0xff]
  %v69 = vld [vmem:[%s1 + $0x148] sm:$0xff]
  %v70 = vld [vmem:[%s1 + $0x150] sm:$0xff]
  %v71 = vld [vmem:[%s1 + $0x158] sm:$0xff]
  %v72 = vld [vmem:[%s1 + $0x160] sm:$0xff]
  %v73 = vld [vmem:[%s1 + $0x168] sm:$0xff]
  %v74 = vld [vmem:[%s1 + $0x170] sm:$0xff]
  %v75 = vld [vmem:[%s1 + $0x178] sm:$0xff]
  %v76 = vld [vmem:[%s1 + $0x180] sm:$0xff]
  %v77 = vld [vmem:[%s1 + $0x188] sm:$0xff]
  %v78 = vld [vmem:[%s1 + $0x190] sm:$0xff]
  %v79 = vld [vmem:[%s1 + $0x198] sm:$0xff]
  %v80 = vld [vmem:[%s1 + $0x1a0] sm:$0xff]
  %v81 = vld [vmem:[%s1 + $0x1a8] sm:$0xff]
  %v82 = vld [vmem:[%s1 + $0x1b0] sm:$0xff]
  %v83 = vld [vmem:[%s1 + $0x1b8] sm:$0xff]
  %v84 = vld [vmem:[%s1 + $0x1c0] sm:$0xff]
  %v85 = vld [vmem:[%s1 + $0x1c8] sm:$0xff]
  %v86 = vld [vmem:[%s1 + $0x1d0] sm:$0xff]
  %v87 = vld [vmem:[%s1 + $0x1d8] sm:$0xff]
  %v88 = vld [vmem:[%s1 + $0x1e0] sm:$0xff]
  %v89 = vld [vmem:[%s1 + $0x1e8] sm:$0xff]
  %v90 = vld [vmem:[%s1 + $0x1f0] sm:$0xff]
  %v91 = vld [vmem:[%s1 + $0x1f8] sm:$0xff]
  %v92 = vld [vmem:[%s1 + $0x200] sm:$0xff]
  %v93 = vld [vmem:[%s1 + $0x208] sm:$0xff]
  %v94 = vld [vmem:[%s1 + $0x210] sm:$0xff]
  %v95 = vld [vmem:[%s1 + $0x218] sm:$0xff]
  %v96 = vld [vmem:[%s1 + $0x220] sm:$0xff]
  %v97 = vld [vmem:[%s1 + $0x228] sm:$0xff]
  %v98 = vld [vmem:[%s1 + $0x230] sm:$0xff]
  %v99 = vld [vmem:[%s1 + $0x238] sm:$0xff]
  %v100 = vld [vmem:[%s1 + $0x240] sm:$0xff]
  %v101 = vld [vmem:[%s1 + $0x248] sm:$0xff]
  %v102 = vld [vmem:[%s1 + $0x250] sm:$0xff]
  %v103 = vld [vmem:[%s1 + $0x258] sm:$0xff]
  %v104 = vld [vmem:[%s1 + $0x260] sm:$0xff]
  %v105 = vld [vmem:[%s1 + $0x268] sm:$0xff]
  %v106 = vld [vmem:[%s1 + $0x270] sm:$0xff]
  %v107 = vld [vmem:[%s1 + $0x278] sm:$0xff]
  %v108 = vld [vmem:[%s1 + $0x280] sm:$0xff]
  %v109 = vld [vmem:[%s1 + $0x288] sm:$0xff]
  %v110 = vld [vmem:[%s1 + $0x290] sm:$0xff]
  %v111 = vld [vmem:[%s1 + $0x298] sm:$0xff]
  %v112 = vld [vmem:[%s1 + $0x2a0] sm:$0xff]
  %v113 = vld [vmem:[%s1 + $0x2a8] sm:$0xff]
  %v114 = vld [vmem:[%s1 + $0x2b0] sm:$0xff]
  %v115 = vld [vmem:[%s1 + $0x2b8] sm:$0xff]
  %v116 = vld [vmem:[%s1 + $0x2c0] sm:$0xff]
  %v117 = vld [vmem:[%s1 + $0x2c8] sm:$0xff]
  %v118 = vld [vmem:[%s1 + $0x2d0] sm:$0xff]
  %v119 = vld [vmem:[%s1 + $0x2d8] sm:$0xff]
  %v120 = vld [vmem:[%s1 + $0x2e0] sm:$0xff]
  %v121 = vld [vmem:[%s1 + $0x2e8] sm:$0xff]
  %v122 = vld [vmem:[%s1 + $0x2f0] sm:$0xff]
  %v123 = vld [vmem:[%s1 + $0x2f8] sm:$0xff]
  %v124 = vld [vmem:[%s1 + $0x300] sm:$0xff]
  %v125 = vld [vmem:[%s1 + $0x308] sm:$0xff]
  %v126 = vld [vmem:[%s1 + $0x310] sm:$0xff]
  %v127 = vld [vmem:[%s1 + $0x318] sm:$0xff]
  %v128 = vld [vmem:[%s1 + $0x320] sm:$0xff]
  %v129 = vld [vmem:[%s1 + $0x328] sm:$0xff]
  %v130 = vld [vmem:[%s1 + $0x330] sm:$0xff]
  %v131 = vld [vmem:[%s1 + $0x338] sm:$0xff]
  %v132 = vld [vmem:[%s1 + $0x340] sm:$0xff]
  %v133 = vld [vmem:[%s1 + $0x348] sm:$0xff]
  %v134 = vld [vmem:[%s1 + $0x350] sm:$0xff]
  %v135 = vld [vmem:[%s1 + $0x358] sm:$0xff]
  %v136 = vld [vmem:[%s1 + $0x360] sm:$0xff]
  %v137 = vld [vmem:[%s1 + $0x368] sm:$0xff]
  %v138 = vld [vmem:[%s1 + $0x370] sm:$0xff]
  %v139 = vld [vmem:[%s1 + $0x378] sm:$0xff]
  %v140 = vld [vmem:[%s1 + $0x380] sm:$0xff]
  %v141 = vld [vmem:[%s1 + $0x388] sm:$0xff]
  %v142 = vld [vmem:[%s1 + $0x390] sm:$0xff]
  %v143 = vld [vmem:[%s1 + $0x398] sm:$0xff]
  %v144 = vld [vmem:[%s1 + $0x3a0] sm:$0xff]
  %v145 = vld [vmem:[%s1 + $0x3a8] sm:$0xff]
  %v146 = vld [vmem:[%s1 + $0x3b0] sm:$0xff]
  %v147 = vld [vmem:[%s1 + $0x3b8] sm:$0xff]
  %v148 = vld [vmem:[%s1 + $0x3c0] sm:$0xff]
  %v149 = vld [vmem:[%s1 + $0x3c8] sm:$0xff]
  %v150 = vld [vmem:[%s1 + $0x3d0] sm:$0xff]
  %v151 = vld [vmem:[%s1 + $0x3d8] sm:$0xff]
  %v152 = vld [vmem:[%s1 + $0x3e0] sm:$0xff]
  %v153 = vld [vmem:[%s1 + $0x3e8] sm:$0xff]
  %v154 = vld [vmem:[%s1 + $0x3f0] sm:$0xff]
  %v155 = vld [vmem:[%s1 + $0x3f8] sm:$0xff]
  %v156 = vld [vmem:[%s1 + $0x400] sm:$0xff]
  %v157 = vld [vmem:[%s1 + $0x408] sm:$0xff]
  %v158 = vld [vmem:[%s1 + $0x410] sm:$0xff]
  %v159 = vld [vmem:[%s1 + $0x418] sm:$0xff]
  %v160 = vld [vmem:[%s1 + $0x420] sm:$0xff]
  %v161 = vld [vmem:[%s1 + $0x428] sm:$0xff]
  %v162 = vld [vmem:[%s1 + $0x430] sm:$0xff]
  %v163 = vld [vmem:[%s1 + $0x438] sm:$0xff]
  %v164 = vld [vmem:[%s1 + $0x440] sm:$0xff]
  %v165 = vld [vmem:[%s1 + $0x448] sm:$0xff]
  %v166 = vld [vmem:[%s1 + $0x450] sm:$0xff]
  %v167 = vld [vmem:[%s1 + $0x458] sm:$0xff]
  %v168 = vld [vmem:[%s1 + $0x460] sm:$0xff]
  %v169 = vld [vmem:[%s1 + $0x468] sm:$0xff]
  %v170 = vld [vmem:[%s1 + $0x470] sm:$0xff]
  %v171 = vld [vmem:[%s1 + $0x478] sm:$0xff]
  %v172 = vld [vmem:[%s1 + $0x480] sm:$0xff]
  %v173 = vld [vmem:[%s1 + $0x488] sm:$0xff]
  %v174 = vld [vmem:[%s1 + $0x490] sm:$0xff]
  %v175 = vld [vmem:[%s1 + $0x498] sm:$0xff]
  %v176 = vld [vmem:[%s1 + $0x4a0] sm:$0xff]
  %v177 = vld [vmem:[%s1 + $0x4a8] sm:$0xff]
  %v178 = vld [vmem:[%s1 + $0x4b0] sm:$0xff]
  %v179 = vld [vmem:[%s1 + $0x4b8] sm:$0xff]
  %v180 = vld [vmem:[%s1 + $0x4c0] sm:$0xff]
  %v181 = vld [vmem:[%s1 + $0x4c8] sm:$0xff]
  %v182 = vld [vmem:[%s1 + $0x4d0] sm:$0xff]
  %v183 = vld [vmem:[%s1 + $0x4d8] sm:$0xff]
  %v184 = vld [vmem:[%s1 + $0x4e0] sm:$0xff]
  %v185 = vld [vmem:[%s1 + $0x4e8] sm:$0xff]
  %v186 = vld [vmem:[%s1 + $0x4f0] sm:$0xff]
  %v187 = vld [vmem:[%s1 + $0x4f8] sm:$0xff]
  %v188 = vld [vmem:[%s1 + $0x500] sm:$0xff]
  %v189 = vld [vmem:[%s1 + $0x508] sm:$0xff]
  %v190 = vld [vmem:[%s1 + $0x510] sm:$0xff]
  %v191 = vld [vmem:[%s1 + $0x518] sm:$0xff]
  %v192 = vld [vmem:[%s1 + $0x520] sm:$0xff]
  %v193 = vld [vmem:[%s1 + $0x528] sm:$0xff]
  %v194 = vld [vmem:[%s1 + $0x530] sm:$0xff]
  %v195 = vld [vmem:[%s1 + $0x538] sm:$0xff]
  %v196 = vld [vmem:[%s1 + $0x540] sm:$0xff]
  %v197 = vld [vmem:[%s1 + $0x548] sm:$0xff]
  %v198 = vld [vmem:[%s1 + $0x550] sm:$0xff]
  %v199 = vld [vmem:[%s1 + $0x558] sm:$0xff]
  %v200 = vld [vmem:[%s1 + $0x560] sm:$0xff]
  %v201 = vld [vmem:[%s1 + $0x568] sm:$0xff]
  %v202 = vld [vmem:[%s1 + $0x570] sm:$0xff]
  %v203 = vld [vmem:[%s1 + $0x578] sm:$0xff]
  %v204 = vld [vmem:[%s1 + $0x580] sm:$0xff]
  %v205 = vld [vmem:[%s1 + $0x588] sm:$0xff]
  %v206 = vld [vmem:[%s1 + $0x590] sm:$0xff]
  %v207 = vld [vmem:[%s1 + $0x598] sm:$0xff]
  %v208 = vld [vmem:[%s1 + $0x5a0] sm:$0xff]
  %v209 = vld [vmem:[%s1 + $0x5a8] sm:$0xff]
  %v210 = vld [vmem:[%s1 + $0x5b0] sm:$0xff]
  %v211 = vld [vmem:[%s1 + $0x5b8] sm:$0xff]
  %v212 = vld [vmem:[%s1 + $0x5c0] sm:$0xff]
  %v213 = vld [vmem:[%s1 + $0x5c8] sm:$0xff]
  %v214 = vld [vmem:[%s1 + $0x5d0] sm:$0xff]
  %v215 = vld [vmem:[%s1 + $0x5d8] sm:$0xff]
  %v216 = vld [vmem:[%s1 + $0x5e0] sm:$0xff]
  %v217 = vld [vmem:[%s1 + $0x5e8] sm:$0xff]
  %v218 = vld [vmem:[%s1 + $0x5f0] sm:$0xff]
  %v219 = vld [vmem:[%s1 + $0x5f8] sm:$0xff]
  %v220 = vld [vmem:[%s1 + $0x600] sm:$0xff]
  %v221 = vld [vmem:[%s1 + $0x608] sm:$0xff]
  %v222 = vld [vmem:[%s1 + $0x610] sm:$0xff]
  %v223 = vld [vmem:[%s1 + $0x618] sm:$0xff]
  %v224 = vld [vmem:[%s1 + $0x620] sm:$0xff]
  %v225 = vld [vmem:[%s1 + $0x628] sm:$0xff]
  %v226 = vld [vmem:[%s1 + $0x630] sm:$0xff]
  %v227 = vld [vmem:[%s1 + $0x638] sm:$0xff]
  %v228 = vld [vmem:[%s1 + $0x640] sm:$0xff]
  %v229 = vld [vmem:[%s1 + $0x648] sm:$0xff]
  %v230 = vld [vmem:[%s1 + $0x650] sm:$0xff]
  %v231 = vld [vmem:[%s1 + $0x658] sm:$0xff]
  %v232 = vld [vmem:[%s1 + $0x660] sm:$0xff]
  %v233 = vld [vmem:[%s1 + $0x668] sm:$0xff]
  %v234 = vld [vmem:[%s1 + $0x670] sm:$0xff]
  %v235 = vld [vmem:[%s1 + $0x678] sm:$0xff]
  %v236 = vld [vmem:[%s1 + $0x680] sm:$0xff]
  %v237 = vld [vmem:[%s1 + $0x688] sm:$0xff]
  %v238 = vld [vmem:[%s1 + $0x690] sm:$0xff]
  %v239 = vld [vmem:[%s1 + $0x698] sm:$0xff]
  %v240 = vld [vmem:[%s1 + $0x6a0] sm:$0xff]
  %v241 = vld [vmem:[%s1 + $0x6a8] sm:$0xff]
  %v242 = vld [vmem:[%s1 + $0x6b0] sm:$0xff]
  %v243 = vld [vmem:[%s1 + $0x6b8] sm:$0xff]
  %v244 = vld [vmem:[%s1 + $0x6c0] sm:$0xff]
  %v245 = vld [vmem:[%s1 + $0x6c8] sm:$0xff]
  %v246 = vld [vmem:[%s1 + $0x6d0] sm:$0xff]
  %v247 = vld [vmem:[%s1 + $0x6d8] sm:$0xff]
  %v248 = vld [vmem:[%s1 + $0x6e0] sm:$0xff]
  %v249 = vld [vmem:[%s1 + $0x6e8] sm:$0xff]
  %v250 = vld [vmem:[%s1 + $0x6f0] sm:$0xff]
  %v251 = vld [vmem:[%s1 + $0x6f8] sm:$0xff]
  %v252 = vld [vmem:[%s1 + $0x700] sm:$0xff]
  %v253 = vld [vmem:[%s1 + $0x708] sm:$0xff]
  %v254 = vld [vmem:[%s1 + $0x710] sm:$0xff]
  %v255 = vld [vmem:[%s1 + $0x718] sm:$0xff]
  %v256 = vld [vmem:[%s1 + $0x720] sm:$0xff]
  %v257 = vld [vmem:[%s1 + $0x728] sm:$0xff]
  %v258 = vld [vmem:[%s1 + $0x730] sm:$0xff]
  %v259 = vld [vmem:[%s1 + $0x738] sm:$0xff]
  %v260 = vld [vmem:[%s1 + $0x740] sm:$0xff]
  %v261 = vld [vmem:[%s1 + $0x748] sm:$0xff]
  %v262 = vld [vmem:[%s1 + $0x750] sm:$0xff]
  %v263 = vld [vmem:[%s1 + $0x758] sm:$0xff]
  %v264 = vld [vmem:[%s1 + $0x760] sm:$0xff]
  %v265 = vld [vmem:[%s1 + $0x768] sm:$0xff]
  %v266 = vld [vmem:[%s1 + $0x770] sm:$0xff]
  %v267 = vld [vmem:[%s1 + $0x778] sm:$0xff]
  %v268 = vld [vmem:[%s1 + $0x780] sm:$0xff]
  %v269 = vld [vmem:[%s1 + $0x788] sm:$0xff]
  %v270 = vld [vmem:[%s1 + $0x790] sm:$0xff]
  %v271 = vld [vmem:[%s1 + $0x798] sm:$0xff]
  %v272 = vld [vmem:[%s1 + $0x7a0] sm:$0xff]
  %v273 = vld [vmem:[%s1 + $0x7a8] sm:$0xff]
  %v274 = vld [vmem:[%s1 + $0x7b0] sm:$0xff]
  %v275 = vld [vmem:[%s1 + $0x7b8] sm:$0xff]
  %v276 = vld [vmem:[%s1 + $0x7c0] sm:$0xff]
  %v277 = vld [vmem:[%s1 + $0x7c8] sm:$0xff]
  %v278 = vld [vmem:[%s1 + $0x7d0] sm:$0xff]
  %v279 = vld [vmem:[%s1 + $0x7d8] sm:$0xff]
  %v280 = vld [vmem:[%s1 + $0x7e0] sm:$0xff]
  %v281 = vld [vmem:[%s1 + $0x7e8] sm:$0xff]
  %v282 = vld [vmem:[%s1 + $0x7f0] sm:$0xff]
  %v283 = vld [vmem:[%s1 + $0x7f8] sm:$0xff]
  %v284 = vld [vmem:[%s1 + $0x800] sm:$0xff]
  %v285 = vld [vmem:[%s1 + $0x808] sm:$0xff]
  %v286 = vld [vmem:[%s1 + $0x810] sm:$0xff]
  %v287 = vld [vmem:[%s1 + $0x818] sm:$0xff]
  %v288 = vld [vmem:[%s1 + $0x820] sm:$0xff]
  %v289 = vld [vmem:[%s1 + $0x828] sm:$0xff]
  %v290 = vld [vmem:[%s1 + $0x830] sm:$0xff]
  %v291 = vld [vmem:[%s1 + $0x838] sm:$0xff]
  %v292 = vld [vmem:[%s1 + $0x840] sm:$0xff]
  %v293 = vld [vmem:[%s1 + $0x848] sm:$0xff]
  %v294 = vld [vmem:[%s1 + $0x850] sm:$0xff]
  %v295 = vld [vmem:[%s1 + $0x858] sm:$0xff]
  %v296 = vld [vmem:[%s1 + $0x860] sm:$0xff]
  %v297 = vld [vmem:[%s1 + $0x868] sm:$0xff]
  %v298 = vld [vmem:[%s1 + $0x870] sm:$0xff]
  %v299 = vld [vmem:[%s1 + $0x878] sm:$0xff]
  %v300 = vld [vmem:[%s1 + $0x880] sm:$0xff]
  %v301 = vld [vmem:[%s1 + $0x888] sm:$0xff]
  %v302 = vld [vmem:[%s1 + $0x890] sm:$0xff]
  %v303 = vld [vmem:[%s1 + $0x898] sm:$0xff]
  %v304 = vld [vmem:[%s1 + $0x8a0] sm:$0xff]
  %v305 = vld [vmem:[%s1 + $0x8a8] sm:$0xff]
  %v306 = vld [vmem:[%s1 + $0x8b0] sm:$0xff]
  %v307 = vld [vmem:[%s1 + $0x8b8] sm:$0xff]
  %v308 = vld [vmem:[%s1 + $0x8c0] sm:$0xff]
  %v309 = vld [vmem:[%s1 + $0x8c8] sm:$0xff]
  %v310 = vld [vmem:[%s1 + $0x8d0] sm:$0xff]
  %v311 = vld [vmem:[%s1 + $0x8d8] sm:$0xff]
  %v312 = vld [vmem:[%s1 + $0x8e0] sm:$0xff]
  %v313 = vld [vmem:[%s1 + $0x8e8] sm:$0xff]
  %v314 = vld [vmem:[%s1 + $0x8f0] sm:$0xff]
  %v315 = vld [vmem:[%s1 + $0x8f8] sm:$0xff]
  %v316 = vld [vmem:[%s1 + $0x900] sm:$0xff]
  %v317 = vld [vmem:[%s1 + $0x908] sm:$0xff]
  %v318 = vld [vmem:[%s1 + $0x910] sm:$0xff]
  %v319 = vld [vmem:[%s1 + $0x918] sm:$0xff]
  %v320 = vld [vmem:[%s1 + $0x920] sm:$0xff]
  %v321 = vld [vmem:[%s1 + $0x928] sm:$0xff]
  %v322 = vld [vmem:[%s1 + $0x930] sm:$0xff]
  %v323 = vld [vmem:[%s1 + $0x938] sm:$0xff]
  %v324 = vld [vmem:[%s1 + $0x940] sm:$0xff]
  %v325 = vld [vmem:[%s1 + $0x948] sm:$0xff]
  %v326 = vld [vmem:[%s1 + $0x950] sm:$0xff]
  %v327 = vld [vmem:[%s1 + $0x958] sm:$0xff]
  %v328 = vld [vmem:[%s1 + $0x960] sm:$0xff]
  %v329 = vld [vmem:[%s1 + $0x968] sm:$0xff]
  %v330 = vld [vmem:[%s1 + $0x970] sm:$0xff]
  %v331 = vld [vmem:[%s1 + $0x978] sm:$0xff]
  %v332 = vld [vmem:[%s1 + $0x980] sm:$0xff]
  %v333 = vld [vmem:[%s1 + $0x988] sm:$0xff]
  %v334 = vld [vmem:[%s1 + $0x990] sm:$0xff]
  %v335 = vld [vmem:[%s1 + $0x998] sm:$0xff]
  %v336 = vld [vmem:[%s1 + $0x9a0] sm:$0xff]
  %v337 = vld [vmem:[%s1 + $0x9a8] sm:$0xff]
  %v338 = vld [vmem:[%s1 + $0x9b0] sm:$0xff]
  %v339 = vld [vmem:[%s1 + $0x9b8] sm:$0xff]
  %v340 = vld [vmem:[%s1 + $0x9c0] sm:$0xff]
  %v341 = vld [vmem:[%s1 + $0x9c8] sm:$0xff]
  %v342 = vld [vmem:[%s1 + $0x9d0] sm:$0xff]
  %v343 = vld [vmem:[%s1 + $0x9d8] sm:$0xff]
  %v344 = vld [vmem:[%s1 + $0x9e0] sm:$0xff]
  %v345 = vld [vmem:[%s1 + $0x9e8] sm:$0xff]
  %v346 = vld [vmem:[%s1 + $0x9f0] sm:$0xff]
  %v347 = vld [vmem:[%s1 + $0x9f8] sm:$0xff]
  %v348 = vld [vmem:[%s1 + $0xa00] sm:$0xff]
  %v349 = vld [vmem:[%s1 + $0xa08] sm:$0xff]
  %v350 = vld [vmem:[%s1 + $0xa10] sm:$0xff]
  %v351 = vld [vmem:[%s1 + $0xa18] sm:$0xff]
  %v352 = vld [vmem:[%s1 + $0xa20] sm:$0xff]
  %v353 = vld [vmem:[%s1 + $0xa28] sm:$0xff]
  %v354 = vld [vmem:[%s1 + $0xa30] sm:$0xff]
  %v355 = vld [vmem:[%s1 + $0xa38] sm:$0xff]
  %v356 = vld [vmem:[%s1 + $0xa40] sm:$0xff]
  %v357 = vld [vmem:[%s1 + $0xa48] sm:$0xff]
  %v358 = vld [vmem:[%s1 + $0xa50] sm:$0xff]
  %v359 = vld [vmem:[%s1 + $0xa58] sm:$0xff]
  %v360 = vld [vmem:[%s1 + $0xa60] sm:$0xff]
  %v361 = vld [vmem:[%s1 + $0xa68] sm:$0xff]
  %v362 = vld [vmem:[%s1 + $0xa70] sm:$0xff]
  %v363 = vld [vmem:[%s1 + $0xa78] sm:$0xff]
  %v364 = vld [vmem:[%s1 + $0xa80] sm:$0xff]
  %v365 = vld [vmem:[%s1 + $0xa88] sm:$0xff]
  %v366 = vld [vmem:[%s1 + $0xa90] sm:$0xff]
  %v367 = vld [vmem:[%s1 + $0xa98] sm:$0xff]
  %v368 = vld [vmem:[%s1 + $0xaa0] sm:$0xff]
  %v369 = vld [vmem:[%s1 + $0xaa8] sm:$0xff]
  %v370 = vld [vmem:[%s1 + $0xab0] sm:$0xff]
  %v371 = vld [vmem:[%s1 + $0xab8] sm:$0xff]
  %v372 = vld [vmem:[%s1 + $0xac0] sm:$0xff]
  %v373 = vld [vmem:[%s1 + $0xac8] sm:$0xff]
  %v374 = vld [vmem:[%s1 + $0xad0] sm:$0xff]
  %v375 = vld [vmem:[%s1 + $0xad8] sm:$0xff]
  %v376 = vld [vmem:[%s1 + $0xae0] sm:$0xff]
  %v377 = vld [vmem:[%s1 + $0xae8] sm:$0xff]
  %v378 = vld [vmem:[%s1 + $0xaf0] sm:$0xff]
  %v379 = vld [vmem:[%s1 + $0xaf8] sm:$0xff]
  %v380 = vld [vmem:[%s1 + $0xb00] sm:$0xff]
  %v381 = vld [vmem:[%s1 + $0xb08] sm:$0xff]
  %v382 = vld [vmem:[%s1 + $0xb10] sm:$0xff]
  %v383 = vld [vmem:[%s1 + $0xb18] sm:$0xff]
  %v384 = vld [vmem:[%s1 + $0xb20] sm:$0xff]
  %v385 = vld [vmem:[%s1 + $0xb28] sm:$0xff]
  %v386 = vld [vmem:[%s1 + $0xb30] sm:$0xff]
  %v387 = vld [vmem:[%s1 + $0xb38] sm:$0xff]
  %v388 = vld [vmem:[%s1 + $0xb40] sm:$0xff]
  %v389 = vld [vmem:[%s1 + $0xb48] sm:$0xff]
  %v390 = vld [vmem:[%s1 + $0xb50] sm:$0xff]
  %v391 = vld [vmem:[%s1 + $0xb58] sm:$0xff]
  %v392 = vld [vmem:[%s1 + $0xb60] sm:$0xff]
  %v393 = vld [vmem:[%s1 + $0xb68] sm:$0xff]
  %v394 = vld [vmem:[%s1 + $0xb70] sm:$0xff]
  %v395 = vld [vmem:[%s1 + $0xb78] sm:$0xff]
  %v396 = vld [vmem:[%s1 + $0xb80] sm:$0xff]
  %v397 = vld [vmem:[%s1 + $0xb88] sm:$0xff]
  %v398 = vld [vmem:[%s1 + $0xb90] sm:$0xff]
  %v399 = vld [vmem:[%s1 + $0xb98] sm:$0xff]
  %v400 = vld [vmem:[%s1 + $0xba0] sm:$0xff]
  %v401 = vld [vmem:[%s1 + $0xba8] sm:$0xff]
  %v402 = vld [vmem:[%s1 + $0xbb0] sm:$0xff]
  %v403 = vld [vmem:[%s1 + $0xbb8] sm:$0xff]
  %v404 = vld [vmem:[%s1 + $0xbc0] sm:$0xff]
  %v405 = vld [vmem:[%s1 + $0xbc8] sm:$0xff]
  %v406 = vld [vmem:[%s1 + $0xbd0] sm:$0xff]
  %v407 = vld [vmem:[%s1 + $0xbd8] sm:$0xff]
  %v408 = vld [vmem:[%s1 + $0xbe0] sm:$0xff]
  %v409 = vld [vmem:[%s1 + $0xbe8] sm:$0xff]
  %v410 = vld [vmem:[%s1 + $0xbf0] sm:$0xff]
  %v411 = vld [vmem:[%s1 + $0xbf8] sm:$0xff]
  %v412 = vld [vmem:[%s1 + $0xc00] sm:$0xff]
  %v413 = vld [vmem:[%s1 + $0xc08] sm:$0xff]
  %v414 = vld [vmem:[%s1 + $0xc10] sm:$0xff]
  %v415 = vld [vmem:[%s1 + $0xc18] sm:$0xff]
  %v416 = vld [vmem:[%s1 + $0xc20] sm:$0xff]
  %v417 = vld [vmem:[%s1 + $0xc28] sm:$0xff]
  %v418 = vld [vmem:[%s1 + $0xc30] sm:$0xff]
  %v419 = vld [vmem:[%s1 + $0xc38] sm:$0xff]
  %v420 = vld [vmem:[%s1 + $0xc40] sm:$0xff]
  %v421 = vld [vmem:[%s1 + $0xc48] sm:$0xff]
  %v422 = vld [vmem:[%s1 + $0xc50] sm:$0xff]
  %v423 = vld [vmem:[%s1 + $0xc58] sm:$0xff]
  %v424 = vld [vmem:[%s1 + $0xc60] sm:$0xff]
  %v425 = vld [vmem:[%s1 + $0xc68] sm:$0xff]
  %v426 = vld [vmem:[%s1 + $0xc70] sm:$0xff]
  %v427 = vld [vmem:[%s1 + $0xc78] sm:$0xff]
  %v428 = vld [vmem:[%s1 + $0xc80] sm:$0xff]
  %v429 = vld [vmem:[%s1 + $0xc88] sm:$0xff]
  %v430 = vld [vmem:[%s1 + $0xc90] sm:$0xff]
  %v431 = vld [vmem:[%s1 + $0xc98] sm:$0xff]
  %v432 = vld [vmem:[%s1 + $0xca0] sm:$0xff]
  %v433 = vld [vmem:[%s1 + $0xca8] sm:$0xff]
  %v434 = vld [vmem:[%s1 + $0xcb0] sm:$0xff]
  %v435 = vld [vmem:[%s1 + $0xcb8] sm:$0xff]
  %v436 = vld [vmem:[%s1 + $0xcc0] sm:$0xff]
  %v437 = vld [vmem:[%s1 + $0xcc8] sm:$0xff]
  %v438 = vld [vmem:[%s1 + $0xcd0] sm:$0xff]
  %v439 = vld [vmem:[%s1 + $0xcd8] sm:$0xff]
  %v440 = vld [vmem:[%s1 + $0xce0] sm:$0xff]
  %v441 = vld [vmem:[%s1 + $0xce8] sm:$0xff]
  %v442 = vld [vmem:[%s1 + $0xcf0] sm:$0xff]
  %v443 = vld [vmem:[%s1 + $0xcf8] sm:$0xff]
  %v444 = vld [vmem:[%s1 + $0xd00] sm:$0xff]
  %v445 = vld [vmem:[%s1 + $0xd08] sm:$0xff]
  %v446 = vld [vmem:[%s1 + $0xd10] sm:$0xff]
  %v447 = vld [vmem:[%s1 + $0xd18] sm:$0xff]
  %v448 = vld [vmem:[%s1 + $0xd20] sm:$0xff]
  %v449 = vld [vmem:[%s1 + $0xd28] sm:$0xff]
  %v450 = vld [vmem:[%s1 + $0xd30] sm:$0xff]
  %v451 = vld [vmem:[%s1 + $0xd38] sm:$0xff]
  %v452 = vld [vmem:[%s1 + $0xd40] sm:$0xff]
  %v453 = vld [vmem:[%s1 + $0xd48] sm:$0xff]
  %v454 = vld [vmem:[%s1 + $0xd50] sm:$0xff]
  %v455 = vld [vmem:[%s1 + $0xd58] sm:$0xff]
  %v456 = vld [vmem:[%s1 + $0xd60] sm:$0xff]
  %v457 = vld [vmem:[%s1 + $0xd68] sm:$0xff]
  %v458 = vld [vmem:[%s1 + $0xd70] sm:$0xff]
  %v459 = vld [vmem:[%s1 + $0xd78] sm:$0xff]
  %v460 = vld [vmem:[%s1 + $0xd80] sm:$0xff]
  %v461 = vld [vmem:[%s1 + $0xd88] sm:$0xff]
  %v462 = vld [vmem:[%s1 + $0xd90] sm:$0xff]
  %v463 = vld [vmem:[%s1 + $0xd98] sm:$0xff]
  %v464 = vld [vmem:[%s1 + $0xda0] sm:$0xff]
  %v465 = vld [vmem:[%s1 + $0xda8] sm:$0xff]
  %v466 = vld [vmem:[%s1 + $0xdb0] sm:$0xff]
  %v467 = vld [vmem:[%s1 + $0xdb8] sm:$0xff]
  %v468 = vld [vmem:[%s1 + $0xdc0] sm:$0xff]
  %v469 = vld [vmem:[%s1 + $0xdc8] sm:$0xff]
  %v470 = vld [vmem:[%s1 + $0xdd0] sm:$0xff]
  %v471 = vld [vmem:[%s1 + $0xdd8] sm:$0xff]
  %v472 = vld [vmem:[%s1 + $0xde0] sm:$0xff]
  %v473 = vld [vmem:[%s1 + $0xde8] sm:$0xff]
  %v474 = vld [vmem:[%s1 + $0xdf0] sm:$0xff]
  %v475 = vld [vmem:[%s1 + $0xdf8] sm:$0xff]
  %v476 = vld [vmem:[%s1 + $0xe00] sm:$0xff]
  %v477 = vld [vmem:[%s1 + $0xe08] sm:$0xff]
  %v478 = vld [vmem:[%s1 + $0xe10] sm:$0xff]
  %v479 = vld [vmem:[%s1 + $0xe18] sm:$0xff]
  %v480 = vld [vmem:[%s1 + $0xe20] sm:$0xff]
  %v481 = vld [vmem:[%s1 + $0xe28] sm:$0xff]
  %v482 = vld [vmem:[%s1 + $0xe30] sm:$0xff]
  %v483 = vld [vmem:[%s1 + $0xe38] sm:$0xff]
  %v484 = vld [vmem:[%s1 + $0xe40] sm:$0xff]
  %v485 = vld [vmem:[%s1 + $0xe48] sm:$0xff]
  %v486 = vld [vmem:[%s1 + $0xe50] sm:$0xff]
  %v487 = vld [vmem:[%s1 + $0xe58] sm:$0xff]
  %v488 = vld [vmem:[%s1 + $0xe60] sm:$0xff]
  %v489 = vld [vmem:[%s1 + $0xe68] sm:$0xff]
  %v490 = vld [vmem:[%s1 + $0xe70] sm:$0xff]
  %v491 = vld [vmem:[%s1 + $0xe78] sm:$0xff]
  %v492 = vld [vmem:[%s1 + $0xe80] sm:$0xff]
  %v493 = vld [vmem:[%s1 + $0xe88] sm:$0xff]
  %v494 = vld [vmem:[%s1 + $0xe90] sm:$0xff]
  %v495 = vld [vmem:[%s1 + $0xe98] sm:$0xff]
  %v496 = vld [vmem:[%s1 + $0xea0] sm:$0xff]
  %v497 = vld [vmem:[%s1 + $0xea8] sm:$0xff]
  %v498 = vld [vmem:[%s1 + $0xeb0] sm:$0xff]
  %v499 = vld [vmem:[%s1 + $0xeb8] sm:$0xff]
  %v500 = vld [vmem:[%s1 + $0xec0] sm:$0xff]
  %v501 = vld [vmem:[%s1 + $0xec8] sm:$0xff]
  %v502 = vld [vmem:[%s1 + $0xed0] sm:$0xff]
  %v503 = vld [vmem:[%s1 + $0xed8] sm:$0xff]
  %v504 = vld [vmem:[%s1 + $0xee0] sm:$0xff]
  %v505 = vld [vmem:[%s1 + $0xee8] sm:$0xff]
  %v506 = vld [vmem:[%s1 + $0xef0] sm:$0xff]
  %v507 = vld [vmem:[%s1 + $0xef8] sm:$0xff]
  %v508 = vld [vmem:[%s1 + $0xf00] sm:$0xff]
  %v509 = vld [vmem:[%s1 + $0xf08] sm:$0xff]
  %v510 = vld [vmem:[%s1 + $0xf10] sm:$0xff]
  %v511 = vld [vmem:[%s1 + $0xf18] sm:$0xff]
  %v512 = vld [vmem:[%s1 + $0xf20] sm:$0xff]
  %v513 = vld [vmem:[%s1 + $0xf28] sm:$0xff]
  %v514 = vld [vmem:[%s1 + $0xf30] sm:$0xff]
  %v515 = vld [vmem:[%s1 + $0xf38] sm:$0xff]
  %v516 = vld [vmem:[%s1 + $0xf40] sm:$0xff]
  %v517 = vld [vmem:[%s1 + $0xf48] sm:$0xff]
  %v518 = vld [vmem:[%s1 + $0xf50] sm:$0xff]
  %v519 = vld [vmem:[%s1 + $0xf58] sm:$0xff]
  %v520 = vld [vmem:[%s1 + $0xf60] sm:$0xff]
  %v521 = vld [vmem:[%s1 + $0xf68] sm:$0xff]
  %v522 = vld [vmem:[%s1 + $0xf70] sm:$0xff]
  %v523 = vld [vmem:[%s1 + $0xf78] sm:$0xff]
  %v524 = vld [vmem:[%s1 + $0xf80] sm:$0xff]
  %v525 = vld [vmem:[%s1 + $0xf88] sm:$0xff]
  %v526 = vld [vmem:[%s1 + $0xf90] sm:$0xff]
  %v527 = vld [vmem:[%s1 + $0xf98] sm:$0xff]
  %v528 = vld [vmem:[%s1 + $0xfa0] sm:$0xff]
  %v529 = vld [vmem:[%s1 + $0xfa8] sm:$0xff]
  %v530 = vld [vmem:[%s1 + $0xfb0] sm:$0xff]
  %v531 = vld [vmem:[%s1 + $0xfb8] sm:$0xff]
  %v532 = vld [vmem:[%s1 + $0xfc0] sm:$0xff]
  %v533 = vld [vmem:[%s1 + $0xfc8] sm:$0xff]
  %v534 = vld [vmem:[%s1 + $0xfd0] sm:$0xff]
  %v535 = vld [vmem:[%s1 + $0xfd8] sm:$0xff]
  %v536 = vld [vmem:[%s1 + $0xfe0] sm:$0xff]
  %v537 = vld [vmem:[%s1 + $0xfe8] sm:$0xff]
  %v538 = vld [vmem:[%s1 + $0xff0] sm:$0xff]
  %v539 = vld [vmem:[%s1 + $0xff8] sm:$0xff]
  %v540 = vld [vmem:[%s2] sm:$0xf]
  %v542 = vlaneseq
  %v543 = vshrl.u32 %v542, 7
  %v544 = vsub.s32 0, %v543
  %v545 = vrot.slane %v540, %v544
  %v546 = vlaneseq
  %v547 = vshrl.u32 %v546, 7
  %v548 = vsub.s32 1, %v547
  %v549 = vrot.slane %v540, %v548
  %v550 = vlaneseq
  %v551 = vshrl.u32 %v550, 7
  %v552 = vsub.s32 2, %v551
  %v553 = vrot.slane %v540, %v552
  %v554 = vlaneseq
  %v555 = vshrl.u32 %v554, 7
  %v556 = vsub.s32 3, %v555
  %v557 = vrot.slane %v540, %v556
  %562 = vmatprep.subr.mxu0 %v29
  %563 = vmatpush1.msra.mxu0 %v28
  %564 = vmatprep.subr.mxu0 %v33
  %565 = vmatpush1.msra.mxu0 %v32
  %566 = vmatprep.subr.mxu0 %v37
  %567 = vmatpush1.msra.mxu0 %v36
  %568 = vmatprep.subr.mxu0 %v41
  %569 = vmatpush1.msra.mxu0 %v40
  %570 = vmatprep.subr.mxu0 %v45
  %571 = vmatpush1.msra.mxu0 %v44
  %572 = vmatprep.subr.mxu0 %v49
  %573 = vmatpush1.msra.mxu0 %v48
  %574 = vmatprep.subr.mxu0 %v53
  %575 = vmatpush1.msra.mxu0 %v52
  %576 = vmatprep.subr.mxu0 %v57
  %577 = vmatpush1.msra.mxu0 %v56
  %578 = vmatprep.subr.mxu0 %v61
  %579 = vmatpush1.msra.mxu0 %v60
  %580 = vmatprep.subr.mxu0 %v65
  %581 = vmatpush1.msra.mxu0 %v64
  %582 = vmatprep.subr.mxu0 %v69
  %583 = vmatpush1.msra.mxu0 %v68
  %584 = vmatprep.subr.mxu0 %v73
  %585 = vmatpush1.msra.mxu0 %v72
  %586 = vmatprep.subr.mxu0 %v77
  %587 = vmatpush1.msra.mxu0 %v76
  %588 = vmatprep.subr.mxu0 %v81
  %589 = vmatpush1.msra.mxu0 %v80
  %590 = vmatprep.subr.mxu0 %v85
  %591 = vmatpush1.msra.mxu0 %v84
  %592 = vmatprep.subr.mxu0 %v89
  %593 = vmatpush1.msra.mxu0 %v88
  %594 = vmatprep.subr.mxu0 %v93
  %595 = vmatpush1.msra.mxu0 %v92
  %596 = vmatprep.subr.mxu0 %v97
  %597 = vmatpush1.msra.mxu0 %v96
  %598 = vmatprep.subr.mxu0 %v101
  %599 = vmatpush1.msra.mxu0 %v100
  %600 = vmatprep.subr.mxu0 %v105
  %601 = vmatpush1.msra.mxu0 %v104
  %602 = vmatprep.subr.mxu0 %v109
  %603 = vmatpush1.msra.mxu0 %v108
  %604 = vmatprep.subr.mxu0 %v113
  %605 = vmatpush1.msra.mxu0 %v112
  %606 = vmatprep.subr.mxu0 %v117
  %607 = vmatpush1.msra.mxu0 %v116
  %608 = vmatprep.subr.mxu0 %v121
  %609 = vmatpush1.msra.mxu0 %v120
  %610 = vmatprep.subr.mxu0 %v125
  %611 = vmatpush1.msra.mxu0 %v124
  %612 = vmatprep.subr.mxu0 %v129
  %613 = vmatpush1.msra.mxu0 %v128
  %614 = vmatprep.subr.mxu0 %v133
  %615 = vmatpush1.msra.mxu0 %v132
  %616 = vmatprep.subr.mxu0 %v137
  %617 = vmatpush1.msra.mxu0 %v136
  %618 = vmatprep.subr.mxu0 %v141
  %619 = vmatpush1.msra.mxu0 %v140
  %620 = vmatprep.subr.mxu0 %v145
  %621 = vmatpush1.msra.mxu0 %v144
  %622 = vmatprep.subr.mxu0 %v149
  %623 = vmatpush1.msra.mxu0 %v148
  %624 = vmatprep.subr.mxu0 %v153
  %625 = vmatpush1.msra.mxu0 %v152
  %626 = vmatprep.mubr.f32.mxu0 %v21
  %627 = vmatmul.mubr.f32.gmra.mrb[0].mxu0 %v20
  %v628 = vpop.f32.mrb[0].mxu0
  %v629 = vadd.f32 %v545, %v628
  %v630 = vpop.f32.mrb[0].mxu0
  %v631 = vadd.f32 %v549, %v630
  %632 = vdwg.mxu0
  %633 = vmatprep.subr.mxu0 %v157
  %634 = vmatpush1.msra.mxu0 %v156
  %635 = vmatprep.subr.mxu0 %v161
  %636 = vmatpush1.msra.mxu0 %v160
  %637 = vmatprep.subr.mxu0 %v165
  %638 = vmatpush1.msra.mxu0 %v164
  %639 = vmatprep.subr.mxu0 %v169
  %640 = vmatpush1.msra.mxu0 %v168
  %641 = vmatprep.subr.mxu0 %v173
  %642 = vmatpush1.msra.mxu0 %v172
  %643 = vmatprep.subr.mxu0 %v177
  %644 = vmatpush1.msra.mxu0 %v176
  %645 = vmatprep.subr.mxu0 %v181
  %646 = vmatpush1.msra.mxu0 %v180
  %647 = vmatprep.subr.mxu0 %v185
  %648 = vmatpush1.msra.mxu0 %v184
  %649 = vmatprep.subr.mxu0 %v189
  %650 = vmatpush1.msra.mxu0 %v188
  %651 = vmatprep.subr.mxu0 %v193
  %652 = vmatpush1.msra.mxu0 %v192
  %653 = vmatprep.subr.mxu0 %v197
  %654 = vmatpush1.msra.mxu0 %v196
  %655 = vmatprep.subr.mxu0 %v201
  %656 = vmatpush1.msra.mxu0 %v200
  %657 = vmatprep.subr.mxu0 %v205
  %658 = vmatpush1.msra.mxu0 %v204
  %659 = vmatprep.subr.mxu0 %v209
  %660 = vmatpush1.msra.mxu0 %v208
  %661 = vmatprep.subr.mxu0 %v213
  %662 = vmatpush1.msra.mxu0 %v212
  %663 = vmatprep.subr.mxu0 %v217
  %664 = vmatpush1.msra.mxu0 %v216
  %665 = vmatprep.subr.mxu0 %v221
  %666 = vmatpush1.msra.mxu0 %v220
  %667 = vmatprep.subr.mxu0 %v225
  %668 = vmatpush1.msra.mxu0 %v224
  %669 = vmatprep.subr.mxu0 %v229
  %670 = vmatpush1.msra.mxu0 %v228
  %671 = vmatprep.subr.mxu0 %v233
  %672 = vmatpush1.msra.mxu0 %v232
  %673 = vmatprep.subr.mxu0 %v237
  %674 = vmatpush1.msra.mxu0 %v236
  %675 = vmatprep.subr.mxu0 %v241
  %676 = vmatpush1.msra.mxu0 %v240
  %677 = vmatprep.subr.mxu0 %v245
  %678 = vmatpush1.msra.mxu0 %v244
  %679 = vmatprep.subr.mxu0 %v249
  %680 = vmatpush1.msra.mxu0 %v248
  %681 = vmatprep.subr.mxu0 %v253
  %682 = vmatpush1.msra.mxu0 %v252
  %683 = vmatprep.subr.mxu0 %v257
  %684 = vmatpush1.msra.mxu0 %v256
  %685 = vmatprep.subr.mxu0 %v261
  %686 = vmatpush1.msra.mxu0 %v260
  %687 = vmatprep.subr.mxu0 %v265
  %688 = vmatpush1.msra.mxu0 %v264
  %689 = vmatprep.subr.mxu0 %v269
  %690 = vmatpush1.msra.mxu0 %v268
  %691 = vmatprep.subr.mxu0 %v273
  %692 = vmatpush1.msra.mxu0 %v272
  %693 = vmatprep.subr.mxu0 %v277
  %694 = vmatpush1.msra.mxu0 %v276
  %695 = vmatprep.subr.mxu0 %v281
  %696 = vmatpush1.msra.mxu0 %v280
  %697 = vmatprep.mubr.f32.mxu0 %v23
  %698 = vmatmul.mubr.f32.gmra.mrb[0].mxu0 %v22
  %v699 = vpop.f32.mrb[0].mxu0
  %v700 = vadd.f32 %v629, %v699
  %v701 = vpop.f32.mrb[0].mxu0
  %v702 = vadd.f32 %v631, %v701
  %703 = vdwg.mxu0
  %704 = vmatprep.subr.mxu0 %v285
  %705 = vmatpush1.msra.mxu0 %v284
  %706 = vmatprep.subr.mxu0 %v289
  %707 = vmatpush1.msra.mxu0 %v288
  %708 = vmatprep.subr.mxu0 %v293
  %709 = vmatpush1.msra.mxu0 %v292
  %710 = vmatprep.subr.mxu0 %v297
  %711 = vmatpush1.msra.mxu0 %v296
  %712 = vmatprep.subr.mxu0 %v301
  %713 = vmatpush1.msra.mxu0 %v300
  %714 = vmatprep.subr.mxu0 %v305
  %715 = vmatpush1.msra.mxu0 %v304
  %716 = vmatprep.subr.mxu0 %v309
  %717 = vmatpush1.msra.mxu0 %v308
  %718 = vmatprep.subr.mxu0 %v313
  %719 = vmatpush1.msra.mxu0 %v312
  %720 = vmatprep.subr.mxu0 %v317
  %721 = vmatpush1.msra.mxu0 %v316
  %722 = vmatprep.subr.mxu0 %v321
  %723 = vmatpush1.msra.mxu0 %v320
  %724 = vmatprep.subr.mxu0 %v325
  %725 = vmatpush1.msra.mxu0 %v324
  %726 = vmatprep.subr.mxu0 %v329
  %727 = vmatpush1.msra.mxu0 %v328
  %728 = vmatprep.subr.mxu0 %v333
  %729 = vmatpush1.msra.mxu0 %v332
  %730 = vmatprep.subr.mxu0 %v337
  %731 = vmatpush1.msra.mxu0 %v336
  %732 = vmatprep.subr.mxu0 %v341
  %733 = vmatpush1.msra.mxu0 %v340
  %734 = vmatprep.subr.mxu0 %v345
  %735 = vmatpush1.msra.mxu0 %v344
  %736 = vmatprep.subr.mxu0 %v349
  %737 = vmatpush1.msra.mxu0 %v348
  %738 = vmatprep.subr.mxu0 %v353
  %739 = vmatpush1.msra.mxu0 %v352
  %740 = vmatprep.subr.mxu0 %v357
  %741 = vmatpush1.msra.mxu0 %v356
  %742 = vmatprep.subr.mxu0 %v361
  %743 = vmatpush1.msra.mxu0 %v360
  %744 = vmatprep.subr.mxu0 %v365
  %745 = vmatpush1.msra.mxu0 %v364
  %746 = vmatprep.subr.mxu0 %v369
  %747 = vmatpush1.msra.mxu0 %v368
  %748 = vmatprep.subr.mxu0 %v373
  %749 = vmatpush1.msra.mxu0 %v372
  %750 = vmatprep.subr.mxu0 %v377
  %751 = vmatpush1.msra.mxu0 %v376
  %752 = vmatprep.subr.mxu0 %v381
  %753 = vmatpush1.msra.mxu0 %v380
  %754 = vmatprep.subr.mxu0 %v385
  %755 = vmatpush1.msra.mxu0 %v384
  %756 = vmatprep.subr.mxu0 %v389
  %757 = vmatpush1.msra.mxu0 %v388
  %758 = vmatprep.subr.mxu0 %v393
  %759 = vmatpush1.msra.mxu0 %v392
  %760 = vmatprep.subr.mxu0 %v397
  %761 = vmatpush1.msra.mxu0 %v396
  %762 = vmatprep.subr.mxu0 %v401
  %763 = vmatpush1.msra.mxu0 %v400
  %764 = vmatprep.subr.mxu0 %v405
  %765 = vmatpush1.msra.mxu0 %v404
  %766 = vmatprep.subr.mxu0 %v409
  %767 = vmatpush1.msra.mxu0 %v408
  %768 = vmatprep.mubr.f32.mxu0 %v25
  %769 = vmatmul.mubr.f32.gmra.mrb[0].mxu0 %v24
  %v770 = vpop.f32.mrb[0].mxu0
  %v771 = vadd.f32 %v700, %v770
  %v772 = vpop.f32.mrb[0].mxu0
  %v773 = vadd.f32 %v702, %v772
  %774 = vdwg.mxu0
  %775 = vmatprep.subr.mxu0 %v413
  %776 = vmatpush1.msra.mxu0 %v412
  %777 = vmatprep.subr.mxu0 %v417
  %778 = vmatpush1.msra.mxu0 %v416
  %779 = vmatprep.subr.mxu0 %v421
  %780 = vmatpush1.msra.mxu0 %v420
  %781 = vmatprep.subr.mxu0 %v425
  %782 = vmatpush1.msra.mxu0 %v424
  %783 = vmatprep.subr.mxu0 %v429
  %784 = vmatpush1.msra.mxu0 %v428
  %785 = vmatprep.subr.mxu0 %v433
  %786 = vmatpush1.msra.mxu0 %v432
  %787 = vmatprep.subr.mxu0 %v437
  %788 = vmatpush1.msra.mxu0 %v436
  %789 = vmatprep.subr.mxu0 %v441
  %790 = vmatpush1.msra.mxu0 %v440
  %791 = vmatprep.subr.mxu0 %v445
  %792 = vmatpush1.msra.mxu0 %v444
  %793 = vmatprep.subr.mxu0 %v449
  %794 = vmatpush1.msra.mxu0 %v448
  %795 = vmatprep.subr.mxu0 %v453
  %796 = vmatpush1.msra.mxu0 %v452
  %797 = vmatprep.subr.mxu0 %v457
  %798 = vmatpush1.msra.mxu0 %v456
  %799 = vmatprep.subr.mxu0 %v461
  %800 = vmatpush1.msra.mxu0 %v460
  %801 = vmatprep.subr.mxu0 %v465
  %802 = vmatpush1.msra.mxu0 %v464
  %803 = vmatprep.subr.mxu0 %v469
  %804 = vmatpush1.msra.mxu0 %v468
  %805 = vmatprep.subr.mxu0 %v473
  %806 = vmatpush1.msra.mxu0 %v472
  %807 = vmatprep.subr.mxu0 %v477
  %808 = vmatpush1.msra.mxu0 %v476
  %809 = vmatprep.subr.mxu0 %v481
  %810 = vmatpush1.msra.mxu0 %v480
  %811 = vmatprep.subr.mxu0 %v485
  %812 = vmatpush1.msra.mxu0 %v484
  %813 = vmatprep.subr.mxu0 %v489
  %814 = vmatpush1.msra.mxu0 %v488
  %815 = vmatprep.subr.mxu0 %v493
  %816 = vmatpush1.msra.mxu0 %v492
  %817 = vmatprep.subr.mxu0 %v497
  %818 = vmatpush1.msra.mxu0 %v496
  %819 = vmatprep.subr.mxu0 %v501
  %820 = vmatpush1.msra.mxu0 %v500
  %821 = vmatprep.subr.mxu0 %v505
  %822 = vmatpush1.msra.mxu0 %v504
  %823 = vmatprep.subr.mxu0 %v509
  %824 = vmatpush1.msra.mxu0 %v508
  %825 = vmatprep.subr.mxu0 %v513
  %826 = vmatpush1.msra.mxu0 %v512
  %827 = vmatprep.subr.mxu0 %v517
  %828 = vmatpush1.msra.mxu0 %v516
  %829 = vmatprep.subr.mxu0 %v521
  %830 = vmatpush1.msra.mxu0 %v520
  %831 = vmatprep.subr.mxu0 %v525
  %832 = vmatpush1.msra.mxu0 %v524
  %833 = vmatprep.subr.mxu0 %v529
  %834 = vmatpush1.msra.mxu0 %v528
  %835 = vmatprep.subr.mxu0 %v533
  %836 = vmatpush1.msra.mxu0 %v532
  %837 = vmatprep.subr.mxu0 %v537
  %838 = vmatpush1.msra.mxu0 %v536
  %839 = vmatprep.mubr.f32.mxu0 %v27
  %840 = vmatmul.mubr.f32.gmra.mrb[0].mxu0 %v26
  %v841 = vpop.f32.mrb[0].mxu0
  %v842 = vadd.f32 %v771, %v841
  %v843 = vpop.f32.mrb[0].mxu0
  %v844 = vadd.f32 %v773, %v843
  %845 = vdwg.mxu0
  %846 = vmatprep.subr.mxu0 %v31
  %847 = vmatpush1.msra.mxu0 %v30
  %848 = vmatprep.subr.mxu0 %v35
  %849 = vmatpush1.msra.mxu0 %v34
  %850 = vmatprep.subr.mxu0 %v39
  %851 = vmatpush1.msra.mxu0 %v38
  %852 = vmatprep.subr.mxu0 %v43
  %853 = vmatpush1.msra.mxu0 %v42
  %854 = vmatprep.subr.mxu0 %v47
  %855 = vmatpush1.msra.mxu0 %v46
  %856 = vmatprep.subr.mxu0 %v51
  %857 = vmatpush1.msra.mxu0 %v50
  %858 = vmatprep.subr.mxu0 %v55
  %859 = vmatpush1.msra.mxu0 %v54
  %860 = vmatprep.subr.mxu0 %v59
  %861 = vmatpush1.msra.mxu0 %v58
  %862 = vmatprep.subr.mxu0 %v63
  %863 = vmatpush1.msra.mxu0 %v62
  %864 = vmatprep.subr.mxu0 %v67
  %865 = vmatpush1.msra.mxu0 %v66
  %866 = vmatprep.subr.mxu0 %v71
  %867 = vmatpush1.msra.mxu0 %v70
  %868 = vmatprep.subr.mxu0 %v75
  %869 = vmatpush1.msra.mxu0 %v74
  %870 = vmatprep.subr.mxu0 %v79
  %871 = vmatpush1.msra.mxu0 %v78
  %872 = vmatprep.subr.mxu0 %v83
  %873 = vmatpush1.msra.mxu0 %v82
  %874 = vmatprep.subr.mxu0 %v87
  %875 = vmatpush1.msra.mxu0 %v86
  %876 = vmatprep.subr.mxu0 %v91
  %877 = vmatpush1.msra.mxu0 %v90
  %878 = vmatprep.subr.mxu0 %v95
  %879 = vmatpush1.msra.mxu0 %v94
  %880 = vmatprep.subr.mxu0 %v99
  %881 = vmatpush1.msra.mxu0 %v98
  %882 = vmatprep.subr.mxu0 %v103
  %883 = vmatpush1.msra.mxu0 %v102
  %884 = vmatprep.subr.mxu0 %v107
  %885 = vmatpush1.msra.mxu0 %v106
  %886 = vmatprep.subr.mxu0 %v111
  %887 = vmatpush1.msra.mxu0 %v110
  %888 = vmatprep.subr.mxu0 %v115
  %889 = vmatpush1.msra.mxu0 %v114
  %890 = vmatprep.subr.mxu0 %v119
  %891 = vmatpush1.msra.mxu0 %v118
  %892 = vmatprep.subr.mxu0 %v123
  %893 = vmatpush1.msra.mxu0 %v122
  %894 = vmatprep.subr.mxu0 %v127
  %895 = vmatpush1.msra.mxu0 %v126
  %896 = vmatprep.subr.mxu0 %v131
  %897 = vmatpush1.msra.mxu0 %v130
  %898 = vmatprep.subr.mxu0 %v135
  %899 = vmatpush1.msra.mxu0 %v134
  %900 = vmatprep.subr.mxu0 %v139
  %901 = vmatpush1.msra.mxu0 %v138
  %902 = vmatprep.subr.mxu0 %v143
  %903 = vmatpush1.msra.mxu0 %v142
  %904 = vmatprep.subr.mxu0 %v147
  %905 = vmatpush1.msra.mxu0 %v146
  %906 = vmatprep.subr.mxu0 %v151
  %907 = vmatpush1.msra.mxu0 %v150
  %908 = vmatprep.subr.mxu0 %v155
  %909 = vmatpush1.msra.mxu0 %v154
  %910 = vmatprep.mubr.f32.mxu0 %v21
  %911 = vmatmul.mubr.f32.gmra.mrb[0].mxu0 %v20
  %v912 = vpop.f32.mrb[0].mxu0
  %v913 = vadd.f32 %v553, %v912
  %v914 = vpop.f32.mrb[0].mxu0
  %v915 = vadd.f32 %v557, %v914
  %916 = vdwg.mxu0
  %917 = vmatprep.subr.mxu0 %v159
  %918 = vmatpush1.msra.mxu0 %v158
  %919 = vmatprep.subr.mxu0 %v163
  %920 = vmatpush1.msra.mxu0 %v162
  %921 = vmatprep.subr.mxu0 %v167
  %922 = vmatpush1.msra.mxu0 %v166
  %923 = vmatprep.subr.mxu0 %v171
  %924 = vmatpush1.msra.mxu0 %v170
  %925 = vmatprep.subr.mxu0 %v175
  %926 = vmatpush1.msra.mxu0 %v174
  %927 = vmatprep.subr.mxu0 %v179
  %928 = vmatpush1.msra.mxu0 %v178
  %929 = vmatprep.subr.mxu0 %v183
  %930 = vmatpush1.msra.mxu0 %v182
  %931 = vmatprep.subr.mxu0 %v187
  %932 = vmatpush1.msra.mxu0 %v186
  %933 = vmatprep.subr.mxu0 %v191
  %934 = vmatpush1.msra.mxu0 %v190
  %935 = vmatprep.subr.mxu0 %v195
  %936 = vmatpush1.msra.mxu0 %v194
  %937 = vmatprep.subr.mxu0 %v199
  %938 = vmatpush1.msra.mxu0 %v198
  %939 = vmatprep.subr.mxu0 %v203
  %940 = vmatpush1.msra.mxu0 %v202
  %941 = vmatprep.subr.mxu0 %v207
  %942 = vmatpush1.msra.mxu0 %v206
  %943 = vmatprep.subr.mxu0 %v211
  %944 = vmatpush1.msra.mxu0 %v210
  %945 = vmatprep.subr.mxu0 %v215
  %946 = vmatpush1.msra.mxu0 %v214
  %947 = vmatprep.subr.mxu0 %v219
  %948 = vmatpush1.msra.mxu0 %v218
  %949 = vmatprep.subr.mxu0 %v223
  %950 = vmatpush1.msra.mxu0 %v222
  %951 = vmatprep.subr.mxu0 %v227
  %952 = vmatpush1.msra.mxu0 %v226
  %953 = vmatprep.subr.mxu0 %v231
  %954 = vmatpush1.msra.mxu0 %v230
  %955 = vmatprep.subr.mxu0 %v235
  %956 = vmatpush1.msra.mxu0 %v234
  %957 = vmatprep.subr.mxu0 %v239
  %958 = vmatpush1.msra.mxu0 %v238
  %959 = vmatprep.subr.mxu0 %v243
  %960 = vmatpush1.msra.mxu0 %v242
  %961 = vmatprep.subr.mxu0 %v247
  %962 = vmatpush1.msra.mxu0 %v246
  %963 = vmatprep.subr.mxu0 %v251
  %964 = vmatpush1.msra.mxu0 %v250
  %965 = vmatprep.subr.mxu0 %v255
  %966 = vmatpush1.msra.mxu0 %v254
  %967 = vmatprep.subr.mxu0 %v259
  %968 = vmatpush1.msra.mxu0 %v258
  %969 = vmatprep.subr.mxu0 %v263
  %970 = vmatpush1.msra.mxu0 %v262
  %971 = vmatprep.subr.mxu0 %v267
  %972 = vmatpush1.msra.mxu0 %v266
  %973 = vmatprep.subr.mxu0 %v271
  %974 = vmatpush1.msra.mxu0 %v270
  %975 = vmatprep.subr.mxu0 %v275
  %976 = vmatpush1.msra.mxu0 %v274
  %977 = vmatprep.subr.mxu0 %v279
  %978 = vmatpush1.msra.mxu0 %v278
  %979 = vmatprep.subr.mxu0 %v283
  %980 = vmatpush1.msra.mxu0 %v282
  %981 = vmatprep.mubr.f32.mxu0 %v23
  %982 = vmatmul.mubr.f32.gmra.mrb[0].mxu0 %v22
  %v983 = vpop.f32.mrb[0].mxu0
  %v984 = vadd.f32 %v913, %v983
  %v985 = vpop.f32.mrb[0].mxu0
  %v986 = vadd.f32 %v915, %v985
  %987 = vdwg.mxu0
  %988 = vmatprep.subr.mxu0 %v287
  %989 = vmatpush1.msra.mxu0 %v286
  %990 = vmatprep.subr.mxu0 %v291
  %991 = vmatpush1.msra.mxu0 %v290
  %992 = vmatprep.subr.mxu0 %v295
  %993 = vmatpush1.msra.mxu0 %v294
  %994 = vmatprep.subr.mxu0 %v299
  %995 = vmatpush1.msra.mxu0 %v298
  %996 = vmatprep.subr.mxu0 %v303
  %997 = vmatpush1.msra.mxu0 %v302
  %998 = vmatprep.subr.mxu0 %v307
  %999 = vmatpush1.msra.mxu0 %v306
  %1000 = vmatprep.subr.mxu0 %v311
  %1001 = vmatpush1.msra.mxu0 %v310
  %1002 = vmatprep.subr.mxu0 %v315
  %1003 = vmatpush1.msra.mxu0 %v314
  %1004 = vmatprep.subr.mxu0 %v319
  %1005 = vmatpush1.msra.mxu0 %v318
  %1006 = vmatprep.subr.mxu0 %v323
  %1007 = vmatpush1.msra.mxu0 %v322
  %1008 = vmatprep.subr.mxu0 %v327
  %1009 = vmatpush1.msra.mxu0 %v326
  %1010 = vmatprep.subr.mxu0 %v331
  %1011 = vmatpush1.msra.mxu0 %v330
  %1012 = vmatprep.subr.mxu0 %v335
  %1013 = vmatpush1.msra.mxu0 %v334
  %1014 = vmatprep.subr.mxu0 %v339
  %1015 = vmatpush1.msra.mxu0 %v338
  %1016 = vmatprep.subr.mxu0 %v343
  %1017 = vmatpush1.msra.mxu0 %v342
  %1018 = vmatprep.subr.mxu0 %v347
  %1019 = vmatpush1.msra.mxu0 %v346
  %1020 = vmatprep.subr.mxu0 %v351
  %1021 = vmatpush1.msra.mxu0 %v350
  %1022 = vmatprep.subr.mxu0 %v355
  %1023 = vmatpush1.msra.mxu0 %v354
  %1024 = vmatprep.subr.mxu0 %v359
  %1025 = vmatpush1.msra.mxu0 %v358
  %1026 = vmatprep.subr.mxu0 %v363
  %1027 = vmatpush1.msra.mxu0 %v362
  %1028 = vmatprep.subr.mxu0 %v367
  %1029 = vmatpush1.msra.mxu0 %v366
  %1030 = vmatprep.subr.mxu0 %v371
  %1031 = vmatpush1.msra.mxu0 %v370
  %1032 = vmatprep.subr.mxu0 %v375
  %1033 = vmatpush1.msra.mxu0 %v374
  %1034 = vmatprep.subr.mxu0 %v379
  %1035 = vmatpush1.msra.mxu0 %v378
  %1036 = vmatprep.subr.mxu0 %v383
  %1037 = vmatpush1.msra.mxu0 %v382
  %1038 = vmatprep.subr.mxu0 %v387
  %1039 = vmatpush1.msra.mxu0 %v386
  %1040 = vmatprep.subr.mxu0 %v391
  %1041 = vmatpush1.msra.mxu0 %v390
  %1042 = vmatprep.subr.mxu0 %v395
  %1043 = vmatpush1.msra.mxu0 %v394
  %1044 = vmatprep.subr.mxu0 %v399
  %1045 = vmatpush1.msra.mxu0 %v398
  %1046 = vmatprep.subr.mxu0 %v403
  %1047 = vmatpush1.msra.mxu0 %v402
  %1048 = vmatprep.subr.mxu0 %v407
  %1049 = vmatpush1.msra.mxu0 %v406
  %1050 = vmatprep.subr.mxu0 %v411
  %1051 = vmatpush1.msra.mxu0 %v410
  %1052 = vmatprep.mubr.f32.mxu0 %v25
  %1053 = vmatmul.mubr.f32.gmra.mrb[0].mxu0 %v24
  %v1054 = vpop.f32.mrb[0].mxu0
  %v1055 = vadd.f32 %v984, %v1054
  %v1056 = vpop.f32.mrb[0].mxu0
  %v1057 = vadd.f32 %v986, %v1056
  %1058 = vdwg.mxu0
  %1059 = vmatprep.subr.mxu0 %v415
  %1060 = vmatpush1.msra.mxu0 %v414
  %1061 = vmatprep.subr.mxu0 %v419
  %1062 = vmatpush1.msra.mxu0 %v418
  %1063 = vmatprep.subr.mxu0 %v423
  %1064 = vmatpush1.msra.mxu0 %v422
  %1065 = vmatprep.subr.mxu0 %v427
  %1066 = vmatpush1.msra.mxu0 %v426
  %1067 = vmatprep.subr.mxu0 %v431
  %1068 = vmatpush1.msra.mxu0 %v430
  %1069 = vmatprep.subr.mxu0 %v435
  %1070 = vmatpush1.msra.mxu0 %v434
  %1071 = vmatprep.subr.mxu0 %v439
  %1072 = vmatpush1.msra.mxu0 %v438
  %1073 = vmatprep.subr.mxu0 %v443
  %1074 = vmatpush1.msra.mxu0 %v442
  %1075 = vmatprep.subr.mxu0 %v447
  %1076 = vmatpush1.msra.mxu0 %v446
  %1077 = vmatprep.subr.mxu0 %v451
  %1078 = vmatpush1.msra.mxu0 %v450
  %1079 = vmatprep.subr.mxu0 %v455
  %1080 = vmatpush1.msra.mxu0 %v454
  %1081 = vmatprep.subr.mxu0 %v459
  %1082 = vmatpush1.msra.mxu0 %v458
  %1083 = vmatprep.subr.mxu0 %v463
  %1084 = vmatpush1.msra.mxu0 %v462
  %1085 = vmatprep.subr.mxu0 %v467
  %1086 = vmatpush1.msra.mxu0 %v466
  %1087 = vmatprep.subr.mxu0 %v471
  %1088 = vmatpush1.msra.mxu0 %v470
  %1089 = vmatprep.subr.mxu0 %v475
  %1090 = vmatpush1.msra.mxu0 %v474
  %1091 = vmatprep.subr.mxu0 %v479
  %1092 = vmatpush1.msra.mxu0 %v478
  %1093 = vmatprep.subr.mxu0 %v483
  %1094 = vmatpush1.msra.mxu0 %v482
  %1095 = vmatprep.subr.mxu0 %v487
  %1096 = vmatpush1.msra.mxu0 %v486
  %1097 = vmatprep.subr.mxu0 %v491
  %1098 = vmatpush1.msra.mxu0 %v490
  %1099 = vmatprep.subr.mxu0 %v495
  %1100 = vmatpush1.msra.mxu0 %v494
  %1101 = vmatprep.subr.mxu0 %v499
  %1102 = vmatpush1.msra.mxu0 %v498
  %1103 = vmatprep.subr.mxu0 %v503
  %1104 = vmatpush1.msra.mxu0 %v502
  %1105 = vmatprep.subr.mxu0 %v507
  %1106 = vmatpush1.msra.mxu0 %v506
  %1107 = vmatprep.subr.mxu0 %v511
  %1108 = vmatpush1.msra.mxu0 %v510
  %1109 = vmatprep.subr.mxu0 %v515
  %1110 = vmatpush1.msra.mxu0 %v514
  %1111 = vmatprep.subr.mxu0 %v519
  %1112 = vmatpush1.msra.mxu0 %v518
  %1113 = vmatprep.subr.mxu0 %v523
  %1114 = vmatpush1.msra.mxu0 %v522
  %1115 = vmatprep.subr.mxu0 %v527
  %1116 = vmatpush1.msra.mxu0 %v526
  %1117 = vmatprep.subr.mxu0 %v531
  %1118 = vmatpush1.msra.mxu0 %v530
  %1119 = vmatprep.subr.mxu0 %v535
  %1120 = vmatpush1.msra.mxu0 %v534
  %1121 = vmatprep.subr.mxu0 %v539
  %1122 = vmatpush1.msra.mxu0 %v538
  %1123 = vmatprep.mubr.f32.mxu0 %v27
  %1124 = vmatmul.mubr.f32.gmra.mrb[0].mxu0 %v26
  %v1125 = vpop.f32.mrb[0].mxu0
  %v1126 = vadd.f32 %v1055, %v1125
  %v1127 = vpop.f32.mrb[0].mxu0
  %v1128 = vadd.f32 %v1057, %v1127
  %1129 = vdwg.mxu0
  %v1130 = vmax.f32 %v842, 0.0
  %v1131 = vmax.f32 %v844, 0.0
  %v1132 = vmax.f32 %v1126, 0.0
  %v1133 = vmax.f32 %v1128, 0.0
  %v1134 = vld [vmem:[%s3] sm:$0xff]
  %v1135 = vld [vmem:[%s3 + $0x8] sm:$0xff]
  %v1136 = vld [vmem:[%s3 + $0x10] sm:$0xff]
  %v1137 = vld [vmem:[%s3 + $0x18] sm:$0xff]
  %v1138 = vld [vmem:[%s3 + $0x20] sm:$0xff]
  %v1139 = vld [vmem:[%s3 + $0x28] sm:$0xff]
  %v1140 = vld [vmem:[%s3 + $0x30] sm:$0xff]
  %v1141 = vld [vmem:[%s3 + $0x38] sm:$0xff]
  %v1142 = vld [vmem:[%s3 + $0x40] sm:$0xff]
  %v1143 = vld [vmem:[%s3 + $0x48] sm:$0xff]
  %v1144 = vld [vmem:[%s3 + $0x50] sm:$0xff]
  %v1145 = vld [vmem:[%s3 + $0x58] sm:$0xff]
  %v1146 = vld [vmem:[%s3 + $0x60] sm:$0xff]
  %v1147 = vld [vmem:[%s3 + $0x68] sm:$0xff]
  %v1148 = vld [vmem:[%s3 + $0x70] sm:$0xff]
  %v1149 = vld [vmem:[%s3 + $0x78] sm:$0xff]
  %v1150 = vld [vmem:[%s3 + $0x80] sm:$0xff]
  %v1151 = vld [vmem:[%s3 + $0x88] sm:$0xff]
  %v1152 = vld [vmem:[%s3 + $0x90] sm:$0xff]
  %v1153 = vld [vmem:[%s3 + $0x98] sm:$0xff]
  %v1154 = vld [vmem:[%s3 + $0xa0] sm:$0xff]
  %v1155 = vld [vmem:[%s3 + $0xa8] sm:$0xff]
  %v1156 = vld [vmem:[%s3 + $0xb0] sm:$0xff]
  %v1157 = vld [vmem:[%s3 + $0xb8] sm:$0xff]
  %v1158 = vld [vmem:[%s3 + $0xc0] sm:$0xff]
  %v1159 = vld [vmem:[%s3 + $0xc8] sm:$0xff]
  %v1160 = vld [vmem:[%s3 + $0xd0] sm:$0xff]
  %v1161 = vld [vmem:[%s3 + $0xd8] sm:$0xff]
  %v1162 = vld [vmem:[%s3 + $0xe0] sm:$0xff]
  %v1163 = vld [vmem:[%s3 + $0xe8] sm:$0xff]
  %v1164 = vld [vmem:[%s3 + $0xf0] sm:$0xff]
  %v1165 = vld [vmem:[%s3 + $0xf8] sm:$0xff]
  %v1166 = vld [vmem:[%s3 + $0x100] sm:$0xff]
  %v1167 = vld [vmem:[%s3 + $0x108] sm:$0xff]
  %v1168 = vld [vmem:[%s3 + $0x110] sm:$0xff]
  %v1169 = vld [vmem:[%s3 + $0x118] sm:$0xff]
  %v1170 = vld [vmem:[%s3 + $0x120] sm:$0xff]
  %v1171 = vld [vmem:[%s3 + $0x128] sm:$0xff]
  %v1172 = vld [vmem:[%s3 + $0x130] sm:$0xff]
  %v1173 = vld [vmem:[%s3 + $0x138] sm:$0xff]
  %v1174 = vld [vmem:[%s3 + $0x140] sm:$0xff]
  %v1175 = vld [vmem:[%s3 + $0x148] sm:$0xff]
  %v1176 = vld [vmem:[%s3 + $0x150] sm:$0xff]
  %v1177 = vld [vmem:[%s3 + $0x158] sm:$0xff]
  %v1178 = vld [vmem:[%s3 + $0x160] sm:$0xff]
  %v1179 = vld [vmem:[%s3 + $0x168] sm:$0xff]
  %v1180 = vld [vmem:[%s3 + $0x170] sm:$0xff]
  %v1181 = vld [vmem:[%s3 + $0x178] sm:$0xff]
  %v1182 = vld [vmem:[%s3 + $0x180] sm:$0xff]
  %v1183 = vld [vmem:[%s3 + $0x188] sm:$0xff]
  %v1184 = vld [vmem:[%s3 + $0x190] sm:$0xff]
  %v1185 = vld [vmem:[%s3 + $0x198] sm:$0xff]
  %v1186 = vld [vmem:[%s3 + $0x1a0] sm:$0xff]
  %v1187 = vld [vmem:[%s3 + $0x1a8] sm:$0xff]
  %v1188 = vld [vmem:[%s3 + $0x1b0] sm:$0xff]
  %v1189 = vld [vmem:[%s3 + $0x1b8] sm:$0xff]
  %v1190 = vld [vmem:[%s3 + $0x1c0] sm:$0xff]
  %v1191 = vld [vmem:[%s3 + $0x1c8] sm:$0xff]
  %v1192 = vld [vmem:[%s3 + $0x1d0] sm:$0xff]
  %v1193 = vld [vmem:[%s3 + $0x1d8] sm:$0xff]
  %v1194 = vld [vmem:[%s3 + $0x1e0] sm:$0xff]
  %v1195 = vld [vmem:[%s3 + $0x1e8] sm:$0xff]
  %v1196 = vld [vmem:[%s3 + $0x1f0] sm:$0xff]
  %v1197 = vld [vmem:[%s3 + $0x1f8] sm:$0xff]
  %v1198 = vld [vmem:[%s4] sm:$0x1]
  %v1200 = vlaneseq
  %v1201 = vshrl.u32 %v1200, 7
  %v1202 = vsub.s32 0, %v1201
  %v1203 = vrot.slane %v1198, %v1202
  %1205 = vmatprep.subr.mxu0 0.0
  %1206 = vmatpush1.msra.mxu0 %v1134
  %1207 = vmatprep.subr.mxu0 0.0
  %1208 = vmatpush1.msra.mxu0 %v1135
  %1209 = vmatprep.subr.mxu0 0.0
  %1210 = vmatpush1.msra.mxu0 %v1136
  %1211 = vmatprep.subr.mxu0 0.0
  %1212 = vmatpush1.msra.mxu0 %v1137
  %1213 = vmatprep.subr.mxu0 0.0
  %1214 = vmatpush1.msra.mxu0 %v1138
  %1215 = vmatprep.subr.mxu0 0.0
  %1216 = vmatpush1.msra.mxu0 %v1139
  %1217 = vmatprep.subr.mxu0 0.0
  %1218 = vmatpush1.msra.mxu0 %v1140
  %1219 = vmatprep.subr.mxu0 0.0
  %1220 = vmatpush1.msra.mxu0 %v1141
  %1221 = vmatprep.subr.mxu0 0.0
  %1222 = vmatpush1.msra.mxu0 %v1142
  %1223 = vmatprep.subr.mxu0 0.0
  %1224 = vmatpush1.msra.mxu0 %v1143
  %1225 = vmatprep.subr.mxu0 0.0
  %1226 = vmatpush1.msra.mxu0 %v1144
  %1227 = vmatprep.subr.mxu0 0.0
  %1228 = vmatpush1.msra.mxu0 %v1145
  %1229 = vmatprep.subr.mxu0 0.0
  %1230 = vmatpush1.msra.mxu0 %v1146
  %1231 = vmatprep.subr.mxu0 0.0
  %1232 = vmatpush1.msra.mxu0 %v1147
  %1233 = vmatprep.subr.mxu0 0.0
  %1234 = vmatpush1.msra.mxu0 %v1148
  %1235 = vmatprep.subr.mxu0 0.0
  %1236 = vmatpush1.msra.mxu0 %v1149
  %1237 = vmatprep.subr.mxu0 0.0
  %1238 = vmatpush1.msra.mxu0 %v1150
  %1239 = vmatprep.subr.mxu0 0.0
  %1240 = vmatpush1.msra.mxu0 %v1151
  %1241 = vmatprep.subr.mxu0 0.0
  %1242 = vmatpush1.msra.mxu0 %v1152
  %1243 = vmatprep.subr.mxu0 0.0
  %1244 = vmatpush1.msra.mxu0 %v1153
  %1245 = vmatprep.subr.mxu0 0.0
  %1246 = vmatpush1.msra.mxu0 %v1154
  %1247 = vmatprep.subr.mxu0 0.0
  %1248 = vmatpush1.msra.mxu0 %v1155
  %1249 = vmatprep.subr.mxu0 0.0
  %1250 = vmatpush1.msra.mxu0 %v1156
  %1251 = vmatprep.subr.mxu0 0.0
  %1252 = vmatpush1.msra.mxu0 %v1157
  %1253 = vmatprep.subr.mxu0 0.0
  %1254 = vmatpush1.msra.mxu0 %v1158
  %1255 = vmatprep.subr.mxu0 0.0
  %1256 = vmatpush1.msra.mxu0 %v1159
  %1257 = vmatprep.subr.mxu0 0.0
  %1258 = vmatpush1.msra.mxu0 %v1160
  %1259 = vmatprep.subr.mxu0 0.0
  %1260 = vmatpush1.msra.mxu0 %v1161
  %1261 = vmatprep.subr.mxu0 0.0
  %1262 = vmatpush1.msra.mxu0 %v1162
  %1263 = vmatprep.subr.mxu0 0.0
  %1264 = vmatpush1.msra.mxu0 %v1163
  %1265 = vmatprep.subr.mxu0 0.0
  %1266 = vmatpush1.msra.mxu0 %v1164
  %1267 = vmatprep.subr.mxu0 0.0
  %1268 = vmatpush1.msra.mxu0 %v1165
  %1269 = vmatprep.mubr.f32.mxu0 %v1131
  %1270 = vmatmul.mubr.f32.gmra.mrb[0].mxu0 %v1130
  %v1271 = vpop.f32.mrb[0].mxu0
  %v1272 = vadd.f32 %v1203, %v1271
  %v1273 = vpop.f32.mrb[0].mxu0
  %1274 = vdwg.mxu0
  %1275 = vmatprep.subr.mxu0 0.0
  %1276 = vmatpush1.msra.mxu0 %v1166
  %1277 = vmatprep.subr.mxu0 0.0
  %1278 = vmatpush1.msra.mxu0 %v1167
  %1279 = vmatprep.subr.mxu0 0.0
  %1280 = vmatpush1.msra.mxu0 %v1168
  %1281 = vmatprep.subr.mxu0 0.0
  %1282 = vmatpush1.msra.mxu0 %v1169
  %1283 = vmatprep.subr.mxu0 0.0
  %1284 = vmatpush1.msra.mxu0 %v1170
  %1285 = vmatprep.subr.mxu0 0.0
  %1286 = vmatpush1.msra.mxu0 %v1171
  %1287 = vmatprep.subr.mxu0 0.0
  %1288 = vmatpush1.msra.mxu0 %v1172
  %1289 = vmatprep.subr.mxu0 0.0
  %1290 = vmatpush1.msra.mxu0 %v1173
  %1291 = vmatprep.subr.mxu0 0.0
  %1292 = vmatpush1.msra.mxu0 %v1174
  %1293 = vmatprep.subr.mxu0 0.0
  %1294 = vmatpush1.msra.mxu0 %v1175
  %1295 = vmatprep.subr.mxu0 0.0
  %1296 = vmatpush1.msra.mxu0 %v1176
  %1297 = vmatprep.subr.mxu0 0.0
  %1298 = vmatpush1.msra.mxu0 %v1177
  %1299 = vmatprep.subr.mxu0 0.0
  %1300 = vmatpush1.msra.mxu0 %v1178
  %1301 = vmatprep.subr.mxu0 0.0
  %1302 = vmatpush1.msra.mxu0 %v1179
  %1303 = vmatprep.subr.mxu0 0.0
  %1304 = vmatpush1.msra.mxu0 %v1180
  %1305 = vmatprep.subr.mxu0 0.0
  %1306 = vmatpush1.msra.mxu0 %v1181
  %1307 = vmatprep.subr.mxu0 0.0
  %1308 = vmatpush1.msra.mxu0 %v1182
  %1309 = vmatprep.subr.mxu0 0.0
  %1310 = vmatpush1.msra.mxu0 %v1183
  %1311 = vmatprep.subr.mxu0 0.0
  %1312 = vmatpush1.msra.mxu0 %v1184
  %1313 = vmatprep.subr.mxu0 0.0
  %1314 = vmatpush1.msra.mxu0 %v1185
  %1315 = vmatprep.subr.mxu0 0.0
  %1316 = vmatpush1.msra.mxu0 %v1186
  %1317 = vmatprep.subr.mxu0 0.0
  %1318 = vmatpush1.msra.mxu0 %v1187
  %1319 = vmatprep.subr.mxu0 0.0
  %1320 = vmatpush1.msra.mxu0 %v1188
  %1321 = vmatprep.subr.mxu0 0.0
  %1322 = vmatpush1.msra.mxu0 %v1189
  %1323 = vmatprep.subr.mxu0 0.0
  %1324 = vmatpush1.msra.mxu0 %v1190
  %1325 = vmatprep.subr.mxu0 0.0
  %1326 = vmatpush1.msra.mxu0 %v1191
  %1327 = vmatprep.subr.mxu0 0.0
  %1328 = vmatpush1.msra.mxu0 %v1192
  %1329 = vmatprep.subr.mxu0 0.0
  %1330 = vmatpush1.msra.mxu0 %v1193
  %1331 = vmatprep.subr.mxu0 0.0
  %1332 = vmatpush1.msra.mxu0 %v1194
  %1333 = vmatprep.subr.mxu0 0.0
  %1334 = vmatpush1.msra.mxu0 %v1195
  %1335 = vmatprep.subr.mxu0 0.0
  %1336 = vmatpush1.msra.mxu0 %v1196
  %1337 = vmatprep.subr.mxu0 0.0
  %1338 = vmatpush1.msra.mxu0 %v1197
  %1339 = vmatprep.mubr.f32.mxu0 %v1133
  %1340 = vmatmul.mubr.f32.gmra.mrb[0].mxu0 %v1132
  %v1341 = vpop.f32.mrb[0].mxu0
  %v1342 = vadd.f32 %v1272, %v1341
  %v1343 = vpop.f32.mrb[0].mxu0
  %1344 = vdwg.mxu0
  %1345 = vst [vmem:[%s5] sm:$0xff] %v1342
  // Predicated region
  $region22: #{fedavg_cnn_forward.5} parent=0 // pred_check
    _
  $region23: #{fedavg_cnn_forward.5} parent=0 // pred_check_branch
    %1347 = sbr.rel (0) target = $region25
  $region24: #{fedavg_cnn_forward.5} parent=0 // pred_region
    _
  $region25: #{fedavg_cnn_forward.5} parent=0 // pred_fallthru
    _
  // Predicated region
  $region26: #{fedavg_cnn_forward.5} parent=0 // pred_check
    _
  $region27: #{fedavg_cnn_forward.5} parent=0 // pred_check_branch
    %1349 = sbr.rel (0) target = $region29
  $region28: #{fedavg_cnn_forward.5} parent=0 // pred_region
    _
  $region29: #{fedavg_cnn_forward.5} parent=0 // pred_fallthru
    _

</llo_original>
